<compile_context>
chip_gen: v5e
topology: v5e:2x2
jax: 0.10.0
libtpu: 0.0.40
codegen_flags: <defaults>
</compile_context>

<pallas_src>
import functools

import jax
import jax.numpy as jnp
import numpy as np
from jax.experimental import pallas as pl
from jax.experimental.pallas import tpu as pltpu

EPS = 1e-5
C_IN = 3
C_IN_PAD = 8            # pad the 3 input channels to 8 only (NOT 128)
C1, C2, C3 = 64, 128, 1024
OUT_PAD = 128           # lane-dense head output width; real outputs live in [:, :9]
_STRIP = 256            # column-strip width for the h3 epilogue
_MB = 1024 * 1024


def _pick_tile_n(n, preferred):
    """Largest convenient point-tile that divides n (multiples of 8, big first).
    Falls back to one full-length block per batch element (legal: a full-dim
    block need not be a multiple of 8, it just pipelines worse)."""
    for cand in (preferred, 4096, 2048, 1024, 512, 256, 128, 64, 32, 16, 8):
        if cand <= n and n % cand == 0:
            return cand
    # TODO(synk): for awkward N with no multiple-of-8 divisor, pad N to a
    # multiple of 256 and mask pad rows out of the BN stats / pool instead.
    return n


# ---------------------------------------------------------------------------
# Kernel 1: bn2 statistics pass (conv1 -> bn1/relu -> conv2, per-batch sums)
# ---------------------------------------------------------------------------
def stats_kernel(x_ref, w1_ref, s1_ref, t1_ref, w2_ref, sum2_ref, sq2_ref):
    f32 = jnp.float32
    ti = pl.program_id(1)   # point tile inside this batch element

    @pl.when(ti == 0)
    def _init():
        sum2_ref[...] = jnp.zeros_like(sum2_ref)
        sq2_ref[...] = jnp.zeros_like(sq2_ref)

    # conv biases feeding training-mode BN cancel exactly -> no bias adds here.
    h1 = jnp.dot(x_ref[...], w1_ref[...], preferred_element_type=f32)
    a1 = jnp.maximum(h1 * s1_ref[...] + t1_ref[...], 0.0)
    h2 = jnp.dot(a1.astype(w2_ref.dtype), w2_ref[...], preferred_element_type=f32)

    sum2_ref[...] += jnp.sum(h2, axis=0, keepdims=True)
    sq2_ref[...] += jnp.sum(h2 * h2, axis=0, keepdims=True)


# ---------------------------------------------------------------------------
# Kernel 2: main encoder pass (conv1..conv3, bn3 stats + per-batch max/min pool)
# ---------------------------------------------------------------------------
def encoder_kernel(x_ref, w1_ref, s1_ref, t1_ref, w2_ref, s2_ref, t2_ref, w3_ref,
                   pmax_ref, pmin_ref, sum3_ref, sq3_ref):
    f32 = jnp.float32
    ti = pl.program_id(1)

    @pl.when(ti == 0)
    def _init():
        pmax_ref[...] = jnp.full(pmax_ref.shape, -jnp.inf, f32)
        pmin_ref[...] = jnp.full(pmin_ref.shape, jnp.inf, f32)
        sum3_ref[...] = jnp.zeros_like(sum3_ref)
        sq3_ref[...] = jnp.zeros_like(sq3_ref)

    h1 = jnp.dot(x_ref[...], w1_ref[...], preferred_element_type=f32)
    a1 = jnp.maximum(h1 * s1_ref[...] + t1_ref[...], 0.0)
    h2 = jnp.dot(a1.astype(w2_ref.dtype), w2_ref[...], preferred_element_type=f32)
    a2 = jnp.maximum(h2 * s2_ref[...] + t2_ref[...], 0.0)
    h3 = jnp.dot(a2.astype(w3_ref.dtype), w3_ref[...],
                 preferred_element_type=f32)                     # (tile_n, 1024)

    # sum_n h3 = (sum_n a2) @ w3  -> offload the big column-sum to the MXU
    # (a tiny (1,128)@(128,1024) matmul) instead of another full VPU sweep.
    colsum_a2 = jnp.sum(a2, axis=0, keepdims=True)               # (1, 128) f32
    sum3_ref[...] += jnp.dot(colsum_a2.astype(w3_ref.dtype), w3_ref[...],
                             preferred_element_type=f32)

    # Strip-mined epilogue: each h3 column strip is read once and feeds the
    # sumsq / max / min accumulators together (cuts vld traffic vs separate
    # full-tile reductions).
    for s in range(0, C3, _STRIP):
        hc = h3[:, s:s + _STRIP]
        sq3_ref[:, s:s + _STRIP] += jnp.sum(hc * hc, axis=0, keepdims=True)
        pmax_ref[:, s:s + _STRIP] = jnp.maximum(
            pmax_ref[:, s:s + _STRIP], jnp.max(hc, axis=0, keepdims=True))
        pmin_ref[:, s:s + _STRIP] = jnp.minimum(
            pmin_ref[:, s:s + _STRIP], jnp.min(hc, axis=0, keepdims=True))


# ---------------------------------------------------------------------------
# Kernel 3: bn3 on pooled features + FC head (tiny, single VMEM block)
# ---------------------------------------------------------------------------
def head_kernel(pmax_ref, pmin_ref, sum3_ref, sq3_ref, g3_ref, be3_ref,
                fw1_ref, g4_ref, be4_ref,
                fw2_ref, g5_ref, be5_ref,
                fw3_ref, fb3_ref,
                o_ref, *, n_points_total):
    f32 = jnp.float32
    inv_cnt = 1.0 / float(n_points_total)

    # Finalize bn3 and apply it *after* the pool (exact for either sign of scale).
    m3 = sum3_ref[...] * inv_cnt
    v3 = jnp.maximum(sq3_ref[...] * inv_cnt - m3 * m3, 0.0)
    s3 = g3_ref[...] * jax.lax.rsqrt(v3 + EPS)
    t3 = be3_ref[...] - m3 * s3
    pooled = jnp.maximum(
        jnp.where(s3 >= 0.0, s3 * pmax_ref[...] + t3, s3 * pmin_ref[...] + t3), 0.0)

    def fc_bn_relu(h, w_ref, g_ref, be_ref):
        # fc bias feeding training-mode BN cancels exactly -> omitted.
        z = jnp.dot(h.astype(w_ref.dtype), w_ref[...], preferred_element_type=f32)
        mean = jnp.mean(z, axis=0, keepdims=True)            # BN over the batch dim
        var = jnp.maximum(jnp.mean(z * z, axis=0, keepdims=True) - mean * mean, 0.0)
        s = g_ref[...] * jax.lax.rsqrt(var + EPS)
        return jnp.maximum(z * s + (be_ref[...] - mean * s), 0.0)

    h = fc_bn_relu(pooled, fw1_ref, g4_ref, be4_ref)          # (B, 512)
    h = fc_bn_relu(h, fw2_ref, g5_ref, be5_ref)               # (B, 256)
    h = jnp.dot(h.astype(fw3_ref.dtype), fw3_ref[...],
                preferred_element_type=f32) + fb3_ref[...]    # (B, 128)

    # + eye(3).view(1, 9): ones at (lane-dense, padded) columns 0, 4, 8.
    col = jax.lax.broadcasted_iota(jnp.int32, h.shape, 1)
    iden = jnp.where((col < 9) & (col % 4 == 0), 1.0, 0.0).astype(h.dtype)
    o_ref[...] = h + iden


# ---------------------------------------------------------------------------
# Wrapper
# ---------------------------------------------------------------------------
@functools.partial(jax.jit, static_argnames=("compute_dtype", "tile_n"))
def stn3d_forward(x, params, *, compute_dtype=jnp.bfloat16, tile_n=2048):
    """x: (B, 3, N) float32 (PyTorch NCL layout).  Returns (B, 3, 3) float32."""
    B, C, N = x.shape
    assert C == C_IN
    p = params
    f32 = jnp.float32
    x = x.astype(f32)
    total = B * N
    inv_total = 1.0 / float(total)

    # ---- bn1 analytically from exact f32 input moments (no encoder pass) ----
    w1f = p["w1"]                                         # (3, 64)
    xsum = jnp.sum(x, axis=(0, 2))                        # (3,)
    xxsum = jnp.einsum("bcn,bdn->cd", x, x)               # (3, 3)
    mean1 = (xsum @ w1f) * inv_total                      # (64,)
    ex2_1 = jnp.einsum("kc,kl,lc->c", w1f, xxsum, w1f) * inv_total
    var1 = jnp.maximum(ex2_1 - mean1 * mean1, 0.0)
    s1 = p["g1"] * jax.lax.rsqrt(var1 + EPS)              # (1, 64)
    t1 = p["be1"] - mean1 * s1                            # b1 cancels under BN

    # ---- channels-last, 3->8-padded, compute-dtype input & conv weights ----
    xt = jnp.transpose(x, (0, 2, 1))
    xt = jnp.pad(xt, ((0, 0), (0, 0), (0, C_IN_PAD - C_IN))).astype(compute_dtype)
    w1 = jnp.pad(w1f, ((0, C_IN_PAD - C_IN), (0, 0))).astype(compute_dtype)
    w2 = p["w2"].astype(compute_dtype)
    w3 = p["w3"].astype(compute_dtype)

    tn = _pick_tile_n(N, tile_n)
    n_tiles = N // tn

    vmem = pl.BlockSpec(memory_space=pltpu.MemorySpace.VMEM)
    x_spec = pl.BlockSpec((None, tn, C_IN_PAD), lambda bb, tt: (bb, tt, 0))
    # Per-batch partial-stat / pool output blocks are indexed solely by the
    # batch axis, so the batch axis can be "parallel" (v7x megacore); only the
    # point-tile axis carries the sequential accumulation.
    sem = ("parallel", "arbitrary")

    # ---- pass A: bn2 statistics (per-batch partials, reduced by XLA below) ----
    stat2_spec = pl.BlockSpec((None, 1, C2), lambda bb, tt: (bb, 0, 0))
    sum2, sq2 = pl.pallas_call(
        stats_kernel,
        grid=(B, n_tiles),
        in_specs=[x_spec, vmem, vmem, vmem, vmem],
        out_specs=(stat2_spec, stat2_spec),
        out_shape=(jax.ShapeDtypeStruct((B, 1, C2), f32),
                   jax.ShapeDtypeStruct((B, 1, C2), f32)),
        compiler_params=pltpu.CompilerParams(
            dimension_semantics=sem, vmem_limit_bytes=16 * _MB),
    )(xt, w1, s1, t1, w2)

    mean2 = jnp.sum(sum2, axis=0) * inv_total              # (1, 128)
    var2 = jnp.maximum(jnp.sum(sq2, axis=0) * inv_total - mean2 * mean2, 0.0)
    s2 = p["g2"] * jax.lax.rsqrt(var2 + EPS)
    t2 = p["be2"] - mean2 * s2                             # b2 cancels under BN

    # ---- pass B: conv1..conv3, bn3 stats + per-batch max/min pool ----
    stat3_spec = pl.BlockSpec((None, 1, C3), lambda bb, tt: (bb, 0, 0))
    pmax, pmin, sum3, sq3 = pl.pallas_call(
        encoder_kernel,
        grid=(B, n_tiles),
        in_specs=[x_spec] + [vmem] * 7,
        out_specs=(stat3_spec,) * 4,
        out_shape=tuple(jax.ShapeDtypeStruct((B, 1, C3), f32) for _ in range(4)),
        compiler_params=pltpu.CompilerParams(
            dimension_semantics=sem, vmem_limit_bytes=32 * _MB),
    )(xt, w1, s1, t1, w2, s2, t2, w3)

    sum3_tot = jnp.sum(sum3, axis=0)                       # (1, 1024)
    sq3_tot = jnp.sum(sq3, axis=0)                         # (1, 1024)

    # ---- head: bn3-after-pool + fc1/bn4/fc2/bn5/fc3 ----
    fw1 = p["fw1"].astype(compute_dtype)
    fw2 = p["fw2"].astype(compute_dtype)
    fw3 = jnp.pad(p["fw3"], ((0, 0), (0, OUT_PAD - 9)))    # lane-dense output
    fb3 = jnp.pad(p["fb3"], ((0, 0), (0, OUT_PAD - 9)))

    out128 = pl.pallas_call(
        functools.partial(head_kernel, n_points_total=total),
        in_specs=[vmem] * 14,
        out_specs=vmem,
        out_shape=jax.ShapeDtypeStruct((B, OUT_PAD), f32),
        compiler_params=pltpu.CompilerParams(vmem_limit_bytes=16 * _MB),
    )(pmax.reshape(B, C3), pmin.reshape(B, C3), sum3_tot, sq3_tot,
      p["g3"], p["be3"],
      fw1, p["g4"], p["be4"],
      fw2, p["g5"], p["be5"],
      fw3, fb3)

    return out128[:, :9].reshape(B, 3, 3)


# ---------------------------------------------------------------------------
# Parameters + pure-JAX reference (PyTorch forward, training-mode BatchNorm)
# ---------------------------------------------------------------------------
def init_params():
    keys = iter(jax.random.split(jax.random.PRNGKey(42), 40))

    def nrm(shape, scale):
        return jax.random.normal(next(keys), shape, jnp.float32) * scale

    p = {}
    p["w1"], p["b1"] = nrm((3, 64), 0.30), nrm((1, 64), 0.10)
    p["w2"], p["b2"] = nrm((64, 128), 0.10), nrm((1, 128), 0.10)
    p["w3"], p["b3"] = nrm((128, 1024), 0.08), nrm((1, 1024), 0.10)
    p["fw1"], p["fb1"] = nrm((1024, 512), 0.03), nrm((1, 512), 0.10)
    p["fw2"], p["fb2"] = nrm((512, 256), 0.04), nrm((1, 256), 0.10)
    p["fw3"], p["fb3"] = nrm((256, 9), 0.05), nrm((1, 9), 0.05)
    for name, c in (("1", 64), ("2", 128), ("3", 1024), ("4", 512), ("5", 256)):
        p["g" + name] = 1.0 + nrm((1, c), 0.05)
        p["be" + name] = nrm((1, c), 0.05)
    return p


def stn3d_ref(x, p):
    """PyTorch-faithful reference INCLUDING all conv/fc biases (they cancel
    exactly inside training-mode BatchNorm, which the Pallas path exploits)."""
    B = x.shape[0]

    def bn_relu(h, g, b, axes):
        m = jnp.mean(h, axis=axes, keepdims=True)
        v = jnp.mean((h - m) ** 2, axis=axes, keepdims=True)
        return jnp.maximum((h - m) / jnp.sqrt(v + EPS) * g + b, 0.0)

    h = jnp.transpose(x, (0, 2, 1))                     # (B, N, 3)
    h = bn_relu(h @ p["w1"] + p["b1"], p["g1"], p["be1"], (0, 1))
    h = bn_relu(h @ p["w2"] + p["b2"], p["g2"], p["be2"], (0, 1))
    h = bn_relu(h @ p["w3"] + p["b3"], p["g3"], p["be3"], (0, 1))
    h = jnp.max(h, axis=1)                              # (B, 1024)
    h = bn_relu(h @ p["fw1"] + p["fb1"], p["g4"], p["be4"], (0,))
    h = bn_relu(h @ p["fw2"] + p["fb2"], p["g5"], p["be5"], (0,))
    h = h @ p["fw3"] + p["fb3"]                         # (B, 9)
    h = h + jnp.eye(3, dtype=h.dtype).reshape(1, 9)
    return h.reshape(B, 3, 3)


if __name__ == "__main__":
    B, C, N = 2, 3, 512                     # small point cloud; grid = (2, 1)
    x = jax.random.normal(jax.random.PRNGKey(0), (B, C, N), jnp.float32)
    params = init_params()

    # Strict correctness check: f32 conv-stack vs the PyTorch-faithful reference.
    out_f32 = jax.block_until_ready(
        stn3d_forward(x, params, compute_dtype=jnp.float32))
    assert out_f32.shape == (B, 3, 3) and out_f32.dtype == jnp.float32
    ref = stn3d_ref(x, params)
    np.testing.assert_allclose(np.asarray(out_f32), np.asarray(ref),
                               atol=2e-2, rtol=2e-2)

    # Default path: bf16 matmul operands (halves HBM/VMEM bytes, ~2-3x MXU rate
    # on v6e/v7x); BN statistics / normalization stay f32.  Smoke-run + finite.
    out = jax.block_until_ready(stn3d_forward(x, params))
    assert out.shape == (B, 3, 3) and bool(jnp.all(jnp.isfinite(out)))

    print("KERNEL_OK")
</pallas_src>

<mosaic_0001>
module attributes {stable_mosaic.version = 11 : i64} {
  func.func @stats_kernel(%arg0: i32, %arg1: i32, %arg2: memref<1x512x8xf32, #tpu.memory_space<vmem>>, %arg3: memref<8x64xf32, #tpu.memory_space<vmem>>, %arg4: memref<1x64xf32, #tpu.memory_space<vmem>>, %arg5: memref<1x64xf32, #tpu.memory_space<vmem>>, %arg6: memref<64x128xf32, #tpu.memory_space<vmem>>, %arg7: memref<1x1x128xf32, #tpu.memory_space<vmem>>, %arg8: memref<1x1x128xf32, #tpu.memory_space<vmem>>) attributes {dimension_semantics = [#tpu.dimension_semantics<parallel>, #tpu.dimension_semantics<arbitrary>], iteration_bounds = array<i64: 2, 1>, scalar_prefetch = 0 : i64, scratch_operands = 0 : i64, tpu.core_type = #tpu.core_type<tc>, window_params = [{transform_indices = @transform_0, window_bounds = array<i64: 1, 512, 8>}, {pipeline_mode = #tpu.pipeline_mode<synchronous>, transform_indices = @transform_1, window_bounds = array<i64: 8, 64>}, {pipeline_mode = #tpu.pipeline_mode<synchronous>, transform_indices = @transform_2, window_bounds = array<i64: 1, 64>}, {pipeline_mode = #tpu.pipeline_mode<synchronous>, transform_indices = @transform_3, window_bounds = array<i64: 1, 64>}, {pipeline_mode = #tpu.pipeline_mode<synchronous>, transform_indices = @transform_4, window_bounds = array<i64: 64, 128>}, {transform_indices = @transform_5, window_bounds = array<i64: 1, 1, 128>}, {transform_indices = @transform_6, window_bounds = array<i64: 1, 1, 128>}]} {
    %c0_i32 = arith.constant 0 : i32
    %0 = arith.cmpi eq, %arg1, %c0_i32 : i32
    %1 = arith.extui %0 : i1 to i32
    %c0_i32_0 = arith.constant 0 : i32
    %2 = arith.cmpi ne, %1, %c0_i32_0 : i32
    scf.if %2 {
      %cst_27 = arith.constant 0.000000e+00 : f32
      %34 = vector.broadcast %cst_27 : f32 to vector<1x128xf32>
      %c0_28 = arith.constant 0 : index
      %c0_29 = arith.constant 0 : index
      %c0_30 = arith.constant 0 : index
      %35 = vector.load %arg7[%c0_28, %c0_29, %c0_30] : memref<1x1x128xf32, #tpu.memory_space<vmem>>, vector<1x1x128xf32>
      %36 = vector.shape_cast %35 : vector<1x1x128xf32> to vector<1x128xf32>
      %37 = vector.shape_cast %34 : vector<1x128xf32> to vector<1x1x128xf32>
      tpu.vector_store %arg7[%c0_28, %c0_29, %c0_30], %37 {strides = array<i32>} : memref<1x1x128xf32, #tpu.memory_space<vmem>>, vector<1x1x128xf32>,
      %cst_31 = arith.constant 0.000000e+00 : f32
      %38 = vector.broadcast %cst_31 : f32 to vector<1x128xf32>
      %c0_32 = arith.constant 0 : index
      %c0_33 = arith.constant 0 : index
      %c0_34 = arith.constant 0 : index
      %39 = vector.load %arg8[%c0_32, %c0_33, %c0_34] : memref<1x1x128xf32, #tpu.memory_space<vmem>>, vector<1x1x128xf32>
      %40 = vector.shape_cast %39 : vector<1x1x128xf32> to vector<1x128xf32>
      %41 = vector.shape_cast %38 : vector<1x128xf32> to vector<1x1x128xf32>
      tpu.vector_store %arg8[%c0_32, %c0_33, %c0_34], %41 {strides = array<i32>} : memref<1x1x128xf32, #tpu.memory_space<vmem>>, vector<1x1x128xf32>,
    } else {
    }
    %c0 = arith.constant 0 : index
    %c0_1 = arith.constant 0 : index
    %c0_2 = arith.constant 0 : index
    %3 = vector.load %arg2[%c0, %c0_1, %c0_2] : memref<1x512x8xf32, #tpu.memory_space<vmem>>, vector<1x512x8xf32>
    %4 = vector.shape_cast %3 : vector<1x512x8xf32> to vector<512x8xf32>
    %c0_3 = arith.constant 0 : index
    %c0_4 = arith.constant 0 : index
    %5 = vector.load %arg3[%c0_3, %c0_4] : memref<8x64xf32, #tpu.memory_space<vmem>>, vector<8x64xf32>
    %cst = arith.constant dense<0.000000e+00> : vector<512x64xf32>
    %6 = tpu.matmul %4, %5, %cst {dimension_numbers = #tpu.dot_dimension_numbers<[1], [0], [0], [1], [0, 0, 1, 1], [], []>} : vector<512x8xf32>, vector<8x64xf32>, vector<512x64xf32> -> vector<512x64xf32>
    %c0_5 = arith.constant 0 : index
    %c0_6 = arith.constant 0 : index
    %7 = vector.load %arg4[%c0_5, %c0_6] : memref<1x64xf32, #tpu.memory_space<vmem>>, vector<1x64xf32>
    %8 = vector.broadcast %7 : vector<1x64xf32> to vector<512x64xf32>
    %9 = arith.mulf %6, %8 : vector<512x64xf32>
    %c0_7 = arith.constant 0 : index
    %c0_8 = arith.constant 0 : index
    %10 = vector.load %arg5[%c0_7, %c0_8] : memref<1x64xf32, #tpu.memory_space<vmem>>, vector<1x64xf32>
    %11 = vector.broadcast %10 : vector<1x64xf32> to vector<512x64xf32>
    %12 = arith.addf %9, %11 : vector<512x64xf32>
    %cst_9 = arith.constant 0.000000e+00 : f32
    %13 = vector.broadcast %cst_9 : f32 to vector<512x64xf32>
    %14 = arith.maximumf %12, %13 : vector<512x64xf32>
    %c0_10 = arith.constant 0 : index
    %c0_11 = arith.constant 0 : index
    %15 = vector.load %arg6[%c0_10, %c0_11] : memref<64x128xf32, #tpu.memory_space<vmem>>, vector<64x128xf32>
    %cst_12 = arith.constant dense<0.000000e+00> : vector<512x128xf32>
    %16 = tpu.matmul %14, %15, %cst_12 {dimension_numbers = #tpu.dot_dimension_numbers<[1], [0], [0], [1], [0, 0, 1, 1], [], []>} : vector<512x64xf32>, vector<64x128xf32>, vector<512x128xf32> -> vector<512x128xf32>
    %c0_13 = arith.constant 0 : index
    %c0_14 = arith.constant 0 : index
    %c0_15 = arith.constant 0 : index
    %17 = vector.load %arg7[%c0_13, %c0_14, %c0_15] : memref<1x1x128xf32, #tpu.memory_space<vmem>>, vector<1x1x128xf32>
    %18 = vector.shape_cast %17 : vector<1x1x128xf32> to vector<1x128xf32>
    %cst_16 = arith.constant dense<0.000000e+00> : vector<128xf32>
    %19 = vector.multi_reduction <add>, %16, %cst_16 [0] : vector<512x128xf32> to vector<128xf32>
    %20 = vector.shape_cast %19 : vector<128xf32> to vector<1x128xf32>
    %21 = arith.addf %18, %20 : vector<1x128xf32>
    %c0_17 = arith.constant 0 : index
    %c0_18 = arith.constant 0 : index
    %c0_19 = arith.constant 0 : index
    %22 = vector.load %arg7[%c0_17, %c0_18, %c0_19] : memref<1x1x128xf32, #tpu.memory_space<vmem>>, vector<1x1x128xf32>
    %23 = vector.shape_cast %22 : vector<1x1x128xf32> to vector<1x128xf32>
    %24 = vector.shape_cast %21 : vector<1x128xf32> to vector<1x1x128xf32>
    tpu.vector_store %arg7[%c0_17, %c0_18, %c0_19], %24 {strides = array<i32>} : memref<1x1x128xf32, #tpu.memory_space<vmem>>, vector<1x1x128xf32>,
    %c0_20 = arith.constant 0 : index
    %c0_21 = arith.constant 0 : index
    %c0_22 = arith.constant 0 : index
    %25 = vector.load %arg8[%c0_20, %c0_21, %c0_22] : memref<1x1x128xf32, #tpu.memory_space<vmem>>, vector<1x1x128xf32>
    %26 = vector.shape_cast %25 : vector<1x1x128xf32> to vector<1x128xf32>
    %27 = arith.mulf %16, %16 : vector<512x128xf32>
    %cst_23 = arith.constant dense<0.000000e+00> : vector<128xf32>
    %28 = vector.multi_reduction <add>, %27, %cst_23 [0] : vector<512x128xf32> to vector<128xf32>
    %29 = vector.shape_cast %28 : vector<128xf32> to vector<1x128xf32>
    %30 = arith.addf %26, %29 : vector<1x128xf32>
    %c0_24 = arith.constant 0 : index
    %c0_25 = arith.constant 0 : index
    %c0_26 = arith.constant 0 : index
    %31 = vector.load %arg8[%c0_24, %c0_25, %c0_26] : memref<1x1x128xf32, #tpu.memory_space<vmem>>, vector<1x1x128xf32>
    %32 = vector.shape_cast %31 : vector<1x1x128xf32> to vector<1x128xf32>
    %33 = vector.shape_cast %30 : vector<1x128xf32> to vector<1x1x128xf32>
    tpu.vector_store %arg8[%c0_24, %c0_25, %c0_26], %33 {strides = array<i32>} : memref<1x1x128xf32, #tpu.memory_space<vmem>>, vector<1x1x128xf32>,
    return
  }
  func.func @transform_0(%arg0: i32, %arg1: i32) -> (i32, i32, i32) {
    %c0_i32 = arith.constant 0 : i32
    %c0_i32_0 = arith.constant 0 : i32
    return %arg0, %arg1, %c0_i32 : i32, i32, i32
  }
  func.func @transform_1(%arg0: i32, %arg1: i32) -> (i32, i32) {
    %c0_i32 = arith.constant 0 : i32
    %c0_i32_0 = arith.constant 0 : i32
    %c0_i32_1 = arith.constant 0 : i32
    return %c0_i32, %c0_i32_0 : i32, i32
  }
  func.func @transform_2(%arg0: i32, %arg1: i32) -> (i32, i32) {
    %c0_i32 = arith.constant 0 : i32
    %c0_i32_0 = arith.constant 0 : i32
    %c0_i32_1 = arith.constant 0 : i32
    return %c0_i32, %c0_i32_0 : i32, i32
  }
  func.func @transform_3(%arg0: i32, %arg1: i32) -> (i32, i32) {
    %c0_i32 = arith.constant 0 : i32
    %c0_i32_0 = arith.constant 0 : i32
    %c0_i32_1 = arith.constant 0 : i32
    return %c0_i32, %c0_i32_0 : i32, i32
  }
  func.func @transform_4(%arg0: i32, %arg1: i32) -> (i32, i32) {
    %c0_i32 = arith.constant 0 : i32
    %c0_i32_0 = arith.constant 0 : i32
    %c0_i32_1 = arith.constant 0 : i32
    return %c0_i32, %c0_i32_0 : i32, i32
  }
  func.func @transform_5(%arg0: i32, %arg1: i32) -> (i32, i32, i32) {
    %c0_i32 = arith.constant 0 : i32
    %c0_i32_0 = arith.constant 0 : i32
    %c0_i32_1 = arith.constant 0 : i32
    return %arg0, %c0_i32, %c0_i32_0 : i32, i32, i32
  }
  func.func @transform_6(%arg0: i32, %arg1: i32) -> (i32, i32, i32) {
    %c0_i32 = arith.constant 0 : i32
    %c0_i32_0 = arith.constant 0 : i32
    %c0_i32_1 = arith.constant 0 : i32
    return %arg0, %c0_i32, %c0_i32_0 : i32, i32, i32
  }
}

module attributes {stable_mosaic.version = 11 : i64} {
  func.func @encoder_kernel(%arg0: i32, %arg1: i32, %arg2: memref<1x512x8xf32, #tpu.memory_space<vmem>>, %arg3: memref<8x64xf32, #tpu.memory_space<vmem>>, %arg4: memref<1x64xf32, #tpu.memory_space<vmem>>, %arg5: memref<1x64xf32, #tpu.memory_space<vmem>>, %arg6: memref<64x128xf32, #tpu.memory_space<vmem>>, %arg7: memref<1x128xf32, #tpu.memory_space<vmem>>, %arg8: memref<1x128xf32, #tpu.memory_space<vmem>>, %arg9: memref<128x1024xf32, #tpu.memory_space<vmem>>, %arg10: memref<1x1x1024xf32, #tpu.memory_space<vmem>>, %arg11: memref<1x1x1024xf32, #tpu.memory_space<vmem>>, %arg12: memref<1x1x1024xf32, #tpu.memory_space<vmem>>, %arg13: memref<1x1x1024xf32, #tpu.memory_space<vmem>>) attributes {dimension_semantics = [#tpu.dimension_semantics<parallel>, #tpu.dimension_semantics<arbitrary>], iteration_bounds = array<i64: 2, 1>, scalar_prefetch = 0 : i64, scratch_operands = 0 : i64, tpu.core_type = #tpu.core_type<tc>, window_params = [{transform_indices = @transform_0, window_bounds = array<i64: 1, 512, 8>}, {pipeline_mode = #tpu.pipeline_mode<synchronous>, transform_indices = @transform_1, window_bounds = array<i64: 8, 64>}, {pipeline_mode = #tpu.pipeline_mode<synchronous>, transform_indices = @transform_2, window_bounds = array<i64: 1, 64>}, {pipeline_mode = #tpu.pipeline_mode<synchronous>, transform_indices = @transform_3, window_bounds = array<i64: 1, 64>}, {pipeline_mode = #tpu.pipeline_mode<synchronous>, transform_indices = @transform_4, window_bounds = array<i64: 64, 128>}, {pipeline_mode = #tpu.pipeline_mode<synchronous>, transform_indices = @transform_5, window_bounds = array<i64: 1, 128>}, {pipeline_mode = #tpu.pipeline_mode<synchronous>, transform_indices = @transform_6, window_bounds = array<i64: 1, 128>}, {pipeline_mode = #tpu.pipeline_mode<synchronous>, transform_indices = @transform_7, window_bounds = array<i64: 128, 1024>}, {transform_indices = @transform_8, window_bounds = array<i64: 1, 1, 1024>}, {transform_indices = @transform_9, window_bounds = array<i64: 1, 1, 1024>}, {transform_indices = @transform_10, window_bounds = array<i64: 1, 1, 1024>}, {transform_indices = @transform_11, window_bounds = array<i64: 1, 1, 1024>}]} {
    %c0_i32 = arith.constant 0 : i32
    %0 = arith.cmpi eq, %arg1, %c0_i32 : i32
    %1 = arith.extui %0 : i1 to i32
    %c0_i32_0 = arith.constant 0 : i32
    %2 = arith.cmpi ne, %1, %c0_i32_0 : i32
    scf.if %2 {
      %cst_112 = arith.constant 0xFF800000 : f32
      %141 = vector.broadcast %cst_112 : f32 to vector<1x1024xf32>
      %c0_113 = arith.constant 0 : index
      %c0_114 = arith.constant 0 : index
      %c0_115 = arith.constant 0 : index
      %142 = vector.load %arg10[%c0_113, %c0_114, %c0_115] : memref<1x1x1024xf32, #tpu.memory_space<vmem>>, vector<1x1x1024xf32>
      %143 = vector.shape_cast %142 : vector<1x1x1024xf32> to vector<1x1024xf32>
      %144 = vector.shape_cast %141 : vector<1x1024xf32> to vector<1x1x1024xf32>
      tpu.vector_store %arg10[%c0_113, %c0_114, %c0_115], %144 {strides = array<i32>} : memref<1x1x1024xf32, #tpu.memory_space<vmem>>, vector<1x1x1024xf32>,
      %cst_116 = arith.constant 0x7F800000 : f32
      %145 = vector.broadcast %cst_116 : f32 to vector<1x1024xf32>
      %c0_117 = arith.constant 0 : index
      %c0_118 = arith.constant 0 : index
      %c0_119 = arith.constant 0 : index
      %146 = vector.load %arg11[%c0_117, %c0_118, %c0_119] : memref<1x1x1024xf32, #tpu.memory_space<vmem>>, vector<1x1x1024xf32>
      %147 = vector.shape_cast %146 : vector<1x1x1024xf32> to vector<1x1024xf32>
      %148 = vector.shape_cast %145 : vector<1x1024xf32> to vector<1x1x1024xf32>
      tpu.vector_store %arg11[%c0_117, %c0_118, %c0_119], %148 {strides = array<i32>} : memref<1x1x1024xf32, #tpu.memory_space<vmem>>, vector<1x1x1024xf32>,
      %cst_120 = arith.constant 0.000000e+00 : f32
      %149 = vector.broadcast %cst_120 : f32 to vector<1x1024xf32>
      %c0_121 = arith.constant 0 : index
      %c0_122 = arith.constant 0 : index
      %c0_123 = arith.constant 0 : index
      %150 = vector.load %arg12[%c0_121, %c0_122, %c0_123] : memref<1x1x1024xf32, #tpu.memory_space<vmem>>, vector<1x1x1024xf32>
      %151 = vector.shape_cast %150 : vector<1x1x1024xf32> to vector<1x1024xf32>
      %152 = vector.shape_cast %149 : vector<1x1024xf32> to vector<1x1x1024xf32>
      tpu.vector_store %arg12[%c0_121, %c0_122, %c0_123], %152 {strides = array<i32>} : memref<1x1x1024xf32, #tpu.memory_space<vmem>>, vector<1x1x1024xf32>,
      %cst_124 = arith.constant 0.000000e+00 : f32
      %153 = vector.broadcast %cst_124 : f32 to vector<1x1024xf32>
      %c0_125 = arith.constant 0 : index
      %c0_126 = arith.constant 0 : index
      %c0_127 = arith.constant 0 : index
      %154 = vector.load %arg13[%c0_125, %c0_126, %c0_127] : memref<1x1x1024xf32, #tpu.memory_space<vmem>>, vector<1x1x1024xf32>
      %155 = vector.shape_cast %154 : vector<1x1x1024xf32> to vector<1x1024xf32>
      %156 = vector.shape_cast %153 : vector<1x1024xf32> to vector<1x1x1024xf32>
      tpu.vector_store %arg13[%c0_125, %c0_126, %c0_127], %156 {strides = array<i32>} : memref<1x1x1024xf32, #tpu.memory_space<vmem>>, vector<1x1x1024xf32>,
    } else {
    }
    %c0 = arith.constant 0 : index
    %c0_1 = arith.constant 0 : index
    %c0_2 = arith.constant 0 : index
    %3 = vector.load %arg2[%c0, %c0_1, %c0_2] : memref<1x512x8xf32, #tpu.memory_space<vmem>>, vector<1x512x8xf32>
    %4 = vector.shape_cast %3 : vector<1x512x8xf32> to vector<512x8xf32>
    %c0_3 = arith.constant 0 : index
    %c0_4 = arith.constant 0 : index
    %5 = vector.load %arg3[%c0_3, %c0_4] : memref<8x64xf32, #tpu.memory_space<vmem>>, vector<8x64xf32>
    %cst = arith.constant dense<0.000000e+00> : vector<512x64xf32>
    %6 = tpu.matmul %4, %5, %cst {dimension_numbers = #tpu.dot_dimension_numbers<[1], [0], [0], [1], [0, 0, 1, 1], [], []>} : vector<512x8xf32>, vector<8x64xf32>, vector<512x64xf32> -> vector<512x64xf32>
    %c0_5 = arith.constant 0 : index
    %c0_6 = arith.constant 0 : index
    %7 = vector.load %arg4[%c0_5, %c0_6] : memref<1x64xf32, #tpu.memory_space<vmem>>, vector<1x64xf32>
    %8 = vector.broadcast %7 : vector<1x64xf32> to vector<512x64xf32>
    %9 = arith.mulf %6, %8 : vector<512x64xf32>
    %c0_7 = arith.constant 0 : index
    %c0_8 = arith.constant 0 : index
    %10 = vector.load %arg5[%c0_7, %c0_8] : memref<1x64xf32, #tpu.memory_space<vmem>>, vector<1x64xf32>
    %11 = vector.broadcast %10 : vector<1x64xf32> to vector<512x64xf32>
    %12 = arith.addf %9, %11 : vector<512x64xf32>
    %cst_9 = arith.constant 0.000000e+00 : f32
    %13 = vector.broadcast %cst_9 : f32 to vector<512x64xf32>
    %14 = arith.maximumf %12, %13 : vector<512x64xf32>
    %c0_10 = arith.constant 0 : index
    %c0_11 = arith.constant 0 : index
    %15 = vector.load %arg6[%c0_10, %c0_11] : memref<64x128xf32, #tpu.memory_space<vmem>>, vector<64x128xf32>
    %cst_12 = arith.constant dense<0.000000e+00> : vector<512x128xf32>
    %16 = tpu.matmul %14, %15, %cst_12 {dimension_numbers = #tpu.dot_dimension_numbers<[1], [0], [0], [1], [0, 0, 1, 1], [], []>} : vector<512x64xf32>, vector<64x128xf32>, vector<512x128xf32> -> vector<512x128xf32>
    %c0_13 = arith.constant 0 : index
    %c0_14 = arith.constant 0 : index
    %17 = vector.load %arg7[%c0_13, %c0_14] : memref<1x128xf32, #tpu.memory_space<vmem>>, vector<1x128xf32>
    %18 = vector.broadcast %17 : vector<1x128xf32> to vector<512x128xf32>
    %19 = arith.mulf %16, %18 : vector<512x128xf32>
    %c0_15 = arith.constant 0 : index
    %c0_16 = arith.constant 0 : index
    %20 = vector.load %arg8[%c0_15, %c0_16] : memref<1x128xf32, #tpu.memory_space<vmem>>, vector<1x128xf32>
    %21 = vector.broadcast %20 : vector<1x128xf32> to vector<512x128xf32>
    %22 = arith.addf %19, %21 : vector<512x128xf32>
    %cst_17 = arith.constant 0.000000e+00 : f32
    %23 = vector.broadcast %cst_17 : f32 to vector<512x128xf32>
    %24 = arith.maximumf %22, %23 : vector<512x128xf32>
    %c0_18 = arith.constant 0 : index
    %c0_19 = arith.constant 0 : index
    %25 = vector.load %arg9[%c0_18, %c0_19] : memref<128x1024xf32, #tpu.memory_space<vmem>>, vector<128x1024xf32>
    %cst_20 = arith.constant dense<0.000000e+00> : vector<512x1024xf32>
    %26 = tpu.matmul %24, %25, %cst_20 {dimension_numbers = #tpu.dot_dimension_numbers<[1], [0], [0], [1], [0, 0, 1, 1], [], []>} : vector<512x128xf32>, vector<128x1024xf32>, vector<512x1024xf32> -> vector<512x1024xf32>
    %cst_21 = arith.constant dense<0.000000e+00> : vector<128xf32>
    %27 = vector.multi_reduction <add>, %24, %cst_21 [0] : vector<512x128xf32> to vector<128xf32>
    %28 = vector.shape_cast %27 : vector<128xf32> to vector<1x128xf32>
    %c0_22 = arith.constant 0 : index
    %c0_23 = arith.constant 0 : index
    %c0_24 = arith.constant 0 : index
    %29 = vector.load %arg12[%c0_22, %c0_23, %c0_24] : memref<1x1x1024xf32, #tpu.memory_space<vmem>>, vector<1x1x1024xf32>
    %30 = vector.shape_cast %29 : vector<1x1x1024xf32> to vector<1x1024xf32>
    %c0_25 = arith.constant 0 : index
    %c0_26 = arith.constant 0 : index
    %31 = vector.load %arg9[%c0_25, %c0_26] : memref<128x1024xf32, #tpu.memory_space<vmem>>, vector<128x1024xf32>
    %cst_27 = arith.constant dense<0.000000e+00> : vector<1x1024xf32>
    %32 = tpu.matmul %28, %31, %cst_27 {dimension_numbers = #tpu.dot_dimension_numbers<[1], [0], [0], [1], [0, 0, 1, 1], [], []>} : vector<1x128xf32>, vector<128x1024xf32>, vector<1x1024xf32> -> vector<1x1024xf32>
    %33 = arith.addf %30, %32 : vector<1x1024xf32>
    %c0_28 = arith.constant 0 : index
    %c0_29 = arith.constant 0 : index
    %c0_30 = arith.constant 0 : index
    %34 = vector.load %arg12[%c0_28, %c0_29, %c0_30] : memref<1x1x1024xf32, #tpu.memory_space<vmem>>, vector<1x1x1024xf32>
    %35 = vector.shape_cast %34 : vector<1x1x1024xf32> to vector<1x1024xf32>
    %36 = vector.shape_cast %33 : vector<1x1024xf32> to vector<1x1x1024xf32>
    tpu.vector_store %arg12[%c0_28, %c0_29, %c0_30], %36 {strides = array<i32>} : memref<1x1x1024xf32, #tpu.memory_space<vmem>>, vector<1x1x1024xf32>,
    %37 = vector.extract_strided_slice %26 {offsets = [0, 0], sizes = [512, 256], strides = [1, 1]} : vector<512x1024xf32> to vector<512x256xf32>
    %c0_31 = arith.constant 0 : index
    %c0_32 = arith.constant 0 : index
    %c0_33 = arith.constant 0 : index
    %38 = vector.load %arg13[%c0_31, %c0_32, %c0_33] : memref<1x1x1024xf32, #tpu.memory_space<vmem>>, vector<1x1x256xf32>
    %39 = vector.shape_cast %38 : vector<1x1x256xf32> to vector<1x256xf32>
    %40 = arith.mulf %37, %37 : vector<512x256xf32>
    %cst_34 = arith.constant dense<0.000000e+00> : vector<256xf32>
    %41 = vector.multi_reduction <add>, %40, %cst_34 [0] : vector<512x256xf32> to vector<256xf32>
    %42 = vector.shape_cast %41 : vector<256xf32> to vector<1x256xf32>
    %43 = arith.addf %39, %42 : vector<1x256xf32>
    %c0_35 = arith.constant 0 : index
    %c0_36 = arith.constant 0 : index
    %c0_37 = arith.constant 0 : index
    %44 = vector.load %arg13[%c0_35, %c0_36, %c0_37] : memref<1x1x1024xf32, #tpu.memory_space<vmem>>, vector<1x1x256xf32>
    %45 = vector.shape_cast %44 : vector<1x1x256xf32> to vector<1x256xf32>
    %46 = vector.shape_cast %43 : vector<1x256xf32> to vector<1x1x256xf32>
    tpu.vector_store %arg13[%c0_35, %c0_36, %c0_37], %46 {strides = array<i32>} : memref<1x1x1024xf32, #tpu.memory_space<vmem>>, vector<1x1x256xf32>,
    %c0_38 = arith.constant 0 : index
    %c0_39 = arith.constant 0 : index
    %c0_40 = arith.constant 0 : index
    %47 = vector.load %arg10[%c0_38, %c0_39, %c0_40] : memref<1x1x1024xf32, #tpu.memory_space<vmem>>, vector<1x1x256xf32>
    %48 = vector.shape_cast %47 : vector<1x1x256xf32> to vector<1x256xf32>
    %cst_41 = arith.constant dense<0xFF800000> : vector<256xf32>
    %49 = vector.multi_reduction <maximumf>, %37, %cst_41 [0] : vector<512x256xf32> to vector<256xf32>
    %50 = vector.shape_cast %49 : vector<256xf32> to vector<1x256xf32>
    %51 = arith.maximumf %48, %50 : vector<1x256xf32>
    %c0_42 = arith.constant 0 : index
    %c0_43 = arith.constant 0 : index
    %c0_44 = arith.constant 0 : index
    %52 = vector.load %arg10[%c0_42, %c0_43, %c0_44] : memref<1x1x1024xf32, #tpu.memory_space<vmem>>, vector<1x1x256xf32>
    %53 = vector.shape_cast %52 : vector<1x1x256xf32> to vector<1x256xf32>
    %54 = vector.shape_cast %51 : vector<1x256xf32> to vector<1x1x256xf32>
    tpu.vector_store %arg10[%c0_42, %c0_43, %c0_44], %54 {strides = array<i32>} : memref<1x1x1024xf32, #tpu.memory_space<vmem>>, vector<1x1x256xf32>,
    %c0_45 = arith.constant 0 : index
    %c0_46 = arith.constant 0 : index
    %c0_47 = arith.constant 0 : index
    %55 = vector.load %arg11[%c0_45, %c0_46, %c0_47] : memref<1x1x1024xf32, #tpu.memory_space<vmem>>, vector<1x1x256xf32>
    %56 = vector.shape_cast %55 : vector<1x1x256xf32> to vector<1x256xf32>
    %cst_48 = arith.constant dense<0x7F800000> : vector<256xf32>
    %57 = vector.multi_reduction <minimumf>, %37, %cst_48 [0] : vector<512x256xf32> to vector<256xf32>
    %58 = vector.shape_cast %57 : vector<256xf32> to vector<1x256xf32>
    %59 = arith.minimumf %56, %58 : vector<1x256xf32>
    %c0_49 = arith.constant 0 : index
    %c0_50 = arith.constant 0 : index
    %c0_51 = arith.constant 0 : index
    %60 = vector.load %arg11[%c0_49, %c0_50, %c0_51] : memref<1x1x1024xf32, #tpu.memory_space<vmem>>, vector<1x1x256xf32>
    %61 = vector.shape_cast %60 : vector<1x1x256xf32> to vector<1x256xf32>
    %62 = vector.shape_cast %59 : vector<1x256xf32> to vector<1x1x256xf32>
    tpu.vector_store %arg11[%c0_49, %c0_50, %c0_51], %62 {strides = array<i32>} : memref<1x1x1024xf32, #tpu.memory_space<vmem>>, vector<1x1x256xf32>,
    %63 = vector.extract_strided_slice %26 {offsets = [0, 256], sizes = [512, 256], strides = [1, 1]} : vector<512x1024xf32> to vector<512x256xf32>
    %c0_52 = arith.constant 0 : index
    %c0_53 = arith.constant 0 : index
    %c256 = arith.constant 256 : index
    %64 = vector.load %arg13[%c0_52, %c0_53, %c256] : memref<1x1x1024xf32, #tpu.memory_space<vmem>>, vector<1x1x256xf32>
    %65 = vector.shape_cast %64 : vector<1x1x256xf32> to vector<1x256xf32>
    %66 = arith.mulf %63, %63 : vector<512x256xf32>
    %cst_54 = arith.constant dense<0.000000e+00> : vector<256xf32>
    %67 = vector.multi_reduction <add>, %66, %cst_54 [0] : vector<512x256xf32> to vector<256xf32>
    %68 = vector.shape_cast %67 : vector<256xf32> to vector<1x256xf32>
    %69 = arith.addf %65, %68 : vector<1x256xf32>
    %c0_55 = arith.constant 0 : index
    %c0_56 = arith.constant 0 : index
    %c256_57 = arith.constant 256 : index
    %70 = vector.load %arg13[%c0_55, %c0_56, %c256_57] : memref<1x1x1024xf32, #tpu.memory_space<vmem>>, vector<1x1x256xf32>
    %71 = vector.shape_cast %70 : vector<1x1x256xf32> to vector<1x256xf32>
    %72 = vector.shape_cast %69 : vector<1x256xf32> to vector<1x1x256xf32>
    tpu.vector_store %arg13[%c0_55, %c0_56, %c256_57], %72 {strides = array<i32>} : memref<1x1x1024xf32, #tpu.memory_space<vmem>>, vector<1x1x256xf32>,
    %c0_58 = arith.constant 0 : index
    %c0_59 = arith.constant 0 : index
    %c256_60 = arith.constant 256 : index
    %73 = vector.load %arg10[%c0_58, %c0_59, %c256_60] : memref<1x1x1024xf32, #tpu.memory_space<vmem>>, vector<1x1x256xf32>
    %74 = vector.shape_cast %73 : vector<1x1x256xf32> to vector<1x256xf32>
    %cst_61 = arith.constant dense<0xFF800000> : vector<256xf32>
    %75 = vector.multi_reduction <maximumf>, %63, %cst_61 [0] : vector<512x256xf32> to vector<256xf32>
    %76 = vector.shape_cast %75 : vector<256xf32> to vector<1x256xf32>
    %77 = arith.maximumf %74, %76 : vector<1x256xf32>
    %c0_62 = arith.constant 0 : index
    %c0_63 = arith.constant 0 : index
    %c256_64 = arith.constant 256 : index
    %78 = vector.load %arg10[%c0_62, %c0_63, %c256_64] : memref<1x1x1024xf32, #tpu.memory_space<vmem>>, vector<1x1x256xf32>
    %79 = vector.shape_cast %78 : vector<1x1x256xf32> to vector<1x256xf32>
    %80 = vector.shape_cast %77 : vector<1x256xf32> to vector<1x1x256xf32>
    tpu.vector_store %arg10[%c0_62, %c0_63, %c256_64], %80 {strides = array<i32>} : memref<1x1x1024xf32, #tpu.memory_space<vmem>>, vector<1x1x256xf32>,
    %c0_65 = arith.constant 0 : index
    %c0_66 = arith.constant 0 : index
    %c256_67 = arith.constant 256 : index
    %81 = vector.load %arg11[%c0_65, %c0_66, %c256_67] : memref<1x1x1024xf32, #tpu.memory_space<vmem>>, vector<1x1x256xf32>
    %82 = vector.shape_cast %81 : vector<1x1x256xf32> to vector<1x256xf32>
    %cst_68 = arith.constant dense<0x7F800000> : vector<256xf32>
    %83 = vector.multi_reduction <minimumf>, %63, %cst_68 [0] : vector<512x256xf32> to vector<256xf32>
    %84 = vector.shape_cast %83 : vector<256xf32> to vector<1x256xf32>
    %85 = arith.minimumf %82, %84 : vector<1x256xf32>
    %c0_69 = arith.constant 0 : index
    %c0_70 = arith.constant 0 : index
    %c256_71 = arith.constant 256 : index
    %86 = vector.load %arg11[%c0_69, %c0_70, %c256_71] : memref<1x1x1024xf32, #tpu.memory_space<vmem>>, vector<1x1x256xf32>
    %87 = vector.shape_cast %86 : vector<1x1x256xf32> to vector<1x256xf32>
    %88 = vector.shape_cast %85 : vector<1x256xf32> to vector<1x1x256xf32>
    tpu.vector_store %arg11[%c0_69, %c0_70, %c256_71], %88 {strides = array<i32>} : memref<1x1x1024xf32, #tpu.memory_space<vmem>>, vector<1x1x256xf32>,
    %89 = vector.extract_strided_slice %26 {offsets = [0, 512], sizes = [512, 256], strides = [1, 1]} : vector<512x1024xf32> to vector<512x256xf32>
    %c0_72 = arith.constant 0 : index
    %c0_73 = arith.constant 0 : index
    %c512 = arith.constant 512 : index
    %90 = vector.load %arg13[%c0_72, %c0_73, %c512] : memref<1x1x1024xf32, #tpu.memory_space<vmem>>, vector<1x1x256xf32>
    %91 = vector.shape_cast %90 : vector<1x1x256xf32> to vector<1x256xf32>
    %92 = arith.mulf %89, %89 : vector<512x256xf32>
    %cst_74 = arith.constant dense<0.000000e+00> : vector<256xf32>
    %93 = vector.multi_reduction <add>, %92, %cst_74 [0] : vector<512x256xf32> to vector<256xf32>
    %94 = vector.shape_cast %93 : vector<256xf32> to vector<1x256xf32>
    %95 = arith.addf %91, %94 : vector<1x256xf32>
    %c0_75 = arith.constant 0 : index
    %c0_76 = arith.constant 0 : index
    %c512_77 = arith.constant 512 : index
    %96 = vector.load %arg13[%c0_75, %c0_76, %c512_77] : memref<1x1x1024xf32, #tpu.memory_space<vmem>>, vector<1x1x256xf32>
    %97 = vector.shape_cast %96 : vector<1x1x256xf32> to vector<1x256xf32>
    %98 = vector.shape_cast %95 : vector<1x256xf32> to vector<1x1x256xf32>
    tpu.vector_store %arg13[%c0_75, %c0_76, %c512_77], %98 {strides = array<i32>} : memref<1x1x1024xf32, #tpu.memory_space<vmem>>, vector<1x1x256xf32>,
    %c0_78 = arith.constant 0 : index
    %c0_79 = arith.constant 0 : index
    %c512_80 = arith.constant 512 : index
    %99 = vector.load %arg10[%c0_78, %c0_79, %c512_80] : memref<1x1x1024xf32, #tpu.memory_space<vmem>>, vector<1x1x256xf32>
    %100 = vector.shape_cast %99 : vector<1x1x256xf32> to vector<1x256xf32>
    %cst_81 = arith.constant dense<0xFF800000> : vector<256xf32>
    %101 = vector.multi_reduction <maximumf>, %89, %cst_81 [0] : vector<512x256xf32> to vector<256xf32>
    %102 = vector.shape_cast %101 : vector<256xf32> to vector<1x256xf32>
    %103 = arith.maximumf %100, %102 : vector<1x256xf32>
    %c0_82 = arith.constant 0 : index
    %c0_83 = arith.constant 0 : index
    %c512_84 = arith.constant 512 : index
    %104 = vector.load %arg10[%c0_82, %c0_83, %c512_84] : memref<1x1x1024xf32, #tpu.memory_space<vmem>>, vector<1x1x256xf32>
    %105 = vector.shape_cast %104 : vector<1x1x256xf32> to vector<1x256xf32>
    %106 = vector.shape_cast %103 : vector<1x256xf32> to vector<1x1x256xf32>
    tpu.vector_store %arg10[%c0_82, %c0_83, %c512_84], %106 {strides = array<i32>} : memref<1x1x1024xf32, #tpu.memory_space<vmem>>, vector<1x1x256xf32>,
    %c0_85 = arith.constant 0 : index
    %c0_86 = arith.constant 0 : index
    %c512_87 = arith.constant 512 : index
    %107 = vector.load %arg11[%c0_85, %c0_86, %c512_87] : memref<1x1x1024xf32, #tpu.memory_space<vmem>>, vector<1x1x256xf32>
    %108 = vector.shape_cast %107 : vector<1x1x256xf32> to vector<1x256xf32>
    %cst_88 = arith.constant dense<0x7F800000> : vector<256xf32>
    %109 = vector.multi_reduction <minimumf>, %89, %cst_88 [0] : vector<512x256xf32> to vector<256xf32>
    %110 = vector.shape_cast %109 : vector<256xf32> to vector<1x256xf32>
    %111 = arith.minimumf %108, %110 : vector<1x256xf32>
    %c0_89 = arith.constant 0 : index
    %c0_90 = arith.constant 0 : index
    %c512_91 = arith.constant 512 : index
    %112 = vector.load %arg11[%c0_89, %c0_90, %c512_91] : memref<1x1x1024xf32, #tpu.memory_space<vmem>>, vector<1x1x256xf32>
    %113 = vector.shape_cast %112 : vector<1x1x256xf32> to vector<1x256xf32>
    %114 = vector.shape_cast %111 : vector<1x256xf32> to vector<1x1x256xf32>
    tpu.vector_store %arg11[%c0_89, %c0_90, %c512_91], %114 {strides = array<i32>} : memref<1x1x1024xf32, #tpu.memory_space<vmem>>, vector<1x1x256xf32>,
    %115 = vector.extract_strided_slice %26 {offsets = [0, 768], sizes = [512, 256], strides = [1, 1]} : vector<512x1024xf32> to vector<512x256xf32>
    %c0_92 = arith.constant 0 : index
    %c0_93 = arith.constant 0 : index
    %c768 = arith.constant 768 : index
    %116 = vector.load %arg13[%c0_92, %c0_93, %c768] : memref<1x1x1024xf32, #tpu.memory_space<vmem>>, vector<1x1x256xf32>
    %117 = vector.shape_cast %116 : vector<1x1x256xf32> to vector<1x256xf32>
    %118 = arith.mulf %115, %115 : vector<512x256xf32>
    %cst_94 = arith.constant dense<0.000000e+00> : vector<256xf32>
    %119 = vector.multi_reduction <add>, %118, %cst_94 [0] : vector<512x256xf32> to vector<256xf32>
    %120 = vector.shape_cast %119 : vector<256xf32> to vector<1x256xf32>
    %121 = arith.addf %117, %120 : vector<1x256xf32>
    %c0_95 = arith.constant 0 : index
    %c0_96 = arith.constant 0 : index
    %c768_97 = arith.constant 768 : index
    %122 = vector.load %arg13[%c0_95, %c0_96, %c768_97] : memref<1x1x1024xf32, #tpu.memory_space<vmem>>, vector<1x1x256xf32>
    %123 = vector.shape_cast %122 : vector<1x1x256xf32> to vector<1x256xf32>
    %124 = vector.shape_cast %121 : vector<1x256xf32> to vector<1x1x256xf32>
    tpu.vector_store %arg13[%c0_95, %c0_96, %c768_97], %124 {strides = array<i32>} : memref<1x1x1024xf32, #tpu.memory_space<vmem>>, vector<1x1x256xf32>,
    %c0_98 = arith.constant 0 : index
    %c0_99 = arith.constant 0 : index
    %c768_100 = arith.constant 768 : index
    %125 = vector.load %arg10[%c0_98, %c0_99, %c768_100] : memref<1x1x1024xf32, #tpu.memory_space<vmem>>, vector<1x1x256xf32>
    %126 = vector.shape_cast %125 : vector<1x1x256xf32> to vector<1x256xf32>
    %cst_101 = arith.constant dense<0xFF800000> : vector<256xf32>
    %127 = vector.multi_reduction <maximumf>, %115, %cst_101 [0] : vector<512x256xf32> to vector<256xf32>
    %128 = vector.shape_cast %127 : vector<256xf32> to vector<1x256xf32>
    %129 = arith.maximumf %126, %128 : vector<1x256xf32>
    %c0_102 = arith.constant 0 : index
    %c0_103 = arith.constant 0 : index
    %c768_104 = arith.constant 768 : index
    %130 = vector.load %arg10[%c0_102, %c0_103, %c768_104] : memref<1x1x1024xf32, #tpu.memory_space<vmem>>, vector<1x1x256xf32>
    %131 = vector.shape_cast %130 : vector<1x1x256xf32> to vector<1x256xf32>
    %132 = vector.shape_cast %129 : vector<1x256xf32> to vector<1x1x256xf32>
    tpu.vector_store %arg10[%c0_102, %c0_103, %c768_104], %132 {strides = array<i32>} : memref<1x1x1024xf32, #tpu.memory_space<vmem>>, vector<1x1x256xf32>,
    %c0_105 = arith.constant 0 : index
    %c0_106 = arith.constant 0 : index
    %c768_107 = arith.constant 768 : index
    %133 = vector.load %arg11[%c0_105, %c0_106, %c768_107] : memref<1x1x1024xf32, #tpu.memory_space<vmem>>, vector<1x1x256xf32>
    %134 = vector.shape_cast %133 : vector<1x1x256xf32> to vector<1x256xf32>
    %cst_108 = arith.constant dense<0x7F800000> : vector<256xf32>
    %135 = vector.multi_reduction <minimumf>, %115, %cst_108 [0] : vector<512x256xf32> to vector<256xf32>
    %136 = vector.shape_cast %135 : vector<256xf32> to vector<1x256xf32>
    %137 = arith.minimumf %134, %136 : vector<1x256xf32>
    %c0_109 = arith.constant 0 : index
    %c0_110 = arith.constant 0 : index
    %c768_111 = arith.constant 768 : index
    %138 = vector.load %arg11[%c0_109, %c0_110, %c768_111] : memref<1x1x1024xf32, #tpu.memory_space<vmem>>, vector<1x1x256xf32>
    %139 = vector.shape_cast %138 : vector<1x1x256xf32> to vector<1x256xf32>
    %140 = vector.shape_cast %137 : vector<1x256xf32> to vector<1x1x256xf32>
    tpu.vector_store %arg11[%c0_109, %c0_110, %c768_111], %140 {strides = array<i32>} : memref<1x1x1024xf32, #tpu.memory_space<vmem>>, vector<1x1x256xf32>,
    return
  }
  func.func @transform_0(%arg0: i32, %arg1: i32) -> (i32, i32, i32) {
    %c0_i32 = arith.constant 0 : i32
    %c0_i32_0 = arith.constant 0 : i32
    return %arg0, %arg1, %c0_i32 : i32, i32, i32
  }
  func.func @transform_1(%arg0: i32, %arg1: i32) -> (i32, i32) {
    %c0_i32 = arith.constant 0 : i32
    %c0_i32_0 = arith.constant 0 : i32
    %c0_i32_1 = arith.constant 0 : i32
    return %c0_i32, %c0_i32_0 : i32, i32
  }
  func.func @transform_2(%arg0: i32, %arg1: i32) -> (i32, i32) {
    %c0_i32 = arith.constant 0 : i32
    %c0_i32_0 = arith.constant 0 : i32
    %c0_i32_1 = arith.constant 0 : i32
    return %c0_i32, %c0_i32_0 : i32, i32
  }
  func.func @transform_3(%arg0: i32, %arg1: i32) -> (i32, i32) {
    %c0_i32 = arith.constant 0 : i32
    %c0_i32_0 = arith.constant 0 : i32
    %c0_i32_1 = arith.constant 0 : i32
    return %c0_i32, %c0_i32_0 : i32, i32
  }
  func.func @transform_4(%arg0: i32, %arg1: i32) -> (i32, i32) {
    %c0_i32 = arith.constant 0 : i32
    %c0_i32_0 = arith.constant 0 : i32
    %c0_i32_1 = arith.constant 0 : i32
    return %c0_i32, %c0_i32_0 : i32, i32
  }
  func.func @transform_5(%arg0: i32, %arg1: i32) -> (i32, i32) {
    %c0_i32 = arith.constant 0 : i32
    %c0_i32_0 = arith.constant 0 : i32
    %c0_i32_1 = arith.constant 0 : i32
    return %c0_i32, %c0_i32_0 : i32, i32
  }
  func.func @transform_6(%arg0: i32, %arg1: i32) -> (i32, i32) {
    %c0_i32 = arith.constant 0 : i32
    %c0_i32_0 = arith.constant 0 : i32
    %c0_i32_1 = arith.constant 0 : i32
    return %c0_i32, %c0_i32_0 : i32, i32
  }
  func.func @transform_7(%arg0: i32, %arg1: i32) -> (i32, i32) {
    %c0_i32 = arith.constant 0 : i32
    %c0_i32_0 = arith.constant 0 : i32
    %c0_i32_1 = arith.constant 0 : i32
    return %c0_i32, %c0_i32_0 : i32, i32
  }
  func.func @transform_8(%arg0: i32, %arg1: i32) -> (i32, i32, i32) {
    %c0_i32 = arith.constant 0 : i32
    %c0_i32_0 = arith.constant 0 : i32
    %c0_i32_1 = arith.constant 0 : i32
    return %arg0, %c0_i32, %c0_i32_0 : i32, i32, i32
  }
  func.func @transform_9(%arg0: i32, %arg1: i32) -> (i32, i32, i32) {
    %c0_i32 = arith.constant 0 : i32
    %c0_i32_0 = arith.constant 0 : i32
    %c0_i32_1 = arith.constant 0 : i32
    return %arg0, %c0_i32, %c0_i32_0 : i32, i32, i32
  }
  func.func @transform_10(%arg0: i32, %arg1: i32) -> (i32, i32, i32) {
    %c0_i32 = arith.constant 0 : i32
    %c0_i32_0 = arith.constant 0 : i32
    %c0_i32_1 = arith.constant 0 : i32
    return %arg0, %c0_i32, %c0_i32_0 : i32, i32, i32
  }
  func.func @transform_11(%arg0: i32, %arg1: i32) -> (i32, i32, i32) {
    %c0_i32 = arith.constant 0 : i32
    %c0_i32_0 = arith.constant 0 : i32
    %c0_i32_1 = arith.constant 0 : i32
    return %arg0, %c0_i32, %c0_i32_0 : i32, i32, i32
  }
}

module attributes {stable_mosaic.version = 11 : i64} {
  func.func @head_kernel(%arg0: memref<2x1024xf32, #tpu.memory_space<vmem>>, %arg1: memref<2x1024xf32, #tpu.memory_space<vmem>>, %arg2: memref<1x1024xf32, #tpu.memory_space<vmem>>, %arg3: memref<1x1024xf32, #tpu.memory_space<vmem>>, %arg4: memref<1x1024xf32, #tpu.memory_space<vmem>>, %arg5: memref<1x1024xf32, #tpu.memory_space<vmem>>, %arg6: memref<1024x512xf32, #tpu.memory_space<vmem>>, %arg7: memref<1x512xf32, #tpu.memory_space<vmem>>, %arg8: memref<1x512xf32, #tpu.memory_space<vmem>>, %arg9: memref<512x256xf32, #tpu.memory_space<vmem>>, %arg10: memref<1x256xf32, #tpu.memory_space<vmem>>, %arg11: memref<1x256xf32, #tpu.memory_space<vmem>>, %arg12: memref<256x128xf32, #tpu.memory_space<vmem>>, %arg13: memref<1x128xf32, #tpu.memory_space<vmem>>, %arg14: memref<2x128xf32, #tpu.memory_space<vmem>>) attributes {dimension_semantics = [], scalar_prefetch = 0 : i64, scratch_operands = 0 : i64, tpu.core_type = #tpu.core_type<tc>} {
    %c0 = arith.constant 0 : index
    %c0_0 = arith.constant 0 : index
    %0 = vector.load %arg2[%c0, %c0_0] : memref<1x1024xf32, #tpu.memory_space<vmem>>, vector<1x1024xf32>
    %cst = arith.constant 9.765625E-4 : f32
    %1 = vector.broadcast %cst : f32 to vector<1x1024xf32>
    %2 = arith.mulf %0, %1 : vector<1x1024xf32>
    %c0_1 = arith.constant 0 : index
    %c0_2 = arith.constant 0 : index
    %3 = vector.load %arg3[%c0_1, %c0_2] : memref<1x1024xf32, #tpu.memory_space<vmem>>, vector<1x1024xf32>
    %cst_3 = arith.constant 9.765625E-4 : f32
    %4 = vector.broadcast %cst_3 : f32 to vector<1x1024xf32>
    %5 = arith.mulf %3, %4 : vector<1x1024xf32>
    %6 = arith.mulf %2, %2 : vector<1x1024xf32>
    %7 = arith.subf %5, %6 : vector<1x1024xf32>
    %cst_4 = arith.constant 0.000000e+00 : f32
    %8 = vector.broadcast %cst_4 : f32 to vector<1x1024xf32>
    %9 = arith.maximumf %7, %8 : vector<1x1024xf32>
    %c0_5 = arith.constant 0 : index
    %c0_6 = arith.constant 0 : index
    %10 = vector.load %arg4[%c0_5, %c0_6] : memref<1x1024xf32, #tpu.memory_space<vmem>>, vector<1x1024xf32>
    %cst_7 = arith.constant 9.99999974E-6 : f32
    %11 = vector.broadcast %cst_7 : f32 to vector<1x1024xf32>
    %12 = arith.addf %9, %11 : vector<1x1024xf32>
    %13 = math.rsqrt %12 : vector<1x1024xf32>
    %14 = arith.mulf %10, %13 : vector<1x1024xf32>
    %c0_8 = arith.constant 0 : index
    %c0_9 = arith.constant 0 : index
    %15 = vector.load %arg5[%c0_8, %c0_9] : memref<1x1024xf32, #tpu.memory_space<vmem>>, vector<1x1024xf32>
    %16 = arith.mulf %2, %14 : vector<1x1024xf32>
    %17 = arith.subf %15, %16 : vector<1x1024xf32>
    %cst_10 = arith.constant 0.000000e+00 : f32
    %18 = vector.broadcast %cst_10 : f32 to vector<1x1024xf32>
    %19 = arith.cmpf oge, %14, %18 : vector<1x1024xf32>
    %c0_11 = arith.constant 0 : index
    %c0_12 = arith.constant 0 : index
    %20 = vector.load %arg0[%c0_11, %c0_12] : memref<2x1024xf32, #tpu.memory_space<vmem>>, vector<2x1024xf32>
    %21 = vector.broadcast %14 : vector<1x1024xf32> to vector<2x1024xf32>
    %22 = arith.mulf %21, %20 : vector<2x1024xf32>
    %23 = vector.broadcast %17 : vector<1x1024xf32> to vector<2x1024xf32>
    %24 = arith.addf %22, %23 : vector<2x1024xf32>
    %c0_13 = arith.constant 0 : index
    %c0_14 = arith.constant 0 : index
    %25 = vector.load %arg1[%c0_13, %c0_14] : memref<2x1024xf32, #tpu.memory_space<vmem>>, vector<2x1024xf32>
    %26 = vector.broadcast %14 : vector<1x1024xf32> to vector<2x1024xf32>
    %27 = arith.mulf %26, %25 : vector<2x1024xf32>
    %28 = vector.broadcast %17 : vector<1x1024xf32> to vector<2x1024xf32>
    %29 = arith.addf %27, %28 : vector<2x1024xf32>
    %30 = vector.shape_cast %19 : vector<1x1024xi1> to vector<1x1024xi1>
    %31 = vector.broadcast %30 : vector<1x1024xi1> to vector<2x1024xi1>
    %32 = arith.select %31, %24, %29 : vector<2x1024xi1>, vector<2x1024xf32>
    %cst_15 = arith.constant 0.000000e+00 : f32
    %33 = vector.broadcast %cst_15 : f32 to vector<2x1024xf32>
    %34 = arith.maximumf %32, %33 : vector<2x1024xf32>
    %c0_16 = arith.constant 0 : index
    %c0_17 = arith.constant 0 : index
    %35 = vector.load %arg6[%c0_16, %c0_17] : memref<1024x512xf32, #tpu.memory_space<vmem>>, vector<1024x512xf32>
    %cst_18 = arith.constant dense<0.000000e+00> : vector<2x512xf32>
    %36 = tpu.matmul %34, %35, %cst_18 {dimension_numbers = #tpu.dot_dimension_numbers<[1], [0], [0], [1], [0, 0, 1, 1], [], []>} : vector<2x1024xf32>, vector<1024x512xf32>, vector<2x512xf32> -> vector<2x512xf32>
    %cst_19 = arith.constant dense<0.000000e+00> : vector<512xf32>
    %37 = vector.multi_reduction <add>, %36, %cst_19 [0] : vector<2x512xf32> to vector<512xf32>
    %38 = vector.shape_cast %37 : vector<512xf32> to vector<1x512xf32>
    %cst_20 = arith.constant 2.000000e+00 : f32
    %39 = vector.broadcast %cst_20 : f32 to vector<1x512xf32>
    %40 = arith.divf %38, %39 : vector<1x512xf32>
    %41 = arith.mulf %36, %36 : vector<2x512xf32>
    %cst_21 = arith.constant dense<0.000000e+00> : vector<512xf32>
    %42 = vector.multi_reduction <add>, %41, %cst_21 [0] : vector<2x512xf32> to vector<512xf32>
    %43 = vector.shape_cast %42 : vector<512xf32> to vector<1x512xf32>
    %cst_22 = arith.constant 2.000000e+00 : f32
    %44 = vector.broadcast %cst_22 : f32 to vector<1x512xf32>
    %45 = arith.divf %43, %44 : vector<1x512xf32>
    %46 = arith.mulf %40, %40 : vector<1x512xf32>
    %47 = arith.subf %45, %46 : vector<1x512xf32>
    %cst_23 = arith.constant 0.000000e+00 : f32
    %48 = vector.broadcast %cst_23 : f32 to vector<1x512xf32>
    %49 = arith.maximumf %47, %48 : vector<1x512xf32>
    %c0_24 = arith.constant 0 : index
    %c0_25 = arith.constant 0 : index
    %50 = vector.load %arg7[%c0_24, %c0_25] : memref<1x512xf32, #tpu.memory_space<vmem>>, vector<1x512xf32>
    %cst_26 = arith.constant 9.99999974E-6 : f32
    %51 = vector.broadcast %cst_26 : f32 to vector<1x512xf32>
    %52 = arith.addf %49, %51 : vector<1x512xf32>
    %53 = math.rsqrt %52 : vector<1x512xf32>
    %54 = arith.mulf %50, %53 : vector<1x512xf32>
    %55 = vector.broadcast %54 : vector<1x512xf32> to vector<2x512xf32>
    %56 = arith.mulf %36, %55 : vector<2x512xf32>
    %c0_27 = arith.constant 0 : index
    %c0_28 = arith.constant 0 : index
    %57 = vector.load %arg8[%c0_27, %c0_28] : memref<1x512xf32, #tpu.memory_space<vmem>>, vector<1x512xf32>
    %58 = arith.mulf %40, %54 : vector<1x512xf32>
    %59 = arith.subf %57, %58 : vector<1x512xf32>
    %60 = vector.broadcast %59 : vector<1x512xf32> to vector<2x512xf32>
    %61 = arith.addf %56, %60 : vector<2x512xf32>
    %cst_29 = arith.constant 0.000000e+00 : f32
    %62 = vector.broadcast %cst_29 : f32 to vector<2x512xf32>
    %63 = arith.maximumf %61, %62 : vector<2x512xf32>
    %c0_30 = arith.constant 0 : index
    %c0_31 = arith.constant 0 : index
    %64 = vector.load %arg9[%c0_30, %c0_31] : memref<512x256xf32, #tpu.memory_space<vmem>>, vector<512x256xf32>
    %cst_32 = arith.constant dense<0.000000e+00> : vector<2x256xf32>
    %65 = tpu.matmul %63, %64, %cst_32 {dimension_numbers = #tpu.dot_dimension_numbers<[1], [0], [0], [1], [0, 0, 1, 1], [], []>} : vector<2x512xf32>, vector<512x256xf32>, vector<2x256xf32> -> vector<2x256xf32>
    %cst_33 = arith.constant dense<0.000000e+00> : vector<256xf32>
    %66 = vector.multi_reduction <add>, %65, %cst_33 [0] : vector<2x256xf32> to vector<256xf32>
    %67 = vector.shape_cast %66 : vector<256xf32> to vector<1x256xf32>
    %cst_34 = arith.constant 2.000000e+00 : f32
    %68 = vector.broadcast %cst_34 : f32 to vector<1x256xf32>
    %69 = arith.divf %67, %68 : vector<1x256xf32>
    %70 = arith.mulf %65, %65 : vector<2x256xf32>
    %cst_35 = arith.constant dense<0.000000e+00> : vector<256xf32>
    %71 = vector.multi_reduction <add>, %70, %cst_35 [0] : vector<2x256xf32> to vector<256xf32>
    %72 = vector.shape_cast %71 : vector<256xf32> to vector<1x256xf32>
    %cst_36 = arith.constant 2.000000e+00 : f32
    %73 = vector.broadcast %cst_36 : f32 to vector<1x256xf32>
    %74 = arith.divf %72, %73 : vector<1x256xf32>
    %75 = arith.mulf %69, %69 : vector<1x256xf32>
    %76 = arith.subf %74, %75 : vector<1x256xf32>
    %cst_37 = arith.constant 0.000000e+00 : f32
    %77 = vector.broadcast %cst_37 : f32 to vector<1x256xf32>
    %78 = arith.maximumf %76, %77 : vector<1x256xf32>
    %c0_38 = arith.constant 0 : index
    %c0_39 = arith.constant 0 : index
    %79 = vector.load %arg10[%c0_38, %c0_39] : memref<1x256xf32, #tpu.memory_space<vmem>>, vector<1x256xf32>
    %cst_40 = arith.constant 9.99999974E-6 : f32
    %80 = vector.broadcast %cst_40 : f32 to vector<1x256xf32>
    %81 = arith.addf %78, %80 : vector<1x256xf32>
    %82 = math.rsqrt %81 : vector<1x256xf32>
    %83 = arith.mulf %79, %82 : vector<1x256xf32>
    %84 = vector.broadcast %83 : vector<1x256xf32> to vector<2x256xf32>
    %85 = arith.mulf %65, %84 : vector<2x256xf32>
    %c0_41 = arith.constant 0 : index
    %c0_42 = arith.constant 0 : index
    %86 = vector.load %arg11[%c0_41, %c0_42] : memref<1x256xf32, #tpu.memory_space<vmem>>, vector<1x256xf32>
    %87 = arith.mulf %69, %83 : vector<1x256xf32>
    %88 = arith.subf %86, %87 : vector<1x256xf32>
    %89 = vector.broadcast %88 : vector<1x256xf32> to vector<2x256xf32>
    %90 = arith.addf %85, %89 : vector<2x256xf32>
    %cst_43 = arith.constant 0.000000e+00 : f32
    %91 = vector.broadcast %cst_43 : f32 to vector<2x256xf32>
    %92 = arith.maximumf %90, %91 : vector<2x256xf32>
    %c0_44 = arith.constant 0 : index
    %c0_45 = arith.constant 0 : index
    %93 = vector.load %arg12[%c0_44, %c0_45] : memref<256x128xf32, #tpu.memory_space<vmem>>, vector<256x128xf32>
    %cst_46 = arith.constant dense<0.000000e+00> : vector<2x128xf32>
    %94 = tpu.matmul %92, %93, %cst_46 {dimension_numbers = #tpu.dot_dimension_numbers<[1], [0], [0], [1], [0, 0, 1, 1], [], []>} : vector<2x256xf32>, vector<256x128xf32>, vector<2x128xf32> -> vector<2x128xf32>
    %c0_47 = arith.constant 0 : index
    %c0_48 = arith.constant 0 : index
    %95 = vector.load %arg13[%c0_47, %c0_48] : memref<1x128xf32, #tpu.memory_space<vmem>>, vector<1x128xf32>
    %96 = vector.broadcast %95 : vector<1x128xf32> to vector<2x128xf32>
    %97 = arith.addf %94, %96 : vector<2x128xf32>
    %98 = tpu.iota {dimensions = array<i32: 1>} : vector<2x128xi32>
    %c9_i32 = arith.constant 9 : i32
    %99 = vector.broadcast %c9_i32 : i32 to vector<2x128xi32>
    %100 = arith.cmpi slt, %98, %99 : vector<2x128xi32>
    %c4_i32 = arith.constant 4 : i32
    %c0_i32 = arith.constant 0 : i32
    %101 = arith.cmpi eq, %c4_i32, %c0_i32 : i32
    %c1_i32 = arith.constant 1 : i32
    %102 = arith.select %101, %c1_i32, %c4_i32 : i32
    %103 = vector.broadcast %102 : i32 to vector<2x128xi32>
    %104 = arith.remsi %98, %103 : vector<2x128xi32>
    %c0_i32_49 = arith.constant 0 : i32
    %105 = vector.broadcast %c0_i32_49 : i32 to vector<2x128xi32>
    %106 = arith.cmpi ne, %104, %105 : vector<2x128xi32>
    %c0_i32_50 = arith.constant 0 : i32
    %107 = vector.broadcast %c0_i32_50 : i32 to vector<2x128xi32>
    %108 = arith.cmpi slt, %104, %107 : vector<2x128xi32>
    %c0_i32_51 = arith.constant 0 : i32
    %109 = arith.cmpi slt, %102, %c0_i32_51 : i32
    %110 = vector.broadcast %109 : i1 to vector<2x128xi1>
    %111 = vector.broadcast %110 : vector<2x128xi1> to vector<2x128xi1>
    %112 = arith.xori %108, %111 : vector<2x128xi1>
    %113 = arith.andi %112, %106 : vector<2x128xi1>
    %114 = vector.broadcast %102 : i32 to vector<2x128xi32>
    %115 = arith.addi %104, %114 : vector<2x128xi32>
    %116 = arith.select %113, %115, %104 : vector<2x128xi1>, vector<2x128xi32>
    %c0_i32_52 = arith.constant 0 : i32
    %117 = vector.broadcast %c0_i32_52 : i32 to vector<2x128xi32>
    %118 = arith.cmpi eq, %116, %117 : vector<2x128xi32>
    %119 = arith.andi %100, %118 : vector<2x128xi1>
    %cst_53 = arith.constant 1.000000e+00 : f32
    %cst_54 = arith.constant 0.000000e+00 : f32
    %120 = vector.broadcast %cst_53 : f32 to vector<2x128xf32>
    %121 = vector.broadcast %cst_54 : f32 to vector<2x128xf32>
    %122 = arith.select %119, %120, %121 : vector<2x128xi1>, vector<2x128xf32>
    %123 = arith.addf %97, %122 : vector<2x128xf32>
    %c0_55 = arith.constant 0 : index
    %c0_56 = arith.constant 0 : index
    %124 = vector.load %arg14[%c0_55, %c0_56] : memref<2x128xf32, #tpu.memory_space<vmem>>, vector<2x128xf32>
    tpu.vector_store %arg14[%c0_55, %c0_56], %123 {strides = array<i32>} : memref<2x128xf32, #tpu.memory_space<vmem>>, vector<2x128xf32>,
    return
  }
}

</mosaic_0001>

<llo_original>
// kernel: stn3d_forward.3
$region0: #{stn3d_forward.3}
  #allocation0 [shape = 'u32[]', space=smem, size = 0x4, offset = 0x4, fixed_abs, tag = 'smem constant byte address 0x4 - core index']
  #allocation1 [shape = 'u32[72,128]{1,0:T(1,128)}', space=vmem, size = 0x9000, scoped, tag = 'internal scratch']
  %s0 = inlined_call_operand.vmem [shape: f32[2,512,8], index: 0, kind: input, shape index: {}]
  %s1 = inlined_call_operand.vmem [shape: f32[8,64], index: 1, kind: input, shape index: {}]
  %s2 = inlined_call_operand.vmem [shape: f32[1,64], index: 2, kind: input, shape index: {}]
  %s3 = inlined_call_operand.vmem [shape: f32[1,64], index: 3, kind: input, shape index: {}]
  %s4 = inlined_call_operand.vmem [shape: f32[64,128], index: 4, kind: input, shape index: {}]
  %s5 = inlined_call_operand.vmem [shape: f32[2,1,128], index: 5, kind: output, shape index: {0}]
  %s6 = inlined_call_operand.vmem [shape: f32[2,1,128], index: 6, kind: output, shape index: {1}]
  %7 = xla_tuple %s5, %s6
  %s8 = sld [smem:[#allocation0]]
  $region65: #{stn3d_forward.3} parent=0
    _
  %s10 = ssub.s32 1, %s8
  %s11 = scalar_select 0, %s10, %s8
  loop: start=0, step=1, limit=4
  $region2: #{stn3d_forward.3} parent=0 // loop_pre_header
    _
  $region3: #{stn3d_forward.3} parent=0 // loop_header
    %s13 = sphi 0, %s17
    %p14 = scmp.ge.s32.totalorder %s13, 4
    %s20 = sphi 0, %s32
    %s21 = sphi 0, %s28
    %s22 = sphi 0, %s20
    %s23 = sphi 0, %s21
    %s24 = sphi 0, %s22
    %s25 = sphi 0, %s23
    %s37 = sphi 0, %s39
    %s40 = sphi 0, %s37
    %s41 = sphi 0, %s40
    %s57 = sphi 0, %s41
    %s61 = sphi 0, %s61
    %s63 = sphi 0, %s61
    %s64 = sphi 0, %s63
    %s78 = sphi 0, %s64
    %s82 = sphi 0, %s82
    %s84 = sphi 0, %s82
    %s85 = sphi 0, %s84
    %s99 = sphi 0, %s85
    %s103 = sphi 0, %s103
    %s105 = sphi 0, %s103
    %s106 = sphi 0, %s105
    %s120 = sphi 0, %s106
    %s124 = sphi 0, %s124
    %s126 = sphi 0, %s124
    %s127 = sphi 0, %s126
    %s141 = sphi 0, %s127
    %s147 = sphi 0, %s149
    %s150 = sphi 0, %s147
    %s151 = sphi 0, %s150
    %s167 = sphi 0, %s151
    %s173 = sphi 0, %s175
    %s176 = sphi 0, %s173
    %s177 = sphi 0, %s176
    %s193 = sphi 0, %s177
  $region4: #{stn3d_forward.3} parent=0 // loop_header_branch
    %16 = sbr.rel (%p14) target = $region8
  $region5: #{stn3d_forward.3} parent=0 // loop_body
    %s18 = ssub.s32 %s13, 1
    %s19 = ssub.s32 %s13, 2
    %s26 = sadd.s32 1, %s21
    %p27 = scmp.ge.s32.totalorder %s26, 1
    %s28 = scalar_select %p27, 0, %s26
    %s29 = sadd.s32 1, %s20
    %s30 = scalar_select %p27, %s29, %s20
    %p31 = scmp.ge.s32.totalorder %s30, 2
    %s32 = scalar_select %p31, 0, %s30
    %s33 = ssub.s32 %s20, %s32
    %s34 = ssub.s32 %s21, %s28
    %s35 = sor.u32 %s33, %s34
    %p36 = scmp.eq.s32.totalorder %s35, 0
    %s38 = sadd.s32 %s37, 1
    %s39 = scalar_select %p36, %s37, %s38
    %p42 = pneg %p36
    %p43 = scmp.eq.s32.totalorder %s13, 1
    %p44 = por %p42, %p43
    %p45 = scmp.ne.s32.totalorder %s37, %s40
    %p46 = scmp.eq.s32.totalorder %s13, 0
    %p47 = por %p45, %p46
    %p48 = scmp.ne.s32.totalorder %s37, %s40
    %p49 = scmp.eq.s32.totalorder %s18, 1
    %p50 = por %p48, %p49
    %p51 = scmp.ne.s32.totalorder %s40, %s41
    %p52 = scmp.eq.s32.totalorder %s18, 0
    %p53 = por %p51, %p52
    %p54 = scmp.ne.s32.totalorder %s40, %s41
    %p55 = scmp.eq.s32.totalorder %s19, 1
    %p56 = por %p54, %p55
    %p58 = scmp.ne.s32.totalorder %s41, %s57
    %p59 = scmp.eq.s32.totalorder %s19, 0
    %p60 = por %p58, %p59
    %s62 = sadd.s32 %s61, 1
    %p65 = scmp.eq.s32.totalorder %s13, 1
    %p66 = scmp.ne.s32.totalorder %s61, %s63
    %p67 = scmp.eq.s32.totalorder %s13, 0
    %p68 = por %p66, %p67
    %p69 = scmp.ne.s32.totalorder %s61, %s63
    %p70 = scmp.eq.s32.totalorder %s18, 1
    %p71 = por %p69, %p70
    %p72 = scmp.ne.s32.totalorder %s63, %s64
    %p73 = scmp.eq.s32.totalorder %s18, 0
    %p74 = por %p72, %p73
    %p75 = scmp.ne.s32.totalorder %s63, %s64
    %p76 = scmp.eq.s32.totalorder %s19, 1
    %p77 = por %p75, %p76
    %p79 = scmp.ne.s32.totalorder %s64, %s78
    %p80 = scmp.eq.s32.totalorder %s19, 0
    %p81 = por %p79, %p80
    %s83 = sadd.s32 %s82, 1
    %p86 = scmp.eq.s32.totalorder %s13, 1
    %p87 = scmp.ne.s32.totalorder %s82, %s84
    %p88 = scmp.eq.s32.totalorder %s13, 0
    %p89 = por %p87, %p88
    %p90 = scmp.ne.s32.totalorder %s82, %s84
    %p91 = scmp.eq.s32.totalorder %s18, 1
    %p92 = por %p90, %p91
    %p93 = scmp.ne.s32.totalorder %s84, %s85
    %p94 = scmp.eq.s32.totalorder %s18, 0
    %p95 = por %p93, %p94
    %p96 = scmp.ne.s32.totalorder %s84, %s85
    %p97 = scmp.eq.s32.totalorder %s19, 1
    %p98 = por %p96, %p97
    %p100 = scmp.ne.s32.totalorder %s85, %s99
    %p101 = scmp.eq.s32.totalorder %s19, 0
    %p102 = por %p100, %p101
    %s104 = sadd.s32 %s103, 1
    %p107 = scmp.eq.s32.totalorder %s13, 1
    %p108 = scmp.ne.s32.totalorder %s103, %s105
    %p109 = scmp.eq.s32.totalorder %s13, 0
    %p110 = por %p108, %p109
    %p111 = scmp.ne.s32.totalorder %s103, %s105
    %p112 = scmp.eq.s32.totalorder %s18, 1
    %p113 = por %p111, %p112
    %p114 = scmp.ne.s32.totalorder %s105, %s106
    %p115 = scmp.eq.s32.totalorder %s18, 0
    %p116 = por %p114, %p115
    %p117 = scmp.ne.s32.totalorder %s105, %s106
    %p118 = scmp.eq.s32.totalorder %s19, 1
    %p119 = por %p117, %p118
    %p121 = scmp.ne.s32.totalorder %s106, %s120
    %p122 = scmp.eq.s32.totalorder %s19, 0
    %p123 = por %p121, %p122
    %s125 = sadd.s32 %s124, 1
    %p128 = scmp.eq.s32.totalorder %s13, 1
    %p129 = scmp.ne.s32.totalorder %s124, %s126
    %p130 = scmp.eq.s32.totalorder %s13, 0
    %p131 = por %p129, %p130
    %p132 = scmp.ne.s32.totalorder %s124, %s126
    %p133 = scmp.eq.s32.totalorder %s18, 1
    %p134 = por %p132, %p133
    %p135 = scmp.ne.s32.totalorder %s126, %s127
    %p136 = scmp.eq.s32.totalorder %s18, 0
    %p137 = por %p135, %p136
    %p138 = scmp.ne.s32.totalorder %s126, %s127
    %p139 = scmp.eq.s32.totalorder %s19, 1
    %p140 = por %p138, %p139
    %p142 = scmp.ne.s32.totalorder %s127, %s141
    %p143 = scmp.eq.s32.totalorder %s19, 0
    %p144 = por %p142, %p143
    %s145 = ssub.s32 %s20, %s32
    %p146 = scmp.eq.s32.totalorder %s145, 0
    %s148 = sadd.s32 %s147, 1
    %s149 = scalar_select %p146, %s147, %s148
    %p152 = pneg %p146
    %p153 = scmp.eq.s32.totalorder %s13, 1
    %p154 = por %p152, %p153
    %p155 = scmp.ne.s32.totalorder %s147, %s150
    %p156 = scmp.eq.s32.totalorder %s13, 0
    %p157 = por %p155, %p156
    %p158 = scmp.ne.s32.totalorder %s147, %s150
    %p159 = scmp.eq.s32.totalorder %s18, 1
    %p160 = por %p158, %p159
    %p161 = scmp.ne.s32.totalorder %s150, %s151
    %p162 = scmp.eq.s32.totalorder %s18, 0
    %p163 = por %p161, %p162
    %p164 = scmp.ne.s32.totalorder %s150, %s151
    %p165 = scmp.eq.s32.totalorder %s19, 1
    %p166 = por %p164, %p165
    %p168 = scmp.ne.s32.totalorder %s151, %s167
    %p169 = scmp.eq.s32.totalorder %s19, 0
    %p170 = por %p168, %p169
    %s171 = ssub.s32 %s20, %s32
    %p172 = scmp.eq.s32.totalorder %s171, 0
    %s174 = sadd.s32 %s173, 1
    %s175 = scalar_select %p172, %s173, %s174
    %p178 = pneg %p172
    %p179 = scmp.eq.s32.totalorder %s13, 1
    %p180 = por %p178, %p179
    %p181 = scmp.ne.s32.totalorder %s173, %s176
    %p182 = scmp.eq.s32.totalorder %s13, 0
    %p183 = por %p181, %p182
    %p184 = scmp.ne.s32.totalorder %s173, %s176
    %p185 = scmp.eq.s32.totalorder %s18, 1
    %p186 = por %p184, %p185
    %p187 = scmp.ne.s32.totalorder %s176, %s177
    %p188 = scmp.eq.s32.totalorder %s18, 0
    %p189 = por %p187, %p188
    %p190 = scmp.ne.s32.totalorder %s176, %s177
    %p191 = scmp.eq.s32.totalorder %s19, 1
    %p192 = por %p190, %p191
    %p194 = scmp.ne.s32.totalorder %s177, %s193
    %p195 = scmp.eq.s32.totalorder %s19, 0
    %p196 = por %p194, %p195
    %p197 = scmp.le.s32.totalorder 1, %s13
    %p198 = scmp.lt.s32.totalorder %s13, 3
    %p199 = pnand %p197, %p198
    %p200 = pneg %p199
    // Predicated region
    $region9: #{stn3d_forward.3} parent=5 // pred_check
      _
    $region10: #{stn3d_forward.3} parent=5 // pred_check_branch
      %202 = sbr.rel (%p199) target = $region12
    $region11: #{stn3d_forward.3} parent=5 // pred_region
      %s203 = ssub.s32 %s13, 1
      // Predicated region
      $region13: #{stn3d_forward.3} parent=11 // pred_check
        %p204 = pneg %p74
      $region14: #{stn3d_forward.3} parent=11 // pred_check_branch
        %206 = sbr.rel (%p204) target = $region16
      $region15: #{stn3d_forward.3} parent=11 // pred_region
        _
      $region16: #{stn3d_forward.3} parent=11 // pred_fallthru
        _
      // Predicated region
      $region17: #{stn3d_forward.3} parent=11 // pred_check
        %p207 = pneg %p95
      $region18: #{stn3d_forward.3} parent=11 // pred_check_branch
        %209 = sbr.rel (%p207) target = $region20
      $region19: #{stn3d_forward.3} parent=11 // pred_region
        _
      $region20: #{stn3d_forward.3} parent=11 // pred_fallthru
        _
      // Predicated region
      $region21: #{stn3d_forward.3} parent=11 // pred_check
        %p210 = pneg %p116
      $region22: #{stn3d_forward.3} parent=11 // pred_check_branch
        %212 = sbr.rel (%p210) target = $region24
      $region23: #{stn3d_forward.3} parent=11 // pred_region
        _
      $region24: #{stn3d_forward.3} parent=11 // pred_fallthru
        _
      // Predicated region
      $region25: #{stn3d_forward.3} parent=11 // pred_check
        %p213 = pneg %p137
      $region26: #{stn3d_forward.3} parent=11 // pred_check_branch
        %215 = sbr.rel (%p213) target = $region28
      $region27: #{stn3d_forward.3} parent=11 // pred_region
        _
      $region28: #{stn3d_forward.3} parent=11 // pred_fallthru
        _
    $region12: #{stn3d_forward.3} parent=5 // pred_fallthru
      _
    %p216 = scmp.lt.s32.totalorder %s13, 2
    // Predicated region
    $region29: #{stn3d_forward.3} parent=5 // pred_check
      %p217 = pneg %p216
    $region30: #{stn3d_forward.3} parent=5 // pred_check_branch
      %219 = sbr.rel (%p217) target = $region32
    $region31: #{stn3d_forward.3} parent=5 // pred_region
      // Predicated region
      $region33: #{stn3d_forward.3} parent=31 // pred_check
        %p220 = pneg %p47
      $region34: #{stn3d_forward.3} parent=31 // pred_check_branch
        %222 = sbr.rel (%p220) target = $region36
      $region35: #{stn3d_forward.3} parent=31 // pred_region
        %s223 = smul.u32 64, %s21
        %p224 = scmp.lt.s32.totalorder %s20, 1
        %s225 = scalar_select %p224, %s20, 1
        %p226 = scmp.lt.s32.totalorder %s223, 63
        %s227 = scalar_select %p226, %s223, 63
        %s228 = smul.addr %s225, 64
        %s229 = sadd.s32 %s227, %s228
        %s230 = smul.addr %s229, 8
        %s231 = scalar_lea.vmem %s0, %s230
        %s232 = smul.u32 64, %s21
      $region36: #{stn3d_forward.3} parent=31 // pred_fallthru
        _
    $region32: #{stn3d_forward.3} parent=5 // pred_fallthru
      _
    %p233 = scmp.le.s32.totalorder 1, %s13
    %p234 = scmp.lt.s32.totalorder %s13, 3
    %p235 = pnand %p233, %p234
    %p236 = pneg %p235
    // Predicated region
    $region37: #{stn3d_forward.3} parent=5 // pred_check
      _
    $region38: #{stn3d_forward.3} parent=5 // pred_check_branch
      %238 = sbr.rel (%p235) target = $region40
    $region39: #{stn3d_forward.3} parent=5 // pred_region
      %s239 = ssub.s32 %s13, 1
      %s240 = smul.u32 64, %s23
      %p241 = scmp.lt.s32.totalorder %s22, 1
      %s242 = scalar_select %p241, %s22, 1
      %p243 = scmp.lt.s32.totalorder %s240, 63
      %s244 = scalar_select %p243, %s240, 63
      %s245 = smul.addr %s242, 64
      %s246 = sadd.s32 %s244, %s245
      %s247 = smul.addr %s246, 8
      %s248 = scalar_lea.vmem %s0, %s247
      %p249 = pneg %p53
      %p250 = pneg %p50
      %p251 = pneg %p74
      %p252 = pneg %p71
      %p253 = pneg %p95
      %p254 = pneg %p92
      %p255 = pneg %p116
      %p256 = pneg %p113
      %p257 = pneg %p137
      %p258 = pneg %p134
      %p259 = pneg %p163
      %p260 = pneg %p160
      %p261 = scmp.lt.s32.totalorder %s22, 1
      %s262 = scalar_select %p261, %s22, 1
      %s263 = scalar_lea.vmem %s5, %s262
      %p264 = pneg %p189
      %p265 = pneg %p186
      %p266 = scmp.lt.s32.totalorder %s22, 1
      %s267 = scalar_select %p266, %s22, 1
      %s268 = scalar_lea.vmem %s6, %s267
      %s269 = smul.u32 64, %s23
      %p270 = scmp.lt.s32.totalorder %s22, 1
      %s271 = scalar_select %p270, %s22, 1
      %p272 = scmp.lt.s32.totalorder %s269, 63
      %s273 = scalar_select %p272, %s269, 63
      %s274 = smul.addr %s271, 64
      %s275 = sadd.s32 %s273, %s274
      %s276 = smul.addr %s275, 8
      %s277 = scalar_lea.vmem %s0, %s276
      %s278 = smul.u32 64, %s23
      %p279 = scmp.lt.s32.totalorder %s22, 1
      %s280 = scalar_select %p279, %s22, 1
      %s281 = scalar_lea.vmem %s5, %s280
      %p282 = scmp.lt.s32.totalorder %s22, 1
      %s283 = scalar_select %p282, %s22, 1
      %s284 = scalar_lea.vmem %s6, %s283
      %p285 = scmp.eq.s32.totalorder %s23, 0
      // Predicated region
      $region41: #{stn3d_forward.3} parent=39 // pred_check
        %p286 = pneg %p285
      $region42: #{stn3d_forward.3} parent=39 // pred_check_branch
        %288 = sbr.rel (%p286) target = $region44
      $region43: #{stn3d_forward.3} parent=39 // pred_region
        %289 = vst [vmem:[%s281] sm:$0x1] 0.0
        %290 = vst [vmem:[%s284] sm:$0x1] 0.0
      $region44: #{stn3d_forward.3} parent=39 // pred_fallthru
        _
      %v291 = vld [vmem:[%s277] sm:$0xff]
      %v292 = vld [vmem:[%s277 + $0x8] sm:$0xff]
      %v293 = vld [vmem:[%s277 + $0x10] sm:$0xff]
      %v294 = vld [vmem:[%s277 + $0x18] sm:$0xff]
      %v295 = vld [vmem:[%s277 + $0x20] sm:$0xff]
      %v296 = vld [vmem:[%s277 + $0x28] sm:$0xff]
      %v297 = vld [vmem:[%s277 + $0x30] sm:$0xff]
      %v298 = vld [vmem:[%s277 + $0x38] sm:$0xff]
      %v299 = vld [vmem:[%s277 + $0x40] sm:$0xff]
      %v300 = vld [vmem:[%s277 + $0x48] sm:$0xff]
      %v301 = vld [vmem:[%s277 + $0x50] sm:$0xff]
      %v302 = vld [vmem:[%s277 + $0x58] sm:$0xff]
      %v303 = vld [vmem:[%s277 + $0x60] sm:$0xff]
      %v304 = vld [vmem:[%s277 + $0x68] sm:$0xff]
      %v305 = vld [vmem:[%s277 + $0x70] sm:$0xff]
      %v306 = vld [vmem:[%s277 + $0x78] sm:$0xff]
      %v307 = vld [vmem:[%s277 + $0x80] sm:$0xff]
      %v308 = vld [vmem:[%s277 + $0x88] sm:$0xff]
      %v309 = vld [vmem:[%s277 + $0x90] sm:$0xff]
      %v310 = vld [vmem:[%s277 + $0x98] sm:$0xff]
      %v311 = vld [vmem:[%s277 + $0xa0] sm:$0xff]
      %v312 = vld [vmem:[%s277 + $0xa8] sm:$0xff]
      %v313 = vld [vmem:[%s277 + $0xb0] sm:$0xff]
      %v314 = vld [vmem:[%s277 + $0xb8] sm:$0xff]
      %v315 = vld [vmem:[%s277 + $0xc0] sm:$0xff]
      %v316 = vld [vmem:[%s277 + $0xc8] sm:$0xff]
      %v317 = vld [vmem:[%s277 + $0xd0] sm:$0xff]
      %v318 = vld [vmem:[%s277 + $0xd8] sm:$0xff]
      %v319 = vld [vmem:[%s277 + $0xe0] sm:$0xff]
      %v320 = vld [vmem:[%s277 + $0xe8] sm:$0xff]
      %v321 = vld [vmem:[%s277 + $0xf0] sm:$0xff]
      %v322 = vld [vmem:[%s277 + $0xf8] sm:$0xff]
      %v323 = vld [vmem:[%s277 + $0x100] sm:$0xff]
      %v324 = vld [vmem:[%s277 + $0x108] sm:$0xff]
      %v325 = vld [vmem:[%s277 + $0x110] sm:$0xff]
      %v326 = vld [vmem:[%s277 + $0x118] sm:$0xff]
      %v327 = vld [vmem:[%s277 + $0x120] sm:$0xff]
      %v328 = vld [vmem:[%s277 + $0x128] sm:$0xff]
      %v329 = vld [vmem:[%s277 + $0x130] sm:$0xff]
      %v330 = vld [vmem:[%s277 + $0x138] sm:$0xff]
      %v331 = vld [vmem:[%s277 + $0x140] sm:$0xff]
      %v332 = vld [vmem:[%s277 + $0x148] sm:$0xff]
      %v333 = vld [vmem:[%s277 + $0x150] sm:$0xff]
      %v334 = vld [vmem:[%s277 + $0x158] sm:$0xff]
      %v335 = vld [vmem:[%s277 + $0x160] sm:$0xff]
      %v336 = vld [vmem:[%s277 + $0x168] sm:$0xff]
      %v337 = vld [vmem:[%s277 + $0x170] sm:$0xff]
      %v338 = vld [vmem:[%s277 + $0x178] sm:$0xff]
      %v339 = vld [vmem:[%s277 + $0x180] sm:$0xff]
      %v340 = vld [vmem:[%s277 + $0x188] sm:$0xff]
      %v341 = vld [vmem:[%s277 + $0x190] sm:$0xff]
      %v342 = vld [vmem:[%s277 + $0x198] sm:$0xff]
      %v343 = vld [vmem:[%s277 + $0x1a0] sm:$0xff]
      %v344 = vld [vmem:[%s277 + $0x1a8] sm:$0xff]
      %v345 = vld [vmem:[%s277 + $0x1b0] sm:$0xff]
      %v346 = vld [vmem:[%s277 + $0x1b8] sm:$0xff]
      %v347 = vld [vmem:[%s277 + $0x1c0] sm:$0xff]
      %v348 = vld [vmem:[%s277 + $0x1c8] sm:$0xff]
      %v349 = vld [vmem:[%s277 + $0x1d0] sm:$0xff]
      %v350 = vld [vmem:[%s277 + $0x1d8] sm:$0xff]
      %v351 = vld [vmem:[%s277 + $0x1e0] sm:$0xff]
      %v352 = vld [vmem:[%s277 + $0x1e8] sm:$0xff]
      %v353 = vld [vmem:[%s277 + $0x1f0] sm:$0xff]
      %v354 = vld [vmem:[%s277 + $0x1f8] sm:$0xff]
      %v355 = vld [vmem:[%s1] sm:$0xff]
      %vm356 = vcmask 64512
      %v358 = vsel %vm356, %v291, 0
      %v361 = vsel %vm356, %v292, 0
      %v364 = vsel %vm356, %v293, 0
      %v367 = vsel %vm356, %v294, 0
      %v370 = vsel %vm356, %v295, 0
      %v373 = vsel %vm356, %v296, 0
      %v376 = vsel %vm356, %v297, 0
      %v379 = vsel %vm356, %v298, 0
      %v382 = vsel %vm356, %v299, 0
      %v385 = vsel %vm356, %v300, 0
      %v388 = vsel %vm356, %v301, 0
      %v391 = vsel %vm356, %v302, 0
      %v394 = vsel %vm356, %v303, 0
      %v397 = vsel %vm356, %v304, 0
      %v400 = vsel %vm356, %v305, 0
      %v403 = vsel %vm356, %v306, 0
      %v406 = vsel %vm356, %v307, 0
      %v409 = vsel %vm356, %v308, 0
      %v412 = vsel %vm356, %v309, 0
      %v415 = vsel %vm356, %v310, 0
      %v418 = vsel %vm356, %v311, 0
      %v421 = vsel %vm356, %v312, 0
      %v424 = vsel %vm356, %v313, 0
      %v427 = vsel %vm356, %v314, 0
      %v430 = vsel %vm356, %v315, 0
      %v433 = vsel %vm356, %v316, 0
      %v436 = vsel %vm356, %v317, 0
      %v439 = vsel %vm356, %v318, 0
      %v442 = vsel %vm356, %v319, 0
      %v445 = vsel %vm356, %v320, 0
      %v448 = vsel %vm356, %v321, 0
      %v451 = vsel %vm356, %v322, 0
      %v454 = vsel %vm356, %v323, 0
      %v457 = vsel %vm356, %v324, 0
      %v460 = vsel %vm356, %v325, 0
      %v463 = vsel %vm356, %v326, 0
      %v466 = vsel %vm356, %v327, 0
      %v469 = vsel %vm356, %v328, 0
      %v472 = vsel %vm356, %v329, 0
      %v475 = vsel %vm356, %v330, 0
      %v478 = vsel %vm356, %v331, 0
      %v481 = vsel %vm356, %v332, 0
      %v484 = vsel %vm356, %v333, 0
      %v487 = vsel %vm356, %v334, 0
      %v490 = vsel %vm356, %v335, 0
      %v493 = vsel %vm356, %v336, 0
      %v496 = vsel %vm356, %v337, 0
      %v499 = vsel %vm356, %v338, 0
      %v502 = vsel %vm356, %v339, 0
      %v505 = vsel %vm356, %v340, 0
      %v508 = vsel %vm356, %v341, 0
      %v511 = vsel %vm356, %v342, 0
      %v514 = vsel %vm356, %v343, 0
      %v517 = vsel %vm356, %v344, 0
      %v520 = vsel %vm356, %v345, 0
      %v523 = vsel %vm356, %v346, 0
      %v526 = vsel %vm356, %v347, 0
      %v529 = vsel %vm356, %v348, 0
      %v532 = vsel %vm356, %v349, 0
      %v535 = vsel %vm356, %v350, 0
      %v538 = vsel %vm356, %v351, 0
      %v541 = vsel %vm356, %v352, 0
      %v544 = vsel %vm356, %v353, 0
      %v547 = vsel %vm356, %v354, 0
      %549 = vmatpush.msra.mxu0 0.0
      %550 = vmatpush.msra.mxu0 0.0
      %551 = vmatpush.msra.mxu0 0.0
      %552 = vmatpush.msra.mxu0 0.0
      %553 = vmatpush.msra.mxu0 0.0
      %554 = vmatpush.msra.mxu0 0.0
      %555 = vmatpush.msra.mxu0 0.0
      %556 = vmatpush.msra.mxu0 0.0
      %557 = vmatpush.msra.mxu0 0.0
      %558 = vmatpush.msra.mxu0 0.0
      %559 = vmatpush.msra.mxu0 0.0
      %560 = vmatpush.msra.mxu0 0.0
      %561 = vmatpush.msra.mxu0 0.0
      %562 = vmatpush.msra.mxu0 0.0
      %563 = vmatpush.msra.mxu0 0.0
      %564 = vmatpush.msra.mxu0 %v355
      %565 = vmatmul.f32.gmra.mxu0 %v358
      %v566 = vpop.f32.mrf.mxu0
      %v567 = vadd.f32 0.0, %v566
      %568 = vmatmul.f32.gmra.mxu0 %v361
      %v569 = vpop.f32.mrf.mxu0
      %v570 = vadd.f32 0.0, %v569
      %571 = vmatmul.f32.gmra.mxu0 %v364
      %v572 = vpop.f32.mrf.mxu0
      %v573 = vadd.f32 0.0, %v572
      %574 = vmatmul.f32.gmra.mxu0 %v367
      %v575 = vpop.f32.mrf.mxu0
      %v576 = vadd.f32 0.0, %v575
      %577 = vmatmul.f32.gmra.mxu0 %v370
      %v578 = vpop.f32.mrf.mxu0
      %v579 = vadd.f32 0.0, %v578
      %580 = vmatmul.f32.gmra.mxu0 %v373
      %v581 = vpop.f32.mrf.mxu0
      %v582 = vadd.f32 0.0, %v581
      %583 = vmatmul.f32.gmra.mxu0 %v376
      %v584 = vpop.f32.mrf.mxu0
      %v585 = vadd.f32 0.0, %v584
      %586 = vmatmul.f32.gmra.mxu0 %v379
      %v587 = vpop.f32.mrf.mxu0
      %v588 = vadd.f32 0.0, %v587
      %589 = vmatmul.f32.gmra.mxu0 %v382
      %v590 = vpop.f32.mrf.mxu0
      %v591 = vadd.f32 0.0, %v590
      %592 = vmatmul.f32.gmra.mxu0 %v385
      %v593 = vpop.f32.mrf.mxu0
      %v594 = vadd.f32 0.0, %v593
      %595 = vmatmul.f32.gmra.mxu0 %v388
      %v596 = vpop.f32.mrf.mxu0
      %v597 = vadd.f32 0.0, %v596
      %598 = vmatmul.f32.gmra.mxu0 %v391
      %v599 = vpop.f32.mrf.mxu0
      %v600 = vadd.f32 0.0, %v599
      %601 = vmatmul.f32.gmra.mxu0 %v394
      %v602 = vpop.f32.mrf.mxu0
      %v603 = vadd.f32 0.0, %v602
      %604 = vmatmul.f32.gmra.mxu0 %v397
      %v605 = vpop.f32.mrf.mxu0
      %v606 = vadd.f32 0.0, %v605
      %607 = vmatmul.f32.gmra.mxu0 %v400
      %v608 = vpop.f32.mrf.mxu0
      %v609 = vadd.f32 0.0, %v608
      %610 = vmatmul.f32.gmra.mxu0 %v403
      %v611 = vpop.f32.mrf.mxu0
      %v612 = vadd.f32 0.0, %v611
      %613 = vmatmul.f32.gmra.mxu0 %v406
      %v614 = vpop.f32.mrf.mxu0
      %v615 = vadd.f32 0.0, %v614
      %616 = vmatmul.f32.gmra.mxu0 %v409
      %v617 = vpop.f32.mrf.mxu0
      %v618 = vadd.f32 0.0, %v617
      %619 = vmatmul.f32.gmra.mxu0 %v412
      %v620 = vpop.f32.mrf.mxu0
      %v621 = vadd.f32 0.0, %v620
      %622 = vmatmul.f32.gmra.mxu0 %v415
      %v623 = vpop.f32.mrf.mxu0
      %v624 = vadd.f32 0.0, %v623
      %625 = vmatmul.f32.gmra.mxu0 %v418
      %v626 = vpop.f32.mrf.mxu0
      %v627 = vadd.f32 0.0, %v626
      %628 = vmatmul.f32.gmra.mxu0 %v421
      %v629 = vpop.f32.mrf.mxu0
      %v630 = vadd.f32 0.0, %v629
      %631 = vmatmul.f32.gmra.mxu0 %v424
      %v632 = vpop.f32.mrf.mxu0
      %v633 = vadd.f32 0.0, %v632
      %634 = vmatmul.f32.gmra.mxu0 %v427
      %v635 = vpop.f32.mrf.mxu0
      %v636 = vadd.f32 0.0, %v635
      %637 = vmatmul.f32.gmra.mxu0 %v430
      %v638 = vpop.f32.mrf.mxu0
      %v639 = vadd.f32 0.0, %v638
      %640 = vmatmul.f32.gmra.mxu0 %v433
      %v641 = vpop.f32.mrf.mxu0
      %v642 = vadd.f32 0.0, %v641
      %643 = vmatmul.f32.gmra.mxu0 %v436
      %v644 = vpop.f32.mrf.mxu0
      %v645 = vadd.f32 0.0, %v644
      %646 = vmatmul.f32.gmra.mxu0 %v439
      %v647 = vpop.f32.mrf.mxu0
      %v648 = vadd.f32 0.0, %v647
      %649 = vmatmul.f32.gmra.mxu0 %v442
      %v650 = vpop.f32.mrf.mxu0
      %v651 = vadd.f32 0.0, %v650
      %652 = vmatmul.f32.gmra.mxu0 %v445
      %v653 = vpop.f32.mrf.mxu0
      %v654 = vadd.f32 0.0, %v653
      %655 = vmatmul.f32.gmra.mxu0 %v448
      %v656 = vpop.f32.mrf.mxu0
      %v657 = vadd.f32 0.0, %v656
      %658 = vmatmul.f32.gmra.mxu0 %v451
      %v659 = vpop.f32.mrf.mxu0
      %v660 = vadd.f32 0.0, %v659
      %661 = vmatmul.f32.gmra.mxu0 %v454
      %v662 = vpop.f32.mrf.mxu0
      %v663 = vadd.f32 0.0, %v662
      %664 = vmatmul.f32.gmra.mxu0 %v457
      %v665 = vpop.f32.mrf.mxu0
      %v666 = vadd.f32 0.0, %v665
      %667 = vmatmul.f32.gmra.mxu0 %v460
      %v668 = vpop.f32.mrf.mxu0
      %v669 = vadd.f32 0.0, %v668
      %670 = vmatmul.f32.gmra.mxu0 %v463
      %v671 = vpop.f32.mrf.mxu0
      %v672 = vadd.f32 0.0, %v671
      %673 = vmatmul.f32.gmra.mxu0 %v466
      %v674 = vpop.f32.mrf.mxu0
      %v675 = vadd.f32 0.0, %v674
      %676 = vmatmul.f32.gmra.mxu0 %v469
      %v677 = vpop.f32.mrf.mxu0
      %v678 = vadd.f32 0.0, %v677
      %679 = vmatmul.f32.gmra.mxu0 %v472
      %v680 = vpop.f32.mrf.mxu0
      %v681 = vadd.f32 0.0, %v680
      %682 = vmatmul.f32.gmra.mxu0 %v475
      %v683 = vpop.f32.mrf.mxu0
      %v684 = vadd.f32 0.0, %v683
      %685 = vmatmul.f32.gmra.mxu0 %v478
      %v686 = vpop.f32.mrf.mxu0
      %v687 = vadd.f32 0.0, %v686
      %688 = vmatmul.f32.gmra.mxu0 %v481
      %v689 = vpop.f32.mrf.mxu0
      %v690 = vadd.f32 0.0, %v689
      %691 = vmatmul.f32.gmra.mxu0 %v484
      %v692 = vpop.f32.mrf.mxu0
      %v693 = vadd.f32 0.0, %v692
      %694 = vmatmul.f32.gmra.mxu0 %v487
      %v695 = vpop.f32.mrf.mxu0
      %v696 = vadd.f32 0.0, %v695
      %697 = vmatmul.f32.gmra.mxu0 %v490
      %v698 = vpop.f32.mrf.mxu0
      %v699 = vadd.f32 0.0, %v698
      %700 = vmatmul.f32.gmra.mxu0 %v493
      %v701 = vpop.f32.mrf.mxu0
      %v702 = vadd.f32 0.0, %v701
      %703 = vmatmul.f32.gmra.mxu0 %v496
      %v704 = vpop.f32.mrf.mxu0
      %v705 = vadd.f32 0.0, %v704
      %706 = vmatmul.f32.gmra.mxu0 %v499
      %v707 = vpop.f32.mrf.mxu0
      %v708 = vadd.f32 0.0, %v707
      %709 = vmatmul.f32.gmra.mxu0 %v502
      %v710 = vpop.f32.mrf.mxu0
      %v711 = vadd.f32 0.0, %v710
      %712 = vmatmul.f32.gmra.mxu0 %v505
      %v713 = vpop.f32.mrf.mxu0
      %v714 = vadd.f32 0.0, %v713
      %715 = vmatmul.f32.gmra.mxu0 %v508
      %v716 = vpop.f32.mrf.mxu0
      %v717 = vadd.f32 0.0, %v716
      %718 = vmatmul.f32.gmra.mxu0 %v511
      %v719 = vpop.f32.mrf.mxu0
      %v720 = vadd.f32 0.0, %v719
      %721 = vmatmul.f32.gmra.mxu0 %v514
      %v722 = vpop.f32.mrf.mxu0
      %v723 = vadd.f32 0.0, %v722
      %724 = vmatmul.f32.gmra.mxu0 %v517
      %v725 = vpop.f32.mrf.mxu0
      %v726 = vadd.f32 0.0, %v725
      %727 = vmatmul.f32.gmra.mxu0 %v520
      %v728 = vpop.f32.mrf.mxu0
      %v729 = vadd.f32 0.0, %v728
      %730 = vmatmul.f32.gmra.mxu0 %v523
      %v731 = vpop.f32.mrf.mxu0
      %v732 = vadd.f32 0.0, %v731
      %733 = vmatmul.f32.gmra.mxu0 %v526
      %v734 = vpop.f32.mrf.mxu0
      %v735 = vadd.f32 0.0, %v734
      %736 = vmatmul.f32.gmra.mxu0 %v529
      %v737 = vpop.f32.mrf.mxu0
      %v738 = vadd.f32 0.0, %v737
      %739 = vmatmul.f32.gmra.mxu0 %v532
      %v740 = vpop.f32.mrf.mxu0
      %v741 = vadd.f32 0.0, %v740
      %742 = vmatmul.f32.gmra.mxu0 %v535
      %v743 = vpop.f32.mrf.mxu0
      %v744 = vadd.f32 0.0, %v743
      %745 = vmatmul.f32.gmra.mxu0 %v538
      %v746 = vpop.f32.mrf.mxu0
      %v747 = vadd.f32 0.0, %v746
      %748 = vmatmul.f32.gmra.mxu0 %v541
      %v749 = vpop.f32.mrf.mxu0
      %v750 = vadd.f32 0.0, %v749
      %751 = vmatmul.f32.gmra.mxu0 %v544
      %v752 = vpop.f32.mrf.mxu0
      %v753 = vadd.f32 0.0, %v752
      %754 = vmatmul.f32.gmra.mxu0 %v547
      %v755 = vpop.f32.mrf.mxu0
      %v756 = vadd.f32 0.0, %v755
      %757 = vdwg.mxu0
      %v758 = vld [vmem:[%s2] sm:$0x1]
      %v760 = vperm.slane %v758, 0
      %v762 = vmul.f32 %v567, %v760
      %v763 = vmul.f32 %v570, %v760
      %v764 = vmul.f32 %v573, %v760
      %v765 = vmul.f32 %v576, %v760
      %v766 = vmul.f32 %v579, %v760
      %v767 = vmul.f32 %v582, %v760
      %v768 = vmul.f32 %v585, %v760
      %v769 = vmul.f32 %v588, %v760
      %v770 = vmul.f32 %v591, %v760
      %v771 = vmul.f32 %v594, %v760
      %v772 = vmul.f32 %v597, %v760
      %v773 = vmul.f32 %v600, %v760
      %v774 = vmul.f32 %v603, %v760
      %v775 = vmul.f32 %v606, %v760
      %v776 = vmul.f32 %v609, %v760
      %v777 = vmul.f32 %v612, %v760
      %v778 = vmul.f32 %v615, %v760
      %v779 = vmul.f32 %v618, %v760
      %v780 = vmul.f32 %v621, %v760
      %v781 = vmul.f32 %v624, %v760
      %v782 = vmul.f32 %v627, %v760
      %v783 = vmul.f32 %v630, %v760
      %v784 = vmul.f32 %v633, %v760
      %v785 = vmul.f32 %v636, %v760
      %v786 = vmul.f32 %v639, %v760
      %v787 = vmul.f32 %v642, %v760
      %v788 = vmul.f32 %v645, %v760
      %v789 = vmul.f32 %v648, %v760
      %v790 = vmul.f32 %v651, %v760
      %v791 = vmul.f32 %v654, %v760
      %v792 = vmul.f32 %v657, %v760
      %v793 = vmul.f32 %v660, %v760
      %v794 = vmul.f32 %v663, %v760
      %v795 = vmul.f32 %v666, %v760
      %v796 = vmul.f32 %v669, %v760
      %v797 = vmul.f32 %v672, %v760
      %v798 = vmul.f32 %v675, %v760
      %v799 = vmul.f32 %v678, %v760
      %v800 = vmul.f32 %v681, %v760
      %v801 = vmul.f32 %v684, %v760
      %v802 = vmul.f32 %v687, %v760
      %v803 = vmul.f32 %v690, %v760
      %v804 = vmul.f32 %v693, %v760
      %v805 = vmul.f32 %v696, %v760
      %v806 = vmul.f32 %v699, %v760
      %v807 = vmul.f32 %v702, %v760
      %v808 = vmul.f32 %v705, %v760
      %v809 = vmul.f32 %v708, %v760
      %v810 = vmul.f32 %v711, %v760
      %v811 = vmul.f32 %v714, %v760
      %v812 = vmul.f32 %v717, %v760
      %v813 = vmul.f32 %v720, %v760
      %v814 = vmul.f32 %v723, %v760
      %v815 = vmul.f32 %v726, %v760
      %v816 = vmul.f32 %v729, %v760
      %v817 = vmul.f32 %v732, %v760
      %v818 = vmul.f32 %v735, %v760
      %v819 = vmul.f32 %v738, %v760
      %v820 = vmul.f32 %v741, %v760
      %v821 = vmul.f32 %v744, %v760
      %v822 = vmul.f32 %v747, %v760
      %v823 = vmul.f32 %v750, %v760
      %v824 = vmul.f32 %v753, %v760
      %v825 = vmul.f32 %v756, %v760
      %v826 = vld [vmem:[%s3] sm:$0x1]
      %v828 = vperm.slane %v826, 0
      %v830 = vadd.f32 %v762, %v828
      %v831 = vadd.f32 %v763, %v828
      %v832 = vadd.f32 %v764, %v828
      %v833 = vadd.f32 %v765, %v828
      %v834 = vadd.f32 %v766, %v828
      %v835 = vadd.f32 %v767, %v828
      %v836 = vadd.f32 %v768, %v828
      %v837 = vadd.f32 %v769, %v828
      %v838 = vadd.f32 %v770, %v828
      %v839 = vadd.f32 %v771, %v828
      %v840 = vadd.f32 %v772, %v828
      %v841 = vadd.f32 %v773, %v828
      %v842 = vadd.f32 %v774, %v828
      %v843 = vadd.f32 %v775, %v828
      %v844 = vadd.f32 %v776, %v828
      %v845 = vadd.f32 %v777, %v828
      %v846 = vadd.f32 %v778, %v828
      %v847 = vadd.f32 %v779, %v828
      %v848 = vadd.f32 %v780, %v828
      %v849 = vadd.f32 %v781, %v828
      %v850 = vadd.f32 %v782, %v828
      %v851 = vadd.f32 %v783, %v828
      %v852 = vadd.f32 %v784, %v828
      %v853 = vadd.f32 %v785, %v828
      %v854 = vadd.f32 %v786, %v828
      %v855 = vadd.f32 %v787, %v828
      %v856 = vadd.f32 %v788, %v828
      %v857 = vadd.f32 %v789, %v828
      %v858 = vadd.f32 %v790, %v828
      %v859 = vadd.f32 %v791, %v828
      %v860 = vadd.f32 %v792, %v828
      %v861 = vadd.f32 %v793, %v828
      %v862 = vadd.f32 %v794, %v828
      %v863 = vadd.f32 %v795, %v828
      %v864 = vadd.f32 %v796, %v828
      %v865 = vadd.f32 %v797, %v828
      %v866 = vadd.f32 %v798, %v828
      %v867 = vadd.f32 %v799, %v828
      %v868 = vadd.f32 %v800, %v828
      %v869 = vadd.f32 %v801, %v828
      %v870 = vadd.f32 %v802, %v828
      %v871 = vadd.f32 %v803, %v828
      %v872 = vadd.f32 %v804, %v828
      %v873 = vadd.f32 %v805, %v828
      %v874 = vadd.f32 %v806, %v828
      %v875 = vadd.f32 %v807, %v828
      %v876 = vadd.f32 %v808, %v828
      %v877 = vadd.f32 %v809, %v828
      %v878 = vadd.f32 %v810, %v828
      %v879 = vadd.f32 %v811, %v828
      %v880 = vadd.f32 %v812, %v828
      %v881 = vadd.f32 %v813, %v828
      %v882 = vadd.f32 %v814, %v828
      %v883 = vadd.f32 %v815, %v828
      %v884 = vadd.f32 %v816, %v828
      %v885 = vadd.f32 %v817, %v828
      %v886 = vadd.f32 %v818, %v828
      %v887 = vadd.f32 %v819, %v828
      %v888 = vadd.f32 %v820, %v828
      %v889 = vadd.f32 %v821, %v828
      %v890 = vadd.f32 %v822, %v828
      %v891 = vadd.f32 %v823, %v828
      %v892 = vadd.f32 %v824, %v828
      %v893 = vadd.f32 %v825, %v828
      %v894 = vmax.f32 %v830, 0.0
      %v895 = vmax.f32 %v831, 0.0
      %v896 = vmax.f32 %v832, 0.0
      %v897 = vmax.f32 %v833, 0.0
      %v898 = vmax.f32 %v834, 0.0
      %v899 = vmax.f32 %v835, 0.0
      %v900 = vmax.f32 %v836, 0.0
      %v901 = vmax.f32 %v837, 0.0
      %v902 = vmax.f32 %v838, 0.0
      %v903 = vmax.f32 %v839, 0.0
      %v904 = vmax.f32 %v840, 0.0
      %v905 = vmax.f32 %v841, 0.0
      %v906 = vmax.f32 %v842, 0.0
      %v907 = vmax.f32 %v843, 0.0
      %v908 = vmax.f32 %v844, 0.0
      %v909 = vmax.f32 %v845, 0.0
      %v910 = vmax.f32 %v846, 0.0
      %v911 = vmax.f32 %v847, 0.0
      %v912 = vmax.f32 %v848, 0.0
      %v913 = vmax.f32 %v849, 0.0
      %v914 = vmax.f32 %v850, 0.0
      %v915 = vmax.f32 %v851, 0.0
      %v916 = vmax.f32 %v852, 0.0
      %v917 = vmax.f32 %v853, 0.0
      %v918 = vmax.f32 %v854, 0.0
      %v919 = vmax.f32 %v855, 0.0
      %v920 = vmax.f32 %v856, 0.0
      %v921 = vmax.f32 %v857, 0.0
      %v922 = vmax.f32 %v858, 0.0
      %v923 = vmax.f32 %v859, 0.0
      %v924 = vmax.f32 %v860, 0.0
      %v925 = vmax.f32 %v861, 0.0
      %v926 = vmax.f32 %v862, 0.0
      %v927 = vmax.f32 %v863, 0.0
      %v928 = vmax.f32 %v864, 0.0
      %v929 = vmax.f32 %v865, 0.0
      %v930 = vmax.f32 %v866, 0.0
      %v931 = vmax.f32 %v867, 0.0
      %v932 = vmax.f32 %v868, 0.0
      %v933 = vmax.f32 %v869, 0.0
      %v934 = vmax.f32 %v870, 0.0
      %v935 = vmax.f32 %v871, 0.0
      %v936 = vmax.f32 %v872, 0.0
      %v937 = vmax.f32 %v873, 0.0
      %v938 = vmax.f32 %v874, 0.0
      %v939 = vmax.f32 %v875, 0.0
      %v940 = vmax.f32 %v876, 0.0
      %v941 = vmax.f32 %v877, 0.0
      %v942 = vmax.f32 %v878, 0.0
      %v943 = vmax.f32 %v879, 0.0
      %v944 = vmax.f32 %v880, 0.0
      %v945 = vmax.f32 %v881, 0.0
      %v946 = vmax.f32 %v882, 0.0
      %v947 = vmax.f32 %v883, 0.0
      %v948 = vmax.f32 %v884, 0.0
      %v949 = vmax.f32 %v885, 0.0
      %v950 = vmax.f32 %v886, 0.0
      %v951 = vmax.f32 %v887, 0.0
      %v952 = vmax.f32 %v888, 0.0
      %v953 = vmax.f32 %v889, 0.0
      %v954 = vmax.f32 %v890, 0.0
      %v955 = vmax.f32 %v891, 0.0
      %v956 = vmax.f32 %v892, 0.0
      %v957 = vmax.f32 %v893, 0.0
      %v958 = vld [vmem:[%s4] sm:$0xff]
      %v959 = vld [vmem:[%s4 + $0x8] sm:$0xff]
      %v960 = vld [vmem:[%s4 + $0x10] sm:$0xff]
      %v961 = vld [vmem:[%s4 + $0x18] sm:$0xff]
      %v962 = vld [vmem:[%s4 + $0x20] sm:$0xff]
      %v963 = vld [vmem:[%s4 + $0x28] sm:$0xff]
      %v964 = vld [vmem:[%s4 + $0x30] sm:$0xff]
      %v965 = vld [vmem:[%s4 + $0x38] sm:$0xff]
      %vm966 = vcmask 523264
      %v968 = vsel %vm966, %v894, 0
      %v971 = vsel %vm966, %v895, 0
      %v974 = vsel %vm966, %v896, 0
      %v977 = vsel %vm966, %v897, 0
      %v980 = vsel %vm966, %v898, 0
      %v983 = vsel %vm966, %v899, 0
      %v986 = vsel %vm966, %v900, 0
      %v989 = vsel %vm966, %v901, 0
      %v992 = vsel %vm966, %v902, 0
      %v995 = vsel %vm966, %v903, 0
      %v998 = vsel %vm966, %v904, 0
      %v1001 = vsel %vm966, %v905, 0
      %v1004 = vsel %vm966, %v906, 0
      %v1007 = vsel %vm966, %v907, 0
      %v1010 = vsel %vm966, %v908, 0
      %v1013 = vsel %vm966, %v909, 0
      %v1016 = vsel %vm966, %v910, 0
      %v1019 = vsel %vm966, %v911, 0
      %v1022 = vsel %vm966, %v912, 0
      %v1025 = vsel %vm966, %v913, 0
      %v1028 = vsel %vm966, %v914, 0
      %v1031 = vsel %vm966, %v915, 0
      %v1034 = vsel %vm966, %v916, 0
      %v1037 = vsel %vm966, %v917, 0
      %v1040 = vsel %vm966, %v918, 0
      %v1043 = vsel %vm966, %v919, 0
      %v1046 = vsel %vm966, %v920, 0
      %v1049 = vsel %vm966, %v921, 0
      %v1052 = vsel %vm966, %v922, 0
      %v1055 = vsel %vm966, %v923, 0
      %v1058 = vsel %vm966, %v924, 0
      %v1061 = vsel %vm966, %v925, 0
      %v1064 = vsel %vm966, %v926, 0
      %v1067 = vsel %vm966, %v927, 0
      %v1070 = vsel %vm966, %v928, 0
      %v1073 = vsel %vm966, %v929, 0
      %v1076 = vsel %vm966, %v930, 0
      %v1079 = vsel %vm966, %v931, 0
      %v1082 = vsel %vm966, %v932, 0
      %v1085 = vsel %vm966, %v933, 0
      %v1088 = vsel %vm966, %v934, 0
      %v1091 = vsel %vm966, %v935, 0
      %v1094 = vsel %vm966, %v936, 0
      %v1097 = vsel %vm966, %v937, 0
      %v1100 = vsel %vm966, %v938, 0
      %v1103 = vsel %vm966, %v939, 0
      %v1106 = vsel %vm966, %v940, 0
      %v1109 = vsel %vm966, %v941, 0
      %v1112 = vsel %vm966, %v942, 0
      %v1115 = vsel %vm966, %v943, 0
      %v1118 = vsel %vm966, %v944, 0
      %v1121 = vsel %vm966, %v945, 0
      %v1124 = vsel %vm966, %v946, 0
      %v1127 = vsel %vm966, %v947, 0
      %v1130 = vsel %vm966, %v948, 0
      %v1133 = vsel %vm966, %v949, 0
      %v1136 = vsel %vm966, %v950, 0
      %v1139 = vsel %vm966, %v951, 0
      %v1142 = vsel %vm966, %v952, 0
      %v1145 = vsel %vm966, %v953, 0
      %v1148 = vsel %vm966, %v954, 0
      %v1151 = vsel %vm966, %v955, 0
      %v1154 = vsel %vm966, %v956, 0
      %v1157 = vsel %vm966, %v957, 0
      %1159 = vmatpush.msra.mxu0 0.0
      %1160 = vmatpush.msra.mxu0 0.0
      %1161 = vmatpush.msra.mxu0 0.0
      %1162 = vmatpush.msra.mxu0 0.0
      %1163 = vmatpush.msra.mxu0 0.0
      %1164 = vmatpush.msra.mxu0 0.0
      %1165 = vmatpush.msra.mxu0 0.0
      %1166 = vmatpush.msra.mxu0 0.0
      %1167 = vmatpush.msra.mxu0 %v965
      %1168 = vmatpush.msra.mxu0 %v964
      %1169 = vmatpush.msra.mxu0 %v963
      %1170 = vmatpush.msra.mxu0 %v962
      %1171 = vmatpush.msra.mxu0 %v961
      %1172 = vmatpush.msra.mxu0 %v960
      %1173 = vmatpush.msra.mxu0 %v959
      %1174 = vmatpush.msra.mxu0 %v958
      %1175 = vmatmul.f32.gmra.mxu0 %v968
      %v1176 = vpop.f32.mrf.mxu0
      %v1177 = vadd.f32 0.0, %v1176
      %1178 = vmatmul.f32.gmra.mxu0 %v971
      %v1179 = vpop.f32.mrf.mxu0
      %v1180 = vadd.f32 0.0, %v1179
      %1181 = vmatmul.f32.gmra.mxu0 %v974
      %v1182 = vpop.f32.mrf.mxu0
      %v1183 = vadd.f32 0.0, %v1182
      %1184 = vmatmul.f32.gmra.mxu0 %v977
      %v1185 = vpop.f32.mrf.mxu0
      %v1186 = vadd.f32 0.0, %v1185
      %1187 = vmatmul.f32.gmra.mxu0 %v980
      %v1188 = vpop.f32.mrf.mxu0
      %v1189 = vadd.f32 0.0, %v1188
      %1190 = vmatmul.f32.gmra.mxu0 %v983
      %v1191 = vpop.f32.mrf.mxu0
      %v1192 = vadd.f32 0.0, %v1191
      %1193 = vmatmul.f32.gmra.mxu0 %v986
      %v1194 = vpop.f32.mrf.mxu0
      %v1195 = vadd.f32 0.0, %v1194
      %1196 = vmatmul.f32.gmra.mxu0 %v989
      %v1197 = vpop.f32.mrf.mxu0
      %v1198 = vadd.f32 0.0, %v1197
      %1199 = vmatmul.f32.gmra.mxu0 %v992
      %v1200 = vpop.f32.mrf.mxu0
      %v1201 = vadd.f32 0.0, %v1200
      %1202 = vmatmul.f32.gmra.mxu0 %v995
      %v1203 = vpop.f32.mrf.mxu0
      %v1204 = vadd.f32 0.0, %v1203
      %1205 = vmatmul.f32.gmra.mxu0 %v998
      %v1206 = vpop.f32.mrf.mxu0
      %v1207 = vadd.f32 0.0, %v1206
      %1208 = vmatmul.f32.gmra.mxu0 %v1001
      %v1209 = vpop.f32.mrf.mxu0
      %v1210 = vadd.f32 0.0, %v1209
      %1211 = vmatmul.f32.gmra.mxu0 %v1004
      %v1212 = vpop.f32.mrf.mxu0
      %v1213 = vadd.f32 0.0, %v1212
      %1214 = vmatmul.f32.gmra.mxu0 %v1007
      %v1215 = vpop.f32.mrf.mxu0
      %v1216 = vadd.f32 0.0, %v1215
      %1217 = vmatmul.f32.gmra.mxu0 %v1010
      %v1218 = vpop.f32.mrf.mxu0
      %v1219 = vadd.f32 0.0, %v1218
      %1220 = vmatmul.f32.gmra.mxu0 %v1013
      %v1221 = vpop.f32.mrf.mxu0
      %v1222 = vadd.f32 0.0, %v1221
      %1223 = vmatmul.f32.gmra.mxu0 %v1016
      %v1224 = vpop.f32.mrf.mxu0
      %v1225 = vadd.f32 0.0, %v1224
      %1226 = vmatmul.f32.gmra.mxu0 %v1019
      %v1227 = vpop.f32.mrf.mxu0
      %v1228 = vadd.f32 0.0, %v1227
      %1229 = vmatmul.f32.gmra.mxu0 %v1022
      %v1230 = vpop.f32.mrf.mxu0
      %v1231 = vadd.f32 0.0, %v1230
      %1232 = vmatmul.f32.gmra.mxu0 %v1025
      %v1233 = vpop.f32.mrf.mxu0
      %v1234 = vadd.f32 0.0, %v1233
      %1235 = vmatmul.f32.gmra.mxu0 %v1028
      %v1236 = vpop.f32.mrf.mxu0
      %v1237 = vadd.f32 0.0, %v1236
      %1238 = vmatmul.f32.gmra.mxu0 %v1031
      %v1239 = vpop.f32.mrf.mxu0
      %v1240 = vadd.f32 0.0, %v1239
      %1241 = vmatmul.f32.gmra.mxu0 %v1034
      %v1242 = vpop.f32.mrf.mxu0
      %v1243 = vadd.f32 0.0, %v1242
      %1244 = vmatmul.f32.gmra.mxu0 %v1037
      %v1245 = vpop.f32.mrf.mxu0
      %v1246 = vadd.f32 0.0, %v1245
      %1247 = vmatmul.f32.gmra.mxu0 %v1040
      %v1248 = vpop.f32.mrf.mxu0
      %v1249 = vadd.f32 0.0, %v1248
      %1250 = vmatmul.f32.gmra.mxu0 %v1043
      %v1251 = vpop.f32.mrf.mxu0
      %v1252 = vadd.f32 0.0, %v1251
      %1253 = vmatmul.f32.gmra.mxu0 %v1046
      %v1254 = vpop.f32.mrf.mxu0
      %v1255 = vadd.f32 0.0, %v1254
      %1256 = vmatmul.f32.gmra.mxu0 %v1049
      %v1257 = vpop.f32.mrf.mxu0
      %v1258 = vadd.f32 0.0, %v1257
      %1259 = vmatmul.f32.gmra.mxu0 %v1052
      %v1260 = vpop.f32.mrf.mxu0
      %v1261 = vadd.f32 0.0, %v1260
      %1262 = vmatmul.f32.gmra.mxu0 %v1055
      %v1263 = vpop.f32.mrf.mxu0
      %v1264 = vadd.f32 0.0, %v1263
      %1265 = vmatmul.f32.gmra.mxu0 %v1058
      %v1266 = vpop.f32.mrf.mxu0
      %v1267 = vadd.f32 0.0, %v1266
      %1268 = vmatmul.f32.gmra.mxu0 %v1061
      %v1269 = vpop.f32.mrf.mxu0
      %v1270 = vadd.f32 0.0, %v1269
      %1271 = vmatmul.f32.gmra.mxu0 %v1064
      %v1272 = vpop.f32.mrf.mxu0
      %v1273 = vadd.f32 0.0, %v1272
      %1274 = vmatmul.f32.gmra.mxu0 %v1067
      %v1275 = vpop.f32.mrf.mxu0
      %v1276 = vadd.f32 0.0, %v1275
      %1277 = vmatmul.f32.gmra.mxu0 %v1070
      %v1278 = vpop.f32.mrf.mxu0
      %v1279 = vadd.f32 0.0, %v1278
      %1280 = vmatmul.f32.gmra.mxu0 %v1073
      %v1281 = vpop.f32.mrf.mxu0
      %v1282 = vadd.f32 0.0, %v1281
      %1283 = vmatmul.f32.gmra.mxu0 %v1076
      %v1284 = vpop.f32.mrf.mxu0
      %v1285 = vadd.f32 0.0, %v1284
      %1286 = vmatmul.f32.gmra.mxu0 %v1079
      %v1287 = vpop.f32.mrf.mxu0
      %v1288 = vadd.f32 0.0, %v1287
      %1289 = vmatmul.f32.gmra.mxu0 %v1082
      %v1290 = vpop.f32.mrf.mxu0
      %v1291 = vadd.f32 0.0, %v1290
      %1292 = vmatmul.f32.gmra.mxu0 %v1085
      %v1293 = vpop.f32.mrf.mxu0
      %v1294 = vadd.f32 0.0, %v1293
      %1295 = vmatmul.f32.gmra.mxu0 %v1088
      %v1296 = vpop.f32.mrf.mxu0
      %v1297 = vadd.f32 0.0, %v1296
      %1298 = vmatmul.f32.gmra.mxu0 %v1091
      %v1299 = vpop.f32.mrf.mxu0
      %v1300 = vadd.f32 0.0, %v1299
      %1301 = vmatmul.f32.gmra.mxu0 %v1094
      %v1302 = vpop.f32.mrf.mxu0
      %v1303 = vadd.f32 0.0, %v1302
      %1304 = vmatmul.f32.gmra.mxu0 %v1097
      %v1305 = vpop.f32.mrf.mxu0
      %v1306 = vadd.f32 0.0, %v1305
      %1307 = vmatmul.f32.gmra.mxu0 %v1100
      %v1308 = vpop.f32.mrf.mxu0
      %v1309 = vadd.f32 0.0, %v1308
      %1310 = vmatmul.f32.gmra.mxu0 %v1103
      %v1311 = vpop.f32.mrf.mxu0
      %v1312 = vadd.f32 0.0, %v1311
      %1313 = vmatmul.f32.gmra.mxu0 %v1106
      %v1314 = vpop.f32.mrf.mxu0
      %v1315 = vadd.f32 0.0, %v1314
      %1316 = vmatmul.f32.gmra.mxu0 %v1109
      %v1317 = vpop.f32.mrf.mxu0
      %v1318 = vadd.f32 0.0, %v1317
      %1319 = vmatmul.f32.gmra.mxu0 %v1112
      %v1320 = vpop.f32.mrf.mxu0
      %v1321 = vadd.f32 0.0, %v1320
      %1322 = vmatmul.f32.gmra.mxu0 %v1115
      %v1323 = vpop.f32.mrf.mxu0
      %v1324 = vadd.f32 0.0, %v1323
      %1325 = vmatmul.f32.gmra.mxu0 %v1118
      %v1326 = vpop.f32.mrf.mxu0
      %v1327 = vadd.f32 0.0, %v1326
      %1328 = vmatmul.f32.gmra.mxu0 %v1121
      %v1329 = vpop.f32.mrf.mxu0
      %v1330 = vadd.f32 0.0, %v1329
      %1331 = vmatmul.f32.gmra.mxu0 %v1124
      %v1332 = vpop.f32.mrf.mxu0
      %v1333 = vadd.f32 0.0, %v1332
      %1334 = vmatmul.f32.gmra.mxu0 %v1127
      %v1335 = vpop.f32.mrf.mxu0
      %v1336 = vadd.f32 0.0, %v1335
      %1337 = vmatmul.f32.gmra.mxu0 %v1130
      %v1338 = vpop.f32.mrf.mxu0
      %v1339 = vadd.f32 0.0, %v1338
      %1340 = vmatmul.f32.gmra.mxu0 %v1133
      %v1341 = vpop.f32.mrf.mxu0
      %v1342 = vadd.f32 0.0, %v1341
      %1343 = vmatmul.f32.gmra.mxu0 %v1136
      %v1344 = vpop.f32.mrf.mxu0
      %v1345 = vadd.f32 0.0, %v1344
      %1346 = vmatmul.f32.gmra.mxu0 %v1139
      %v1347 = vpop.f32.mrf.mxu0
      %v1348 = vadd.f32 0.0, %v1347
      %1349 = vmatmul.f32.gmra.mxu0 %v1142
      %v1350 = vpop.f32.mrf.mxu0
      %v1351 = vadd.f32 0.0, %v1350
      %1352 = vmatmul.f32.gmra.mxu0 %v1145
      %v1353 = vpop.f32.mrf.mxu0
      %v1354 = vadd.f32 0.0, %v1353
      %1355 = vmatmul.f32.gmra.mxu0 %v1148
      %v1356 = vpop.f32.mrf.mxu0
      %v1357 = vadd.f32 0.0, %v1356
      %1358 = vmatmul.f32.gmra.mxu0 %v1151
      %v1359 = vpop.f32.mrf.mxu0
      %v1360 = vadd.f32 0.0, %v1359
      %1361 = vmatmul.f32.gmra.mxu0 %v1154
      %v1362 = vpop.f32.mrf.mxu0
      %v1363 = vadd.f32 0.0, %v1362
      %1364 = vmatmul.f32.gmra.mxu0 %v1157
      %v1365 = vpop.f32.mrf.mxu0
      %v1366 = vadd.f32 0.0, %v1365
      %1367 = vdwg.mxu0
      %v1368 = vld [vmem:[%s281] sm:$0x1]
      %v1369 = vadd.f32 %v1177, %v1180
      %v1370 = vadd.f32 %v1369, %v1183
      %v1371 = vadd.f32 %v1370, %v1186
      %v1372 = vadd.f32 %v1371, %v1189
      %v1373 = vadd.f32 %v1372, %v1192
      %v1374 = vadd.f32 %v1373, %v1195
      %v1375 = vadd.f32 %v1374, %v1198
      %v1376 = vadd.f32 %v1375, %v1201
      %v1377 = vadd.f32 %v1376, %v1204
      %v1378 = vadd.f32 %v1377, %v1207
      %v1379 = vadd.f32 %v1378, %v1210
      %v1380 = vadd.f32 %v1379, %v1213
      %v1381 = vadd.f32 %v1380, %v1216
      %v1382 = vadd.f32 %v1381, %v1219
      %v1383 = vadd.f32 %v1382, %v1222
      %v1384 = vadd.f32 %v1383, %v1225
      %v1385 = vadd.f32 %v1384, %v1228
      %v1386 = vadd.f32 %v1385, %v1231
      %v1387 = vadd.f32 %v1386, %v1234
      %v1388 = vadd.f32 %v1387, %v1237
      %v1389 = vadd.f32 %v1388, %v1240
      %v1390 = vadd.f32 %v1389, %v1243
      %v1391 = vadd.f32 %v1390, %v1246
      %v1392 = vadd.f32 %v1391, %v1249
      %v1393 = vadd.f32 %v1392, %v1252
      %v1394 = vadd.f32 %v1393, %v1255
      %v1395 = vadd.f32 %v1394, %v1258
      %v1396 = vadd.f32 %v1395, %v1261
      %v1397 = vadd.f32 %v1396, %v1264
      %v1398 = vadd.f32 %v1397, %v1267
      %v1399 = vadd.f32 %v1398, %v1270
      %v1400 = vadd.f32 %v1399, %v1273
      %v1401 = vadd.f32 %v1400, %v1276
      %v1402 = vadd.f32 %v1401, %v1279
      %v1403 = vadd.f32 %v1402, %v1282
      %v1404 = vadd.f32 %v1403, %v1285
      %v1405 = vadd.f32 %v1404, %v1288
      %v1406 = vadd.f32 %v1405, %v1291
      %v1407 = vadd.f32 %v1406, %v1294
      %v1408 = vadd.f32 %v1407, %v1297
      %v1409 = vadd.f32 %v1408, %v1300
      %v1410 = vadd.f32 %v1409, %v1303
      %v1411 = vadd.f32 %v1410, %v1306
      %v1412 = vadd.f32 %v1411, %v1309
      %v1413 = vadd.f32 %v1412, %v1312
      %v1414 = vadd.f32 %v1413, %v1315
      %v1415 = vadd.f32 %v1414, %v1318
      %v1416 = vadd.f32 %v1415, %v1321
      %v1417 = vadd.f32 %v1416, %v1324
      %v1418 = vadd.f32 %v1417, %v1327
      %v1419 = vadd.f32 %v1418, %v1330
      %v1420 = vadd.f32 %v1419, %v1333
      %v1421 = vadd.f32 %v1420, %v1336
      %v1422 = vadd.f32 %v1421, %v1339
      %v1423 = vadd.f32 %v1422, %v1342
      %v1424 = vadd.f32 %v1423, %v1345
      %v1425 = vadd.f32 %v1424, %v1348
      %v1426 = vadd.f32 %v1425, %v1351
      %v1427 = vadd.f32 %v1426, %v1354
      %v1428 = vadd.f32 %v1427, %v1357
      %v1429 = vadd.f32 %v1428, %v1360
      %v1430 = vadd.f32 %v1429, %v1363
      %v1431 = vadd.f32 %v1430, %v1366
      %v1432 = vrot.slane %v1431, 4
      %v1433 = vadd.f32 %v1431, %v1432
      %v1434 = vrot.slane %v1433, 2
      %v1435 = vadd.f32 %v1433, %v1434
      %v1436 = vrot.slane %v1435, 1
      %v1437 = vadd.f32 %v1435, %v1436
      %v1438 = vadd.f32 %v1368, %v1437
      %1439 = vst [vmem:[%s281] sm:$0x1] %v1438
      %v1440 = vld [vmem:[%s284] sm:$0x1]
      %v1441 = vmul.f32 %v1177, %v1177
      %v1442 = vmul.f32 %v1180, %v1180
      %v1443 = vmul.f32 %v1183, %v1183
      %v1444 = vmul.f32 %v1186, %v1186
      %v1445 = vmul.f32 %v1189, %v1189
      %v1446 = vmul.f32 %v1192, %v1192
      %v1447 = vmul.f32 %v1195, %v1195
      %v1448 = vmul.f32 %v1198, %v1198
      %v1449 = vmul.f32 %v1201, %v1201
      %v1450 = vmul.f32 %v1204, %v1204
      %v1451 = vmul.f32 %v1207, %v1207
      %v1452 = vmul.f32 %v1210, %v1210
      %v1453 = vmul.f32 %v1213, %v1213
      %v1454 = vmul.f32 %v1216, %v1216
      %v1455 = vmul.f32 %v1219, %v1219
      %v1456 = vmul.f32 %v1222, %v1222
      %v1457 = vmul.f32 %v1225, %v1225
      %v1458 = vmul.f32 %v1228, %v1228
      %v1459 = vmul.f32 %v1231, %v1231
      %v1460 = vmul.f32 %v1234, %v1234
      %v1461 = vmul.f32 %v1237, %v1237
      %v1462 = vmul.f32 %v1240, %v1240
      %v1463 = vmul.f32 %v1243, %v1243
      %v1464 = vmul.f32 %v1246, %v1246
      %v1465 = vmul.f32 %v1249, %v1249
      %v1466 = vmul.f32 %v1252, %v1252
      %v1467 = vmul.f32 %v1255, %v1255
      %v1468 = vmul.f32 %v1258, %v1258
      %v1469 = vmul.f32 %v1261, %v1261
      %v1470 = vmul.f32 %v1264, %v1264
      %v1471 = vmul.f32 %v1267, %v1267
      %v1472 = vmul.f32 %v1270, %v1270
      %v1473 = vmul.f32 %v1273, %v1273
      %v1474 = vmul.f32 %v1276, %v1276
      %v1475 = vmul.f32 %v1279, %v1279
      %v1476 = vmul.f32 %v1282, %v1282
      %v1477 = vmul.f32 %v1285, %v1285
      %v1478 = vmul.f32 %v1288, %v1288
      %v1479 = vmul.f32 %v1291, %v1291
      %v1480 = vmul.f32 %v1294, %v1294
      %v1481 = vmul.f32 %v1297, %v1297
      %v1482 = vmul.f32 %v1300, %v1300
      %v1483 = vmul.f32 %v1303, %v1303
      %v1484 = vmul.f32 %v1306, %v1306
      %v1485 = vmul.f32 %v1309, %v1309
      %v1486 = vmul.f32 %v1312, %v1312
      %v1487 = vmul.f32 %v1315, %v1315
      %v1488 = vmul.f32 %v1318, %v1318
      %v1489 = vmul.f32 %v1321, %v1321
      %v1490 = vmul.f32 %v1324, %v1324
      %v1491 = vmul.f32 %v1327, %v1327
      %v1492 = vmul.f32 %v1330, %v1330
      %v1493 = vmul.f32 %v1333, %v1333
      %v1494 = vmul.f32 %v1336, %v1336
      %v1495 = vmul.f32 %v1339, %v1339
      %v1496 = vmul.f32 %v1342, %v1342
      %v1497 = vmul.f32 %v1345, %v1345
      %v1498 = vmul.f32 %v1348, %v1348
      %v1499 = vmul.f32 %v1351, %v1351
      %v1500 = vmul.f32 %v1354, %v1354
      %v1501 = vmul.f32 %v1357, %v1357
      %v1502 = vmul.f32 %v1360, %v1360
      %v1503 = vmul.f32 %v1363, %v1363
      %v1504 = vmul.f32 %v1366, %v1366
      %v1505 = vadd.f32 %v1441, %v1442
      %v1506 = vadd.f32 %v1505, %v1443
      %v1507 = vadd.f32 %v1506, %v1444
      %v1508 = vadd.f32 %v1507, %v1445
      %v1509 = vadd.f32 %v1508, %v1446
      %v1510 = vadd.f32 %v1509, %v1447
      %v1511 = vadd.f32 %v1510, %v1448
      %v1512 = vadd.f32 %v1511, %v1449
      %v1513 = vadd.f32 %v1512, %v1450
      %v1514 = vadd.f32 %v1513, %v1451
      %v1515 = vadd.f32 %v1514, %v1452
      %v1516 = vadd.f32 %v1515, %v1453
      %v1517 = vadd.f32 %v1516, %v1454
      %v1518 = vadd.f32 %v1517, %v1455
      %v1519 = vadd.f32 %v1518, %v1456
      %v1520 = vadd.f32 %v1519, %v1457
      %v1521 = vadd.f32 %v1520, %v1458
      %v1522 = vadd.f32 %v1521, %v1459
      %v1523 = vadd.f32 %v1522, %v1460
      %v1524 = vadd.f32 %v1523, %v1461
      %v1525 = vadd.f32 %v1524, %v1462
      %v1526 = vadd.f32 %v1525, %v1463
      %v1527 = vadd.f32 %v1526, %v1464
      %v1528 = vadd.f32 %v1527, %v1465
      %v1529 = vadd.f32 %v1528, %v1466
      %v1530 = vadd.f32 %v1529, %v1467
      %v1531 = vadd.f32 %v1530, %v1468
      %v1532 = vadd.f32 %v1531, %v1469
      %v1533 = vadd.f32 %v1532, %v1470
      %v1534 = vadd.f32 %v1533, %v1471
      %v1535 = vadd.f32 %v1534, %v1472
      %v1536 = vadd.f32 %v1535, %v1473
      %v1537 = vadd.f32 %v1536, %v1474
      %v1538 = vadd.f32 %v1537, %v1475
      %v1539 = vadd.f32 %v1538, %v1476
      %v1540 = vadd.f32 %v1539, %v1477
      %v1541 = vadd.f32 %v1540, %v1478
      %v1542 = vadd.f32 %v1541, %v1479
      %v1543 = vadd.f32 %v1542, %v1480
      %v1544 = vadd.f32 %v1543, %v1481
      %v1545 = vadd.f32 %v1544, %v1482
      %v1546 = vadd.f32 %v1545, %v1483
      %v1547 = vadd.f32 %v1546, %v1484
      %v1548 = vadd.f32 %v1547, %v1485
      %v1549 = vadd.f32 %v1548, %v1486
      %v1550 = vadd.f32 %v1549, %v1487
      %v1551 = vadd.f32 %v1550, %v1488
      %v1552 = vadd.f32 %v1551, %v1489
      %v1553 = vadd.f32 %v1552, %v1490
      %v1554 = vadd.f32 %v1553, %v1491
      %v1555 = vadd.f32 %v1554, %v1492
      %v1556 = vadd.f32 %v1555, %v1493
      %v1557 = vadd.f32 %v1556, %v1494
      %v1558 = vadd.f32 %v1557, %v1495
      %v1559 = vadd.f32 %v1558, %v1496
      %v1560 = vadd.f32 %v1559, %v1497
      %v1561 = vadd.f32 %v1560, %v1498
      %v1562 = vadd.f32 %v1561, %v1499
      %v1563 = vadd.f32 %v1562, %v1500
      %v1564 = vadd.f32 %v1563, %v1501
      %v1565 = vadd.f32 %v1564, %v1502
      %v1566 = vadd.f32 %v1565, %v1503
      %v1567 = vadd.f32 %v1566, %v1504
      %v1568 = vrot.slane %v1567, 4
      %v1569 = vadd.f32 %v1567, %v1568
      %v1570 = vrot.slane %v1569, 2
      %v1571 = vadd.f32 %v1569, %v1570
      %v1572 = vrot.slane %v1571, 1
      %v1573 = vadd.f32 %v1571, %v1572
      %v1574 = vadd.f32 %v1440, %v1573
      %1575 = vst [vmem:[%s284] sm:$0x1] %v1574
      %p1576 = scmp.lt.s32.totalorder %s22, 1
      %s1577 = scalar_select %p1576, %s22, 1
      %s1578 = scalar_lea.vmem %s5, %s1577
      %p1579 = scmp.lt.s32.totalorder %s22, 1
      %s1580 = scalar_select %p1579, %s22, 1
      %s1581 = scalar_lea.vmem %s6, %s1580
      // Predicated region
      $region45: #{stn3d_forward.3} parent=39 // pred_check
        %p1582 = pneg %p160
      $region46: #{stn3d_forward.3} parent=39 // pred_check_branch
        %1584 = sbr.rel (%p1582) target = $region48
      $region47: #{stn3d_forward.3} parent=39 // pred_region
        _
      $region48: #{stn3d_forward.3} parent=39 // pred_fallthru
        _
      // Predicated region
      $region49: #{stn3d_forward.3} parent=39 // pred_check
        %p1585 = pneg %p186
      $region50: #{stn3d_forward.3} parent=39 // pred_check_branch
        %1587 = sbr.rel (%p1585) target = $region52
      $region51: #{stn3d_forward.3} parent=39 // pred_region
        _
      $region52: #{stn3d_forward.3} parent=39 // pred_fallthru
        _
    $region40: #{stn3d_forward.3} parent=5 // pred_fallthru
      _
    %p1588 = scmp.le.s32.totalorder 2, %s13
    // Predicated region
    $region53: #{stn3d_forward.3} parent=5 // pred_check
      %p1589 = pneg %p1588
    $region54: #{stn3d_forward.3} parent=5 // pred_check_branch
      %1591 = sbr.rel (%p1589) target = $region56
    $region55: #{stn3d_forward.3} parent=5 // pred_region
      %s1592 = ssub.s32 %s13, 2
      // Predicated region
      $region57: #{stn3d_forward.3} parent=55 // pred_check
        %p1593 = pneg %p166
      $region58: #{stn3d_forward.3} parent=55 // pred_check_branch
        %1595 = sbr.rel (%p1593) target = $region60
      $region59: #{stn3d_forward.3} parent=55 // pred_region
        %p1596 = scmp.lt.s32.totalorder %s24, 1
        %s1597 = scalar_select %p1596, %s24, 1
        %s1598 = scalar_lea.vmem %s5, %s1597
      $region60: #{stn3d_forward.3} parent=55 // pred_fallthru
        _
      // Predicated region
      $region61: #{stn3d_forward.3} parent=55 // pred_check
        %p1599 = pneg %p192
      $region62: #{stn3d_forward.3} parent=55 // pred_check_branch
        %1601 = sbr.rel (%p1599) target = $region64
      $region63: #{stn3d_forward.3} parent=55 // pred_region
        %p1602 = scmp.lt.s32.totalorder %s24, 1
        %s1603 = scalar_select %p1602, %s24, 1
        %s1604 = scalar_lea.vmem %s6, %s1603
      $region64: #{stn3d_forward.3} parent=55 // pred_fallthru
        _
    $region56: #{stn3d_forward.3} parent=5 // pred_fallthru
      _
  $region6: #{stn3d_forward.3} parent=0 // loop_footer
    %s17 = sadd.s32 1, %s13
  $region7: #{stn3d_forward.3} parent=0 // loop_footer_branch
    %12 = sbr.rel target = $region3
  $region8: #{stn3d_forward.3} parent=0 // loop_exit
    _

// kernel: stn3d_forward.5
$region0: #{stn3d_forward.5}
  #allocation0 [shape = 'u32[]', space=smem, size = 0x4, offset = 0x4, fixed_abs, tag = 'smem constant byte address 0x4 - core index']
  #allocation1 [shape = 'u32[72,128]{1,0:T(1,128)}', space=vmem, size = 0x9000, scoped, tag = 'internal scratch']
  %s0 = inlined_call_operand.vmem [shape: f32[2,1024], index: 0, kind: input, shape index: {}]
  %s1 = inlined_call_operand.vmem [shape: f32[2,1024], index: 1, kind: input, shape index: {}]
  %s2 = inlined_call_operand.vmem [shape: f32[1,1024], index: 2, kind: input, shape index: {}]
  %s3 = inlined_call_operand.vmem [shape: f32[1,1024], index: 3, kind: input, shape index: {}]
  %s4 = inlined_call_operand.vmem [shape: f32[1,1024], index: 4, kind: input, shape index: {}]
  %s5 = inlined_call_operand.vmem [shape: f32[1,1024], index: 5, kind: input, shape index: {}]
  %s6 = inlined_call_operand.vmem [shape: f32[1024,512], index: 6, kind: input, shape index: {}]
  %s7 = inlined_call_operand.vmem [shape: f32[1,512], index: 7, kind: input, shape index: {}]
  %s8 = inlined_call_operand.vmem [shape: f32[1,512], index: 8, kind: input, shape index: {}]
  %s9 = inlined_call_operand.hbm [shape: f32[512,256], index: 9, kind: input, shape index: {}]
  %s10 = inlined_call_operand.vmem [shape: f32[1,256], index: 10, kind: input, shape index: {}]
  %s11 = inlined_call_operand.vmem [shape: f32[1,256], index: 11, kind: input, shape index: {}]
  %s12 = inlined_call_operand.vmem [shape: f32[256,128], index: 12, kind: input, shape index: {}]
  %s13 = inlined_call_operand.vmem [shape: f32[1,128], index: 13, kind: input, shape index: {}]
  %s14 = inlined_call_operand.vmem [shape: f32[2,128], index: 14, kind: output, shape index: {}]
  %s15 = sld [smem:[#allocation0]]
  $region70: #{stn3d_forward.5} parent=0
    _
  %s17 = ssub.s32 1, %s15
  %s18 = scalar_select 0, %s17, %s15
  $region1: #{stn3d_forward.5} parent=0
    #allocation2 [shape = 'u8[524288]{0}', space=vmem, size = 0x80000, scoped, tag = 'input window, operand 9, single buffered']
    #allocation3 [shape = 's32[1]{0}', space=sflag, size = 0x4, scoped, tag = 'scoped memory for stn3d_forward.5']
    %19 = vsyncpa [#allocation3], 0
    // Predicated region
    $region2: #{stn3d_forward.5} parent=1 // pred_check
      _
    $region3: #{stn3d_forward.5} parent=1 // pred_check_branch
      %21 = sbr.rel (0) target = $region5
    $region4: #{stn3d_forward.5} parent=1 // pred_region
      _
    $region5: #{stn3d_forward.5} parent=1 // pred_fallthru
      _
    // Predicated region
    $region6: #{stn3d_forward.5} parent=1 // pred_check
      _
    $region7: #{stn3d_forward.5} parent=1 // pred_check_branch
      %23 = sbr.rel (0) target = $region9
    $region8: #{stn3d_forward.5} parent=1 // pred_region
      _
    $region9: #{stn3d_forward.5} parent=1 // pred_fallthru
      _
    // Predicated region
    $region10: #{stn3d_forward.5} parent=1 // pred_check
      _
    $region11: #{stn3d_forward.5} parent=1 // pred_check_branch
      %25 = sbr.rel (0) target = $region13
    $region12: #{stn3d_forward.5} parent=1 // pred_region
      _
    $region13: #{stn3d_forward.5} parent=1 // pred_fallthru
      _
    // Predicated region
    $region14: #{stn3d_forward.5} parent=1 // pred_check
      _
    $region15: #{stn3d_forward.5} parent=1 // pred_check_branch
      %27 = sbr.rel (0) target = $region17
    $region16: #{stn3d_forward.5} parent=1 // pred_region
      _
    $region17: #{stn3d_forward.5} parent=1 // pred_fallthru
      _
    // Predicated region
    $region18: #{stn3d_forward.5} parent=1 // pred_check
      _
    $region19: #{stn3d_forward.5} parent=1 // pred_check_branch
      %29 = sbr.rel (0) target = $region21
    $region20: #{stn3d_forward.5} parent=1 // pred_region
      _
    $region21: #{stn3d_forward.5} parent=1 // pred_fallthru
      _
    // Predicated region
    $region22: #{stn3d_forward.5} parent=1 // pred_check
      _
    $region23: #{stn3d_forward.5} parent=1 // pred_check_branch
      %31 = sbr.rel (0) target = $region25
    $region24: #{stn3d_forward.5} parent=1 // pred_region
      _
    $region25: #{stn3d_forward.5} parent=1 // pred_fallthru
      _
    // Predicated region
    $region26: #{stn3d_forward.5} parent=1 // pred_check
      _
    $region27: #{stn3d_forward.5} parent=1 // pred_check_branch
      %33 = sbr.rel (0) target = $region29
    $region28: #{stn3d_forward.5} parent=1 // pred_region
      _
    $region29: #{stn3d_forward.5} parent=1 // pred_fallthru
      _
    // Predicated region
    $region30: #{stn3d_forward.5} parent=1 // pred_check
      _
    $region31: #{stn3d_forward.5} parent=1 // pred_check_branch
      %35 = sbr.rel (0) target = $region33
    $region32: #{stn3d_forward.5} parent=1 // pred_region
      _
    $region33: #{stn3d_forward.5} parent=1 // pred_fallthru
      _
    // Predicated region
    $region34: #{stn3d_forward.5} parent=1 // pred_check
      _
    $region35: #{stn3d_forward.5} parent=1 // pred_check_branch
      %37 = sbr.rel (0) target = $region37
    $region36: #{stn3d_forward.5} parent=1 // pred_region
      _
    $region37: #{stn3d_forward.5} parent=1 // pred_fallthru
      _
    // Predicated region
    $region38: #{stn3d_forward.5} parent=1 // pred_check
      _
    $region39: #{stn3d_forward.5} parent=1 // pred_check_branch
      %39 = sbr.rel (0) target = $region41
    $region40: #{stn3d_forward.5} parent=1 // pred_region
      %41 = vsyncadd [#allocation3], 0
      %s42 = sshll.u32 %s9, 4
      %s43 = int_to_ptr.hbm [resolvable:$true] %s42
      %s44 = sshll.u32 [#allocation2], 4
      %s45 = int_to_ptr.vmem [resolvable:$true] %s44
      %50 = dma.hbm_to_vmem [thread:$0]  %s43, 16384, %s45, [#allocation3], 256, 256, 16
    $region41: #{stn3d_forward.5} parent=1 // pred_fallthru
      _
    // Predicated region
    $region42: #{stn3d_forward.5} parent=1 // pred_check
      _
    $region43: #{stn3d_forward.5} parent=1 // pred_check_branch
      %52 = sbr.rel (0) target = $region45
    $region44: #{stn3d_forward.5} parent=1 // pred_region
      _
    $region45: #{stn3d_forward.5} parent=1 // pred_fallthru
      _
    // Predicated region
    $region46: #{stn3d_forward.5} parent=1 // pred_check
      _
    $region47: #{stn3d_forward.5} parent=1 // pred_check_branch
      %54 = sbr.rel (0) target = $region49
    $region48: #{stn3d_forward.5} parent=1 // pred_region
      _
    $region49: #{stn3d_forward.5} parent=1 // pred_fallthru
      _
    // Predicated region
    $region50: #{stn3d_forward.5} parent=1 // pred_check
      _
    $region51: #{stn3d_forward.5} parent=1 // pred_check_branch
      %56 = sbr.rel (0) target = $region53
    $region52: #{stn3d_forward.5} parent=1 // pred_region
      _
    $region53: #{stn3d_forward.5} parent=1 // pred_fallthru
      _
    // Predicated region
    $region54: #{stn3d_forward.5} parent=1 // pred_check
      _
    $region55: #{stn3d_forward.5} parent=1 // pred_check_branch
      %58 = sbr.rel (0) target = $region57
    $region56: #{stn3d_forward.5} parent=1 // pred_region
      _
    $region57: #{stn3d_forward.5} parent=1 // pred_fallthru
      _
    // Predicated region
    $region58: #{stn3d_forward.5} parent=1 // pred_check
      _
    $region59: #{stn3d_forward.5} parent=1 // pred_check_branch
      %60 = sbr.rel (0) target = $region61
    $region60: #{stn3d_forward.5} parent=1 // pred_region
      %62 = dma.done [#allocation3], 16384
    $region61: #{stn3d_forward.5} parent=1 // pred_fallthru
      _
    %v63 = vld [vmem:[%s2] sm:$0xff]
    %v64 = vmul.f32 %v63, 0.0009765625
    %v65 = vld [vmem:[%s3] sm:$0xff]
    %v66 = vmul.f32 %v65, 0.0009765625
    %v67 = vmul.f32 %v64, %v64
    %v68 = vsub.f32 %v66, %v67
    %v69 = vmax.f32 %v68, 0.0
    %v70 = vld [vmem:[%s4] sm:$0xff]
    %v71 = vadd.f32 %v69, 1e-05
    %v72 = vrsqrt.pop %v71
    %v73 = vmul.f32 %v72, %v71
    %v74 = vmul.f32 %v73, %v72
    %v75 = vmul.f32 0.5, %v74
    %v76 = vsub.f32 1.5, %v75
    %v77 = vmul.f32 %v72, %v76
    %vm78 = vweird.f32 %v71
    %vm79 = vweird.f32 %v72
    %vm80 = vmor %vm78, %vm79
    %v81 = vsel %vm80, %v72, %v77
    %v82 = vmul.f32 %v70, %v81
    %v83 = vld [vmem:[%s5] sm:$0xff]
    %v84 = vmul.f32 %v64, %v82
    %v85 = vsub.f32 %v83, %v84
    %vm86 = vcmp.ge.f32.partialorder %v82, 0.0
    %v87 = vld [vmem:[%s0] sm:$0xff]
    %v88 = vld [vmem:[%s0 + $0x8] sm:$0xff]
    %v90 = vperm.slane %v82, 0
    %v91 = vperm.slane %v82, 1
    %v92 = vperm.slane %v82, 2
    %v93 = vperm.slane %v82, 3
    %v94 = vperm.slane %v82, 4
    %v95 = vperm.slane %v82, 5
    %v96 = vperm.slane %v82, 6
    %v97 = vperm.slane %v82, 7
    %108 = vst [vmem:[#allocation1] ss:$4 sm:$0xff] %v87
    %s109 = scalar_lea.vmem [#allocation1], 32
    %110 = vst [vmem:[%s109] ss:$4 sm:$0xff] %v88
    %v111 = vld.sshfl [vmem:[#allocation1] sm:$0xff pattern:$0x73625140]
    %v112 = vld.sshfl [vmem:[#allocation1 + $0x8] sm:$0xff pattern:$0x73625140]
    %v113 = vld.sshfl [vmem:[#allocation1 + $0x10] sm:$0xff pattern:$0x73625140]
    %v114 = vld.sshfl [vmem:[#allocation1 + $0x18] sm:$0xff pattern:$0x73625140]
    %v115 = vld.sshfl [vmem:[#allocation1 + $0x20] sm:$0xff pattern:$0x73625140]
    %v116 = vld.sshfl [vmem:[#allocation1 + $0x28] sm:$0xff pattern:$0x73625140]
    %v117 = vld.sshfl [vmem:[#allocation1 + $0x30] sm:$0xff pattern:$0x73625140]
    %v118 = vld.sshfl [vmem:[#allocation1 + $0x38] sm:$0xff pattern:$0x73625140]
    %v127 = vmul.f32 %v90, %v111
    %v128 = vmul.f32 %v91, %v112
    %v129 = vmul.f32 %v92, %v113
    %v130 = vmul.f32 %v93, %v114
    %v131 = vmul.f32 %v94, %v115
    %v132 = vmul.f32 %v95, %v116
    %v133 = vmul.f32 %v96, %v117
    %v134 = vmul.f32 %v97, %v118
    %v136 = vperm.slane %v85, 0
    %v137 = vperm.slane %v85, 1
    %v138 = vperm.slane %v85, 2
    %v139 = vperm.slane %v85, 3
    %v140 = vperm.slane %v85, 4
    %v141 = vperm.slane %v85, 5
    %v142 = vperm.slane %v85, 6
    %v143 = vperm.slane %v85, 7
    %v152 = vadd.f32 %v127, %v136
    %v153 = vadd.f32 %v128, %v137
    %v154 = vadd.f32 %v129, %v138
    %v155 = vadd.f32 %v130, %v139
    %v156 = vadd.f32 %v131, %v140
    %v157 = vadd.f32 %v132, %v141
    %v158 = vadd.f32 %v133, %v142
    %v159 = vadd.f32 %v134, %v143
    %v160 = vld [vmem:[%s1] sm:$0xff]
    %v161 = vld [vmem:[%s1 + $0x8] sm:$0xff]
    %164 = vst [vmem:[#allocation1] ss:$4 sm:$0xff] %v160
    %s165 = scalar_lea.vmem [#allocation1], 32
    %166 = vst [vmem:[%s165] ss:$4 sm:$0xff] %v161
    %v167 = vld.sshfl [vmem:[#allocation1] sm:$0xff pattern:$0x73625140]
    %v168 = vld.sshfl [vmem:[#allocation1 + $0x8] sm:$0xff pattern:$0x73625140]
    %v169 = vld.sshfl [vmem:[#allocation1 + $0x10] sm:$0xff pattern:$0x73625140]
    %v170 = vld.sshfl [vmem:[#allocation1 + $0x18] sm:$0xff pattern:$0x73625140]
    %v171 = vld.sshfl [vmem:[#allocation1 + $0x20] sm:$0xff pattern:$0x73625140]
    %v172 = vld.sshfl [vmem:[#allocation1 + $0x28] sm:$0xff pattern:$0x73625140]
    %v173 = vld.sshfl [vmem:[#allocation1 + $0x30] sm:$0xff pattern:$0x73625140]
    %v174 = vld.sshfl [vmem:[#allocation1 + $0x38] sm:$0xff pattern:$0x73625140]
    %v183 = vmul.f32 %v90, %v167
    %v184 = vmul.f32 %v91, %v168
    %v185 = vmul.f32 %v92, %v169
    %v186 = vmul.f32 %v93, %v170
    %v187 = vmul.f32 %v94, %v171
    %v188 = vmul.f32 %v95, %v172
    %v189 = vmul.f32 %v96, %v173
    %v190 = vmul.f32 %v97, %v174
    %v191 = vadd.f32 %v183, %v136
    %v192 = vadd.f32 %v184, %v137
    %v193 = vadd.f32 %v185, %v138
    %v194 = vadd.f32 %v186, %v139
    %v195 = vadd.f32 %v187, %v140
    %v196 = vadd.f32 %v188, %v141
    %v197 = vadd.f32 %v189, %v142
    %v198 = vadd.f32 %v190, %v143
    %v199 = vsel %vm86, 1, 0
    %v200 = vperm.slane %v199, 0
    %v201 = vperm.slane %v199, 1
    %v202 = vperm.slane %v199, 2
    %v203 = vperm.slane %v199, 3
    %v204 = vperm.slane %v199, 4
    %v205 = vperm.slane %v199, 5
    %v206 = vperm.slane %v199, 6
    %v207 = vperm.slane %v199, 7
    %vm208 = vcmp.eq.s32.totalorder %v200, 1
    %vm209 = vcmp.eq.s32.totalorder %v201, 1
    %vm210 = vcmp.eq.s32.totalorder %v202, 1
    %vm211 = vcmp.eq.s32.totalorder %v203, 1
    %vm212 = vcmp.eq.s32.totalorder %v204, 1
    %vm213 = vcmp.eq.s32.totalorder %v205, 1
    %vm214 = vcmp.eq.s32.totalorder %v206, 1
    %vm215 = vcmp.eq.s32.totalorder %v207, 1
    %v216 = vsel %vm208, %v152, %v191
    %v217 = vsel %vm209, %v153, %v192
    %v218 = vsel %vm210, %v154, %v193
    %v219 = vsel %vm211, %v155, %v194
    %v220 = vsel %vm212, %v156, %v195
    %v221 = vsel %vm213, %v157, %v196
    %v222 = vsel %vm214, %v158, %v197
    %v223 = vsel %vm215, %v159, %v198
    %v224 = vmax.f32 %v216, 0.0
    %v225 = vmax.f32 %v217, 0.0
    %v226 = vmax.f32 %v218, 0.0
    %v227 = vmax.f32 %v219, 0.0
    %v228 = vmax.f32 %v220, 0.0
    %v229 = vmax.f32 %v221, 0.0
    %v230 = vmax.f32 %v222, 0.0
    %v231 = vmax.f32 %v223, 0.0
    %v232 = vld [vmem:[%s6] sm:$0xff]
    %v233 = vld [vmem:[%s6 + $0x8] sm:$0xff]
    %v234 = vld [vmem:[%s6 + $0x10] sm:$0xff]
    %v235 = vld [vmem:[%s6 + $0x18] sm:$0xff]
    %v236 = vld [vmem:[%s6 + $0x20] sm:$0xff]
    %v237 = vld [vmem:[%s6 + $0x28] sm:$0xff]
    %v238 = vld [vmem:[%s6 + $0x30] sm:$0xff]
    %v239 = vld [vmem:[%s6 + $0x38] sm:$0xff]
    %v240 = vld [vmem:[%s6 + $0x40] sm:$0xff]
    %v241 = vld [vmem:[%s6 + $0x48] sm:$0xff]
    %v242 = vld [vmem:[%s6 + $0x50] sm:$0xff]
    %v243 = vld [vmem:[%s6 + $0x58] sm:$0xff]
    %v244 = vld [vmem:[%s6 + $0x60] sm:$0xff]
    %v245 = vld [vmem:[%s6 + $0x68] sm:$0xff]
    %v246 = vld [vmem:[%s6 + $0x70] sm:$0xff]
    %v247 = vld [vmem:[%s6 + $0x78] sm:$0xff]
    %v248 = vld [vmem:[%s6 + $0x80] sm:$0xff]
    %v249 = vld [vmem:[%s6 + $0x88] sm:$0xff]
    %v250 = vld [vmem:[%s6 + $0x90] sm:$0xff]
    %v251 = vld [vmem:[%s6 + $0x98] sm:$0xff]
    %v252 = vld [vmem:[%s6 + $0xa0] sm:$0xff]
    %v253 = vld [vmem:[%s6 + $0xa8] sm:$0xff]
    %v254 = vld [vmem:[%s6 + $0xb0] sm:$0xff]
    %v255 = vld [vmem:[%s6 + $0xb8] sm:$0xff]
    %v256 = vld [vmem:[%s6 + $0xc0] sm:$0xff]
    %v257 = vld [vmem:[%s6 + $0xc8] sm:$0xff]
    %v258 = vld [vmem:[%s6 + $0xd0] sm:$0xff]
    %v259 = vld [vmem:[%s6 + $0xd8] sm:$0xff]
    %v260 = vld [vmem:[%s6 + $0xe0] sm:$0xff]
    %v261 = vld [vmem:[%s6 + $0xe8] sm:$0xff]
    %v262 = vld [vmem:[%s6 + $0xf0] sm:$0xff]
    %v263 = vld [vmem:[%s6 + $0xf8] sm:$0xff]
    %v264 = vld [vmem:[%s6 + $0x100] sm:$0xff]
    %v265 = vld [vmem:[%s6 + $0x108] sm:$0xff]
    %v266 = vld [vmem:[%s6 + $0x110] sm:$0xff]
    %v267 = vld [vmem:[%s6 + $0x118] sm:$0xff]
    %v268 = vld [vmem:[%s6 + $0x120] sm:$0xff]
    %v269 = vld [vmem:[%s6 + $0x128] sm:$0xff]
    %v270 = vld [vmem:[%s6 + $0x130] sm:$0xff]
    %v271 = vld [vmem:[%s6 + $0x138] sm:$0xff]
    %v272 = vld [vmem:[%s6 + $0x140] sm:$0xff]
    %v273 = vld [vmem:[%s6 + $0x148] sm:$0xff]
    %v274 = vld [vmem:[%s6 + $0x150] sm:$0xff]
    %v275 = vld [vmem:[%s6 + $0x158] sm:$0xff]
    %v276 = vld [vmem:[%s6 + $0x160] sm:$0xff]
    %v277 = vld [vmem:[%s6 + $0x168] sm:$0xff]
    %v278 = vld [vmem:[%s6 + $0x170] sm:$0xff]
    %v279 = vld [vmem:[%s6 + $0x178] sm:$0xff]
    %v280 = vld [vmem:[%s6 + $0x180] sm:$0xff]
    %v281 = vld [vmem:[%s6 + $0x188] sm:$0xff]
    %v282 = vld [vmem:[%s6 + $0x190] sm:$0xff]
    %v283 = vld [vmem:[%s6 + $0x198] sm:$0xff]
    %v284 = vld [vmem:[%s6 + $0x1a0] sm:$0xff]
    %v285 = vld [vmem:[%s6 + $0x1a8] sm:$0xff]
    %v286 = vld [vmem:[%s6 + $0x1b0] sm:$0xff]
    %v287 = vld [vmem:[%s6 + $0x1b8] sm:$0xff]
    %v288 = vld [vmem:[%s6 + $0x1c0] sm:$0xff]
    %v289 = vld [vmem:[%s6 + $0x1c8] sm:$0xff]
    %v290 = vld [vmem:[%s6 + $0x1d0] sm:$0xff]
    %v291 = vld [vmem:[%s6 + $0x1d8] sm:$0xff]
    %v292 = vld [vmem:[%s6 + $0x1e0] sm:$0xff]
    %v293 = vld [vmem:[%s6 + $0x1e8] sm:$0xff]
    %v294 = vld [vmem:[%s6 + $0x1f0] sm:$0xff]
    %v295 = vld [vmem:[%s6 + $0x1f8] sm:$0xff]
    %v296 = vld [vmem:[%s6 + $0x200] sm:$0xff]
    %v297 = vld [vmem:[%s6 + $0x208] sm:$0xff]
    %v298 = vld [vmem:[%s6 + $0x210] sm:$0xff]
    %v299 = vld [vmem:[%s6 + $0x218] sm:$0xff]
    %v300 = vld [vmem:[%s6 + $0x220] sm:$0xff]
    %v301 = vld [vmem:[%s6 + $0x228] sm:$0xff]
    %v302 = vld [vmem:[%s6 + $0x230] sm:$0xff]
    %v303 = vld [vmem:[%s6 + $0x238] sm:$0xff]
    %v304 = vld [vmem:[%s6 + $0x240] sm:$0xff]
    %v305 = vld [vmem:[%s6 + $0x248] sm:$0xff]
    %v306 = vld [vmem:[%s6 + $0x250] sm:$0xff]
    %v307 = vld [vmem:[%s6 + $0x258] sm:$0xff]
    %v308 = vld [vmem:[%s6 + $0x260] sm:$0xff]
    %v309 = vld [vmem:[%s6 + $0x268] sm:$0xff]
    %v310 = vld [vmem:[%s6 + $0x270] sm:$0xff]
    %v311 = vld [vmem:[%s6 + $0x278] sm:$0xff]
    %v312 = vld [vmem:[%s6 + $0x280] sm:$0xff]
    %v313 = vld [vmem:[%s6 + $0x288] sm:$0xff]
    %v314 = vld [vmem:[%s6 + $0x290] sm:$0xff]
    %v315 = vld [vmem:[%s6 + $0x298] sm:$0xff]
    %v316 = vld [vmem:[%s6 + $0x2a0] sm:$0xff]
    %v317 = vld [vmem:[%s6 + $0x2a8] sm:$0xff]
    %v318 = vld [vmem:[%s6 + $0x2b0] sm:$0xff]
    %v319 = vld [vmem:[%s6 + $0x2b8] sm:$0xff]
    %v320 = vld [vmem:[%s6 + $0x2c0] sm:$0xff]
    %v321 = vld [vmem:[%s6 + $0x2c8] sm:$0xff]
    %v322 = vld [vmem:[%s6 + $0x2d0] sm:$0xff]
    %v323 = vld [vmem:[%s6 + $0x2d8] sm:$0xff]
    %v324 = vld [vmem:[%s6 + $0x2e0] sm:$0xff]
    %v325 = vld [vmem:[%s6 + $0x2e8] sm:$0xff]
    %v326 = vld [vmem:[%s6 + $0x2f0] sm:$0xff]
    %v327 = vld [vmem:[%s6 + $0x2f8] sm:$0xff]
    %v328 = vld [vmem:[%s6 + $0x300] sm:$0xff]
    %v329 = vld [vmem:[%s6 + $0x308] sm:$0xff]
    %v330 = vld [vmem:[%s6 + $0x310] sm:$0xff]
    %v331 = vld [vmem:[%s6 + $0x318] sm:$0xff]
    %v332 = vld [vmem:[%s6 + $0x320] sm:$0xff]
    %v333 = vld [vmem:[%s6 + $0x328] sm:$0xff]
    %v334 = vld [vmem:[%s6 + $0x330] sm:$0xff]
    %v335 = vld [vmem:[%s6 + $0x338] sm:$0xff]
    %v336 = vld [vmem:[%s6 + $0x340] sm:$0xff]
    %v337 = vld [vmem:[%s6 + $0x348] sm:$0xff]
    %v338 = vld [vmem:[%s6 + $0x350] sm:$0xff]
    %v339 = vld [vmem:[%s6 + $0x358] sm:$0xff]
    %v340 = vld [vmem:[%s6 + $0x360] sm:$0xff]
    %v341 = vld [vmem:[%s6 + $0x368] sm:$0xff]
    %v342 = vld [vmem:[%s6 + $0x370] sm:$0xff]
    %v343 = vld [vmem:[%s6 + $0x378] sm:$0xff]
    %v344 = vld [vmem:[%s6 + $0x380] sm:$0xff]
    %v345 = vld [vmem:[%s6 + $0x388] sm:$0xff]
    %v346 = vld [vmem:[%s6 + $0x390] sm:$0xff]
    %v347 = vld [vmem:[%s6 + $0x398] sm:$0xff]
    %v348 = vld [vmem:[%s6 + $0x3a0] sm:$0xff]
    %v349 = vld [vmem:[%s6 + $0x3a8] sm:$0xff]
    %v350 = vld [vmem:[%s6 + $0x3b0] sm:$0xff]
    %v351 = vld [vmem:[%s6 + $0x3b8] sm:$0xff]
    %v352 = vld [vmem:[%s6 + $0x3c0] sm:$0xff]
    %v353 = vld [vmem:[%s6 + $0x3c8] sm:$0xff]
    %v354 = vld [vmem:[%s6 + $0x3d0] sm:$0xff]
    %v355 = vld [vmem:[%s6 + $0x3d8] sm:$0xff]
    %v356 = vld [vmem:[%s6 + $0x3e0] sm:$0xff]
    %v357 = vld [vmem:[%s6 + $0x3e8] sm:$0xff]
    %v358 = vld [vmem:[%s6 + $0x3f0] sm:$0xff]
    %v359 = vld [vmem:[%s6 + $0x3f8] sm:$0xff]
    %v360 = vld [vmem:[%s6 + $0x400] sm:$0xff]
    %v361 = vld [vmem:[%s6 + $0x408] sm:$0xff]
    %v362 = vld [vmem:[%s6 + $0x410] sm:$0xff]
    %v363 = vld [vmem:[%s6 + $0x418] sm:$0xff]
    %v364 = vld [vmem:[%s6 + $0x420] sm:$0xff]
    %v365 = vld [vmem:[%s6 + $0x428] sm:$0xff]
    %v366 = vld [vmem:[%s6 + $0x430] sm:$0xff]
    %v367 = vld [vmem:[%s6 + $0x438] sm:$0xff]
    %v368 = vld [vmem:[%s6 + $0x440] sm:$0xff]
    %v369 = vld [vmem:[%s6 + $0x448] sm:$0xff]
    %v370 = vld [vmem:[%s6 + $0x450] sm:$0xff]
    %v371 = vld [vmem:[%s6 + $0x458] sm:$0xff]
    %v372 = vld [vmem:[%s6 + $0x460] sm:$0xff]
    %v373 = vld [vmem:[%s6 + $0x468] sm:$0xff]
    %v374 = vld [vmem:[%s6 + $0x470] sm:$0xff]
    %v375 = vld [vmem:[%s6 + $0x478] sm:$0xff]
    %v376 = vld [vmem:[%s6 + $0x480] sm:$0xff]
    %v377 = vld [vmem:[%s6 + $0x488] sm:$0xff]
    %v378 = vld [vmem:[%s6 + $0x490] sm:$0xff]
    %v379 = vld [vmem:[%s6 + $0x498] sm:$0xff]
    %v380 = vld [vmem:[%s6 + $0x4a0] sm:$0xff]
    %v381 = vld [vmem:[%s6 + $0x4a8] sm:$0xff]
    %v382 = vld [vmem:[%s6 + $0x4b0] sm:$0xff]
    %v383 = vld [vmem:[%s6 + $0x4b8] sm:$0xff]
    %v384 = vld [vmem:[%s6 + $0x4c0] sm:$0xff]
    %v385 = vld [vmem:[%s6 + $0x4c8] sm:$0xff]
    %v386 = vld [vmem:[%s6 + $0x4d0] sm:$0xff]
    %v387 = vld [vmem:[%s6 + $0x4d8] sm:$0xff]
    %v388 = vld [vmem:[%s6 + $0x4e0] sm:$0xff]
    %v389 = vld [vmem:[%s6 + $0x4e8] sm:$0xff]
    %v390 = vld [vmem:[%s6 + $0x4f0] sm:$0xff]
    %v391 = vld [vmem:[%s6 + $0x4f8] sm:$0xff]
    %v392 = vld [vmem:[%s6 + $0x500] sm:$0xff]
    %v393 = vld [vmem:[%s6 + $0x508] sm:$0xff]
    %v394 = vld [vmem:[%s6 + $0x510] sm:$0xff]
    %v395 = vld [vmem:[%s6 + $0x518] sm:$0xff]
    %v396 = vld [vmem:[%s6 + $0x520] sm:$0xff]
    %v397 = vld [vmem:[%s6 + $0x528] sm:$0xff]
    %v398 = vld [vmem:[%s6 + $0x530] sm:$0xff]
    %v399 = vld [vmem:[%s6 + $0x538] sm:$0xff]
    %v400 = vld [vmem:[%s6 + $0x540] sm:$0xff]
    %v401 = vld [vmem:[%s6 + $0x548] sm:$0xff]
    %v402 = vld [vmem:[%s6 + $0x550] sm:$0xff]
    %v403 = vld [vmem:[%s6 + $0x558] sm:$0xff]
    %v404 = vld [vmem:[%s6 + $0x560] sm:$0xff]
    %v405 = vld [vmem:[%s6 + $0x568] sm:$0xff]
    %v406 = vld [vmem:[%s6 + $0x570] sm:$0xff]
    %v407 = vld [vmem:[%s6 + $0x578] sm:$0xff]
    %v408 = vld [vmem:[%s6 + $0x580] sm:$0xff]
    %v409 = vld [vmem:[%s6 + $0x588] sm:$0xff]
    %v410 = vld [vmem:[%s6 + $0x590] sm:$0xff]
    %v411 = vld [vmem:[%s6 + $0x598] sm:$0xff]
    %v412 = vld [vmem:[%s6 + $0x5a0] sm:$0xff]
    %v413 = vld [vmem:[%s6 + $0x5a8] sm:$0xff]
    %v414 = vld [vmem:[%s6 + $0x5b0] sm:$0xff]
    %v415 = vld [vmem:[%s6 + $0x5b8] sm:$0xff]
    %v416 = vld [vmem:[%s6 + $0x5c0] sm:$0xff]
    %v417 = vld [vmem:[%s6 + $0x5c8] sm:$0xff]
    %v418 = vld [vmem:[%s6 + $0x5d0] sm:$0xff]
    %v419 = vld [vmem:[%s6 + $0x5d8] sm:$0xff]
    %v420 = vld [vmem:[%s6 + $0x5e0] sm:$0xff]
    %v421 = vld [vmem:[%s6 + $0x5e8] sm:$0xff]
    %v422 = vld [vmem:[%s6 + $0x5f0] sm:$0xff]
    %v423 = vld [vmem:[%s6 + $0x5f8] sm:$0xff]
    %v424 = vld [vmem:[%s6 + $0x600] sm:$0xff]
    %v425 = vld [vmem:[%s6 + $0x608] sm:$0xff]
    %v426 = vld [vmem:[%s6 + $0x610] sm:$0xff]
    %v427 = vld [vmem:[%s6 + $0x618] sm:$0xff]
    %v428 = vld [vmem:[%s6 + $0x620] sm:$0xff]
    %v429 = vld [vmem:[%s6 + $0x628] sm:$0xff]
    %v430 = vld [vmem:[%s6 + $0x630] sm:$0xff]
    %v431 = vld [vmem:[%s6 + $0x638] sm:$0xff]
    %v432 = vld [vmem:[%s6 + $0x640] sm:$0xff]
    %v433 = vld [vmem:[%s6 + $0x648] sm:$0xff]
    %v434 = vld [vmem:[%s6 + $0x650] sm:$0xff]
    %v435 = vld [vmem:[%s6 + $0x658] sm:$0xff]
    %v436 = vld [vmem:[%s6 + $0x660] sm:$0xff]
    %v437 = vld [vmem:[%s6 + $0x668] sm:$0xff]
    %v438 = vld [vmem:[%s6 + $0x670] sm:$0xff]
    %v439 = vld [vmem:[%s6 + $0x678] sm:$0xff]
    %v440 = vld [vmem:[%s6 + $0x680] sm:$0xff]
    %v441 = vld [vmem:[%s6 + $0x688] sm:$0xff]
    %v442 = vld [vmem:[%s6 + $0x690] sm:$0xff]
    %v443 = vld [vmem:[%s6 + $0x698] sm:$0xff]
    %v444 = vld [vmem:[%s6 + $0x6a0] sm:$0xff]
    %v445 = vld [vmem:[%s6 + $0x6a8] sm:$0xff]
    %v446 = vld [vmem:[%s6 + $0x6b0] sm:$0xff]
    %v447 = vld [vmem:[%s6 + $0x6b8] sm:$0xff]
    %v448 = vld [vmem:[%s6 + $0x6c0] sm:$0xff]
    %v449 = vld [vmem:[%s6 + $0x6c8] sm:$0xff]
    %v450 = vld [vmem:[%s6 + $0x6d0] sm:$0xff]
    %v451 = vld [vmem:[%s6 + $0x6d8] sm:$0xff]
    %v452 = vld [vmem:[%s6 + $0x6e0] sm:$0xff]
    %v453 = vld [vmem:[%s6 + $0x6e8] sm:$0xff]
    %v454 = vld [vmem:[%s6 + $0x6f0] sm:$0xff]
    %v455 = vld [vmem:[%s6 + $0x6f8] sm:$0xff]
    %v456 = vld [vmem:[%s6 + $0x700] sm:$0xff]
    %v457 = vld [vmem:[%s6 + $0x708] sm:$0xff]
    %v458 = vld [vmem:[%s6 + $0x710] sm:$0xff]
    %v459 = vld [vmem:[%s6 + $0x718] sm:$0xff]
    %v460 = vld [vmem:[%s6 + $0x720] sm:$0xff]
    %v461 = vld [vmem:[%s6 + $0x728] sm:$0xff]
    %v462 = vld [vmem:[%s6 + $0x730] sm:$0xff]
    %v463 = vld [vmem:[%s6 + $0x738] sm:$0xff]
    %v464 = vld [vmem:[%s6 + $0x740] sm:$0xff]
    %v465 = vld [vmem:[%s6 + $0x748] sm:$0xff]
    %v466 = vld [vmem:[%s6 + $0x750] sm:$0xff]
    %v467 = vld [vmem:[%s6 + $0x758] sm:$0xff]
    %v468 = vld [vmem:[%s6 + $0x760] sm:$0xff]
    %v469 = vld [vmem:[%s6 + $0x768] sm:$0xff]
    %v470 = vld [vmem:[%s6 + $0x770] sm:$0xff]
    %v471 = vld [vmem:[%s6 + $0x778] sm:$0xff]
    %v472 = vld [vmem:[%s6 + $0x780] sm:$0xff]
    %v473 = vld [vmem:[%s6 + $0x788] sm:$0xff]
    %v474 = vld [vmem:[%s6 + $0x790] sm:$0xff]
    %v475 = vld [vmem:[%s6 + $0x798] sm:$0xff]
    %v476 = vld [vmem:[%s6 + $0x7a0] sm:$0xff]
    %v477 = vld [vmem:[%s6 + $0x7a8] sm:$0xff]
    %v478 = vld [vmem:[%s6 + $0x7b0] sm:$0xff]
    %v479 = vld [vmem:[%s6 + $0x7b8] sm:$0xff]
    %v480 = vld [vmem:[%s6 + $0x7c0] sm:$0xff]
    %v481 = vld [vmem:[%s6 + $0x7c8] sm:$0xff]
    %v482 = vld [vmem:[%s6 + $0x7d0] sm:$0xff]
    %v483 = vld [vmem:[%s6 + $0x7d8] sm:$0xff]
    %v484 = vld [vmem:[%s6 + $0x7e0] sm:$0xff]
    %v485 = vld [vmem:[%s6 + $0x7e8] sm:$0xff]
    %v486 = vld [vmem:[%s6 + $0x7f0] sm:$0xff]
    %v487 = vld [vmem:[%s6 + $0x7f8] sm:$0xff]
    %v488 = vld [vmem:[%s6 + $0x800] sm:$0xff]
    %v489 = vld [vmem:[%s6 + $0x808] sm:$0xff]
    %v490 = vld [vmem:[%s6 + $0x810] sm:$0xff]
    %v491 = vld [vmem:[%s6 + $0x818] sm:$0xff]
    %v492 = vld [vmem:[%s6 + $0x820] sm:$0xff]
    %v493 = vld [vmem:[%s6 + $0x828] sm:$0xff]
    %v494 = vld [vmem:[%s6 + $0x830] sm:$0xff]
    %v495 = vld [vmem:[%s6 + $0x838] sm:$0xff]
    %v496 = vld [vmem:[%s6 + $0x840] sm:$0xff]
    %v497 = vld [vmem:[%s6 + $0x848] sm:$0xff]
    %v498 = vld [vmem:[%s6 + $0x850] sm:$0xff]
    %v499 = vld [vmem:[%s6 + $0x858] sm:$0xff]
    %v500 = vld [vmem:[%s6 + $0x860] sm:$0xff]
    %v501 = vld [vmem:[%s6 + $0x868] sm:$0xff]
    %v502 = vld [vmem:[%s6 + $0x870] sm:$0xff]
    %v503 = vld [vmem:[%s6 + $0x878] sm:$0xff]
    %v504 = vld [vmem:[%s6 + $0x880] sm:$0xff]
    %v505 = vld [vmem:[%s6 + $0x888] sm:$0xff]
    %v506 = vld [vmem:[%s6 + $0x890] sm:$0xff]
    %v507 = vld [vmem:[%s6 + $0x898] sm:$0xff]
    %v508 = vld [vmem:[%s6 + $0x8a0] sm:$0xff]
    %v509 = vld [vmem:[%s6 + $0x8a8] sm:$0xff]
    %v510 = vld [vmem:[%s6 + $0x8b0] sm:$0xff]
    %v511 = vld [vmem:[%s6 + $0x8b8] sm:$0xff]
    %v512 = vld [vmem:[%s6 + $0x8c0] sm:$0xff]
    %v513 = vld [vmem:[%s6 + $0x8c8] sm:$0xff]
    %v514 = vld [vmem:[%s6 + $0x8d0] sm:$0xff]
    %v515 = vld [vmem:[%s6 + $0x8d8] sm:$0xff]
    %v516 = vld [vmem:[%s6 + $0x8e0] sm:$0xff]
    %v517 = vld [vmem:[%s6 + $0x8e8] sm:$0xff]
    %v518 = vld [vmem:[%s6 + $0x8f0] sm:$0xff]
    %v519 = vld [vmem:[%s6 + $0x8f8] sm:$0xff]
    %v520 = vld [vmem:[%s6 + $0x900] sm:$0xff]
    %v521 = vld [vmem:[%s6 + $0x908] sm:$0xff]
    %v522 = vld [vmem:[%s6 + $0x910] sm:$0xff]
    %v523 = vld [vmem:[%s6 + $0x918] sm:$0xff]
    %v524 = vld [vmem:[%s6 + $0x920] sm:$0xff]
    %v525 = vld [vmem:[%s6 + $0x928] sm:$0xff]
    %v526 = vld [vmem:[%s6 + $0x930] sm:$0xff]
    %v527 = vld [vmem:[%s6 + $0x938] sm:$0xff]
    %v528 = vld [vmem:[%s6 + $0x940] sm:$0xff]
    %v529 = vld [vmem:[%s6 + $0x948] sm:$0xff]
    %v530 = vld [vmem:[%s6 + $0x950] sm:$0xff]
    %v531 = vld [vmem:[%s6 + $0x958] sm:$0xff]
    %v532 = vld [vmem:[%s6 + $0x960] sm:$0xff]
    %v533 = vld [vmem:[%s6 + $0x968] sm:$0xff]
    %v534 = vld [vmem:[%s6 + $0x970] sm:$0xff]
    %v535 = vld [vmem:[%s6 + $0x978] sm:$0xff]
    %v536 = vld [vmem:[%s6 + $0x980] sm:$0xff]
    %v537 = vld [vmem:[%s6 + $0x988] sm:$0xff]
    %v538 = vld [vmem:[%s6 + $0x990] sm:$0xff]
    %v539 = vld [vmem:[%s6 + $0x998] sm:$0xff]
    %v540 = vld [vmem:[%s6 + $0x9a0] sm:$0xff]
    %v541 = vld [vmem:[%s6 + $0x9a8] sm:$0xff]
    %v542 = vld [vmem:[%s6 + $0x9b0] sm:$0xff]
    %v543 = vld [vmem:[%s6 + $0x9b8] sm:$0xff]
    %v544 = vld [vmem:[%s6 + $0x9c0] sm:$0xff]
    %v545 = vld [vmem:[%s6 + $0x9c8] sm:$0xff]
    %v546 = vld [vmem:[%s6 + $0x9d0] sm:$0xff]
    %v547 = vld [vmem:[%s6 + $0x9d8] sm:$0xff]
    %v548 = vld [vmem:[%s6 + $0x9e0] sm:$0xff]
    %v549 = vld [vmem:[%s6 + $0x9e8] sm:$0xff]
    %v550 = vld [vmem:[%s6 + $0x9f0] sm:$0xff]
    %v551 = vld [vmem:[%s6 + $0x9f8] sm:$0xff]
    %v552 = vld [vmem:[%s6 + $0xa00] sm:$0xff]
    %v553 = vld [vmem:[%s6 + $0xa08] sm:$0xff]
    %v554 = vld [vmem:[%s6 + $0xa10] sm:$0xff]
    %v555 = vld [vmem:[%s6 + $0xa18] sm:$0xff]
    %v556 = vld [vmem:[%s6 + $0xa20] sm:$0xff]
    %v557 = vld [vmem:[%s6 + $0xa28] sm:$0xff]
    %v558 = vld [vmem:[%s6 + $0xa30] sm:$0xff]
    %v559 = vld [vmem:[%s6 + $0xa38] sm:$0xff]
    %v560 = vld [vmem:[%s6 + $0xa40] sm:$0xff]
    %v561 = vld [vmem:[%s6 + $0xa48] sm:$0xff]
    %v562 = vld [vmem:[%s6 + $0xa50] sm:$0xff]
    %v563 = vld [vmem:[%s6 + $0xa58] sm:$0xff]
    %v564 = vld [vmem:[%s6 + $0xa60] sm:$0xff]
    %v565 = vld [vmem:[%s6 + $0xa68] sm:$0xff]
    %v566 = vld [vmem:[%s6 + $0xa70] sm:$0xff]
    %v567 = vld [vmem:[%s6 + $0xa78] sm:$0xff]
    %v568 = vld [vmem:[%s6 + $0xa80] sm:$0xff]
    %v569 = vld [vmem:[%s6 + $0xa88] sm:$0xff]
    %v570 = vld [vmem:[%s6 + $0xa90] sm:$0xff]
    %v571 = vld [vmem:[%s6 + $0xa98] sm:$0xff]
    %v572 = vld [vmem:[%s6 + $0xaa0] sm:$0xff]
    %v573 = vld [vmem:[%s6 + $0xaa8] sm:$0xff]
    %v574 = vld [vmem:[%s6 + $0xab0] sm:$0xff]
    %v575 = vld [vmem:[%s6 + $0xab8] sm:$0xff]
    %v576 = vld [vmem:[%s6 + $0xac0] sm:$0xff]
    %v577 = vld [vmem:[%s6 + $0xac8] sm:$0xff]
    %v578 = vld [vmem:[%s6 + $0xad0] sm:$0xff]
    %v579 = vld [vmem:[%s6 + $0xad8] sm:$0xff]
    %v580 = vld [vmem:[%s6 + $0xae0] sm:$0xff]
    %v581 = vld [vmem:[%s6 + $0xae8] sm:$0xff]
    %v582 = vld [vmem:[%s6 + $0xaf0] sm:$0xff]
    %v583 = vld [vmem:[%s6 + $0xaf8] sm:$0xff]
    %v584 = vld [vmem:[%s6 + $0xb00] sm:$0xff]
    %v585 = vld [vmem:[%s6 + $0xb08] sm:$0xff]
    %v586 = vld [vmem:[%s6 + $0xb10] sm:$0xff]
    %v587 = vld [vmem:[%s6 + $0xb18] sm:$0xff]
    %v588 = vld [vmem:[%s6 + $0xb20] sm:$0xff]
    %v589 = vld [vmem:[%s6 + $0xb28] sm:$0xff]
    %v590 = vld [vmem:[%s6 + $0xb30] sm:$0xff]
    %v591 = vld [vmem:[%s6 + $0xb38] sm:$0xff]
    %v592 = vld [vmem:[%s6 + $0xb40] sm:$0xff]
    %v593 = vld [vmem:[%s6 + $0xb48] sm:$0xff]
    %v594 = vld [vmem:[%s6 + $0xb50] sm:$0xff]
    %v595 = vld [vmem:[%s6 + $0xb58] sm:$0xff]
    %v596 = vld [vmem:[%s6 + $0xb60] sm:$0xff]
    %v597 = vld [vmem:[%s6 + $0xb68] sm:$0xff]
    %v598 = vld [vmem:[%s6 + $0xb70] sm:$0xff]
    %v599 = vld [vmem:[%s6 + $0xb78] sm:$0xff]
    %v600 = vld [vmem:[%s6 + $0xb80] sm:$0xff]
    %v601 = vld [vmem:[%s6 + $0xb88] sm:$0xff]
    %v602 = vld [vmem:[%s6 + $0xb90] sm:$0xff]
    %v603 = vld [vmem:[%s6 + $0xb98] sm:$0xff]
    %v604 = vld [vmem:[%s6 + $0xba0] sm:$0xff]
    %v605 = vld [vmem:[%s6 + $0xba8] sm:$0xff]
    %v606 = vld [vmem:[%s6 + $0xbb0] sm:$0xff]
    %v607 = vld [vmem:[%s6 + $0xbb8] sm:$0xff]
    %v608 = vld [vmem:[%s6 + $0xbc0] sm:$0xff]
    %v609 = vld [vmem:[%s6 + $0xbc8] sm:$0xff]
    %v610 = vld [vmem:[%s6 + $0xbd0] sm:$0xff]
    %v611 = vld [vmem:[%s6 + $0xbd8] sm:$0xff]
    %v612 = vld [vmem:[%s6 + $0xbe0] sm:$0xff]
    %v613 = vld [vmem:[%s6 + $0xbe8] sm:$0xff]
    %v614 = vld [vmem:[%s6 + $0xbf0] sm:$0xff]
    %v615 = vld [vmem:[%s6 + $0xbf8] sm:$0xff]
    %v616 = vld [vmem:[%s6 + $0xc00] sm:$0xff]
    %v617 = vld [vmem:[%s6 + $0xc08] sm:$0xff]
    %v618 = vld [vmem:[%s6 + $0xc10] sm:$0xff]
    %v619 = vld [vmem:[%s6 + $0xc18] sm:$0xff]
    %v620 = vld [vmem:[%s6 + $0xc20] sm:$0xff]
    %v621 = vld [vmem:[%s6 + $0xc28] sm:$0xff]
    %v622 = vld [vmem:[%s6 + $0xc30] sm:$0xff]
    %v623 = vld [vmem:[%s6 + $0xc38] sm:$0xff]
    %v624 = vld [vmem:[%s6 + $0xc40] sm:$0xff]
    %v625 = vld [vmem:[%s6 + $0xc48] sm:$0xff]
    %v626 = vld [vmem:[%s6 + $0xc50] sm:$0xff]
    %v627 = vld [vmem:[%s6 + $0xc58] sm:$0xff]
    %v628 = vld [vmem:[%s6 + $0xc60] sm:$0xff]
    %v629 = vld [vmem:[%s6 + $0xc68] sm:$0xff]
    %v630 = vld [vmem:[%s6 + $0xc70] sm:$0xff]
    %v631 = vld [vmem:[%s6 + $0xc78] sm:$0xff]
    %v632 = vld [vmem:[%s6 + $0xc80] sm:$0xff]
    %v633 = vld [vmem:[%s6 + $0xc88] sm:$0xff]
    %v634 = vld [vmem:[%s6 + $0xc90] sm:$0xff]
    %v635 = vld [vmem:[%s6 + $0xc98] sm:$0xff]
    %v636 = vld [vmem:[%s6 + $0xca0] sm:$0xff]
    %v637 = vld [vmem:[%s6 + $0xca8] sm:$0xff]
    %v638 = vld [vmem:[%s6 + $0xcb0] sm:$0xff]
    %v639 = vld [vmem:[%s6 + $0xcb8] sm:$0xff]
    %v640 = vld [vmem:[%s6 + $0xcc0] sm:$0xff]
    %v641 = vld [vmem:[%s6 + $0xcc8] sm:$0xff]
    %v642 = vld [vmem:[%s6 + $0xcd0] sm:$0xff]
    %v643 = vld [vmem:[%s6 + $0xcd8] sm:$0xff]
    %v644 = vld [vmem:[%s6 + $0xce0] sm:$0xff]
    %v645 = vld [vmem:[%s6 + $0xce8] sm:$0xff]
    %v646 = vld [vmem:[%s6 + $0xcf0] sm:$0xff]
    %v647 = vld [vmem:[%s6 + $0xcf8] sm:$0xff]
    %v648 = vld [vmem:[%s6 + $0xd00] sm:$0xff]
    %v649 = vld [vmem:[%s6 + $0xd08] sm:$0xff]
    %v650 = vld [vmem:[%s6 + $0xd10] sm:$0xff]
    %v651 = vld [vmem:[%s6 + $0xd18] sm:$0xff]
    %v652 = vld [vmem:[%s6 + $0xd20] sm:$0xff]
    %v653 = vld [vmem:[%s6 + $0xd28] sm:$0xff]
    %v654 = vld [vmem:[%s6 + $0xd30] sm:$0xff]
    %v655 = vld [vmem:[%s6 + $0xd38] sm:$0xff]
    %v656 = vld [vmem:[%s6 + $0xd40] sm:$0xff]
    %v657 = vld [vmem:[%s6 + $0xd48] sm:$0xff]
    %v658 = vld [vmem:[%s6 + $0xd50] sm:$0xff]
    %v659 = vld [vmem:[%s6 + $0xd58] sm:$0xff]
    %v660 = vld [vmem:[%s6 + $0xd60] sm:$0xff]
    %v661 = vld [vmem:[%s6 + $0xd68] sm:$0xff]
    %v662 = vld [vmem:[%s6 + $0xd70] sm:$0xff]
    %v663 = vld [vmem:[%s6 + $0xd78] sm:$0xff]
    %v664 = vld [vmem:[%s6 + $0xd80] sm:$0xff]
    %v665 = vld [vmem:[%s6 + $0xd88] sm:$0xff]
    %v666 = vld [vmem:[%s6 + $0xd90] sm:$0xff]
    %v667 = vld [vmem:[%s6 + $0xd98] sm:$0xff]
    %v668 = vld [vmem:[%s6 + $0xda0] sm:$0xff]
    %v669 = vld [vmem:[%s6 + $0xda8] sm:$0xff]
    %v670 = vld [vmem:[%s6 + $0xdb0] sm:$0xff]
    %v671 = vld [vmem:[%s6 + $0xdb8] sm:$0xff]
    %v672 = vld [vmem:[%s6 + $0xdc0] sm:$0xff]
    %v673 = vld [vmem:[%s6 + $0xdc8] sm:$0xff]
    %v674 = vld [vmem:[%s6 + $0xdd0] sm:$0xff]
    %v675 = vld [vmem:[%s6 + $0xdd8] sm:$0xff]
    %v676 = vld [vmem:[%s6 + $0xde0] sm:$0xff]
    %v677 = vld [vmem:[%s6 + $0xde8] sm:$0xff]
    %v678 = vld [vmem:[%s6 + $0xdf0] sm:$0xff]
    %v679 = vld [vmem:[%s6 + $0xdf8] sm:$0xff]
    %v680 = vld [vmem:[%s6 + $0xe00] sm:$0xff]
    %v681 = vld [vmem:[%s6 + $0xe08] sm:$0xff]
    %v682 = vld [vmem:[%s6 + $0xe10] sm:$0xff]
    %v683 = vld [vmem:[%s6 + $0xe18] sm:$0xff]
    %v684 = vld [vmem:[%s6 + $0xe20] sm:$0xff]
    %v685 = vld [vmem:[%s6 + $0xe28] sm:$0xff]
    %v686 = vld [vmem:[%s6 + $0xe30] sm:$0xff]
    %v687 = vld [vmem:[%s6 + $0xe38] sm:$0xff]
    %v688 = vld [vmem:[%s6 + $0xe40] sm:$0xff]
    %v689 = vld [vmem:[%s6 + $0xe48] sm:$0xff]
    %v690 = vld [vmem:[%s6 + $0xe50] sm:$0xff]
    %v691 = vld [vmem:[%s6 + $0xe58] sm:$0xff]
    %v692 = vld [vmem:[%s6 + $0xe60] sm:$0xff]
    %v693 = vld [vmem:[%s6 + $0xe68] sm:$0xff]
    %v694 = vld [vmem:[%s6 + $0xe70] sm:$0xff]
    %v695 = vld [vmem:[%s6 + $0xe78] sm:$0xff]
    %v696 = vld [vmem:[%s6 + $0xe80] sm:$0xff]
    %v697 = vld [vmem:[%s6 + $0xe88] sm:$0xff]
    %v698 = vld [vmem:[%s6 + $0xe90] sm:$0xff]
    %v699 = vld [vmem:[%s6 + $0xe98] sm:$0xff]
    %v700 = vld [vmem:[%s6 + $0xea0] sm:$0xff]
    %v701 = vld [vmem:[%s6 + $0xea8] sm:$0xff]
    %v702 = vld [vmem:[%s6 + $0xeb0] sm:$0xff]
    %v703 = vld [vmem:[%s6 + $0xeb8] sm:$0xff]
    %v704 = vld [vmem:[%s6 + $0xec0] sm:$0xff]
    %v705 = vld [vmem:[%s6 + $0xec8] sm:$0xff]
    %v706 = vld [vmem:[%s6 + $0xed0] sm:$0xff]
    %v707 = vld [vmem:[%s6 + $0xed8] sm:$0xff]
    %v708 = vld [vmem:[%s6 + $0xee0] sm:$0xff]
    %v709 = vld [vmem:[%s6 + $0xee8] sm:$0xff]
    %v710 = vld [vmem:[%s6 + $0xef0] sm:$0xff]
    %v711 = vld [vmem:[%s6 + $0xef8] sm:$0xff]
    %v712 = vld [vmem:[%s6 + $0xf00] sm:$0xff]
    %v713 = vld [vmem:[%s6 + $0xf08] sm:$0xff]
    %v714 = vld [vmem:[%s6 + $0xf10] sm:$0xff]
    %v715 = vld [vmem:[%s6 + $0xf18] sm:$0xff]
    %v716 = vld [vmem:[%s6 + $0xf20] sm:$0xff]
    %v717 = vld [vmem:[%s6 + $0xf28] sm:$0xff]
    %v718 = vld [vmem:[%s6 + $0xf30] sm:$0xff]
    %v719 = vld [vmem:[%s6 + $0xf38] sm:$0xff]
    %v720 = vld [vmem:[%s6 + $0xf40] sm:$0xff]
    %v721 = vld [vmem:[%s6 + $0xf48] sm:$0xff]
    %v722 = vld [vmem:[%s6 + $0xf50] sm:$0xff]
    %v723 = vld [vmem:[%s6 + $0xf58] sm:$0xff]
    %v724 = vld [vmem:[%s6 + $0xf60] sm:$0xff]
    %v725 = vld [vmem:[%s6 + $0xf68] sm:$0xff]
    %v726 = vld [vmem:[%s6 + $0xf70] sm:$0xff]
    %v727 = vld [vmem:[%s6 + $0xf78] sm:$0xff]
    %v728 = vld [vmem:[%s6 + $0xf80] sm:$0xff]
    %v729 = vld [vmem:[%s6 + $0xf88] sm:$0xff]
    %v730 = vld [vmem:[%s6 + $0xf90] sm:$0xff]
    %v731 = vld [vmem:[%s6 + $0xf98] sm:$0xff]
    %v732 = vld [vmem:[%s6 + $0xfa0] sm:$0xff]
    %v733 = vld [vmem:[%s6 + $0xfa8] sm:$0xff]
    %v734 = vld [vmem:[%s6 + $0xfb0] sm:$0xff]
    %v735 = vld [vmem:[%s6 + $0xfb8] sm:$0xff]
    %v736 = vld [vmem:[%s6 + $0xfc0] sm:$0xff]
    %v737 = vld [vmem:[%s6 + $0xfc8] sm:$0xff]
    %v738 = vld [vmem:[%s6 + $0xfd0] sm:$0xff]
    %v739 = vld [vmem:[%s6 + $0xfd8] sm:$0xff]
    %v740 = vld [vmem:[%s6 + $0xfe0] sm:$0xff]
    %v741 = vld [vmem:[%s6 + $0xfe8] sm:$0xff]
    %v742 = vld [vmem:[%s6 + $0xff0] sm:$0xff]
    %v743 = vld [vmem:[%s6 + $0xff8] sm:$0xff]
    %744 = vmatpush.msra.mxu0 %v292
    %745 = vmatpush.msra.mxu0 %v288
    %746 = vmatpush.msra.mxu0 %v284
    %747 = vmatpush.msra.mxu0 %v280
    %748 = vmatpush.msra.mxu0 %v276
    %749 = vmatpush.msra.mxu0 %v272
    %750 = vmatpush.msra.mxu0 %v268
    %751 = vmatpush.msra.mxu0 %v264
    %752 = vmatpush.msra.mxu0 %v260
    %753 = vmatpush.msra.mxu0 %v256
    %754 = vmatpush.msra.mxu0 %v252
    %755 = vmatpush.msra.mxu0 %v248
    %756 = vmatpush.msra.mxu0 %v244
    %757 = vmatpush.msra.mxu0 %v240
    %758 = vmatpush.msra.mxu0 %v236
    %759 = vmatpush.msra.mxu0 %v232
    %760 = vmatmul.f32.gmra.mxu0 %v224
    %v761 = vpop.f32.mrf.mxu0
    %v762 = vadd.f32 0.0, %v761
    %763 = vdwg.mxu0
    %764 = vmatpush.msra.mxu0 %v356
    %765 = vmatpush.msra.mxu0 %v352
    %766 = vmatpush.msra.mxu0 %v348
    %767 = vmatpush.msra.mxu0 %v344
    %768 = vmatpush.msra.mxu0 %v340
    %769 = vmatpush.msra.mxu0 %v336
    %770 = vmatpush.msra.mxu0 %v332
    %771 = vmatpush.msra.mxu0 %v328
    %772 = vmatpush.msra.mxu0 %v324
    %773 = vmatpush.msra.mxu0 %v320
    %774 = vmatpush.msra.mxu0 %v316
    %775 = vmatpush.msra.mxu0 %v312
    %776 = vmatpush.msra.mxu0 %v308
    %777 = vmatpush.msra.mxu0 %v304
    %778 = vmatpush.msra.mxu0 %v300
    %779 = vmatpush.msra.mxu0 %v296
    %780 = vmatmul.f32.gmra.mxu0 %v225
    %v781 = vpop.f32.mrf.mxu0
    %v782 = vadd.f32 %v762, %v781
    %783 = vdwg.mxu0
    %784 = vmatpush.msra.mxu0 %v420
    %785 = vmatpush.msra.mxu0 %v416
    %786 = vmatpush.msra.mxu0 %v412
    %787 = vmatpush.msra.mxu0 %v408
    %788 = vmatpush.msra.mxu0 %v404
    %789 = vmatpush.msra.mxu0 %v400
    %790 = vmatpush.msra.mxu0 %v396
    %791 = vmatpush.msra.mxu0 %v392
    %792 = vmatpush.msra.mxu0 %v388
    %793 = vmatpush.msra.mxu0 %v384
    %794 = vmatpush.msra.mxu0 %v380
    %795 = vmatpush.msra.mxu0 %v376
    %796 = vmatpush.msra.mxu0 %v372
    %797 = vmatpush.msra.mxu0 %v368
    %798 = vmatpush.msra.mxu0 %v364
    %799 = vmatpush.msra.mxu0 %v360
    %800 = vmatmul.f32.gmra.mxu0 %v226
    %v801 = vpop.f32.mrf.mxu0
    %v802 = vadd.f32 %v782, %v801
    %803 = vdwg.mxu0
    %804 = vmatpush.msra.mxu0 %v484
    %805 = vmatpush.msra.mxu0 %v480
    %806 = vmatpush.msra.mxu0 %v476
    %807 = vmatpush.msra.mxu0 %v472
    %808 = vmatpush.msra.mxu0 %v468
    %809 = vmatpush.msra.mxu0 %v464
    %810 = vmatpush.msra.mxu0 %v460
    %811 = vmatpush.msra.mxu0 %v456
    %812 = vmatpush.msra.mxu0 %v452
    %813 = vmatpush.msra.mxu0 %v448
    %814 = vmatpush.msra.mxu0 %v444
    %815 = vmatpush.msra.mxu0 %v440
    %816 = vmatpush.msra.mxu0 %v436
    %817 = vmatpush.msra.mxu0 %v432
    %818 = vmatpush.msra.mxu0 %v428
    %819 = vmatpush.msra.mxu0 %v424
    %820 = vmatmul.f32.gmra.mxu0 %v227
    %v821 = vpop.f32.mrf.mxu0
    %v822 = vadd.f32 %v802, %v821
    %823 = vdwg.mxu0
    %824 = vmatpush.msra.mxu0 %v548
    %825 = vmatpush.msra.mxu0 %v544
    %826 = vmatpush.msra.mxu0 %v540
    %827 = vmatpush.msra.mxu0 %v536
    %828 = vmatpush.msra.mxu0 %v532
    %829 = vmatpush.msra.mxu0 %v528
    %830 = vmatpush.msra.mxu0 %v524
    %831 = vmatpush.msra.mxu0 %v520
    %832 = vmatpush.msra.mxu0 %v516
    %833 = vmatpush.msra.mxu0 %v512
    %834 = vmatpush.msra.mxu0 %v508
    %835 = vmatpush.msra.mxu0 %v504
    %836 = vmatpush.msra.mxu0 %v500
    %837 = vmatpush.msra.mxu0 %v496
    %838 = vmatpush.msra.mxu0 %v492
    %839 = vmatpush.msra.mxu0 %v488
    %840 = vmatmul.f32.gmra.mxu0 %v228
    %v841 = vpop.f32.mrf.mxu0
    %v842 = vadd.f32 %v822, %v841
    %843 = vdwg.mxu0
    %844 = vmatpush.msra.mxu0 %v612
    %845 = vmatpush.msra.mxu0 %v608
    %846 = vmatpush.msra.mxu0 %v604
    %847 = vmatpush.msra.mxu0 %v600
    %848 = vmatpush.msra.mxu0 %v596
    %849 = vmatpush.msra.mxu0 %v592
    %850 = vmatpush.msra.mxu0 %v588
    %851 = vmatpush.msra.mxu0 %v584
    %852 = vmatpush.msra.mxu0 %v580
    %853 = vmatpush.msra.mxu0 %v576
    %854 = vmatpush.msra.mxu0 %v572
    %855 = vmatpush.msra.mxu0 %v568
    %856 = vmatpush.msra.mxu0 %v564
    %857 = vmatpush.msra.mxu0 %v560
    %858 = vmatpush.msra.mxu0 %v556
    %859 = vmatpush.msra.mxu0 %v552
    %860 = vmatmul.f32.gmra.mxu0 %v229
    %v861 = vpop.f32.mrf.mxu0
    %v862 = vadd.f32 %v842, %v861
    %863 = vdwg.mxu0
    %864 = vmatpush.msra.mxu0 %v676
    %865 = vmatpush.msra.mxu0 %v672
    %866 = vmatpush.msra.mxu0 %v668
    %867 = vmatpush.msra.mxu0 %v664
    %868 = vmatpush.msra.mxu0 %v660
    %869 = vmatpush.msra.mxu0 %v656
    %870 = vmatpush.msra.mxu0 %v652
    %871 = vmatpush.msra.mxu0 %v648
    %872 = vmatpush.msra.mxu0 %v644
    %873 = vmatpush.msra.mxu0 %v640
    %874 = vmatpush.msra.mxu0 %v636
    %875 = vmatpush.msra.mxu0 %v632
    %876 = vmatpush.msra.mxu0 %v628
    %877 = vmatpush.msra.mxu0 %v624
    %878 = vmatpush.msra.mxu0 %v620
    %879 = vmatpush.msra.mxu0 %v616
    %880 = vmatmul.f32.gmra.mxu0 %v230
    %v881 = vpop.f32.mrf.mxu0
    %v882 = vadd.f32 %v862, %v881
    %883 = vdwg.mxu0
    %884 = vmatpush.msra.mxu0 %v740
    %885 = vmatpush.msra.mxu0 %v736
    %886 = vmatpush.msra.mxu0 %v732
    %887 = vmatpush.msra.mxu0 %v728
    %888 = vmatpush.msra.mxu0 %v724
    %889 = vmatpush.msra.mxu0 %v720
    %890 = vmatpush.msra.mxu0 %v716
    %891 = vmatpush.msra.mxu0 %v712
    %892 = vmatpush.msra.mxu0 %v708
    %893 = vmatpush.msra.mxu0 %v704
    %894 = vmatpush.msra.mxu0 %v700
    %895 = vmatpush.msra.mxu0 %v696
    %896 = vmatpush.msra.mxu0 %v692
    %897 = vmatpush.msra.mxu0 %v688
    %898 = vmatpush.msra.mxu0 %v684
    %899 = vmatpush.msra.mxu0 %v680
    %900 = vmatmul.f32.gmra.mxu0 %v231
    %v901 = vpop.f32.mrf.mxu0
    %v902 = vadd.f32 %v882, %v901
    %903 = vdwg.mxu0
    %904 = vmatpush.msra.mxu0 %v293
    %905 = vmatpush.msra.mxu0 %v289
    %906 = vmatpush.msra.mxu0 %v285
    %907 = vmatpush.msra.mxu0 %v281
    %908 = vmatpush.msra.mxu0 %v277
    %909 = vmatpush.msra.mxu0 %v273
    %910 = vmatpush.msra.mxu0 %v269
    %911 = vmatpush.msra.mxu0 %v265
    %912 = vmatpush.msra.mxu0 %v261
    %913 = vmatpush.msra.mxu0 %v257
    %914 = vmatpush.msra.mxu0 %v253
    %915 = vmatpush.msra.mxu0 %v249
    %916 = vmatpush.msra.mxu0 %v245
    %917 = vmatpush.msra.mxu0 %v241
    %918 = vmatpush.msra.mxu0 %v237
    %919 = vmatpush.msra.mxu0 %v233
    %920 = vmatmul.f32.gmra.mxu0 %v224
    %v921 = vpop.f32.mrf.mxu0
    %v922 = vadd.f32 0.0, %v921
    %923 = vdwg.mxu0
    %924 = vmatpush.msra.mxu0 %v357
    %925 = vmatpush.msra.mxu0 %v353
    %926 = vmatpush.msra.mxu0 %v349
    %927 = vmatpush.msra.mxu0 %v345
    %928 = vmatpush.msra.mxu0 %v341
    %929 = vmatpush.msra.mxu0 %v337
    %930 = vmatpush.msra.mxu0 %v333
    %931 = vmatpush.msra.mxu0 %v329
    %932 = vmatpush.msra.mxu0 %v325
    %933 = vmatpush.msra.mxu0 %v321
    %934 = vmatpush.msra.mxu0 %v317
    %935 = vmatpush.msra.mxu0 %v313
    %936 = vmatpush.msra.mxu0 %v309
    %937 = vmatpush.msra.mxu0 %v305
    %938 = vmatpush.msra.mxu0 %v301
    %939 = vmatpush.msra.mxu0 %v297
    %940 = vmatmul.f32.gmra.mxu0 %v225
    %v941 = vpop.f32.mrf.mxu0
    %v942 = vadd.f32 %v922, %v941
    %943 = vdwg.mxu0
    %944 = vmatpush.msra.mxu0 %v421
    %945 = vmatpush.msra.mxu0 %v417
    %946 = vmatpush.msra.mxu0 %v413
    %947 = vmatpush.msra.mxu0 %v409
    %948 = vmatpush.msra.mxu0 %v405
    %949 = vmatpush.msra.mxu0 %v401
    %950 = vmatpush.msra.mxu0 %v397
    %951 = vmatpush.msra.mxu0 %v393
    %952 = vmatpush.msra.mxu0 %v389
    %953 = vmatpush.msra.mxu0 %v385
    %954 = vmatpush.msra.mxu0 %v381
    %955 = vmatpush.msra.mxu0 %v377
    %956 = vmatpush.msra.mxu0 %v373
    %957 = vmatpush.msra.mxu0 %v369
    %958 = vmatpush.msra.mxu0 %v365
    %959 = vmatpush.msra.mxu0 %v361
    %960 = vmatmul.f32.gmra.mxu0 %v226
    %v961 = vpop.f32.mrf.mxu0
    %v962 = vadd.f32 %v942, %v961
    %963 = vdwg.mxu0
    %964 = vmatpush.msra.mxu0 %v485
    %965 = vmatpush.msra.mxu0 %v481
    %966 = vmatpush.msra.mxu0 %v477
    %967 = vmatpush.msra.mxu0 %v473
    %968 = vmatpush.msra.mxu0 %v469
    %969 = vmatpush.msra.mxu0 %v465
    %970 = vmatpush.msra.mxu0 %v461
    %971 = vmatpush.msra.mxu0 %v457
    %972 = vmatpush.msra.mxu0 %v453
    %973 = vmatpush.msra.mxu0 %v449
    %974 = vmatpush.msra.mxu0 %v445
    %975 = vmatpush.msra.mxu0 %v441
    %976 = vmatpush.msra.mxu0 %v437
    %977 = vmatpush.msra.mxu0 %v433
    %978 = vmatpush.msra.mxu0 %v429
    %979 = vmatpush.msra.mxu0 %v425
    %980 = vmatmul.f32.gmra.mxu0 %v227
    %v981 = vpop.f32.mrf.mxu0
    %v982 = vadd.f32 %v962, %v981
    %983 = vdwg.mxu0
    %984 = vmatpush.msra.mxu0 %v549
    %985 = vmatpush.msra.mxu0 %v545
    %986 = vmatpush.msra.mxu0 %v541
    %987 = vmatpush.msra.mxu0 %v537
    %988 = vmatpush.msra.mxu0 %v533
    %989 = vmatpush.msra.mxu0 %v529
    %990 = vmatpush.msra.mxu0 %v525
    %991 = vmatpush.msra.mxu0 %v521
    %992 = vmatpush.msra.mxu0 %v517
    %993 = vmatpush.msra.mxu0 %v513
    %994 = vmatpush.msra.mxu0 %v509
    %995 = vmatpush.msra.mxu0 %v505
    %996 = vmatpush.msra.mxu0 %v501
    %997 = vmatpush.msra.mxu0 %v497
    %998 = vmatpush.msra.mxu0 %v493
    %999 = vmatpush.msra.mxu0 %v489
    %1000 = vmatmul.f32.gmra.mxu0 %v228
    %v1001 = vpop.f32.mrf.mxu0
    %v1002 = vadd.f32 %v982, %v1001
    %1003 = vdwg.mxu0
    %1004 = vmatpush.msra.mxu0 %v613
    %1005 = vmatpush.msra.mxu0 %v609
    %1006 = vmatpush.msra.mxu0 %v605
    %1007 = vmatpush.msra.mxu0 %v601
    %1008 = vmatpush.msra.mxu0 %v597
    %1009 = vmatpush.msra.mxu0 %v593
    %1010 = vmatpush.msra.mxu0 %v589
    %1011 = vmatpush.msra.mxu0 %v585
    %1012 = vmatpush.msra.mxu0 %v581
    %1013 = vmatpush.msra.mxu0 %v577
    %1014 = vmatpush.msra.mxu0 %v573
    %1015 = vmatpush.msra.mxu0 %v569
    %1016 = vmatpush.msra.mxu0 %v565
    %1017 = vmatpush.msra.mxu0 %v561
    %1018 = vmatpush.msra.mxu0 %v557
    %1019 = vmatpush.msra.mxu0 %v553
    %1020 = vmatmul.f32.gmra.mxu0 %v229
    %v1021 = vpop.f32.mrf.mxu0
    %v1022 = vadd.f32 %v1002, %v1021
    %1023 = vdwg.mxu0
    %1024 = vmatpush.msra.mxu0 %v677
    %1025 = vmatpush.msra.mxu0 %v673
    %1026 = vmatpush.msra.mxu0 %v669
    %1027 = vmatpush.msra.mxu0 %v665
    %1028 = vmatpush.msra.mxu0 %v661
    %1029 = vmatpush.msra.mxu0 %v657
    %1030 = vmatpush.msra.mxu0 %v653
    %1031 = vmatpush.msra.mxu0 %v649
    %1032 = vmatpush.msra.mxu0 %v645
    %1033 = vmatpush.msra.mxu0 %v641
    %1034 = vmatpush.msra.mxu0 %v637
    %1035 = vmatpush.msra.mxu0 %v633
    %1036 = vmatpush.msra.mxu0 %v629
    %1037 = vmatpush.msra.mxu0 %v625
    %1038 = vmatpush.msra.mxu0 %v621
    %1039 = vmatpush.msra.mxu0 %v617
    %1040 = vmatmul.f32.gmra.mxu0 %v230
    %v1041 = vpop.f32.mrf.mxu0
    %v1042 = vadd.f32 %v1022, %v1041
    %1043 = vdwg.mxu0
    %1044 = vmatpush.msra.mxu0 %v741
    %1045 = vmatpush.msra.mxu0 %v737
    %1046 = vmatpush.msra.mxu0 %v733
    %1047 = vmatpush.msra.mxu0 %v729
    %1048 = vmatpush.msra.mxu0 %v725
    %1049 = vmatpush.msra.mxu0 %v721
    %1050 = vmatpush.msra.mxu0 %v717
    %1051 = vmatpush.msra.mxu0 %v713
    %1052 = vmatpush.msra.mxu0 %v709
    %1053 = vmatpush.msra.mxu0 %v705
    %1054 = vmatpush.msra.mxu0 %v701
    %1055 = vmatpush.msra.mxu0 %v697
    %1056 = vmatpush.msra.mxu0 %v693
    %1057 = vmatpush.msra.mxu0 %v689
    %1058 = vmatpush.msra.mxu0 %v685
    %1059 = vmatpush.msra.mxu0 %v681
    %1060 = vmatmul.f32.gmra.mxu0 %v231
    %v1061 = vpop.f32.mrf.mxu0
    %v1062 = vadd.f32 %v1042, %v1061
    %1063 = vdwg.mxu0
    %1064 = vmatpush.msra.mxu0 %v294
    %1065 = vmatpush.msra.mxu0 %v290
    %1066 = vmatpush.msra.mxu0 %v286
    %1067 = vmatpush.msra.mxu0 %v282
    %1068 = vmatpush.msra.mxu0 %v278
    %1069 = vmatpush.msra.mxu0 %v274
    %1070 = vmatpush.msra.mxu0 %v270
    %1071 = vmatpush.msra.mxu0 %v266
    %1072 = vmatpush.msra.mxu0 %v262
    %1073 = vmatpush.msra.mxu0 %v258
    %1074 = vmatpush.msra.mxu0 %v254
    %1075 = vmatpush.msra.mxu0 %v250
    %1076 = vmatpush.msra.mxu0 %v246
    %1077 = vmatpush.msra.mxu0 %v242
    %1078 = vmatpush.msra.mxu0 %v238
    %1079 = vmatpush.msra.mxu0 %v234
    %1080 = vmatmul.f32.gmra.mxu0 %v224
    %v1081 = vpop.f32.mrf.mxu0
    %v1082 = vadd.f32 0.0, %v1081
    %1083 = vdwg.mxu0
    %1084 = vmatpush.msra.mxu0 %v358
    %1085 = vmatpush.msra.mxu0 %v354
    %1086 = vmatpush.msra.mxu0 %v350
    %1087 = vmatpush.msra.mxu0 %v346
    %1088 = vmatpush.msra.mxu0 %v342
    %1089 = vmatpush.msra.mxu0 %v338
    %1090 = vmatpush.msra.mxu0 %v334
    %1091 = vmatpush.msra.mxu0 %v330
    %1092 = vmatpush.msra.mxu0 %v326
    %1093 = vmatpush.msra.mxu0 %v322
    %1094 = vmatpush.msra.mxu0 %v318
    %1095 = vmatpush.msra.mxu0 %v314
    %1096 = vmatpush.msra.mxu0 %v310
    %1097 = vmatpush.msra.mxu0 %v306
    %1098 = vmatpush.msra.mxu0 %v302
    %1099 = vmatpush.msra.mxu0 %v298
    %1100 = vmatmul.f32.gmra.mxu0 %v225
    %v1101 = vpop.f32.mrf.mxu0
    %v1102 = vadd.f32 %v1082, %v1101
    %1103 = vdwg.mxu0
    %1104 = vmatpush.msra.mxu0 %v422
    %1105 = vmatpush.msra.mxu0 %v418
    %1106 = vmatpush.msra.mxu0 %v414
    %1107 = vmatpush.msra.mxu0 %v410
    %1108 = vmatpush.msra.mxu0 %v406
    %1109 = vmatpush.msra.mxu0 %v402
    %1110 = vmatpush.msra.mxu0 %v398
    %1111 = vmatpush.msra.mxu0 %v394
    %1112 = vmatpush.msra.mxu0 %v390
    %1113 = vmatpush.msra.mxu0 %v386
    %1114 = vmatpush.msra.mxu0 %v382
    %1115 = vmatpush.msra.mxu0 %v378
    %1116 = vmatpush.msra.mxu0 %v374
    %1117 = vmatpush.msra.mxu0 %v370
    %1118 = vmatpush.msra.mxu0 %v366
    %1119 = vmatpush.msra.mxu0 %v362
    %1120 = vmatmul.f32.gmra.mxu0 %v226
    %v1121 = vpop.f32.mrf.mxu0
    %v1122 = vadd.f32 %v1102, %v1121
    %1123 = vdwg.mxu0
    %1124 = vmatpush.msra.mxu0 %v486
    %1125 = vmatpush.msra.mxu0 %v482
    %1126 = vmatpush.msra.mxu0 %v478
    %1127 = vmatpush.msra.mxu0 %v474
    %1128 = vmatpush.msra.mxu0 %v470
    %1129 = vmatpush.msra.mxu0 %v466
    %1130 = vmatpush.msra.mxu0 %v462
    %1131 = vmatpush.msra.mxu0 %v458
    %1132 = vmatpush.msra.mxu0 %v454
    %1133 = vmatpush.msra.mxu0 %v450
    %1134 = vmatpush.msra.mxu0 %v446
    %1135 = vmatpush.msra.mxu0 %v442
    %1136 = vmatpush.msra.mxu0 %v438
    %1137 = vmatpush.msra.mxu0 %v434
    %1138 = vmatpush.msra.mxu0 %v430
    %1139 = vmatpush.msra.mxu0 %v426
    %1140 = vmatmul.f32.gmra.mxu0 %v227
    %v1141 = vpop.f32.mrf.mxu0
    %v1142 = vadd.f32 %v1122, %v1141
    %1143 = vdwg.mxu0
    %1144 = vmatpush.msra.mxu0 %v550
    %1145 = vmatpush.msra.mxu0 %v546
    %1146 = vmatpush.msra.mxu0 %v542
    %1147 = vmatpush.msra.mxu0 %v538
    %1148 = vmatpush.msra.mxu0 %v534
    %1149 = vmatpush.msra.mxu0 %v530
    %1150 = vmatpush.msra.mxu0 %v526
    %1151 = vmatpush.msra.mxu0 %v522
    %1152 = vmatpush.msra.mxu0 %v518
    %1153 = vmatpush.msra.mxu0 %v514
    %1154 = vmatpush.msra.mxu0 %v510
    %1155 = vmatpush.msra.mxu0 %v506
    %1156 = vmatpush.msra.mxu0 %v502
    %1157 = vmatpush.msra.mxu0 %v498
    %1158 = vmatpush.msra.mxu0 %v494
    %1159 = vmatpush.msra.mxu0 %v490
    %1160 = vmatmul.f32.gmra.mxu0 %v228
    %v1161 = vpop.f32.mrf.mxu0
    %v1162 = vadd.f32 %v1142, %v1161
    %1163 = vdwg.mxu0
    %1164 = vmatpush.msra.mxu0 %v614
    %1165 = vmatpush.msra.mxu0 %v610
    %1166 = vmatpush.msra.mxu0 %v606
    %1167 = vmatpush.msra.mxu0 %v602
    %1168 = vmatpush.msra.mxu0 %v598
    %1169 = vmatpush.msra.mxu0 %v594
    %1170 = vmatpush.msra.mxu0 %v590
    %1171 = vmatpush.msra.mxu0 %v586
    %1172 = vmatpush.msra.mxu0 %v582
    %1173 = vmatpush.msra.mxu0 %v578
    %1174 = vmatpush.msra.mxu0 %v574
    %1175 = vmatpush.msra.mxu0 %v570
    %1176 = vmatpush.msra.mxu0 %v566
    %1177 = vmatpush.msra.mxu0 %v562
    %1178 = vmatpush.msra.mxu0 %v558
    %1179 = vmatpush.msra.mxu0 %v554
    %1180 = vmatmul.f32.gmra.mxu0 %v229
    %v1181 = vpop.f32.mrf.mxu0
    %v1182 = vadd.f32 %v1162, %v1181
    %1183 = vdwg.mxu0
    %1184 = vmatpush.msra.mxu0 %v678
    %1185 = vmatpush.msra.mxu0 %v674
    %1186 = vmatpush.msra.mxu0 %v670
    %1187 = vmatpush.msra.mxu0 %v666
    %1188 = vmatpush.msra.mxu0 %v662
    %1189 = vmatpush.msra.mxu0 %v658
    %1190 = vmatpush.msra.mxu0 %v654
    %1191 = vmatpush.msra.mxu0 %v650
    %1192 = vmatpush.msra.mxu0 %v646
    %1193 = vmatpush.msra.mxu0 %v642
    %1194 = vmatpush.msra.mxu0 %v638
    %1195 = vmatpush.msra.mxu0 %v634
    %1196 = vmatpush.msra.mxu0 %v630
    %1197 = vmatpush.msra.mxu0 %v626
    %1198 = vmatpush.msra.mxu0 %v622
    %1199 = vmatpush.msra.mxu0 %v618
    %1200 = vmatmul.f32.gmra.mxu0 %v230
    %v1201 = vpop.f32.mrf.mxu0
    %v1202 = vadd.f32 %v1182, %v1201
    %1203 = vdwg.mxu0
    %1204 = vmatpush.msra.mxu0 %v742
    %1205 = vmatpush.msra.mxu0 %v738
    %1206 = vmatpush.msra.mxu0 %v734
    %1207 = vmatpush.msra.mxu0 %v730
    %1208 = vmatpush.msra.mxu0 %v726
    %1209 = vmatpush.msra.mxu0 %v722
    %1210 = vmatpush.msra.mxu0 %v718
    %1211 = vmatpush.msra.mxu0 %v714
    %1212 = vmatpush.msra.mxu0 %v710
    %1213 = vmatpush.msra.mxu0 %v706
    %1214 = vmatpush.msra.mxu0 %v702
    %1215 = vmatpush.msra.mxu0 %v698
    %1216 = vmatpush.msra.mxu0 %v694
    %1217 = vmatpush.msra.mxu0 %v690
    %1218 = vmatpush.msra.mxu0 %v686
    %1219 = vmatpush.msra.mxu0 %v682
    %1220 = vmatmul.f32.gmra.mxu0 %v231
    %v1221 = vpop.f32.mrf.mxu0
    %v1222 = vadd.f32 %v1202, %v1221
    %1223 = vdwg.mxu0
    %1224 = vmatpush.msra.mxu0 %v295
    %1225 = vmatpush.msra.mxu0 %v291
    %1226 = vmatpush.msra.mxu0 %v287
    %1227 = vmatpush.msra.mxu0 %v283
    %1228 = vmatpush.msra.mxu0 %v279
    %1229 = vmatpush.msra.mxu0 %v275
    %1230 = vmatpush.msra.mxu0 %v271
    %1231 = vmatpush.msra.mxu0 %v267
    %1232 = vmatpush.msra.mxu0 %v263
    %1233 = vmatpush.msra.mxu0 %v259
    %1234 = vmatpush.msra.mxu0 %v255
    %1235 = vmatpush.msra.mxu0 %v251
    %1236 = vmatpush.msra.mxu0 %v247
    %1237 = vmatpush.msra.mxu0 %v243
    %1238 = vmatpush.msra.mxu0 %v239
    %1239 = vmatpush.msra.mxu0 %v235
    %1240 = vmatmul.f32.gmra.mxu0 %v224
    %v1241 = vpop.f32.mrf.mxu0
    %v1242 = vadd.f32 0.0, %v1241
    %1243 = vdwg.mxu0
    %1244 = vmatpush.msra.mxu0 %v359
    %1245 = vmatpush.msra.mxu0 %v355
    %1246 = vmatpush.msra.mxu0 %v351
    %1247 = vmatpush.msra.mxu0 %v347
    %1248 = vmatpush.msra.mxu0 %v343
    %1249 = vmatpush.msra.mxu0 %v339
    %1250 = vmatpush.msra.mxu0 %v335
    %1251 = vmatpush.msra.mxu0 %v331
    %1252 = vmatpush.msra.mxu0 %v327
    %1253 = vmatpush.msra.mxu0 %v323
    %1254 = vmatpush.msra.mxu0 %v319
    %1255 = vmatpush.msra.mxu0 %v315
    %1256 = vmatpush.msra.mxu0 %v311
    %1257 = vmatpush.msra.mxu0 %v307
    %1258 = vmatpush.msra.mxu0 %v303
    %1259 = vmatpush.msra.mxu0 %v299
    %1260 = vmatmul.f32.gmra.mxu0 %v225
    %v1261 = vpop.f32.mrf.mxu0
    %v1262 = vadd.f32 %v1242, %v1261
    %1263 = vdwg.mxu0
    %1264 = vmatpush.msra.mxu0 %v423
    %1265 = vmatpush.msra.mxu0 %v419
    %1266 = vmatpush.msra.mxu0 %v415
    %1267 = vmatpush.msra.mxu0 %v411
    %1268 = vmatpush.msra.mxu0 %v407
    %1269 = vmatpush.msra.mxu0 %v403
    %1270 = vmatpush.msra.mxu0 %v399
    %1271 = vmatpush.msra.mxu0 %v395
    %1272 = vmatpush.msra.mxu0 %v391
    %1273 = vmatpush.msra.mxu0 %v387
    %1274 = vmatpush.msra.mxu0 %v383
    %1275 = vmatpush.msra.mxu0 %v379
    %1276 = vmatpush.msra.mxu0 %v375
    %1277 = vmatpush.msra.mxu0 %v371
    %1278 = vmatpush.msra.mxu0 %v367
    %1279 = vmatpush.msra.mxu0 %v363
    %1280 = vmatmul.f32.gmra.mxu0 %v226
    %v1281 = vpop.f32.mrf.mxu0
    %v1282 = vadd.f32 %v1262, %v1281
    %1283 = vdwg.mxu0
    %1284 = vmatpush.msra.mxu0 %v487
    %1285 = vmatpush.msra.mxu0 %v483
    %1286 = vmatpush.msra.mxu0 %v479
    %1287 = vmatpush.msra.mxu0 %v475
    %1288 = vmatpush.msra.mxu0 %v471
    %1289 = vmatpush.msra.mxu0 %v467
    %1290 = vmatpush.msra.mxu0 %v463
    %1291 = vmatpush.msra.mxu0 %v459
    %1292 = vmatpush.msra.mxu0 %v455
    %1293 = vmatpush.msra.mxu0 %v451
    %1294 = vmatpush.msra.mxu0 %v447
    %1295 = vmatpush.msra.mxu0 %v443
    %1296 = vmatpush.msra.mxu0 %v439
    %1297 = vmatpush.msra.mxu0 %v435
    %1298 = vmatpush.msra.mxu0 %v431
    %1299 = vmatpush.msra.mxu0 %v427
    %1300 = vmatmul.f32.gmra.mxu0 %v227
    %v1301 = vpop.f32.mrf.mxu0
    %v1302 = vadd.f32 %v1282, %v1301
    %1303 = vdwg.mxu0
    %1304 = vmatpush.msra.mxu0 %v551
    %1305 = vmatpush.msra.mxu0 %v547
    %1306 = vmatpush.msra.mxu0 %v543
    %1307 = vmatpush.msra.mxu0 %v539
    %1308 = vmatpush.msra.mxu0 %v535
    %1309 = vmatpush.msra.mxu0 %v531
    %1310 = vmatpush.msra.mxu0 %v527
    %1311 = vmatpush.msra.mxu0 %v523
    %1312 = vmatpush.msra.mxu0 %v519
    %1313 = vmatpush.msra.mxu0 %v515
    %1314 = vmatpush.msra.mxu0 %v511
    %1315 = vmatpush.msra.mxu0 %v507
    %1316 = vmatpush.msra.mxu0 %v503
    %1317 = vmatpush.msra.mxu0 %v499
    %1318 = vmatpush.msra.mxu0 %v495
    %1319 = vmatpush.msra.mxu0 %v491
    %1320 = vmatmul.f32.gmra.mxu0 %v228
    %v1321 = vpop.f32.mrf.mxu0
    %v1322 = vadd.f32 %v1302, %v1321
    %1323 = vdwg.mxu0
    %1324 = vmatpush.msra.mxu0 %v615
    %1325 = vmatpush.msra.mxu0 %v611
    %1326 = vmatpush.msra.mxu0 %v607
    %1327 = vmatpush.msra.mxu0 %v603
    %1328 = vmatpush.msra.mxu0 %v599
    %1329 = vmatpush.msra.mxu0 %v595
    %1330 = vmatpush.msra.mxu0 %v591
    %1331 = vmatpush.msra.mxu0 %v587
    %1332 = vmatpush.msra.mxu0 %v583
    %1333 = vmatpush.msra.mxu0 %v579
    %1334 = vmatpush.msra.mxu0 %v575
    %1335 = vmatpush.msra.mxu0 %v571
    %1336 = vmatpush.msra.mxu0 %v567
    %1337 = vmatpush.msra.mxu0 %v563
    %1338 = vmatpush.msra.mxu0 %v559
    %1339 = vmatpush.msra.mxu0 %v555
    %1340 = vmatmul.f32.gmra.mxu0 %v229
    %v1341 = vpop.f32.mrf.mxu0
    %v1342 = vadd.f32 %v1322, %v1341
    %1343 = vdwg.mxu0
    %1344 = vmatpush.msra.mxu0 %v679
    %1345 = vmatpush.msra.mxu0 %v675
    %1346 = vmatpush.msra.mxu0 %v671
    %1347 = vmatpush.msra.mxu0 %v667
    %1348 = vmatpush.msra.mxu0 %v663
    %1349 = vmatpush.msra.mxu0 %v659
    %1350 = vmatpush.msra.mxu0 %v655
    %1351 = vmatpush.msra.mxu0 %v651
    %1352 = vmatpush.msra.mxu0 %v647
    %1353 = vmatpush.msra.mxu0 %v643
    %1354 = vmatpush.msra.mxu0 %v639
    %1355 = vmatpush.msra.mxu0 %v635
    %1356 = vmatpush.msra.mxu0 %v631
    %1357 = vmatpush.msra.mxu0 %v627
    %1358 = vmatpush.msra.mxu0 %v623
    %1359 = vmatpush.msra.mxu0 %v619
    %1360 = vmatmul.f32.gmra.mxu0 %v230
    %v1361 = vpop.f32.mrf.mxu0
    %v1362 = vadd.f32 %v1342, %v1361
    %1363 = vdwg.mxu0
    %1364 = vmatpush.msra.mxu0 %v743
    %1365 = vmatpush.msra.mxu0 %v739
    %1366 = vmatpush.msra.mxu0 %v735
    %1367 = vmatpush.msra.mxu0 %v731
    %1368 = vmatpush.msra.mxu0 %v727
    %1369 = vmatpush.msra.mxu0 %v723
    %1370 = vmatpush.msra.mxu0 %v719
    %1371 = vmatpush.msra.mxu0 %v715
    %1372 = vmatpush.msra.mxu0 %v711
    %1373 = vmatpush.msra.mxu0 %v707
    %1374 = vmatpush.msra.mxu0 %v703
    %1375 = vmatpush.msra.mxu0 %v699
    %1376 = vmatpush.msra.mxu0 %v695
    %1377 = vmatpush.msra.mxu0 %v691
    %1378 = vmatpush.msra.mxu0 %v687
    %1379 = vmatpush.msra.mxu0 %v683
    %1380 = vmatmul.f32.gmra.mxu0 %v231
    %v1381 = vpop.f32.mrf.mxu0
    %v1382 = vadd.f32 %v1362, %v1381
    %1383 = vdwg.mxu0
    %vm1384 = vcmask 1041408
    %v1385 = vsel %vm1384, %v902, 0.0
    %v1386 = vrot.slane %v1385, 4
    %v1387 = vadd.f32 %v1385, %v1386
    %v1388 = vrot.slane %v1387, 2
    %v1389 = vadd.f32 %v1387, %v1388
    %v1390 = vrot.slane %v1389, 1
    %v1391 = vadd.f32 %v1389, %v1390
    %v1392 = vsel %vm1384, %v1062, 0.0
    %v1393 = vrot.slane %v1392, 4
    %v1394 = vadd.f32 %v1392, %v1393
    %v1395 = vrot.slane %v1394, 2
    %v1396 = vadd.f32 %v1394, %v1395
    %v1397 = vrot.slane %v1396, 1
    %v1398 = vadd.f32 %v1396, %v1397
    %v1399 = vsel %vm1384, %v1222, 0.0
    %v1400 = vrot.slane %v1399, 4
    %v1401 = vadd.f32 %v1399, %v1400
    %v1402 = vrot.slane %v1401, 2
    %v1403 = vadd.f32 %v1401, %v1402
    %v1404 = vrot.slane %v1403, 1
    %v1405 = vadd.f32 %v1403, %v1404
    %v1406 = vsel %vm1384, %v1382, 0.0
    %v1407 = vrot.slane %v1406, 4
    %v1408 = vadd.f32 %v1406, %v1407
    %v1409 = vrot.slane %v1408, 2
    %v1410 = vadd.f32 %v1408, %v1409
    %v1411 = vrot.slane %v1410, 1
    %v1412 = vadd.f32 %v1410, %v1411
    %v1413 = vrcp.pop 2.0
    %v1414 = vmul.f32 2.0, %v1413
    %v1415 = vsub.f32 1.0, %v1414
    %v1416 = vmul.f32 %v1413, %v1415
    %v1417 = vadd.f32 %v1413, %v1416
    %vm1418 = vweird.f32 %v1413
    %v1419 = vsel %vm1418, %v1413, %v1417
    %v1420 = vmul.f32 %v1391, %v1419
    %v1421 = vmul.f32 %v1398, %v1419
    %v1422 = vmul.f32 %v1405, %v1419
    %v1423 = vmul.f32 %v1412, %v1419
    %v1424 = vmul.f32 %v902, %v902
    %v1425 = vmul.f32 %v1062, %v1062
    %v1426 = vmul.f32 %v1222, %v1222
    %v1427 = vmul.f32 %v1382, %v1382
    %v1428 = vsel %vm1384, %v1424, 0.0
    %v1429 = vrot.slane %v1428, 4
    %v1430 = vadd.f32 %v1428, %v1429
    %v1431 = vrot.slane %v1430, 2
    %v1432 = vadd.f32 %v1430, %v1431
    %v1433 = vrot.slane %v1432, 1
    %v1434 = vadd.f32 %v1432, %v1433
    %v1435 = vsel %vm1384, %v1425, 0.0
    %v1436 = vrot.slane %v1435, 4
    %v1437 = vadd.f32 %v1435, %v1436
    %v1438 = vrot.slane %v1437, 2
    %v1439 = vadd.f32 %v1437, %v1438
    %v1440 = vrot.slane %v1439, 1
    %v1441 = vadd.f32 %v1439, %v1440
    %v1442 = vsel %vm1384, %v1426, 0.0
    %v1443 = vrot.slane %v1442, 4
    %v1444 = vadd.f32 %v1442, %v1443
    %v1445 = vrot.slane %v1444, 2
    %v1446 = vadd.f32 %v1444, %v1445
    %v1447 = vrot.slane %v1446, 1
    %v1448 = vadd.f32 %v1446, %v1447
    %v1449 = vsel %vm1384, %v1427, 0.0
    %v1450 = vrot.slane %v1449, 4
    %v1451 = vadd.f32 %v1449, %v1450
    %v1452 = vrot.slane %v1451, 2
    %v1453 = vadd.f32 %v1451, %v1452
    %v1454 = vrot.slane %v1453, 1
    %v1455 = vadd.f32 %v1453, %v1454
    %v1456 = vmul.f32 %v1434, %v1419
    %v1457 = vmul.f32 %v1441, %v1419
    %v1458 = vmul.f32 %v1448, %v1419
    %v1459 = vmul.f32 %v1455, %v1419
    %v1460 = vmul.f32 %v1420, %v1420
    %v1461 = vmul.f32 %v1421, %v1421
    %v1462 = vmul.f32 %v1422, %v1422
    %v1463 = vmul.f32 %v1423, %v1423
    %v1464 = vsub.f32 %v1456, %v1460
    %v1465 = vsub.f32 %v1457, %v1461
    %v1466 = vsub.f32 %v1458, %v1462
    %v1467 = vsub.f32 %v1459, %v1463
    %v1468 = vmax.f32 %v1464, 0.0
    %v1469 = vmax.f32 %v1465, 0.0
    %v1470 = vmax.f32 %v1466, 0.0
    %v1471 = vmax.f32 %v1467, 0.0
    %v1472 = vld [vmem:[%s7] sm:$0xf]
    %v1473 = vadd.f32 %v1468, 1e-05
    %v1474 = vadd.f32 %v1469, 1e-05
    %v1475 = vadd.f32 %v1470, 1e-05
    %v1476 = vadd.f32 %v1471, 1e-05
    %v1477 = vrsqrt.pop %v1473
    %v1478 = vmul.f32 %v1477, %v1473
    %v1479 = vmul.f32 %v1478, %v1477
    %v1480 = vmul.f32 0.5, %v1479
    %v1481 = vsub.f32 1.5, %v1480
    %v1482 = vmul.f32 %v1477, %v1481
    %vm1483 = vweird.f32 %v1473
    %vm1484 = vweird.f32 %v1477
    %vm1485 = vmor %vm1483, %vm1484
    %v1486 = vsel %vm1485, %v1477, %v1482
    %v1487 = vrsqrt.pop %v1474
    %v1488 = vmul.f32 %v1487, %v1474
    %v1489 = vmul.f32 %v1488, %v1487
    %v1490 = vmul.f32 0.5, %v1489
    %v1491 = vsub.f32 1.5, %v1490
    %v1492 = vmul.f32 %v1487, %v1491
    %vm1493 = vweird.f32 %v1474
    %vm1494 = vweird.f32 %v1487
    %vm1495 = vmor %vm1493, %vm1494
    %v1496 = vsel %vm1495, %v1487, %v1492
    %v1497 = vrsqrt.pop %v1475
    %v1498 = vmul.f32 %v1497, %v1475
    %v1499 = vmul.f32 %v1498, %v1497
    %v1500 = vmul.f32 0.5, %v1499
    %v1501 = vsub.f32 1.5, %v1500
    %v1502 = vmul.f32 %v1497, %v1501
    %vm1503 = vweird.f32 %v1475
    %vm1504 = vweird.f32 %v1497
    %vm1505 = vmor %vm1503, %vm1504
    %v1506 = vsel %vm1505, %v1497, %v1502
    %v1507 = vrsqrt.pop %v1476
    %v1508 = vmul.f32 %v1507, %v1476
    %v1509 = vmul.f32 %v1508, %v1507
    %v1510 = vmul.f32 0.5, %v1509
    %v1511 = vsub.f32 1.5, %v1510
    %v1512 = vmul.f32 %v1507, %v1511
    %vm1513 = vweird.f32 %v1476
    %vm1514 = vweird.f32 %v1507
    %vm1515 = vmor %vm1513, %vm1514
    %v1516 = vsel %vm1515, %v1507, %v1512
    %v1521 = vrot.slane %v1496, 7
    %v1522 = vrot.slane %v1506, 6
    %v1523 = vrot.slane %v1516, 5
    %vm1524 = vcmask 1040384
    %v1525 = vsel %vm1524, %v1486, %v1521
    %vm1526 = vcmask 1042434
    %v1527 = vsel %vm1526, %v1522, %v1523
    %v1528 = vsel %vm1384, %v1525, %v1527
    %v1530 = vmul.f32 %v1472, %v1528
    %v1532 = vperm.slane %v1530, 0
    %v1533 = vperm.slane %v1530, 1
    %v1534 = vperm.slane %v1530, 2
    %v1535 = vperm.slane %v1530, 3
    %v1540 = vmul.f32 %v902, %v1532
    %v1541 = vmul.f32 %v1062, %v1533
    %v1542 = vmul.f32 %v1222, %v1534
    %v1543 = vmul.f32 %v1382, %v1535
    %v1544 = vld [vmem:[%s8] sm:$0xf]
    %v1545 = vmul.f32 %v1420, %v1532
    %v1546 = vmul.f32 %v1421, %v1533
    %v1547 = vmul.f32 %v1422, %v1534
    %v1548 = vmul.f32 %v1423, %v1535
    %v1553 = vrot.slane %v1546, 7
    %v1554 = vrot.slane %v1547, 6
    %v1555 = vrot.slane %v1548, 5
    %v1556 = vsel %vm1524, %v1545, %v1553
    %v1557 = vsel %vm1526, %v1554, %v1555
    %v1558 = vsel %vm1384, %v1556, %v1557
    %v1560 = vsub.f32 %v1544, %v1558
    %v1562 = vperm.slane %v1560, 0
    %v1563 = vperm.slane %v1560, 1
    %v1564 = vperm.slane %v1560, 2
    %v1565 = vperm.slane %v1560, 3
    %v1570 = vadd.f32 %v1540, %v1562
    %v1571 = vadd.f32 %v1541, %v1563
    %v1572 = vadd.f32 %v1542, %v1564
    %v1573 = vadd.f32 %v1543, %v1565
    %v1574 = vmax.f32 %v1570, 0.0
    %v1575 = vmax.f32 %v1571, 0.0
    %v1576 = vmax.f32 %v1572, 0.0
    %v1577 = vmax.f32 %v1573, 0.0
    %v1578 = vld [vmem:[#allocation2] sm:$0xff]
    %v1579 = vld [vmem:[#allocation2 + $0x8] sm:$0xff]
    %v1580 = vld [vmem:[#allocation2 + $0x10] sm:$0xff]
    %v1581 = vld [vmem:[#allocation2 + $0x18] sm:$0xff]
    %v1582 = vld [vmem:[#allocation2 + $0x20] sm:$0xff]
    %v1583 = vld [vmem:[#allocation2 + $0x28] sm:$0xff]
    %v1584 = vld [vmem:[#allocation2 + $0x30] sm:$0xff]
    %v1585 = vld [vmem:[#allocation2 + $0x38] sm:$0xff]
    %v1586 = vld [vmem:[#allocation2 + $0x40] sm:$0xff]
    %v1587 = vld [vmem:[#allocation2 + $0x48] sm:$0xff]
    %v1588 = vld [vmem:[#allocation2 + $0x50] sm:$0xff]
    %v1589 = vld [vmem:[#allocation2 + $0x58] sm:$0xff]
    %v1590 = vld [vmem:[#allocation2 + $0x60] sm:$0xff]
    %v1591 = vld [vmem:[#allocation2 + $0x68] sm:$0xff]
    %v1592 = vld [vmem:[#allocation2 + $0x70] sm:$0xff]
    %v1593 = vld [vmem:[#allocation2 + $0x78] sm:$0xff]
    %v1594 = vld [vmem:[#allocation2 + $0x80] sm:$0xff]
    %v1595 = vld [vmem:[#allocation2 + $0x88] sm:$0xff]
    %v1596 = vld [vmem:[#allocation2 + $0x90] sm:$0xff]
    %v1597 = vld [vmem:[#allocation2 + $0x98] sm:$0xff]
    %v1598 = vld [vmem:[#allocation2 + $0xa0] sm:$0xff]
    %v1599 = vld [vmem:[#allocation2 + $0xa8] sm:$0xff]
    %v1600 = vld [vmem:[#allocation2 + $0xb0] sm:$0xff]
    %v1601 = vld [vmem:[#allocation2 + $0xb8] sm:$0xff]
    %v1602 = vld [vmem:[#allocation2 + $0xc0] sm:$0xff]
    %v1603 = vld [vmem:[#allocation2 + $0xc8] sm:$0xff]
    %v1604 = vld [vmem:[#allocation2 + $0xd0] sm:$0xff]
    %v1605 = vld [vmem:[#allocation2 + $0xd8] sm:$0xff]
    %v1606 = vld [vmem:[#allocation2 + $0xe0] sm:$0xff]
    %v1607 = vld [vmem:[#allocation2 + $0xe8] sm:$0xff]
    %v1608 = vld [vmem:[#allocation2 + $0xf0] sm:$0xff]
    %v1609 = vld [vmem:[#allocation2 + $0xf8] sm:$0xff]
    %v1610 = vld [vmem:[#allocation2 + $0x100] sm:$0xff]
    %v1611 = vld [vmem:[#allocation2 + $0x108] sm:$0xff]
    %v1612 = vld [vmem:[#allocation2 + $0x110] sm:$0xff]
    %v1613 = vld [vmem:[#allocation2 + $0x118] sm:$0xff]
    %v1614 = vld [vmem:[#allocation2 + $0x120] sm:$0xff]
    %v1615 = vld [vmem:[#allocation2 + $0x128] sm:$0xff]
    %v1616 = vld [vmem:[#allocation2 + $0x130] sm:$0xff]
    %v1617 = vld [vmem:[#allocation2 + $0x138] sm:$0xff]
    %v1618 = vld [vmem:[#allocation2 + $0x140] sm:$0xff]
    %v1619 = vld [vmem:[#allocation2 + $0x148] sm:$0xff]
    %v1620 = vld [vmem:[#allocation2 + $0x150] sm:$0xff]
    %v1621 = vld [vmem:[#allocation2 + $0x158] sm:$0xff]
    %v1622 = vld [vmem:[#allocation2 + $0x160] sm:$0xff]
    %v1623 = vld [vmem:[#allocation2 + $0x168] sm:$0xff]
    %v1624 = vld [vmem:[#allocation2 + $0x170] sm:$0xff]
    %v1625 = vld [vmem:[#allocation2 + $0x178] sm:$0xff]
    %v1626 = vld [vmem:[#allocation2 + $0x180] sm:$0xff]
    %v1627 = vld [vmem:[#allocation2 + $0x188] sm:$0xff]
    %v1628 = vld [vmem:[#allocation2 + $0x190] sm:$0xff]
    %v1629 = vld [vmem:[#allocation2 + $0x198] sm:$0xff]
    %v1630 = vld [vmem:[#allocation2 + $0x1a0] sm:$0xff]
    %v1631 = vld [vmem:[#allocation2 + $0x1a8] sm:$0xff]
    %v1632 = vld [vmem:[#allocation2 + $0x1b0] sm:$0xff]
    %v1633 = vld [vmem:[#allocation2 + $0x1b8] sm:$0xff]
    %v1634 = vld [vmem:[#allocation2 + $0x1c0] sm:$0xff]
    %v1635 = vld [vmem:[#allocation2 + $0x1c8] sm:$0xff]
    %v1636 = vld [vmem:[#allocation2 + $0x1d0] sm:$0xff]
    %v1637 = vld [vmem:[#allocation2 + $0x1d8] sm:$0xff]
    %v1638 = vld [vmem:[#allocation2 + $0x1e0] sm:$0xff]
    %v1639 = vld [vmem:[#allocation2 + $0x1e8] sm:$0xff]
    %v1640 = vld [vmem:[#allocation2 + $0x1f0] sm:$0xff]
    %v1641 = vld [vmem:[#allocation2 + $0x1f8] sm:$0xff]
    %v1642 = vld [vmem:[#allocation2 + $0x200] sm:$0xff]
    %v1643 = vld [vmem:[#allocation2 + $0x208] sm:$0xff]
    %v1644 = vld [vmem:[#allocation2 + $0x210] sm:$0xff]
    %v1645 = vld [vmem:[#allocation2 + $0x218] sm:$0xff]
    %v1646 = vld [vmem:[#allocation2 + $0x220] sm:$0xff]
    %v1647 = vld [vmem:[#allocation2 + $0x228] sm:$0xff]
    %v1648 = vld [vmem:[#allocation2 + $0x230] sm:$0xff]
    %v1649 = vld [vmem:[#allocation2 + $0x238] sm:$0xff]
    %v1650 = vld [vmem:[#allocation2 + $0x240] sm:$0xff]
    %v1651 = vld [vmem:[#allocation2 + $0x248] sm:$0xff]
    %v1652 = vld [vmem:[#allocation2 + $0x250] sm:$0xff]
    %v1653 = vld [vmem:[#allocation2 + $0x258] sm:$0xff]
    %v1654 = vld [vmem:[#allocation2 + $0x260] sm:$0xff]
    %v1655 = vld [vmem:[#allocation2 + $0x268] sm:$0xff]
    %v1656 = vld [vmem:[#allocation2 + $0x270] sm:$0xff]
    %v1657 = vld [vmem:[#allocation2 + $0x278] sm:$0xff]
    %v1658 = vld [vmem:[#allocation2 + $0x280] sm:$0xff]
    %v1659 = vld [vmem:[#allocation2 + $0x288] sm:$0xff]
    %v1660 = vld [vmem:[#allocation2 + $0x290] sm:$0xff]
    %v1661 = vld [vmem:[#allocation2 + $0x298] sm:$0xff]
    %v1662 = vld [vmem:[#allocation2 + $0x2a0] sm:$0xff]
    %v1663 = vld [vmem:[#allocation2 + $0x2a8] sm:$0xff]
    %v1664 = vld [vmem:[#allocation2 + $0x2b0] sm:$0xff]
    %v1665 = vld [vmem:[#allocation2 + $0x2b8] sm:$0xff]
    %v1666 = vld [vmem:[#allocation2 + $0x2c0] sm:$0xff]
    %v1667 = vld [vmem:[#allocation2 + $0x2c8] sm:$0xff]
    %v1668 = vld [vmem:[#allocation2 + $0x2d0] sm:$0xff]
    %v1669 = vld [vmem:[#allocation2 + $0x2d8] sm:$0xff]
    %v1670 = vld [vmem:[#allocation2 + $0x2e0] sm:$0xff]
    %v1671 = vld [vmem:[#allocation2 + $0x2e8] sm:$0xff]
    %v1672 = vld [vmem:[#allocation2 + $0x2f0] sm:$0xff]
    %v1673 = vld [vmem:[#allocation2 + $0x2f8] sm:$0xff]
    %v1674 = vld [vmem:[#allocation2 + $0x300] sm:$0xff]
    %v1675 = vld [vmem:[#allocation2 + $0x308] sm:$0xff]
    %v1676 = vld [vmem:[#allocation2 + $0x310] sm:$0xff]
    %v1677 = vld [vmem:[#allocation2 + $0x318] sm:$0xff]
    %v1678 = vld [vmem:[#allocation2 + $0x320] sm:$0xff]
    %v1679 = vld [vmem:[#allocation2 + $0x328] sm:$0xff]
    %v1680 = vld [vmem:[#allocation2 + $0x330] sm:$0xff]
    %v1681 = vld [vmem:[#allocation2 + $0x338] sm:$0xff]
    %v1682 = vld [vmem:[#allocation2 + $0x340] sm:$0xff]
    %v1683 = vld [vmem:[#allocation2 + $0x348] sm:$0xff]
    %v1684 = vld [vmem:[#allocation2 + $0x350] sm:$0xff]
    %v1685 = vld [vmem:[#allocation2 + $0x358] sm:$0xff]
    %v1686 = vld [vmem:[#allocation2 + $0x360] sm:$0xff]
    %v1687 = vld [vmem:[#allocation2 + $0x368] sm:$0xff]
    %v1688 = vld [vmem:[#allocation2 + $0x370] sm:$0xff]
    %v1689 = vld [vmem:[#allocation2 + $0x378] sm:$0xff]
    %v1690 = vld [vmem:[#allocation2 + $0x380] sm:$0xff]
    %v1691 = vld [vmem:[#allocation2 + $0x388] sm:$0xff]
    %v1692 = vld [vmem:[#allocation2 + $0x390] sm:$0xff]
    %v1693 = vld [vmem:[#allocation2 + $0x398] sm:$0xff]
    %v1694 = vld [vmem:[#allocation2 + $0x3a0] sm:$0xff]
    %v1695 = vld [vmem:[#allocation2 + $0x3a8] sm:$0xff]
    %v1696 = vld [vmem:[#allocation2 + $0x3b0] sm:$0xff]
    %v1697 = vld [vmem:[#allocation2 + $0x3b8] sm:$0xff]
    %v1698 = vld [vmem:[#allocation2 + $0x3c0] sm:$0xff]
    %v1699 = vld [vmem:[#allocation2 + $0x3c8] sm:$0xff]
    %v1700 = vld [vmem:[#allocation2 + $0x3d0] sm:$0xff]
    %v1701 = vld [vmem:[#allocation2 + $0x3d8] sm:$0xff]
    %v1702 = vld [vmem:[#allocation2 + $0x3e0] sm:$0xff]
    %v1703 = vld [vmem:[#allocation2 + $0x3e8] sm:$0xff]
    %v1704 = vld [vmem:[#allocation2 + $0x3f0] sm:$0xff]
    %v1705 = vld [vmem:[#allocation2 + $0x3f8] sm:$0xff]
    %1706 = vmatpush.msra.mxu0 %v1608
    %1707 = vmatpush.msra.mxu0 %v1606
    %1708 = vmatpush.msra.mxu0 %v1604
    %1709 = vmatpush.msra.mxu0 %v1602
    %1710 = vmatpush.msra.mxu0 %v1600
    %1711 = vmatpush.msra.mxu0 %v1598
    %1712 = vmatpush.msra.mxu0 %v1596
    %1713 = vmatpush.msra.mxu0 %v1594
    %1714 = vmatpush.msra.mxu0 %v1592
    %1715 = vmatpush.msra.mxu0 %v1590
    %1716 = vmatpush.msra.mxu0 %v1588
    %1717 = vmatpush.msra.mxu0 %v1586
    %1718 = vmatpush.msra.mxu0 %v1584
    %1719 = vmatpush.msra.mxu0 %v1582
    %1720 = vmatpush.msra.mxu0 %v1580
    %1721 = vmatpush.msra.mxu0 %v1578
    %1722 = vmatmul.f32.gmra.mxu0 %v1574
    %v1723 = vpop.f32.mrf.mxu0
    %v1724 = vadd.f32 0.0, %v1723
    %1725 = vdwg.mxu0
    %1726 = vmatpush.msra.mxu0 %v1640
    %1727 = vmatpush.msra.mxu0 %v1638
    %1728 = vmatpush.msra.mxu0 %v1636
    %1729 = vmatpush.msra.mxu0 %v1634
    %1730 = vmatpush.msra.mxu0 %v1632
    %1731 = vmatpush.msra.mxu0 %v1630
    %1732 = vmatpush.msra.mxu0 %v1628
    %1733 = vmatpush.msra.mxu0 %v1626
    %1734 = vmatpush.msra.mxu0 %v1624
    %1735 = vmatpush.msra.mxu0 %v1622
    %1736 = vmatpush.msra.mxu0 %v1620
    %1737 = vmatpush.msra.mxu0 %v1618
    %1738 = vmatpush.msra.mxu0 %v1616
    %1739 = vmatpush.msra.mxu0 %v1614
    %1740 = vmatpush.msra.mxu0 %v1612
    %1741 = vmatpush.msra.mxu0 %v1610
    %1742 = vmatmul.f32.gmra.mxu0 %v1575
    %v1743 = vpop.f32.mrf.mxu0
    %v1744 = vadd.f32 %v1724, %v1743
    %1745 = vdwg.mxu0
    %1746 = vmatpush.msra.mxu0 %v1672
    %1747 = vmatpush.msra.mxu0 %v1670
    %1748 = vmatpush.msra.mxu0 %v1668
    %1749 = vmatpush.msra.mxu0 %v1666
    %1750 = vmatpush.msra.mxu0 %v1664
    %1751 = vmatpush.msra.mxu0 %v1662
    %1752 = vmatpush.msra.mxu0 %v1660
    %1753 = vmatpush.msra.mxu0 %v1658
    %1754 = vmatpush.msra.mxu0 %v1656
    %1755 = vmatpush.msra.mxu0 %v1654
    %1756 = vmatpush.msra.mxu0 %v1652
    %1757 = vmatpush.msra.mxu0 %v1650
    %1758 = vmatpush.msra.mxu0 %v1648
    %1759 = vmatpush.msra.mxu0 %v1646
    %1760 = vmatpush.msra.mxu0 %v1644
    %1761 = vmatpush.msra.mxu0 %v1642
    %1762 = vmatmul.f32.gmra.mxu0 %v1576
    %v1763 = vpop.f32.mrf.mxu0
    %v1764 = vadd.f32 %v1744, %v1763
    %1765 = vdwg.mxu0
    %1766 = vmatpush.msra.mxu0 %v1704
    %1767 = vmatpush.msra.mxu0 %v1702
    %1768 = vmatpush.msra.mxu0 %v1700
    %1769 = vmatpush.msra.mxu0 %v1698
    %1770 = vmatpush.msra.mxu0 %v1696
    %1771 = vmatpush.msra.mxu0 %v1694
    %1772 = vmatpush.msra.mxu0 %v1692
    %1773 = vmatpush.msra.mxu0 %v1690
    %1774 = vmatpush.msra.mxu0 %v1688
    %1775 = vmatpush.msra.mxu0 %v1686
    %1776 = vmatpush.msra.mxu0 %v1684
    %1777 = vmatpush.msra.mxu0 %v1682
    %1778 = vmatpush.msra.mxu0 %v1680
    %1779 = vmatpush.msra.mxu0 %v1678
    %1780 = vmatpush.msra.mxu0 %v1676
    %1781 = vmatpush.msra.mxu0 %v1674
    %1782 = vmatmul.f32.gmra.mxu0 %v1577
    %v1783 = vpop.f32.mrf.mxu0
    %v1784 = vadd.f32 %v1764, %v1783
    %1785 = vdwg.mxu0
    %1786 = vmatpush.msra.mxu0 %v1609
    %1787 = vmatpush.msra.mxu0 %v1607
    %1788 = vmatpush.msra.mxu0 %v1605
    %1789 = vmatpush.msra.mxu0 %v1603
    %1790 = vmatpush.msra.mxu0 %v1601
    %1791 = vmatpush.msra.mxu0 %v1599
    %1792 = vmatpush.msra.mxu0 %v1597
    %1793 = vmatpush.msra.mxu0 %v1595
    %1794 = vmatpush.msra.mxu0 %v1593
    %1795 = vmatpush.msra.mxu0 %v1591
    %1796 = vmatpush.msra.mxu0 %v1589
    %1797 = vmatpush.msra.mxu0 %v1587
    %1798 = vmatpush.msra.mxu0 %v1585
    %1799 = vmatpush.msra.mxu0 %v1583
    %1800 = vmatpush.msra.mxu0 %v1581
    %1801 = vmatpush.msra.mxu0 %v1579
    %1802 = vmatmul.f32.gmra.mxu0 %v1574
    %v1803 = vpop.f32.mrf.mxu0
    %v1804 = vadd.f32 0.0, %v1803
    %1805 = vdwg.mxu0
    %1806 = vmatpush.msra.mxu0 %v1641
    %1807 = vmatpush.msra.mxu0 %v1639
    %1808 = vmatpush.msra.mxu0 %v1637
    %1809 = vmatpush.msra.mxu0 %v1635
    %1810 = vmatpush.msra.mxu0 %v1633
    %1811 = vmatpush.msra.mxu0 %v1631
    %1812 = vmatpush.msra.mxu0 %v1629
    %1813 = vmatpush.msra.mxu0 %v1627
    %1814 = vmatpush.msra.mxu0 %v1625
    %1815 = vmatpush.msra.mxu0 %v1623
    %1816 = vmatpush.msra.mxu0 %v1621
    %1817 = vmatpush.msra.mxu0 %v1619
    %1818 = vmatpush.msra.mxu0 %v1617
    %1819 = vmatpush.msra.mxu0 %v1615
    %1820 = vmatpush.msra.mxu0 %v1613
    %1821 = vmatpush.msra.mxu0 %v1611
    %1822 = vmatmul.f32.gmra.mxu0 %v1575
    %v1823 = vpop.f32.mrf.mxu0
    %v1824 = vadd.f32 %v1804, %v1823
    %1825 = vdwg.mxu0
    %1826 = vmatpush.msra.mxu0 %v1673
    %1827 = vmatpush.msra.mxu0 %v1671
    %1828 = vmatpush.msra.mxu0 %v1669
    %1829 = vmatpush.msra.mxu0 %v1667
    %1830 = vmatpush.msra.mxu0 %v1665
    %1831 = vmatpush.msra.mxu0 %v1663
    %1832 = vmatpush.msra.mxu0 %v1661
    %1833 = vmatpush.msra.mxu0 %v1659
    %1834 = vmatpush.msra.mxu0 %v1657
    %1835 = vmatpush.msra.mxu0 %v1655
    %1836 = vmatpush.msra.mxu0 %v1653
    %1837 = vmatpush.msra.mxu0 %v1651
    %1838 = vmatpush.msra.mxu0 %v1649
    %1839 = vmatpush.msra.mxu0 %v1647
    %1840 = vmatpush.msra.mxu0 %v1645
    %1841 = vmatpush.msra.mxu0 %v1643
    %1842 = vmatmul.f32.gmra.mxu0 %v1576
    %v1843 = vpop.f32.mrf.mxu0
    %v1844 = vadd.f32 %v1824, %v1843
    %1845 = vdwg.mxu0
    %1846 = vmatpush.msra.mxu0 %v1705
    %1847 = vmatpush.msra.mxu0 %v1703
    %1848 = vmatpush.msra.mxu0 %v1701
    %1849 = vmatpush.msra.mxu0 %v1699
    %1850 = vmatpush.msra.mxu0 %v1697
    %1851 = vmatpush.msra.mxu0 %v1695
    %1852 = vmatpush.msra.mxu0 %v1693
    %1853 = vmatpush.msra.mxu0 %v1691
    %1854 = vmatpush.msra.mxu0 %v1689
    %1855 = vmatpush.msra.mxu0 %v1687
    %1856 = vmatpush.msra.mxu0 %v1685
    %1857 = vmatpush.msra.mxu0 %v1683
    %1858 = vmatpush.msra.mxu0 %v1681
    %1859 = vmatpush.msra.mxu0 %v1679
    %1860 = vmatpush.msra.mxu0 %v1677
    %1861 = vmatpush.msra.mxu0 %v1675
    %1862 = vmatmul.f32.gmra.mxu0 %v1577
    %v1863 = vpop.f32.mrf.mxu0
    %v1864 = vadd.f32 %v1844, %v1863
    %1865 = vdwg.mxu0
    %v1866 = vsel %vm1384, %v1784, 0.0
    %v1867 = vrot.slane %v1866, 4
    %v1868 = vadd.f32 %v1866, %v1867
    %v1869 = vrot.slane %v1868, 2
    %v1870 = vadd.f32 %v1868, %v1869
    %v1871 = vrot.slane %v1870, 1
    %v1872 = vadd.f32 %v1870, %v1871
    %v1873 = vsel %vm1384, %v1864, 0.0
    %v1874 = vrot.slane %v1873, 4
    %v1875 = vadd.f32 %v1873, %v1874
    %v1876 = vrot.slane %v1875, 2
    %v1877 = vadd.f32 %v1875, %v1876
    %v1878 = vrot.slane %v1877, 1
    %v1879 = vadd.f32 %v1877, %v1878
    %v1880 = vmul.f32 %v1872, %v1419
    %v1881 = vmul.f32 %v1879, %v1419
    %v1882 = vmul.f32 %v1784, %v1784
    %v1883 = vmul.f32 %v1864, %v1864
    %v1884 = vsel %vm1384, %v1882, 0.0
    %v1885 = vrot.slane %v1884, 4
    %v1886 = vadd.f32 %v1884, %v1885
    %v1887 = vrot.slane %v1886, 2
    %v1888 = vadd.f32 %v1886, %v1887
    %v1889 = vrot.slane %v1888, 1
    %v1890 = vadd.f32 %v1888, %v1889
    %v1891 = vsel %vm1384, %v1883, 0.0
    %v1892 = vrot.slane %v1891, 4
    %v1893 = vadd.f32 %v1891, %v1892
    %v1894 = vrot.slane %v1893, 2
    %v1895 = vadd.f32 %v1893, %v1894
    %v1896 = vrot.slane %v1895, 1
    %v1897 = vadd.f32 %v1895, %v1896
    %v1898 = vmul.f32 %v1890, %v1419
    %v1899 = vmul.f32 %v1897, %v1419
    %v1900 = vmul.f32 %v1880, %v1880
    %v1901 = vmul.f32 %v1881, %v1881
    %v1902 = vsub.f32 %v1898, %v1900
    %v1903 = vsub.f32 %v1899, %v1901
    %v1904 = vmax.f32 %v1902, 0.0
    %v1905 = vmax.f32 %v1903, 0.0
    %v1906 = vld [vmem:[%s10] sm:$0x3]
    %v1907 = vadd.f32 %v1904, 1e-05
    %v1908 = vadd.f32 %v1905, 1e-05
    %v1909 = vrsqrt.pop %v1907
    %v1910 = vmul.f32 %v1909, %v1907
    %v1911 = vmul.f32 %v1910, %v1909
    %v1912 = vmul.f32 0.5, %v1911
    %v1913 = vsub.f32 1.5, %v1912
    %v1914 = vmul.f32 %v1909, %v1913
    %vm1915 = vweird.f32 %v1907
    %vm1916 = vweird.f32 %v1909
    %vm1917 = vmor %vm1915, %vm1916
    %v1918 = vsel %vm1917, %v1909, %v1914
    %v1919 = vrsqrt.pop %v1908
    %v1920 = vmul.f32 %v1919, %v1908
    %v1921 = vmul.f32 %v1920, %v1919
    %v1922 = vmul.f32 0.5, %v1921
    %v1923 = vsub.f32 1.5, %v1922
    %v1924 = vmul.f32 %v1919, %v1923
    %vm1925 = vweird.f32 %v1908
    %vm1926 = vweird.f32 %v1919
    %vm1927 = vmor %vm1925, %vm1926
    %v1928 = vsel %vm1927, %v1919, %v1924
    %v1931 = vrot.slane %v1928, 7
    %v1932 = vsel %vm1524, %v1918, %v1931
    %v1934 = vmul.f32 %v1906, %v1932
    %v1936 = vperm.slane %v1934, 0
    %v1937 = vperm.slane %v1934, 1
    %v1940 = vmul.f32 %v1784, %v1936
    %v1941 = vmul.f32 %v1864, %v1937
    %v1942 = vld [vmem:[%s11] sm:$0x3]
    %v1943 = vmul.f32 %v1880, %v1936
    %v1944 = vmul.f32 %v1881, %v1937
    %v1947 = vrot.slane %v1944, 7
    %v1948 = vsel %vm1524, %v1943, %v1947
    %v1950 = vsub.f32 %v1942, %v1948
    %v1952 = vperm.slane %v1950, 0
    %v1953 = vperm.slane %v1950, 1
    %v1956 = vadd.f32 %v1940, %v1952
    %v1957 = vadd.f32 %v1941, %v1953
    %v1958 = vmax.f32 %v1956, 0.0
    %v1959 = vmax.f32 %v1957, 0.0
    %v1960 = vld [vmem:[%s12] sm:$0xff]
    %v1961 = vld [vmem:[%s12 + $0x8] sm:$0xff]
    %v1962 = vld [vmem:[%s12 + $0x10] sm:$0xff]
    %v1963 = vld [vmem:[%s12 + $0x18] sm:$0xff]
    %v1964 = vld [vmem:[%s12 + $0x20] sm:$0xff]
    %v1965 = vld [vmem:[%s12 + $0x28] sm:$0xff]
    %v1966 = vld [vmem:[%s12 + $0x30] sm:$0xff]
    %v1967 = vld [vmem:[%s12 + $0x38] sm:$0xff]
    %v1968 = vld [vmem:[%s12 + $0x40] sm:$0xff]
    %v1969 = vld [vmem:[%s12 + $0x48] sm:$0xff]
    %v1970 = vld [vmem:[%s12 + $0x50] sm:$0xff]
    %v1971 = vld [vmem:[%s12 + $0x58] sm:$0xff]
    %v1972 = vld [vmem:[%s12 + $0x60] sm:$0xff]
    %v1973 = vld [vmem:[%s12 + $0x68] sm:$0xff]
    %v1974 = vld [vmem:[%s12 + $0x70] sm:$0xff]
    %v1975 = vld [vmem:[%s12 + $0x78] sm:$0xff]
    %v1976 = vld [vmem:[%s12 + $0x80] sm:$0xff]
    %v1977 = vld [vmem:[%s12 + $0x88] sm:$0xff]
    %v1978 = vld [vmem:[%s12 + $0x90] sm:$0xff]
    %v1979 = vld [vmem:[%s12 + $0x98] sm:$0xff]
    %v1980 = vld [vmem:[%s12 + $0xa0] sm:$0xff]
    %v1981 = vld [vmem:[%s12 + $0xa8] sm:$0xff]
    %v1982 = vld [vmem:[%s12 + $0xb0] sm:$0xff]
    %v1983 = vld [vmem:[%s12 + $0xb8] sm:$0xff]
    %v1984 = vld [vmem:[%s12 + $0xc0] sm:$0xff]
    %v1985 = vld [vmem:[%s12 + $0xc8] sm:$0xff]
    %v1986 = vld [vmem:[%s12 + $0xd0] sm:$0xff]
    %v1987 = vld [vmem:[%s12 + $0xd8] sm:$0xff]
    %v1988 = vld [vmem:[%s12 + $0xe0] sm:$0xff]
    %v1989 = vld [vmem:[%s12 + $0xe8] sm:$0xff]
    %v1990 = vld [vmem:[%s12 + $0xf0] sm:$0xff]
    %v1991 = vld [vmem:[%s12 + $0xf8] sm:$0xff]
    %v1992 = vld [vmem:[%s13] sm:$0x1]
    %v1994 = vperm.slane %v1992, 0
    %1996 = vmatpush.msra.mxu0 %v1975
    %1997 = vmatpush.msra.mxu0 %v1974
    %1998 = vmatpush.msra.mxu0 %v1973
    %1999 = vmatpush.msra.mxu0 %v1972
    %2000 = vmatpush.msra.mxu0 %v1971
    %2001 = vmatpush.msra.mxu0 %v1970
    %2002 = vmatpush.msra.mxu0 %v1969
    %2003 = vmatpush.msra.mxu0 %v1968
    %2004 = vmatpush.msra.mxu0 %v1967
    %2005 = vmatpush.msra.mxu0 %v1966
    %2006 = vmatpush.msra.mxu0 %v1965
    %2007 = vmatpush.msra.mxu0 %v1964
    %2008 = vmatpush.msra.mxu0 %v1963
    %2009 = vmatpush.msra.mxu0 %v1962
    %2010 = vmatpush.msra.mxu0 %v1961
    %2011 = vmatpush.msra.mxu0 %v1960
    %2012 = vmatmul.f32.gmra.mxu0 %v1958
    %v2013 = vpop.f32.mrf.mxu0
    %v2014 = vadd.f32 %v1994, %v2013
    %2015 = vdwg.mxu0
    %2016 = vmatpush.msra.mxu0 %v1991
    %2017 = vmatpush.msra.mxu0 %v1990
    %2018 = vmatpush.msra.mxu0 %v1989
    %2019 = vmatpush.msra.mxu0 %v1988
    %2020 = vmatpush.msra.mxu0 %v1987
    %2021 = vmatpush.msra.mxu0 %v1986
    %2022 = vmatpush.msra.mxu0 %v1985
    %2023 = vmatpush.msra.mxu0 %v1984
    %2024 = vmatpush.msra.mxu0 %v1983
    %2025 = vmatpush.msra.mxu0 %v1982
    %2026 = vmatpush.msra.mxu0 %v1981
    %2027 = vmatpush.msra.mxu0 %v1980
    %2028 = vmatpush.msra.mxu0 %v1979
    %2029 = vmatpush.msra.mxu0 %v1978
    %2030 = vmatpush.msra.mxu0 %v1977
    %2031 = vmatpush.msra.mxu0 %v1976
    %2032 = vmatmul.f32.gmra.mxu0 %v1959
    %v2033 = vpop.f32.mrf.mxu0
    %v2034 = vadd.f32 %v2014, %v2033
    %2035 = vdwg.mxu0
    %v2036 = vlaneseq
    %v2037 = vand.u32 %v2036, 127
    %vm2038 = vcmp.lt.s32.totalorder %v2037, 9
    %vm2039 = vcmp.lt.s32.totalorder %v2037, 0
    %v2040 = vsub.s32 0, %v2037
    %v2041 = vsel %vm2039, %v2040, %v2037
    %v2042 = vshrl.u32 %v2041, 2
    %v2043 = vand.u32 %v2041, 3
    %v2044 = vsub.s32 0, %v2043
    %v2045 = vsel %vm2039, %v2044, %v2043
    %vm2046 = vcmp.ne.s32.totalorder %v2045, 0
    %vm2047 = vcmp.lt.s32.totalorder %v2045, 0
    %vm2048 = vmand %vm2047, %vm2046
    %v2049 = vadd.s32 %v2045, 4
    %v2050 = vsel %vm2048, %v2049, %v2045
    %vm2051 = vcmp.eq.s32.totalorder %v2050, 0
    %vm2052 = vmand %vm2038, %vm2051
    %v2053 = vsel %vm2052, 1.0, 0.0
    %v2054 = vadd.f32 %v2034, %v2053
    %2055 = vst [vmem:[%s14] sm:$0x3] %v2054
    // Predicated region
    $region62: #{stn3d_forward.5} parent=1 // pred_check
      _
    $region63: #{stn3d_forward.5} parent=1 // pred_check_branch
      %2057 = sbr.rel (0) target = $region65
    $region64: #{stn3d_forward.5} parent=1 // pred_region
      _
    $region65: #{stn3d_forward.5} parent=1 // pred_fallthru
      _
    // Predicated region
    $region66: #{stn3d_forward.5} parent=1 // pred_check
      _
    $region67: #{stn3d_forward.5} parent=1 // pred_check_branch
      %2059 = sbr.rel (0) target = $region69
    $region68: #{stn3d_forward.5} parent=1 // pred_region
      _
    $region69: #{stn3d_forward.5} parent=1 // pred_fallthru
      _
    %2060 = vsyncpa [#allocation3], 1

// kernel: stn3d_forward.4
$region0: #{stn3d_forward.4}
  #allocation0 [shape = 'u32[]', space=smem, size = 0x4, offset = 0x4, fixed_abs, tag = 'smem constant byte address 0x4 - core index']
  #allocation1 [shape = 'u32[72,128]{1,0:T(1,128)}', space=vmem, size = 0x9000, scoped, tag = 'internal scratch']
  %s0 = inlined_call_operand.vmem [shape: f32[2,512,8], index: 0, kind: input, shape index: {}]
  %s1 = inlined_call_operand.vmem [shape: f32[8,64], index: 1, kind: input, shape index: {}]
  %s2 = inlined_call_operand.vmem [shape: f32[1,64], index: 2, kind: input, shape index: {}]
  %s3 = inlined_call_operand.vmem [shape: f32[1,64], index: 3, kind: input, shape index: {}]
  %s4 = inlined_call_operand.vmem [shape: f32[64,128], index: 4, kind: input, shape index: {}]
  %s5 = inlined_call_operand.vmem [shape: f32[1,128], index: 5, kind: input, shape index: {}]
  %s6 = inlined_call_operand.vmem [shape: f32[1,128], index: 6, kind: input, shape index: {}]
  %s7 = inlined_call_operand.vmem [shape: f32[128,1024], index: 7, kind: input, shape index: {}]
  %s8 = inlined_call_operand.vmem [shape: f32[2,1,1024], index: 8, kind: output, shape index: {0}]
  %s9 = inlined_call_operand.vmem [shape: f32[2,1,1024], index: 9, kind: output, shape index: {1}]
  %s10 = inlined_call_operand.vmem [shape: f32[2,1,1024], index: 10, kind: output, shape index: {2}]
  %s11 = inlined_call_operand.vmem [shape: f32[2,1,1024], index: 11, kind: output, shape index: {3}]
  %12 = xla_tuple %s8, %s9, %s10, %s11
  %s13 = sld [smem:[#allocation0]]
  $region93: #{stn3d_forward.4} parent=0
    _
  %s15 = ssub.s32 1, %s13
  %s16 = scalar_select 0, %s15, %s13
  loop: start=0, step=1, limit=4
  $region2: #{stn3d_forward.4} parent=0 // loop_pre_header
    _
  $region3: #{stn3d_forward.4} parent=0 // loop_header
    %s18 = sphi 0, %s22
    %p19 = scmp.ge.s32.totalorder %s18, 4
    %s25 = sphi 0, %s37
    %s26 = sphi 0, %s33
    %s27 = sphi 0, %s25
    %s28 = sphi 0, %s26
    %s29 = sphi 0, %s27
    %s30 = sphi 0, %s28
    %s42 = sphi 0, %s44
    %s45 = sphi 0, %s42
    %s46 = sphi 0, %s45
    %s62 = sphi 0, %s46
    %s66 = sphi 0, %s66
    %s68 = sphi 0, %s66
    %s69 = sphi 0, %s68
    %s83 = sphi 0, %s69
    %s87 = sphi 0, %s87
    %s89 = sphi 0, %s87
    %s90 = sphi 0, %s89
    %s104 = sphi 0, %s90
    %s108 = sphi 0, %s108
    %s110 = sphi 0, %s108
    %s111 = sphi 0, %s110
    %s125 = sphi 0, %s111
    %s129 = sphi 0, %s129
    %s131 = sphi 0, %s129
    %s132 = sphi 0, %s131
    %s146 = sphi 0, %s132
    %s150 = sphi 0, %s150
    %s152 = sphi 0, %s150
    %s153 = sphi 0, %s152
    %s167 = sphi 0, %s153
    %s171 = sphi 0, %s171
    %s173 = sphi 0, %s171
    %s174 = sphi 0, %s173
    %s188 = sphi 0, %s174
    %s192 = sphi 0, %s192
    %s194 = sphi 0, %s192
    %s195 = sphi 0, %s194
    %s209 = sphi 0, %s195
    %s215 = sphi 0, %s217
    %s218 = sphi 0, %s215
    %s219 = sphi 0, %s218
    %s235 = sphi 0, %s219
    %s241 = sphi 0, %s243
    %s244 = sphi 0, %s241
    %s245 = sphi 0, %s244
    %s261 = sphi 0, %s245
    %s267 = sphi 0, %s269
    %s270 = sphi 0, %s267
    %s271 = sphi 0, %s270
    %s287 = sphi 0, %s271
    %s293 = sphi 0, %s295
    %s296 = sphi 0, %s293
    %s297 = sphi 0, %s296
    %s313 = sphi 0, %s297
  $region4: #{stn3d_forward.4} parent=0 // loop_header_branch
    %21 = sbr.rel (%p19) target = $region8
  $region5: #{stn3d_forward.4} parent=0 // loop_body
    %s23 = ssub.s32 %s18, 1
    %s24 = ssub.s32 %s18, 2
    %s31 = sadd.s32 1, %s26
    %p32 = scmp.ge.s32.totalorder %s31, 1
    %s33 = scalar_select %p32, 0, %s31
    %s34 = sadd.s32 1, %s25
    %s35 = scalar_select %p32, %s34, %s25
    %p36 = scmp.ge.s32.totalorder %s35, 2
    %s37 = scalar_select %p36, 0, %s35
    %s38 = ssub.s32 %s25, %s37
    %s39 = ssub.s32 %s26, %s33
    %s40 = sor.u32 %s38, %s39
    %p41 = scmp.eq.s32.totalorder %s40, 0
    %s43 = sadd.s32 %s42, 1
    %s44 = scalar_select %p41, %s42, %s43
    %p47 = pneg %p41
    %p48 = scmp.eq.s32.totalorder %s18, 1
    %p49 = por %p47, %p48
    %p50 = scmp.ne.s32.totalorder %s42, %s45
    %p51 = scmp.eq.s32.totalorder %s18, 0
    %p52 = por %p50, %p51
    %p53 = scmp.ne.s32.totalorder %s42, %s45
    %p54 = scmp.eq.s32.totalorder %s23, 1
    %p55 = por %p53, %p54
    %p56 = scmp.ne.s32.totalorder %s45, %s46
    %p57 = scmp.eq.s32.totalorder %s23, 0
    %p58 = por %p56, %p57
    %p59 = scmp.ne.s32.totalorder %s45, %s46
    %p60 = scmp.eq.s32.totalorder %s24, 1
    %p61 = por %p59, %p60
    %p63 = scmp.ne.s32.totalorder %s46, %s62
    %p64 = scmp.eq.s32.totalorder %s24, 0
    %p65 = por %p63, %p64
    %s67 = sadd.s32 %s66, 1
    %p70 = scmp.eq.s32.totalorder %s18, 1
    %p71 = scmp.ne.s32.totalorder %s66, %s68
    %p72 = scmp.eq.s32.totalorder %s18, 0
    %p73 = por %p71, %p72
    %p74 = scmp.ne.s32.totalorder %s66, %s68
    %p75 = scmp.eq.s32.totalorder %s23, 1
    %p76 = por %p74, %p75
    %p77 = scmp.ne.s32.totalorder %s68, %s69
    %p78 = scmp.eq.s32.totalorder %s23, 0
    %p79 = por %p77, %p78
    %p80 = scmp.ne.s32.totalorder %s68, %s69
    %p81 = scmp.eq.s32.totalorder %s24, 1
    %p82 = por %p80, %p81
    %p84 = scmp.ne.s32.totalorder %s69, %s83
    %p85 = scmp.eq.s32.totalorder %s24, 0
    %p86 = por %p84, %p85
    %s88 = sadd.s32 %s87, 1
    %p91 = scmp.eq.s32.totalorder %s18, 1
    %p92 = scmp.ne.s32.totalorder %s87, %s89
    %p93 = scmp.eq.s32.totalorder %s18, 0
    %p94 = por %p92, %p93
    %p95 = scmp.ne.s32.totalorder %s87, %s89
    %p96 = scmp.eq.s32.totalorder %s23, 1
    %p97 = por %p95, %p96
    %p98 = scmp.ne.s32.totalorder %s89, %s90
    %p99 = scmp.eq.s32.totalorder %s23, 0
    %p100 = por %p98, %p99
    %p101 = scmp.ne.s32.totalorder %s89, %s90
    %p102 = scmp.eq.s32.totalorder %s24, 1
    %p103 = por %p101, %p102
    %p105 = scmp.ne.s32.totalorder %s90, %s104
    %p106 = scmp.eq.s32.totalorder %s24, 0
    %p107 = por %p105, %p106
    %s109 = sadd.s32 %s108, 1
    %p112 = scmp.eq.s32.totalorder %s18, 1
    %p113 = scmp.ne.s32.totalorder %s108, %s110
    %p114 = scmp.eq.s32.totalorder %s18, 0
    %p115 = por %p113, %p114
    %p116 = scmp.ne.s32.totalorder %s108, %s110
    %p117 = scmp.eq.s32.totalorder %s23, 1
    %p118 = por %p116, %p117
    %p119 = scmp.ne.s32.totalorder %s110, %s111
    %p120 = scmp.eq.s32.totalorder %s23, 0
    %p121 = por %p119, %p120
    %p122 = scmp.ne.s32.totalorder %s110, %s111
    %p123 = scmp.eq.s32.totalorder %s24, 1
    %p124 = por %p122, %p123
    %p126 = scmp.ne.s32.totalorder %s111, %s125
    %p127 = scmp.eq.s32.totalorder %s24, 0
    %p128 = por %p126, %p127
    %s130 = sadd.s32 %s129, 1
    %p133 = scmp.eq.s32.totalorder %s18, 1
    %p134 = scmp.ne.s32.totalorder %s129, %s131
    %p135 = scmp.eq.s32.totalorder %s18, 0
    %p136 = por %p134, %p135
    %p137 = scmp.ne.s32.totalorder %s129, %s131
    %p138 = scmp.eq.s32.totalorder %s23, 1
    %p139 = por %p137, %p138
    %p140 = scmp.ne.s32.totalorder %s131, %s132
    %p141 = scmp.eq.s32.totalorder %s23, 0
    %p142 = por %p140, %p141
    %p143 = scmp.ne.s32.totalorder %s131, %s132
    %p144 = scmp.eq.s32.totalorder %s24, 1
    %p145 = por %p143, %p144
    %p147 = scmp.ne.s32.totalorder %s132, %s146
    %p148 = scmp.eq.s32.totalorder %s24, 0
    %p149 = por %p147, %p148
    %s151 = sadd.s32 %s150, 1
    %p154 = scmp.eq.s32.totalorder %s18, 1
    %p155 = scmp.ne.s32.totalorder %s150, %s152
    %p156 = scmp.eq.s32.totalorder %s18, 0
    %p157 = por %p155, %p156
    %p158 = scmp.ne.s32.totalorder %s150, %s152
    %p159 = scmp.eq.s32.totalorder %s23, 1
    %p160 = por %p158, %p159
    %p161 = scmp.ne.s32.totalorder %s152, %s153
    %p162 = scmp.eq.s32.totalorder %s23, 0
    %p163 = por %p161, %p162
    %p164 = scmp.ne.s32.totalorder %s152, %s153
    %p165 = scmp.eq.s32.totalorder %s24, 1
    %p166 = por %p164, %p165
    %p168 = scmp.ne.s32.totalorder %s153, %s167
    %p169 = scmp.eq.s32.totalorder %s24, 0
    %p170 = por %p168, %p169
    %s172 = sadd.s32 %s171, 1
    %p175 = scmp.eq.s32.totalorder %s18, 1
    %p176 = scmp.ne.s32.totalorder %s171, %s173
    %p177 = scmp.eq.s32.totalorder %s18, 0
    %p178 = por %p176, %p177
    %p179 = scmp.ne.s32.totalorder %s171, %s173
    %p180 = scmp.eq.s32.totalorder %s23, 1
    %p181 = por %p179, %p180
    %p182 = scmp.ne.s32.totalorder %s173, %s174
    %p183 = scmp.eq.s32.totalorder %s23, 0
    %p184 = por %p182, %p183
    %p185 = scmp.ne.s32.totalorder %s173, %s174
    %p186 = scmp.eq.s32.totalorder %s24, 1
    %p187 = por %p185, %p186
    %p189 = scmp.ne.s32.totalorder %s174, %s188
    %p190 = scmp.eq.s32.totalorder %s24, 0
    %p191 = por %p189, %p190
    %s193 = sadd.s32 %s192, 1
    %p196 = scmp.eq.s32.totalorder %s18, 1
    %p197 = scmp.ne.s32.totalorder %s192, %s194
    %p198 = scmp.eq.s32.totalorder %s18, 0
    %p199 = por %p197, %p198
    %p200 = scmp.ne.s32.totalorder %s192, %s194
    %p201 = scmp.eq.s32.totalorder %s23, 1
    %p202 = por %p200, %p201
    %p203 = scmp.ne.s32.totalorder %s194, %s195
    %p204 = scmp.eq.s32.totalorder %s23, 0
    %p205 = por %p203, %p204
    %p206 = scmp.ne.s32.totalorder %s194, %s195
    %p207 = scmp.eq.s32.totalorder %s24, 1
    %p208 = por %p206, %p207
    %p210 = scmp.ne.s32.totalorder %s195, %s209
    %p211 = scmp.eq.s32.totalorder %s24, 0
    %p212 = por %p210, %p211
    %s213 = ssub.s32 %s25, %s37
    %p214 = scmp.eq.s32.totalorder %s213, 0
    %s216 = sadd.s32 %s215, 1
    %s217 = scalar_select %p214, %s215, %s216
    %p220 = pneg %p214
    %p221 = scmp.eq.s32.totalorder %s18, 1
    %p222 = por %p220, %p221
    %p223 = scmp.ne.s32.totalorder %s215, %s218
    %p224 = scmp.eq.s32.totalorder %s18, 0
    %p225 = por %p223, %p224
    %p226 = scmp.ne.s32.totalorder %s215, %s218
    %p227 = scmp.eq.s32.totalorder %s23, 1
    %p228 = por %p226, %p227
    %p229 = scmp.ne.s32.totalorder %s218, %s219
    %p230 = scmp.eq.s32.totalorder %s23, 0
    %p231 = por %p229, %p230
    %p232 = scmp.ne.s32.totalorder %s218, %s219
    %p233 = scmp.eq.s32.totalorder %s24, 1
    %p234 = por %p232, %p233
    %p236 = scmp.ne.s32.totalorder %s219, %s235
    %p237 = scmp.eq.s32.totalorder %s24, 0
    %p238 = por %p236, %p237
    %s239 = ssub.s32 %s25, %s37
    %p240 = scmp.eq.s32.totalorder %s239, 0
    %s242 = sadd.s32 %s241, 1
    %s243 = scalar_select %p240, %s241, %s242
    %p246 = pneg %p240
    %p247 = scmp.eq.s32.totalorder %s18, 1
    %p248 = por %p246, %p247
    %p249 = scmp.ne.s32.totalorder %s241, %s244
    %p250 = scmp.eq.s32.totalorder %s18, 0
    %p251 = por %p249, %p250
    %p252 = scmp.ne.s32.totalorder %s241, %s244
    %p253 = scmp.eq.s32.totalorder %s23, 1
    %p254 = por %p252, %p253
    %p255 = scmp.ne.s32.totalorder %s244, %s245
    %p256 = scmp.eq.s32.totalorder %s23, 0
    %p257 = por %p255, %p256
    %p258 = scmp.ne.s32.totalorder %s244, %s245
    %p259 = scmp.eq.s32.totalorder %s24, 1
    %p260 = por %p258, %p259
    %p262 = scmp.ne.s32.totalorder %s245, %s261
    %p263 = scmp.eq.s32.totalorder %s24, 0
    %p264 = por %p262, %p263
    %s265 = ssub.s32 %s25, %s37
    %p266 = scmp.eq.s32.totalorder %s265, 0
    %s268 = sadd.s32 %s267, 1
    %s269 = scalar_select %p266, %s267, %s268
    %p272 = pneg %p266
    %p273 = scmp.eq.s32.totalorder %s18, 1
    %p274 = por %p272, %p273
    %p275 = scmp.ne.s32.totalorder %s267, %s270
    %p276 = scmp.eq.s32.totalorder %s18, 0
    %p277 = por %p275, %p276
    %p278 = scmp.ne.s32.totalorder %s267, %s270
    %p279 = scmp.eq.s32.totalorder %s23, 1
    %p280 = por %p278, %p279
    %p281 = scmp.ne.s32.totalorder %s270, %s271
    %p282 = scmp.eq.s32.totalorder %s23, 0
    %p283 = por %p281, %p282
    %p284 = scmp.ne.s32.totalorder %s270, %s271
    %p285 = scmp.eq.s32.totalorder %s24, 1
    %p286 = por %p284, %p285
    %p288 = scmp.ne.s32.totalorder %s271, %s287
    %p289 = scmp.eq.s32.totalorder %s24, 0
    %p290 = por %p288, %p289
    %s291 = ssub.s32 %s25, %s37
    %p292 = scmp.eq.s32.totalorder %s291, 0
    %s294 = sadd.s32 %s293, 1
    %s295 = scalar_select %p292, %s293, %s294
    %p298 = pneg %p292
    %p299 = scmp.eq.s32.totalorder %s18, 1
    %p300 = por %p298, %p299
    %p301 = scmp.ne.s32.totalorder %s293, %s296
    %p302 = scmp.eq.s32.totalorder %s18, 0
    %p303 = por %p301, %p302
    %p304 = scmp.ne.s32.totalorder %s293, %s296
    %p305 = scmp.eq.s32.totalorder %s23, 1
    %p306 = por %p304, %p305
    %p307 = scmp.ne.s32.totalorder %s296, %s297
    %p308 = scmp.eq.s32.totalorder %s23, 0
    %p309 = por %p307, %p308
    %p310 = scmp.ne.s32.totalorder %s296, %s297
    %p311 = scmp.eq.s32.totalorder %s24, 1
    %p312 = por %p310, %p311
    %p314 = scmp.ne.s32.totalorder %s297, %s313
    %p315 = scmp.eq.s32.totalorder %s24, 0
    %p316 = por %p314, %p315
    %p317 = scmp.le.s32.totalorder 1, %s18
    %p318 = scmp.lt.s32.totalorder %s18, 3
    %p319 = pnand %p317, %p318
    %p320 = pneg %p319
    // Predicated region
    $region9: #{stn3d_forward.4} parent=5 // pred_check
      _
    $region10: #{stn3d_forward.4} parent=5 // pred_check_branch
      %322 = sbr.rel (%p319) target = $region12
    $region11: #{stn3d_forward.4} parent=5 // pred_region
      %s323 = ssub.s32 %s18, 1
      // Predicated region
      $region13: #{stn3d_forward.4} parent=11 // pred_check
        %p324 = pneg %p79
      $region14: #{stn3d_forward.4} parent=11 // pred_check_branch
        %326 = sbr.rel (%p324) target = $region16
      $region15: #{stn3d_forward.4} parent=11 // pred_region
        _
      $region16: #{stn3d_forward.4} parent=11 // pred_fallthru
        _
      // Predicated region
      $region17: #{stn3d_forward.4} parent=11 // pred_check
        %p327 = pneg %p100
      $region18: #{stn3d_forward.4} parent=11 // pred_check_branch
        %329 = sbr.rel (%p327) target = $region20
      $region19: #{stn3d_forward.4} parent=11 // pred_region
        _
      $region20: #{stn3d_forward.4} parent=11 // pred_fallthru
        _
      // Predicated region
      $region21: #{stn3d_forward.4} parent=11 // pred_check
        %p330 = pneg %p121
      $region22: #{stn3d_forward.4} parent=11 // pred_check_branch
        %332 = sbr.rel (%p330) target = $region24
      $region23: #{stn3d_forward.4} parent=11 // pred_region
        _
      $region24: #{stn3d_forward.4} parent=11 // pred_fallthru
        _
      // Predicated region
      $region25: #{stn3d_forward.4} parent=11 // pred_check
        %p333 = pneg %p142
      $region26: #{stn3d_forward.4} parent=11 // pred_check_branch
        %335 = sbr.rel (%p333) target = $region28
      $region27: #{stn3d_forward.4} parent=11 // pred_region
        _
      $region28: #{stn3d_forward.4} parent=11 // pred_fallthru
        _
      // Predicated region
      $region29: #{stn3d_forward.4} parent=11 // pred_check
        %p336 = pneg %p163
      $region30: #{stn3d_forward.4} parent=11 // pred_check_branch
        %338 = sbr.rel (%p336) target = $region32
      $region31: #{stn3d_forward.4} parent=11 // pred_region
        _
      $region32: #{stn3d_forward.4} parent=11 // pred_fallthru
        _
      // Predicated region
      $region33: #{stn3d_forward.4} parent=11 // pred_check
        %p339 = pneg %p184
      $region34: #{stn3d_forward.4} parent=11 // pred_check_branch
        %341 = sbr.rel (%p339) target = $region36
      $region35: #{stn3d_forward.4} parent=11 // pred_region
        _
      $region36: #{stn3d_forward.4} parent=11 // pred_fallthru
        _
      // Predicated region
      $region37: #{stn3d_forward.4} parent=11 // pred_check
        %p342 = pneg %p205
      $region38: #{stn3d_forward.4} parent=11 // pred_check_branch
        %344 = sbr.rel (%p342) target = $region40
      $region39: #{stn3d_forward.4} parent=11 // pred_region
        _
      $region40: #{stn3d_forward.4} parent=11 // pred_fallthru
        _
    $region12: #{stn3d_forward.4} parent=5 // pred_fallthru
      _
    %p345 = scmp.lt.s32.totalorder %s18, 2
    // Predicated region
    $region41: #{stn3d_forward.4} parent=5 // pred_check
      %p346 = pneg %p345
    $region42: #{stn3d_forward.4} parent=5 // pred_check_branch
      %348 = sbr.rel (%p346) target = $region44
    $region43: #{stn3d_forward.4} parent=5 // pred_region
      // Predicated region
      $region45: #{stn3d_forward.4} parent=43 // pred_check
        %p349 = pneg %p52
      $region46: #{stn3d_forward.4} parent=43 // pred_check_branch
        %351 = sbr.rel (%p349) target = $region48
      $region47: #{stn3d_forward.4} parent=43 // pred_region
        %s352 = smul.u32 64, %s26
        %p353 = scmp.lt.s32.totalorder %s25, 1
        %s354 = scalar_select %p353, %s25, 1
        %p355 = scmp.lt.s32.totalorder %s352, 63
        %s356 = scalar_select %p355, %s352, 63
        %s357 = smul.addr %s354, 64
        %s358 = sadd.s32 %s356, %s357
        %s359 = smul.addr %s358, 8
        %s360 = scalar_lea.vmem %s0, %s359
        %s361 = smul.u32 64, %s26
      $region48: #{stn3d_forward.4} parent=43 // pred_fallthru
        _
    $region44: #{stn3d_forward.4} parent=5 // pred_fallthru
      _
    %p362 = scmp.le.s32.totalorder 1, %s18
    %p363 = scmp.lt.s32.totalorder %s18, 3
    %p364 = pnand %p362, %p363
    %p365 = pneg %p364
    // Predicated region
    $region49: #{stn3d_forward.4} parent=5 // pred_check
      _
    $region50: #{stn3d_forward.4} parent=5 // pred_check_branch
      %367 = sbr.rel (%p364) target = $region52
    $region51: #{stn3d_forward.4} parent=5 // pred_region
      %s368 = ssub.s32 %s18, 1
      %s369 = smul.u32 64, %s28
      %p370 = scmp.lt.s32.totalorder %s27, 1
      %s371 = scalar_select %p370, %s27, 1
      %p372 = scmp.lt.s32.totalorder %s369, 63
      %s373 = scalar_select %p372, %s369, 63
      %s374 = smul.addr %s371, 64
      %s375 = sadd.s32 %s373, %s374
      %s376 = smul.addr %s375, 8
      %s377 = scalar_lea.vmem %s0, %s376
      %p378 = pneg %p58
      %p379 = pneg %p55
      %p380 = pneg %p79
      %p381 = pneg %p76
      %p382 = pneg %p100
      %p383 = pneg %p97
      %p384 = pneg %p121
      %p385 = pneg %p118
      %p386 = pneg %p142
      %p387 = pneg %p139
      %p388 = pneg %p163
      %p389 = pneg %p160
      %p390 = pneg %p184
      %p391 = pneg %p181
      %p392 = pneg %p205
      %p393 = pneg %p202
      %p394 = pneg %p231
      %p395 = pneg %p228
      %p396 = scmp.lt.s32.totalorder %s27, 1
      %s397 = scalar_select %p396, %s27, 1
      %s398 = smul.addr %s397, 8
      %s399 = scalar_lea.vmem %s8, %s398
      %p400 = pneg %p257
      %p401 = pneg %p254
      %p402 = scmp.lt.s32.totalorder %s27, 1
      %s403 = scalar_select %p402, %s27, 1
      %s404 = smul.addr %s403, 8
      %s405 = scalar_lea.vmem %s9, %s404
      %p406 = pneg %p283
      %p407 = pneg %p280
      %p408 = scmp.lt.s32.totalorder %s27, 1
      %s409 = scalar_select %p408, %s27, 1
      %s410 = smul.addr %s409, 8
      %s411 = scalar_lea.vmem %s10, %s410
      %p412 = pneg %p309
      %p413 = pneg %p306
      %p414 = scmp.lt.s32.totalorder %s27, 1
      %s415 = scalar_select %p414, %s27, 1
      %s416 = smul.addr %s415, 8
      %s417 = scalar_lea.vmem %s11, %s416
      %s418 = smul.u32 64, %s28
      %p419 = scmp.lt.s32.totalorder %s27, 1
      %s420 = scalar_select %p419, %s27, 1
      %p421 = scmp.lt.s32.totalorder %s418, 63
      %s422 = scalar_select %p421, %s418, 63
      %s423 = smul.addr %s420, 64
      %s424 = sadd.s32 %s422, %s423
      %s425 = smul.addr %s424, 8
      %s426 = scalar_lea.vmem %s0, %s425
      %s427 = smul.u32 64, %s28
      %p428 = scmp.lt.s32.totalorder %s27, 1
      %s429 = scalar_select %p428, %s27, 1
      %s430 = smul.addr %s429, 8
      %s431 = scalar_lea.vmem %s8, %s430
      %p432 = scmp.lt.s32.totalorder %s27, 1
      %s433 = scalar_select %p432, %s27, 1
      %s434 = smul.addr %s433, 8
      %s435 = scalar_lea.vmem %s9, %s434
      %p436 = scmp.lt.s32.totalorder %s27, 1
      %s437 = scalar_select %p436, %s27, 1
      %s438 = smul.addr %s437, 8
      %s439 = scalar_lea.vmem %s10, %s438
      %p440 = scmp.lt.s32.totalorder %s27, 1
      %s441 = scalar_select %p440, %s27, 1
      %s442 = smul.addr %s441, 8
      %s443 = scalar_lea.vmem %s11, %s442
      %p444 = scmp.eq.s32.totalorder %s28, 0
      // Predicated region
      $region53: #{stn3d_forward.4} parent=51 // pred_check
        %p445 = pneg %p444
      $region54: #{stn3d_forward.4} parent=51 // pred_check_branch
        %447 = sbr.rel (%p445) target = $region56
      $region55: #{stn3d_forward.4} parent=51 // pred_region
        %448 = vst [vmem:[%s431] sm:$0xff] -inf
        %449 = vst [vmem:[%s435] sm:$0xff] inf
        %450 = vst [vmem:[%s439] sm:$0xff] 0.0
        %451 = vst [vmem:[%s443] sm:$0xff] 0.0
      $region56: #{stn3d_forward.4} parent=51 // pred_fallthru
        _
      %v452 = vld [vmem:[%s426] sm:$0xff]
      %v453 = vld [vmem:[%s426 + $0x8] sm:$0xff]
      %v454 = vld [vmem:[%s426 + $0x10] sm:$0xff]
      %v455 = vld [vmem:[%s426 + $0x18] sm:$0xff]
      %v456 = vld [vmem:[%s426 + $0x20] sm:$0xff]
      %v457 = vld [vmem:[%s426 + $0x28] sm:$0xff]
      %v458 = vld [vmem:[%s426 + $0x30] sm:$0xff]
      %v459 = vld [vmem:[%s426 + $0x38] sm:$0xff]
      %v460 = vld [vmem:[%s426 + $0x40] sm:$0xff]
      %v461 = vld [vmem:[%s426 + $0x48] sm:$0xff]
      %v462 = vld [vmem:[%s426 + $0x50] sm:$0xff]
      %v463 = vld [vmem:[%s426 + $0x58] sm:$0xff]
      %v464 = vld [vmem:[%s426 + $0x60] sm:$0xff]
      %v465 = vld [vmem:[%s426 + $0x68] sm:$0xff]
      %v466 = vld [vmem:[%s426 + $0x70] sm:$0xff]
      %v467 = vld [vmem:[%s426 + $0x78] sm:$0xff]
      %v468 = vld [vmem:[%s426 + $0x80] sm:$0xff]
      %v469 = vld [vmem:[%s426 + $0x88] sm:$0xff]
      %v470 = vld [vmem:[%s426 + $0x90] sm:$0xff]
      %v471 = vld [vmem:[%s426 + $0x98] sm:$0xff]
      %v472 = vld [vmem:[%s426 + $0xa0] sm:$0xff]
      %v473 = vld [vmem:[%s426 + $0xa8] sm:$0xff]
      %v474 = vld [vmem:[%s426 + $0xb0] sm:$0xff]
      %v475 = vld [vmem:[%s426 + $0xb8] sm:$0xff]
      %v476 = vld [vmem:[%s426 + $0xc0] sm:$0xff]
      %v477 = vld [vmem:[%s426 + $0xc8] sm:$0xff]
      %v478 = vld [vmem:[%s426 + $0xd0] sm:$0xff]
      %v479 = vld [vmem:[%s426 + $0xd8] sm:$0xff]
      %v480 = vld [vmem:[%s426 + $0xe0] sm:$0xff]
      %v481 = vld [vmem:[%s426 + $0xe8] sm:$0xff]
      %v482 = vld [vmem:[%s426 + $0xf0] sm:$0xff]
      %v483 = vld [vmem:[%s426 + $0xf8] sm:$0xff]
      %v484 = vld [vmem:[%s426 + $0x100] sm:$0xff]
      %v485 = vld [vmem:[%s426 + $0x108] sm:$0xff]
      %v486 = vld [vmem:[%s426 + $0x110] sm:$0xff]
      %v487 = vld [vmem:[%s426 + $0x118] sm:$0xff]
      %v488 = vld [vmem:[%s426 + $0x120] sm:$0xff]
      %v489 = vld [vmem:[%s426 + $0x128] sm:$0xff]
      %v490 = vld [vmem:[%s426 + $0x130] sm:$0xff]
      %v491 = vld [vmem:[%s426 + $0x138] sm:$0xff]
      %v492 = vld [vmem:[%s426 + $0x140] sm:$0xff]
      %v493 = vld [vmem:[%s426 + $0x148] sm:$0xff]
      %v494 = vld [vmem:[%s426 + $0x150] sm:$0xff]
      %v495 = vld [vmem:[%s426 + $0x158] sm:$0xff]
      %v496 = vld [vmem:[%s426 + $0x160] sm:$0xff]
      %v497 = vld [vmem:[%s426 + $0x168] sm:$0xff]
      %v498 = vld [vmem:[%s426 + $0x170] sm:$0xff]
      %v499 = vld [vmem:[%s426 + $0x178] sm:$0xff]
      %v500 = vld [vmem:[%s426 + $0x180] sm:$0xff]
      %v501 = vld [vmem:[%s426 + $0x188] sm:$0xff]
      %v502 = vld [vmem:[%s426 + $0x190] sm:$0xff]
      %v503 = vld [vmem:[%s426 + $0x198] sm:$0xff]
      %v504 = vld [vmem:[%s426 + $0x1a0] sm:$0xff]
      %v505 = vld [vmem:[%s426 + $0x1a8] sm:$0xff]
      %v506 = vld [vmem:[%s426 + $0x1b0] sm:$0xff]
      %v507 = vld [vmem:[%s426 + $0x1b8] sm:$0xff]
      %v508 = vld [vmem:[%s426 + $0x1c0] sm:$0xff]
      %v509 = vld [vmem:[%s426 + $0x1c8] sm:$0xff]
      %v510 = vld [vmem:[%s426 + $0x1d0] sm:$0xff]
      %v511 = vld [vmem:[%s426 + $0x1d8] sm:$0xff]
      %v512 = vld [vmem:[%s426 + $0x1e0] sm:$0xff]
      %v513 = vld [vmem:[%s426 + $0x1e8] sm:$0xff]
      %v514 = vld [vmem:[%s426 + $0x1f0] sm:$0xff]
      %v515 = vld [vmem:[%s426 + $0x1f8] sm:$0xff]
      %v516 = vld [vmem:[%s1] sm:$0xff]
      %vm517 = vcmask 64512
      %v519 = vsel %vm517, %v452, 0
      %v522 = vsel %vm517, %v453, 0
      %v525 = vsel %vm517, %v454, 0
      %v528 = vsel %vm517, %v455, 0
      %v531 = vsel %vm517, %v456, 0
      %v534 = vsel %vm517, %v457, 0
      %v537 = vsel %vm517, %v458, 0
      %v540 = vsel %vm517, %v459, 0
      %v543 = vsel %vm517, %v460, 0
      %v546 = vsel %vm517, %v461, 0
      %v549 = vsel %vm517, %v462, 0
      %v552 = vsel %vm517, %v463, 0
      %v555 = vsel %vm517, %v464, 0
      %v558 = vsel %vm517, %v465, 0
      %v561 = vsel %vm517, %v466, 0
      %v564 = vsel %vm517, %v467, 0
      %v567 = vsel %vm517, %v468, 0
      %v570 = vsel %vm517, %v469, 0
      %v573 = vsel %vm517, %v470, 0
      %v576 = vsel %vm517, %v471, 0
      %v579 = vsel %vm517, %v472, 0
      %v582 = vsel %vm517, %v473, 0
      %v585 = vsel %vm517, %v474, 0
      %v588 = vsel %vm517, %v475, 0
      %v591 = vsel %vm517, %v476, 0
      %v594 = vsel %vm517, %v477, 0
      %v597 = vsel %vm517, %v478, 0
      %v600 = vsel %vm517, %v479, 0
      %v603 = vsel %vm517, %v480, 0
      %v606 = vsel %vm517, %v481, 0
      %v609 = vsel %vm517, %v482, 0
      %v612 = vsel %vm517, %v483, 0
      %v615 = vsel %vm517, %v484, 0
      %v618 = vsel %vm517, %v485, 0
      %v621 = vsel %vm517, %v486, 0
      %v624 = vsel %vm517, %v487, 0
      %v627 = vsel %vm517, %v488, 0
      %v630 = vsel %vm517, %v489, 0
      %v633 = vsel %vm517, %v490, 0
      %v636 = vsel %vm517, %v491, 0
      %v639 = vsel %vm517, %v492, 0
      %v642 = vsel %vm517, %v493, 0
      %v645 = vsel %vm517, %v494, 0
      %v648 = vsel %vm517, %v495, 0
      %v651 = vsel %vm517, %v496, 0
      %v654 = vsel %vm517, %v497, 0
      %v657 = vsel %vm517, %v498, 0
      %v660 = vsel %vm517, %v499, 0
      %v663 = vsel %vm517, %v500, 0
      %v666 = vsel %vm517, %v501, 0
      %v669 = vsel %vm517, %v502, 0
      %v672 = vsel %vm517, %v503, 0
      %v675 = vsel %vm517, %v504, 0
      %v678 = vsel %vm517, %v505, 0
      %v681 = vsel %vm517, %v506, 0
      %v684 = vsel %vm517, %v507, 0
      %v687 = vsel %vm517, %v508, 0
      %v690 = vsel %vm517, %v509, 0
      %v693 = vsel %vm517, %v510, 0
      %v696 = vsel %vm517, %v511, 0
      %v699 = vsel %vm517, %v512, 0
      %v702 = vsel %vm517, %v513, 0
      %v705 = vsel %vm517, %v514, 0
      %v708 = vsel %vm517, %v515, 0
      %710 = vmatpush.msra.mxu0 0.0
      %711 = vmatpush.msra.mxu0 0.0
      %712 = vmatpush.msra.mxu0 0.0
      %713 = vmatpush.msra.mxu0 0.0
      %714 = vmatpush.msra.mxu0 0.0
      %715 = vmatpush.msra.mxu0 0.0
      %716 = vmatpush.msra.mxu0 0.0
      %717 = vmatpush.msra.mxu0 0.0
      %718 = vmatpush.msra.mxu0 0.0
      %719 = vmatpush.msra.mxu0 0.0
      %720 = vmatpush.msra.mxu0 0.0
      %721 = vmatpush.msra.mxu0 0.0
      %722 = vmatpush.msra.mxu0 0.0
      %723 = vmatpush.msra.mxu0 0.0
      %724 = vmatpush.msra.mxu0 0.0
      %725 = vmatpush.msra.mxu0 %v516
      %726 = vmatmul.f32.gmra.mxu0 %v519
      %v727 = vpop.f32.mrf.mxu0
      %v728 = vadd.f32 0.0, %v727
      %729 = vmatmul.f32.gmra.mxu0 %v522
      %v730 = vpop.f32.mrf.mxu0
      %v731 = vadd.f32 0.0, %v730
      %732 = vmatmul.f32.gmra.mxu0 %v525
      %v733 = vpop.f32.mrf.mxu0
      %v734 = vadd.f32 0.0, %v733
      %735 = vmatmul.f32.gmra.mxu0 %v528
      %v736 = vpop.f32.mrf.mxu0
      %v737 = vadd.f32 0.0, %v736
      %738 = vmatmul.f32.gmra.mxu0 %v531
      %v739 = vpop.f32.mrf.mxu0
      %v740 = vadd.f32 0.0, %v739
      %741 = vmatmul.f32.gmra.mxu0 %v534
      %v742 = vpop.f32.mrf.mxu0
      %v743 = vadd.f32 0.0, %v742
      %744 = vmatmul.f32.gmra.mxu0 %v537
      %v745 = vpop.f32.mrf.mxu0
      %v746 = vadd.f32 0.0, %v745
      %747 = vmatmul.f32.gmra.mxu0 %v540
      %v748 = vpop.f32.mrf.mxu0
      %v749 = vadd.f32 0.0, %v748
      %750 = vmatmul.f32.gmra.mxu0 %v543
      %v751 = vpop.f32.mrf.mxu0
      %v752 = vadd.f32 0.0, %v751
      %753 = vmatmul.f32.gmra.mxu0 %v546
      %v754 = vpop.f32.mrf.mxu0
      %v755 = vadd.f32 0.0, %v754
      %756 = vmatmul.f32.gmra.mxu0 %v549
      %v757 = vpop.f32.mrf.mxu0
      %v758 = vadd.f32 0.0, %v757
      %759 = vmatmul.f32.gmra.mxu0 %v552
      %v760 = vpop.f32.mrf.mxu0
      %v761 = vadd.f32 0.0, %v760
      %762 = vmatmul.f32.gmra.mxu0 %v555
      %v763 = vpop.f32.mrf.mxu0
      %v764 = vadd.f32 0.0, %v763
      %765 = vmatmul.f32.gmra.mxu0 %v558
      %v766 = vpop.f32.mrf.mxu0
      %v767 = vadd.f32 0.0, %v766
      %768 = vmatmul.f32.gmra.mxu0 %v561
      %v769 = vpop.f32.mrf.mxu0
      %v770 = vadd.f32 0.0, %v769
      %771 = vmatmul.f32.gmra.mxu0 %v564
      %v772 = vpop.f32.mrf.mxu0
      %v773 = vadd.f32 0.0, %v772
      %774 = vmatmul.f32.gmra.mxu0 %v567
      %v775 = vpop.f32.mrf.mxu0
      %v776 = vadd.f32 0.0, %v775
      %777 = vmatmul.f32.gmra.mxu0 %v570
      %v778 = vpop.f32.mrf.mxu0
      %v779 = vadd.f32 0.0, %v778
      %780 = vmatmul.f32.gmra.mxu0 %v573
      %v781 = vpop.f32.mrf.mxu0
      %v782 = vadd.f32 0.0, %v781
      %783 = vmatmul.f32.gmra.mxu0 %v576
      %v784 = vpop.f32.mrf.mxu0
      %v785 = vadd.f32 0.0, %v784
      %786 = vmatmul.f32.gmra.mxu0 %v579
      %v787 = vpop.f32.mrf.mxu0
      %v788 = vadd.f32 0.0, %v787
      %789 = vmatmul.f32.gmra.mxu0 %v582
      %v790 = vpop.f32.mrf.mxu0
      %v791 = vadd.f32 0.0, %v790
      %792 = vmatmul.f32.gmra.mxu0 %v585
      %v793 = vpop.f32.mrf.mxu0
      %v794 = vadd.f32 0.0, %v793
      %795 = vmatmul.f32.gmra.mxu0 %v588
      %v796 = vpop.f32.mrf.mxu0
      %v797 = vadd.f32 0.0, %v796
      %798 = vmatmul.f32.gmra.mxu0 %v591
      %v799 = vpop.f32.mrf.mxu0
      %v800 = vadd.f32 0.0, %v799
      %801 = vmatmul.f32.gmra.mxu0 %v594
      %v802 = vpop.f32.mrf.mxu0
      %v803 = vadd.f32 0.0, %v802
      %804 = vmatmul.f32.gmra.mxu0 %v597
      %v805 = vpop.f32.mrf.mxu0
      %v806 = vadd.f32 0.0, %v805
      %807 = vmatmul.f32.gmra.mxu0 %v600
      %v808 = vpop.f32.mrf.mxu0
      %v809 = vadd.f32 0.0, %v808
      %810 = vmatmul.f32.gmra.mxu0 %v603
      %v811 = vpop.f32.mrf.mxu0
      %v812 = vadd.f32 0.0, %v811
      %813 = vmatmul.f32.gmra.mxu0 %v606
      %v814 = vpop.f32.mrf.mxu0
      %v815 = vadd.f32 0.0, %v814
      %816 = vmatmul.f32.gmra.mxu0 %v609
      %v817 = vpop.f32.mrf.mxu0
      %v818 = vadd.f32 0.0, %v817
      %819 = vmatmul.f32.gmra.mxu0 %v612
      %v820 = vpop.f32.mrf.mxu0
      %v821 = vadd.f32 0.0, %v820
      %822 = vmatmul.f32.gmra.mxu0 %v615
      %v823 = vpop.f32.mrf.mxu0
      %v824 = vadd.f32 0.0, %v823
      %825 = vmatmul.f32.gmra.mxu0 %v618
      %v826 = vpop.f32.mrf.mxu0
      %v827 = vadd.f32 0.0, %v826
      %828 = vmatmul.f32.gmra.mxu0 %v621
      %v829 = vpop.f32.mrf.mxu0
      %v830 = vadd.f32 0.0, %v829
      %831 = vmatmul.f32.gmra.mxu0 %v624
      %v832 = vpop.f32.mrf.mxu0
      %v833 = vadd.f32 0.0, %v832
      %834 = vmatmul.f32.gmra.mxu0 %v627
      %v835 = vpop.f32.mrf.mxu0
      %v836 = vadd.f32 0.0, %v835
      %837 = vmatmul.f32.gmra.mxu0 %v630
      %v838 = vpop.f32.mrf.mxu0
      %v839 = vadd.f32 0.0, %v838
      %840 = vmatmul.f32.gmra.mxu0 %v633
      %v841 = vpop.f32.mrf.mxu0
      %v842 = vadd.f32 0.0, %v841
      %843 = vmatmul.f32.gmra.mxu0 %v636
      %v844 = vpop.f32.mrf.mxu0
      %v845 = vadd.f32 0.0, %v844
      %846 = vmatmul.f32.gmra.mxu0 %v639
      %v847 = vpop.f32.mrf.mxu0
      %v848 = vadd.f32 0.0, %v847
      %849 = vmatmul.f32.gmra.mxu0 %v642
      %v850 = vpop.f32.mrf.mxu0
      %v851 = vadd.f32 0.0, %v850
      %852 = vmatmul.f32.gmra.mxu0 %v645
      %v853 = vpop.f32.mrf.mxu0
      %v854 = vadd.f32 0.0, %v853
      %855 = vmatmul.f32.gmra.mxu0 %v648
      %v856 = vpop.f32.mrf.mxu0
      %v857 = vadd.f32 0.0, %v856
      %858 = vmatmul.f32.gmra.mxu0 %v651
      %v859 = vpop.f32.mrf.mxu0
      %v860 = vadd.f32 0.0, %v859
      %861 = vmatmul.f32.gmra.mxu0 %v654
      %v862 = vpop.f32.mrf.mxu0
      %v863 = vadd.f32 0.0, %v862
      %864 = vmatmul.f32.gmra.mxu0 %v657
      %v865 = vpop.f32.mrf.mxu0
      %v866 = vadd.f32 0.0, %v865
      %867 = vmatmul.f32.gmra.mxu0 %v660
      %v868 = vpop.f32.mrf.mxu0
      %v869 = vadd.f32 0.0, %v868
      %870 = vmatmul.f32.gmra.mxu0 %v663
      %v871 = vpop.f32.mrf.mxu0
      %v872 = vadd.f32 0.0, %v871
      %873 = vmatmul.f32.gmra.mxu0 %v666
      %v874 = vpop.f32.mrf.mxu0
      %v875 = vadd.f32 0.0, %v874
      %876 = vmatmul.f32.gmra.mxu0 %v669
      %v877 = vpop.f32.mrf.mxu0
      %v878 = vadd.f32 0.0, %v877
      %879 = vmatmul.f32.gmra.mxu0 %v672
      %v880 = vpop.f32.mrf.mxu0
      %v881 = vadd.f32 0.0, %v880
      %882 = vmatmul.f32.gmra.mxu0 %v675
      %v883 = vpop.f32.mrf.mxu0
      %v884 = vadd.f32 0.0, %v883
      %885 = vmatmul.f32.gmra.mxu0 %v678
      %v886 = vpop.f32.mrf.mxu0
      %v887 = vadd.f32 0.0, %v886
      %888 = vmatmul.f32.gmra.mxu0 %v681
      %v889 = vpop.f32.mrf.mxu0
      %v890 = vadd.f32 0.0, %v889
      %891 = vmatmul.f32.gmra.mxu0 %v684
      %v892 = vpop.f32.mrf.mxu0
      %v893 = vadd.f32 0.0, %v892
      %894 = vmatmul.f32.gmra.mxu0 %v687
      %v895 = vpop.f32.mrf.mxu0
      %v896 = vadd.f32 0.0, %v895
      %897 = vmatmul.f32.gmra.mxu0 %v690
      %v898 = vpop.f32.mrf.mxu0
      %v899 = vadd.f32 0.0, %v898
      %900 = vmatmul.f32.gmra.mxu0 %v693
      %v901 = vpop.f32.mrf.mxu0
      %v902 = vadd.f32 0.0, %v901
      %903 = vmatmul.f32.gmra.mxu0 %v696
      %v904 = vpop.f32.mrf.mxu0
      %v905 = vadd.f32 0.0, %v904
      %906 = vmatmul.f32.gmra.mxu0 %v699
      %v907 = vpop.f32.mrf.mxu0
      %v908 = vadd.f32 0.0, %v907
      %909 = vmatmul.f32.gmra.mxu0 %v702
      %v910 = vpop.f32.mrf.mxu0
      %v911 = vadd.f32 0.0, %v910
      %912 = vmatmul.f32.gmra.mxu0 %v705
      %v913 = vpop.f32.mrf.mxu0
      %v914 = vadd.f32 0.0, %v913
      %915 = vmatmul.f32.gmra.mxu0 %v708
      %v916 = vpop.f32.mrf.mxu0
      %v917 = vadd.f32 0.0, %v916
      %918 = vdwg.mxu0
      %v919 = vld [vmem:[%s2] sm:$0x1]
      %v921 = vperm.slane %v919, 0
      %v923 = vmul.f32 %v728, %v921
      %v924 = vmul.f32 %v731, %v921
      %v925 = vmul.f32 %v734, %v921
      %v926 = vmul.f32 %v737, %v921
      %v927 = vmul.f32 %v740, %v921
      %v928 = vmul.f32 %v743, %v921
      %v929 = vmul.f32 %v746, %v921
      %v930 = vmul.f32 %v749, %v921
      %v931 = vmul.f32 %v752, %v921
      %v932 = vmul.f32 %v755, %v921
      %v933 = vmul.f32 %v758, %v921
      %v934 = vmul.f32 %v761, %v921
      %v935 = vmul.f32 %v764, %v921
      %v936 = vmul.f32 %v767, %v921
      %v937 = vmul.f32 %v770, %v921
      %v938 = vmul.f32 %v773, %v921
      %v939 = vmul.f32 %v776, %v921
      %v940 = vmul.f32 %v779, %v921
      %v941 = vmul.f32 %v782, %v921
      %v942 = vmul.f32 %v785, %v921
      %v943 = vmul.f32 %v788, %v921
      %v944 = vmul.f32 %v791, %v921
      %v945 = vmul.f32 %v794, %v921
      %v946 = vmul.f32 %v797, %v921
      %v947 = vmul.f32 %v800, %v921
      %v948 = vmul.f32 %v803, %v921
      %v949 = vmul.f32 %v806, %v921
      %v950 = vmul.f32 %v809, %v921
      %v951 = vmul.f32 %v812, %v921
      %v952 = vmul.f32 %v815, %v921
      %v953 = vmul.f32 %v818, %v921
      %v954 = vmul.f32 %v821, %v921
      %v955 = vmul.f32 %v824, %v921
      %v956 = vmul.f32 %v827, %v921
      %v957 = vmul.f32 %v830, %v921
      %v958 = vmul.f32 %v833, %v921
      %v959 = vmul.f32 %v836, %v921
      %v960 = vmul.f32 %v839, %v921
      %v961 = vmul.f32 %v842, %v921
      %v962 = vmul.f32 %v845, %v921
      %v963 = vmul.f32 %v848, %v921
      %v964 = vmul.f32 %v851, %v921
      %v965 = vmul.f32 %v854, %v921
      %v966 = vmul.f32 %v857, %v921
      %v967 = vmul.f32 %v860, %v921
      %v968 = vmul.f32 %v863, %v921
      %v969 = vmul.f32 %v866, %v921
      %v970 = vmul.f32 %v869, %v921
      %v971 = vmul.f32 %v872, %v921
      %v972 = vmul.f32 %v875, %v921
      %v973 = vmul.f32 %v878, %v921
      %v974 = vmul.f32 %v881, %v921
      %v975 = vmul.f32 %v884, %v921
      %v976 = vmul.f32 %v887, %v921
      %v977 = vmul.f32 %v890, %v921
      %v978 = vmul.f32 %v893, %v921
      %v979 = vmul.f32 %v896, %v921
      %v980 = vmul.f32 %v899, %v921
      %v981 = vmul.f32 %v902, %v921
      %v982 = vmul.f32 %v905, %v921
      %v983 = vmul.f32 %v908, %v921
      %v984 = vmul.f32 %v911, %v921
      %v985 = vmul.f32 %v914, %v921
      %v986 = vmul.f32 %v917, %v921
      %v987 = vld [vmem:[%s3] sm:$0x1]
      %v989 = vperm.slane %v987, 0
      %v991 = vadd.f32 %v923, %v989
      %v992 = vadd.f32 %v924, %v989
      %v993 = vadd.f32 %v925, %v989
      %v994 = vadd.f32 %v926, %v989
      %v995 = vadd.f32 %v927, %v989
      %v996 = vadd.f32 %v928, %v989
      %v997 = vadd.f32 %v929, %v989
      %v998 = vadd.f32 %v930, %v989
      %v999 = vadd.f32 %v931, %v989
      %v1000 = vadd.f32 %v932, %v989
      %v1001 = vadd.f32 %v933, %v989
      %v1002 = vadd.f32 %v934, %v989
      %v1003 = vadd.f32 %v935, %v989
      %v1004 = vadd.f32 %v936, %v989
      %v1005 = vadd.f32 %v937, %v989
      %v1006 = vadd.f32 %v938, %v989
      %v1007 = vadd.f32 %v939, %v989
      %v1008 = vadd.f32 %v940, %v989
      %v1009 = vadd.f32 %v941, %v989
      %v1010 = vadd.f32 %v942, %v989
      %v1011 = vadd.f32 %v943, %v989
      %v1012 = vadd.f32 %v944, %v989
      %v1013 = vadd.f32 %v945, %v989
      %v1014 = vadd.f32 %v946, %v989
      %v1015 = vadd.f32 %v947, %v989
      %v1016 = vadd.f32 %v948, %v989
      %v1017 = vadd.f32 %v949, %v989
      %v1018 = vadd.f32 %v950, %v989
      %v1019 = vadd.f32 %v951, %v989
      %v1020 = vadd.f32 %v952, %v989
      %v1021 = vadd.f32 %v953, %v989
      %v1022 = vadd.f32 %v954, %v989
      %v1023 = vadd.f32 %v955, %v989
      %v1024 = vadd.f32 %v956, %v989
      %v1025 = vadd.f32 %v957, %v989
      %v1026 = vadd.f32 %v958, %v989
      %v1027 = vadd.f32 %v959, %v989
      %v1028 = vadd.f32 %v960, %v989
      %v1029 = vadd.f32 %v961, %v989
      %v1030 = vadd.f32 %v962, %v989
      %v1031 = vadd.f32 %v963, %v989
      %v1032 = vadd.f32 %v964, %v989
      %v1033 = vadd.f32 %v965, %v989
      %v1034 = vadd.f32 %v966, %v989
      %v1035 = vadd.f32 %v967, %v989
      %v1036 = vadd.f32 %v968, %v989
      %v1037 = vadd.f32 %v969, %v989
      %v1038 = vadd.f32 %v970, %v989
      %v1039 = vadd.f32 %v971, %v989
      %v1040 = vadd.f32 %v972, %v989
      %v1041 = vadd.f32 %v973, %v989
      %v1042 = vadd.f32 %v974, %v989
      %v1043 = vadd.f32 %v975, %v989
      %v1044 = vadd.f32 %v976, %v989
      %v1045 = vadd.f32 %v977, %v989
      %v1046 = vadd.f32 %v978, %v989
      %v1047 = vadd.f32 %v979, %v989
      %v1048 = vadd.f32 %v980, %v989
      %v1049 = vadd.f32 %v981, %v989
      %v1050 = vadd.f32 %v982, %v989
      %v1051 = vadd.f32 %v983, %v989
      %v1052 = vadd.f32 %v984, %v989
      %v1053 = vadd.f32 %v985, %v989
      %v1054 = vadd.f32 %v986, %v989
      %v1055 = vmax.f32 %v991, 0.0
      %v1056 = vmax.f32 %v992, 0.0
      %v1057 = vmax.f32 %v993, 0.0
      %v1058 = vmax.f32 %v994, 0.0
      %v1059 = vmax.f32 %v995, 0.0
      %v1060 = vmax.f32 %v996, 0.0
      %v1061 = vmax.f32 %v997, 0.0
      %v1062 = vmax.f32 %v998, 0.0
      %v1063 = vmax.f32 %v999, 0.0
      %v1064 = vmax.f32 %v1000, 0.0
      %v1065 = vmax.f32 %v1001, 0.0
      %v1066 = vmax.f32 %v1002, 0.0
      %v1067 = vmax.f32 %v1003, 0.0
      %v1068 = vmax.f32 %v1004, 0.0
      %v1069 = vmax.f32 %v1005, 0.0
      %v1070 = vmax.f32 %v1006, 0.0
      %v1071 = vmax.f32 %v1007, 0.0
      %v1072 = vmax.f32 %v1008, 0.0
      %v1073 = vmax.f32 %v1009, 0.0
      %v1074 = vmax.f32 %v1010, 0.0
      %v1075 = vmax.f32 %v1011, 0.0
      %v1076 = vmax.f32 %v1012, 0.0
      %v1077 = vmax.f32 %v1013, 0.0
      %v1078 = vmax.f32 %v1014, 0.0
      %v1079 = vmax.f32 %v1015, 0.0
      %v1080 = vmax.f32 %v1016, 0.0
      %v1081 = vmax.f32 %v1017, 0.0
      %v1082 = vmax.f32 %v1018, 0.0
      %v1083 = vmax.f32 %v1019, 0.0
      %v1084 = vmax.f32 %v1020, 0.0
      %v1085 = vmax.f32 %v1021, 0.0
      %v1086 = vmax.f32 %v1022, 0.0
      %v1087 = vmax.f32 %v1023, 0.0
      %v1088 = vmax.f32 %v1024, 0.0
      %v1089 = vmax.f32 %v1025, 0.0
      %v1090 = vmax.f32 %v1026, 0.0
      %v1091 = vmax.f32 %v1027, 0.0
      %v1092 = vmax.f32 %v1028, 0.0
      %v1093 = vmax.f32 %v1029, 0.0
      %v1094 = vmax.f32 %v1030, 0.0
      %v1095 = vmax.f32 %v1031, 0.0
      %v1096 = vmax.f32 %v1032, 0.0
      %v1097 = vmax.f32 %v1033, 0.0
      %v1098 = vmax.f32 %v1034, 0.0
      %v1099 = vmax.f32 %v1035, 0.0
      %v1100 = vmax.f32 %v1036, 0.0
      %v1101 = vmax.f32 %v1037, 0.0
      %v1102 = vmax.f32 %v1038, 0.0
      %v1103 = vmax.f32 %v1039, 0.0
      %v1104 = vmax.f32 %v1040, 0.0
      %v1105 = vmax.f32 %v1041, 0.0
      %v1106 = vmax.f32 %v1042, 0.0
      %v1107 = vmax.f32 %v1043, 0.0
      %v1108 = vmax.f32 %v1044, 0.0
      %v1109 = vmax.f32 %v1045, 0.0
      %v1110 = vmax.f32 %v1046, 0.0
      %v1111 = vmax.f32 %v1047, 0.0
      %v1112 = vmax.f32 %v1048, 0.0
      %v1113 = vmax.f32 %v1049, 0.0
      %v1114 = vmax.f32 %v1050, 0.0
      %v1115 = vmax.f32 %v1051, 0.0
      %v1116 = vmax.f32 %v1052, 0.0
      %v1117 = vmax.f32 %v1053, 0.0
      %v1118 = vmax.f32 %v1054, 0.0
      %v1119 = vld [vmem:[%s4] sm:$0xff]
      %v1120 = vld [vmem:[%s4 + $0x8] sm:$0xff]
      %v1121 = vld [vmem:[%s4 + $0x10] sm:$0xff]
      %v1122 = vld [vmem:[%s4 + $0x18] sm:$0xff]
      %v1123 = vld [vmem:[%s4 + $0x20] sm:$0xff]
      %v1124 = vld [vmem:[%s4 + $0x28] sm:$0xff]
      %v1125 = vld [vmem:[%s4 + $0x30] sm:$0xff]
      %v1126 = vld [vmem:[%s4 + $0x38] sm:$0xff]
      %vm1127 = vcmask 523264
      %v1129 = vsel %vm1127, %v1055, 0
      %v1132 = vsel %vm1127, %v1056, 0
      %v1135 = vsel %vm1127, %v1057, 0
      %v1138 = vsel %vm1127, %v1058, 0
      %v1141 = vsel %vm1127, %v1059, 0
      %v1144 = vsel %vm1127, %v1060, 0
      %v1147 = vsel %vm1127, %v1061, 0
      %v1150 = vsel %vm1127, %v1062, 0
      %v1153 = vsel %vm1127, %v1063, 0
      %v1156 = vsel %vm1127, %v1064, 0
      %v1159 = vsel %vm1127, %v1065, 0
      %v1162 = vsel %vm1127, %v1066, 0
      %v1165 = vsel %vm1127, %v1067, 0
      %v1168 = vsel %vm1127, %v1068, 0
      %v1171 = vsel %vm1127, %v1069, 0
      %v1174 = vsel %vm1127, %v1070, 0
      %v1177 = vsel %vm1127, %v1071, 0
      %v1180 = vsel %vm1127, %v1072, 0
      %v1183 = vsel %vm1127, %v1073, 0
      %v1186 = vsel %vm1127, %v1074, 0
      %v1189 = vsel %vm1127, %v1075, 0
      %v1192 = vsel %vm1127, %v1076, 0
      %v1195 = vsel %vm1127, %v1077, 0
      %v1198 = vsel %vm1127, %v1078, 0
      %v1201 = vsel %vm1127, %v1079, 0
      %v1204 = vsel %vm1127, %v1080, 0
      %v1207 = vsel %vm1127, %v1081, 0
      %v1210 = vsel %vm1127, %v1082, 0
      %v1213 = vsel %vm1127, %v1083, 0
      %v1216 = vsel %vm1127, %v1084, 0
      %v1219 = vsel %vm1127, %v1085, 0
      %v1222 = vsel %vm1127, %v1086, 0
      %v1225 = vsel %vm1127, %v1087, 0
      %v1228 = vsel %vm1127, %v1088, 0
      %v1231 = vsel %vm1127, %v1089, 0
      %v1234 = vsel %vm1127, %v1090, 0
      %v1237 = vsel %vm1127, %v1091, 0
      %v1240 = vsel %vm1127, %v1092, 0
      %v1243 = vsel %vm1127, %v1093, 0
      %v1246 = vsel %vm1127, %v1094, 0
      %v1249 = vsel %vm1127, %v1095, 0
      %v1252 = vsel %vm1127, %v1096, 0
      %v1255 = vsel %vm1127, %v1097, 0
      %v1258 = vsel %vm1127, %v1098, 0
      %v1261 = vsel %vm1127, %v1099, 0
      %v1264 = vsel %vm1127, %v1100, 0
      %v1267 = vsel %vm1127, %v1101, 0
      %v1270 = vsel %vm1127, %v1102, 0
      %v1273 = vsel %vm1127, %v1103, 0
      %v1276 = vsel %vm1127, %v1104, 0
      %v1279 = vsel %vm1127, %v1105, 0
      %v1282 = vsel %vm1127, %v1106, 0
      %v1285 = vsel %vm1127, %v1107, 0
      %v1288 = vsel %vm1127, %v1108, 0
      %v1291 = vsel %vm1127, %v1109, 0
      %v1294 = vsel %vm1127, %v1110, 0
      %v1297 = vsel %vm1127, %v1111, 0
      %v1300 = vsel %vm1127, %v1112, 0
      %v1303 = vsel %vm1127, %v1113, 0
      %v1306 = vsel %vm1127, %v1114, 0
      %v1309 = vsel %vm1127, %v1115, 0
      %v1312 = vsel %vm1127, %v1116, 0
      %v1315 = vsel %vm1127, %v1117, 0
      %v1318 = vsel %vm1127, %v1118, 0
      %1320 = vmatpush.msra.mxu0 0.0
      %1321 = vmatpush.msra.mxu0 0.0
      %1322 = vmatpush.msra.mxu0 0.0
      %1323 = vmatpush.msra.mxu0 0.0
      %1324 = vmatpush.msra.mxu0 0.0
      %1325 = vmatpush.msra.mxu0 0.0
      %1326 = vmatpush.msra.mxu0 0.0
      %1327 = vmatpush.msra.mxu0 0.0
      %1328 = vmatpush.msra.mxu0 %v1126
      %1329 = vmatpush.msra.mxu0 %v1125
      %1330 = vmatpush.msra.mxu0 %v1124
      %1331 = vmatpush.msra.mxu0 %v1123
      %1332 = vmatpush.msra.mxu0 %v1122
      %1333 = vmatpush.msra.mxu0 %v1121
      %1334 = vmatpush.msra.mxu0 %v1120
      %1335 = vmatpush.msra.mxu0 %v1119
      %1336 = vmatmul.f32.gmra.mxu0 %v1129
      %v1337 = vpop.f32.mrf.mxu0
      %v1338 = vadd.f32 0.0, %v1337
      %1339 = vmatmul.f32.gmra.mxu0 %v1132
      %v1340 = vpop.f32.mrf.mxu0
      %v1341 = vadd.f32 0.0, %v1340
      %1342 = vmatmul.f32.gmra.mxu0 %v1135
      %v1343 = vpop.f32.mrf.mxu0
      %v1344 = vadd.f32 0.0, %v1343
      %1345 = vmatmul.f32.gmra.mxu0 %v1138
      %v1346 = vpop.f32.mrf.mxu0
      %v1347 = vadd.f32 0.0, %v1346
      %1348 = vmatmul.f32.gmra.mxu0 %v1141
      %v1349 = vpop.f32.mrf.mxu0
      %v1350 = vadd.f32 0.0, %v1349
      %1351 = vmatmul.f32.gmra.mxu0 %v1144
      %v1352 = vpop.f32.mrf.mxu0
      %v1353 = vadd.f32 0.0, %v1352
      %1354 = vmatmul.f32.gmra.mxu0 %v1147
      %v1355 = vpop.f32.mrf.mxu0
      %v1356 = vadd.f32 0.0, %v1355
      %1357 = vmatmul.f32.gmra.mxu0 %v1150
      %v1358 = vpop.f32.mrf.mxu0
      %v1359 = vadd.f32 0.0, %v1358
      %1360 = vmatmul.f32.gmra.mxu0 %v1153
      %v1361 = vpop.f32.mrf.mxu0
      %v1362 = vadd.f32 0.0, %v1361
      %1363 = vmatmul.f32.gmra.mxu0 %v1156
      %v1364 = vpop.f32.mrf.mxu0
      %v1365 = vadd.f32 0.0, %v1364
      %1366 = vmatmul.f32.gmra.mxu0 %v1159
      %v1367 = vpop.f32.mrf.mxu0
      %v1368 = vadd.f32 0.0, %v1367
      %1369 = vmatmul.f32.gmra.mxu0 %v1162
      %v1370 = vpop.f32.mrf.mxu0
      %v1371 = vadd.f32 0.0, %v1370
      %1372 = vmatmul.f32.gmra.mxu0 %v1165
      %v1373 = vpop.f32.mrf.mxu0
      %v1374 = vadd.f32 0.0, %v1373
      %1375 = vmatmul.f32.gmra.mxu0 %v1168
      %v1376 = vpop.f32.mrf.mxu0
      %v1377 = vadd.f32 0.0, %v1376
      %1378 = vmatmul.f32.gmra.mxu0 %v1171
      %v1379 = vpop.f32.mrf.mxu0
      %v1380 = vadd.f32 0.0, %v1379
      %1381 = vmatmul.f32.gmra.mxu0 %v1174
      %v1382 = vpop.f32.mrf.mxu0
      %v1383 = vadd.f32 0.0, %v1382
      %1384 = vmatmul.f32.gmra.mxu0 %v1177
      %v1385 = vpop.f32.mrf.mxu0
      %v1386 = vadd.f32 0.0, %v1385
      %1387 = vmatmul.f32.gmra.mxu0 %v1180
      %v1388 = vpop.f32.mrf.mxu0
      %v1389 = vadd.f32 0.0, %v1388
      %1390 = vmatmul.f32.gmra.mxu0 %v1183
      %v1391 = vpop.f32.mrf.mxu0
      %v1392 = vadd.f32 0.0, %v1391
      %1393 = vmatmul.f32.gmra.mxu0 %v1186
      %v1394 = vpop.f32.mrf.mxu0
      %v1395 = vadd.f32 0.0, %v1394
      %1396 = vmatmul.f32.gmra.mxu0 %v1189
      %v1397 = vpop.f32.mrf.mxu0
      %v1398 = vadd.f32 0.0, %v1397
      %1399 = vmatmul.f32.gmra.mxu0 %v1192
      %v1400 = vpop.f32.mrf.mxu0
      %v1401 = vadd.f32 0.0, %v1400
      %1402 = vmatmul.f32.gmra.mxu0 %v1195
      %v1403 = vpop.f32.mrf.mxu0
      %v1404 = vadd.f32 0.0, %v1403
      %1405 = vmatmul.f32.gmra.mxu0 %v1198
      %v1406 = vpop.f32.mrf.mxu0
      %v1407 = vadd.f32 0.0, %v1406
      %1408 = vmatmul.f32.gmra.mxu0 %v1201
      %v1409 = vpop.f32.mrf.mxu0
      %v1410 = vadd.f32 0.0, %v1409
      %1411 = vmatmul.f32.gmra.mxu0 %v1204
      %v1412 = vpop.f32.mrf.mxu0
      %v1413 = vadd.f32 0.0, %v1412
      %1414 = vmatmul.f32.gmra.mxu0 %v1207
      %v1415 = vpop.f32.mrf.mxu0
      %v1416 = vadd.f32 0.0, %v1415
      %1417 = vmatmul.f32.gmra.mxu0 %v1210
      %v1418 = vpop.f32.mrf.mxu0
      %v1419 = vadd.f32 0.0, %v1418
      %1420 = vmatmul.f32.gmra.mxu0 %v1213
      %v1421 = vpop.f32.mrf.mxu0
      %v1422 = vadd.f32 0.0, %v1421
      %1423 = vmatmul.f32.gmra.mxu0 %v1216
      %v1424 = vpop.f32.mrf.mxu0
      %v1425 = vadd.f32 0.0, %v1424
      %1426 = vmatmul.f32.gmra.mxu0 %v1219
      %v1427 = vpop.f32.mrf.mxu0
      %v1428 = vadd.f32 0.0, %v1427
      %1429 = vmatmul.f32.gmra.mxu0 %v1222
      %v1430 = vpop.f32.mrf.mxu0
      %v1431 = vadd.f32 0.0, %v1430
      %1432 = vmatmul.f32.gmra.mxu0 %v1225
      %v1433 = vpop.f32.mrf.mxu0
      %v1434 = vadd.f32 0.0, %v1433
      %1435 = vmatmul.f32.gmra.mxu0 %v1228
      %v1436 = vpop.f32.mrf.mxu0
      %v1437 = vadd.f32 0.0, %v1436
      %1438 = vmatmul.f32.gmra.mxu0 %v1231
      %v1439 = vpop.f32.mrf.mxu0
      %v1440 = vadd.f32 0.0, %v1439
      %1441 = vmatmul.f32.gmra.mxu0 %v1234
      %v1442 = vpop.f32.mrf.mxu0
      %v1443 = vadd.f32 0.0, %v1442
      %1444 = vmatmul.f32.gmra.mxu0 %v1237
      %v1445 = vpop.f32.mrf.mxu0
      %v1446 = vadd.f32 0.0, %v1445
      %1447 = vmatmul.f32.gmra.mxu0 %v1240
      %v1448 = vpop.f32.mrf.mxu0
      %v1449 = vadd.f32 0.0, %v1448
      %1450 = vmatmul.f32.gmra.mxu0 %v1243
      %v1451 = vpop.f32.mrf.mxu0
      %v1452 = vadd.f32 0.0, %v1451
      %1453 = vmatmul.f32.gmra.mxu0 %v1246
      %v1454 = vpop.f32.mrf.mxu0
      %v1455 = vadd.f32 0.0, %v1454
      %1456 = vmatmul.f32.gmra.mxu0 %v1249
      %v1457 = vpop.f32.mrf.mxu0
      %v1458 = vadd.f32 0.0, %v1457
      %1459 = vmatmul.f32.gmra.mxu0 %v1252
      %v1460 = vpop.f32.mrf.mxu0
      %v1461 = vadd.f32 0.0, %v1460
      %1462 = vmatmul.f32.gmra.mxu0 %v1255
      %v1463 = vpop.f32.mrf.mxu0
      %v1464 = vadd.f32 0.0, %v1463
      %1465 = vmatmul.f32.gmra.mxu0 %v1258
      %v1466 = vpop.f32.mrf.mxu0
      %v1467 = vadd.f32 0.0, %v1466
      %1468 = vmatmul.f32.gmra.mxu0 %v1261
      %v1469 = vpop.f32.mrf.mxu0
      %v1470 = vadd.f32 0.0, %v1469
      %1471 = vmatmul.f32.gmra.mxu0 %v1264
      %v1472 = vpop.f32.mrf.mxu0
      %v1473 = vadd.f32 0.0, %v1472
      %1474 = vmatmul.f32.gmra.mxu0 %v1267
      %v1475 = vpop.f32.mrf.mxu0
      %v1476 = vadd.f32 0.0, %v1475
      %1477 = vmatmul.f32.gmra.mxu0 %v1270
      %v1478 = vpop.f32.mrf.mxu0
      %v1479 = vadd.f32 0.0, %v1478
      %1480 = vmatmul.f32.gmra.mxu0 %v1273
      %v1481 = vpop.f32.mrf.mxu0
      %v1482 = vadd.f32 0.0, %v1481
      %1483 = vmatmul.f32.gmra.mxu0 %v1276
      %v1484 = vpop.f32.mrf.mxu0
      %v1485 = vadd.f32 0.0, %v1484
      %1486 = vmatmul.f32.gmra.mxu0 %v1279
      %v1487 = vpop.f32.mrf.mxu0
      %v1488 = vadd.f32 0.0, %v1487
      %1489 = vmatmul.f32.gmra.mxu0 %v1282
      %v1490 = vpop.f32.mrf.mxu0
      %v1491 = vadd.f32 0.0, %v1490
      %1492 = vmatmul.f32.gmra.mxu0 %v1285
      %v1493 = vpop.f32.mrf.mxu0
      %v1494 = vadd.f32 0.0, %v1493
      %1495 = vmatmul.f32.gmra.mxu0 %v1288
      %v1496 = vpop.f32.mrf.mxu0
      %v1497 = vadd.f32 0.0, %v1496
      %1498 = vmatmul.f32.gmra.mxu0 %v1291
      %v1499 = vpop.f32.mrf.mxu0
      %v1500 = vadd.f32 0.0, %v1499
      %1501 = vmatmul.f32.gmra.mxu0 %v1294
      %v1502 = vpop.f32.mrf.mxu0
      %v1503 = vadd.f32 0.0, %v1502
      %1504 = vmatmul.f32.gmra.mxu0 %v1297
      %v1505 = vpop.f32.mrf.mxu0
      %v1506 = vadd.f32 0.0, %v1505
      %1507 = vmatmul.f32.gmra.mxu0 %v1300
      %v1508 = vpop.f32.mrf.mxu0
      %v1509 = vadd.f32 0.0, %v1508
      %1510 = vmatmul.f32.gmra.mxu0 %v1303
      %v1511 = vpop.f32.mrf.mxu0
      %v1512 = vadd.f32 0.0, %v1511
      %1513 = vmatmul.f32.gmra.mxu0 %v1306
      %v1514 = vpop.f32.mrf.mxu0
      %v1515 = vadd.f32 0.0, %v1514
      %1516 = vmatmul.f32.gmra.mxu0 %v1309
      %v1517 = vpop.f32.mrf.mxu0
      %v1518 = vadd.f32 0.0, %v1517
      %1519 = vmatmul.f32.gmra.mxu0 %v1312
      %v1520 = vpop.f32.mrf.mxu0
      %v1521 = vadd.f32 0.0, %v1520
      %1522 = vmatmul.f32.gmra.mxu0 %v1315
      %v1523 = vpop.f32.mrf.mxu0
      %v1524 = vadd.f32 0.0, %v1523
      %1525 = vmatmul.f32.gmra.mxu0 %v1318
      %v1526 = vpop.f32.mrf.mxu0
      %v1527 = vadd.f32 0.0, %v1526
      %1528 = vdwg.mxu0
      %v1529 = vld [vmem:[%s5] sm:$0x1]
      %v1531 = vperm.slane %v1529, 0
      %v1533 = vmul.f32 %v1338, %v1531
      %v1534 = vmul.f32 %v1341, %v1531
      %v1535 = vmul.f32 %v1344, %v1531
      %v1536 = vmul.f32 %v1347, %v1531
      %v1537 = vmul.f32 %v1350, %v1531
      %v1538 = vmul.f32 %v1353, %v1531
      %v1539 = vmul.f32 %v1356, %v1531
      %v1540 = vmul.f32 %v1359, %v1531
      %v1541 = vmul.f32 %v1362, %v1531
      %v1542 = vmul.f32 %v1365, %v1531
      %v1543 = vmul.f32 %v1368, %v1531
      %v1544 = vmul.f32 %v1371, %v1531
      %v1545 = vmul.f32 %v1374, %v1531
      %v1546 = vmul.f32 %v1377, %v1531
      %v1547 = vmul.f32 %v1380, %v1531
      %v1548 = vmul.f32 %v1383, %v1531
      %v1549 = vmul.f32 %v1386, %v1531
      %v1550 = vmul.f32 %v1389, %v1531
      %v1551 = vmul.f32 %v1392, %v1531
      %v1552 = vmul.f32 %v1395, %v1531
      %v1553 = vmul.f32 %v1398, %v1531
      %v1554 = vmul.f32 %v1401, %v1531
      %v1555 = vmul.f32 %v1404, %v1531
      %v1556 = vmul.f32 %v1407, %v1531
      %v1557 = vmul.f32 %v1410, %v1531
      %v1558 = vmul.f32 %v1413, %v1531
      %v1559 = vmul.f32 %v1416, %v1531
      %v1560 = vmul.f32 %v1419, %v1531
      %v1561 = vmul.f32 %v1422, %v1531
      %v1562 = vmul.f32 %v1425, %v1531
      %v1563 = vmul.f32 %v1428, %v1531
      %v1564 = vmul.f32 %v1431, %v1531
      %v1565 = vmul.f32 %v1434, %v1531
      %v1566 = vmul.f32 %v1437, %v1531
      %v1567 = vmul.f32 %v1440, %v1531
      %v1568 = vmul.f32 %v1443, %v1531
      %v1569 = vmul.f32 %v1446, %v1531
      %v1570 = vmul.f32 %v1449, %v1531
      %v1571 = vmul.f32 %v1452, %v1531
      %v1572 = vmul.f32 %v1455, %v1531
      %v1573 = vmul.f32 %v1458, %v1531
      %v1574 = vmul.f32 %v1461, %v1531
      %v1575 = vmul.f32 %v1464, %v1531
      %v1576 = vmul.f32 %v1467, %v1531
      %v1577 = vmul.f32 %v1470, %v1531
      %v1578 = vmul.f32 %v1473, %v1531
      %v1579 = vmul.f32 %v1476, %v1531
      %v1580 = vmul.f32 %v1479, %v1531
      %v1581 = vmul.f32 %v1482, %v1531
      %v1582 = vmul.f32 %v1485, %v1531
      %v1583 = vmul.f32 %v1488, %v1531
      %v1584 = vmul.f32 %v1491, %v1531
      %v1585 = vmul.f32 %v1494, %v1531
      %v1586 = vmul.f32 %v1497, %v1531
      %v1587 = vmul.f32 %v1500, %v1531
      %v1588 = vmul.f32 %v1503, %v1531
      %v1589 = vmul.f32 %v1506, %v1531
      %v1590 = vmul.f32 %v1509, %v1531
      %v1591 = vmul.f32 %v1512, %v1531
      %v1592 = vmul.f32 %v1515, %v1531
      %v1593 = vmul.f32 %v1518, %v1531
      %v1594 = vmul.f32 %v1521, %v1531
      %v1595 = vmul.f32 %v1524, %v1531
      %v1596 = vmul.f32 %v1527, %v1531
      %v1597 = vld [vmem:[%s6] sm:$0x1]
      %v1599 = vperm.slane %v1597, 0
      %v1601 = vadd.f32 %v1533, %v1599
      %v1602 = vadd.f32 %v1534, %v1599
      %v1603 = vadd.f32 %v1535, %v1599
      %v1604 = vadd.f32 %v1536, %v1599
      %v1605 = vadd.f32 %v1537, %v1599
      %v1606 = vadd.f32 %v1538, %v1599
      %v1607 = vadd.f32 %v1539, %v1599
      %v1608 = vadd.f32 %v1540, %v1599
      %v1609 = vadd.f32 %v1541, %v1599
      %v1610 = vadd.f32 %v1542, %v1599
      %v1611 = vadd.f32 %v1543, %v1599
      %v1612 = vadd.f32 %v1544, %v1599
      %v1613 = vadd.f32 %v1545, %v1599
      %v1614 = vadd.f32 %v1546, %v1599
      %v1615 = vadd.f32 %v1547, %v1599
      %v1616 = vadd.f32 %v1548, %v1599
      %v1617 = vadd.f32 %v1549, %v1599
      %v1618 = vadd.f32 %v1550, %v1599
      %v1619 = vadd.f32 %v1551, %v1599
      %v1620 = vadd.f32 %v1552, %v1599
      %v1621 = vadd.f32 %v1553, %v1599
      %v1622 = vadd.f32 %v1554, %v1599
      %v1623 = vadd.f32 %v1555, %v1599
      %v1624 = vadd.f32 %v1556, %v1599
      %v1625 = vadd.f32 %v1557, %v1599
      %v1626 = vadd.f32 %v1558, %v1599
      %v1627 = vadd.f32 %v1559, %v1599
      %v1628 = vadd.f32 %v1560, %v1599
      %v1629 = vadd.f32 %v1561, %v1599
      %v1630 = vadd.f32 %v1562, %v1599
      %v1631 = vadd.f32 %v1563, %v1599
      %v1632 = vadd.f32 %v1564, %v1599
      %v1633 = vadd.f32 %v1565, %v1599
      %v1634 = vadd.f32 %v1566, %v1599
      %v1635 = vadd.f32 %v1567, %v1599
      %v1636 = vadd.f32 %v1568, %v1599
      %v1637 = vadd.f32 %v1569, %v1599
      %v1638 = vadd.f32 %v1570, %v1599
      %v1639 = vadd.f32 %v1571, %v1599
      %v1640 = vadd.f32 %v1572, %v1599
      %v1641 = vadd.f32 %v1573, %v1599
      %v1642 = vadd.f32 %v1574, %v1599
      %v1643 = vadd.f32 %v1575, %v1599
      %v1644 = vadd.f32 %v1576, %v1599
      %v1645 = vadd.f32 %v1577, %v1599
      %v1646 = vadd.f32 %v1578, %v1599
      %v1647 = vadd.f32 %v1579, %v1599
      %v1648 = vadd.f32 %v1580, %v1599
      %v1649 = vadd.f32 %v1581, %v1599
      %v1650 = vadd.f32 %v1582, %v1599
      %v1651 = vadd.f32 %v1583, %v1599
      %v1652 = vadd.f32 %v1584, %v1599
      %v1653 = vadd.f32 %v1585, %v1599
      %v1654 = vadd.f32 %v1586, %v1599
      %v1655 = vadd.f32 %v1587, %v1599
      %v1656 = vadd.f32 %v1588, %v1599
      %v1657 = vadd.f32 %v1589, %v1599
      %v1658 = vadd.f32 %v1590, %v1599
      %v1659 = vadd.f32 %v1591, %v1599
      %v1660 = vadd.f32 %v1592, %v1599
      %v1661 = vadd.f32 %v1593, %v1599
      %v1662 = vadd.f32 %v1594, %v1599
      %v1663 = vadd.f32 %v1595, %v1599
      %v1664 = vadd.f32 %v1596, %v1599
      %v1665 = vmax.f32 %v1601, 0.0
      %v1666 = vmax.f32 %v1602, 0.0
      %v1667 = vmax.f32 %v1603, 0.0
      %v1668 = vmax.f32 %v1604, 0.0
      %v1669 = vmax.f32 %v1605, 0.0
      %v1670 = vmax.f32 %v1606, 0.0
      %v1671 = vmax.f32 %v1607, 0.0
      %v1672 = vmax.f32 %v1608, 0.0
      %v1673 = vmax.f32 %v1609, 0.0
      %v1674 = vmax.f32 %v1610, 0.0
      %v1675 = vmax.f32 %v1611, 0.0
      %v1676 = vmax.f32 %v1612, 0.0
      %v1677 = vmax.f32 %v1613, 0.0
      %v1678 = vmax.f32 %v1614, 0.0
      %v1679 = vmax.f32 %v1615, 0.0
      %v1680 = vmax.f32 %v1616, 0.0
      %v1681 = vmax.f32 %v1617, 0.0
      %v1682 = vmax.f32 %v1618, 0.0
      %v1683 = vmax.f32 %v1619, 0.0
      %v1684 = vmax.f32 %v1620, 0.0
      %v1685 = vmax.f32 %v1621, 0.0
      %v1686 = vmax.f32 %v1622, 0.0
      %v1687 = vmax.f32 %v1623, 0.0
      %v1688 = vmax.f32 %v1624, 0.0
      %v1689 = vmax.f32 %v1625, 0.0
      %v1690 = vmax.f32 %v1626, 0.0
      %v1691 = vmax.f32 %v1627, 0.0
      %v1692 = vmax.f32 %v1628, 0.0
      %v1693 = vmax.f32 %v1629, 0.0
      %v1694 = vmax.f32 %v1630, 0.0
      %v1695 = vmax.f32 %v1631, 0.0
      %v1696 = vmax.f32 %v1632, 0.0
      %v1697 = vmax.f32 %v1633, 0.0
      %v1698 = vmax.f32 %v1634, 0.0
      %v1699 = vmax.f32 %v1635, 0.0
      %v1700 = vmax.f32 %v1636, 0.0
      %v1701 = vmax.f32 %v1637, 0.0
      %v1702 = vmax.f32 %v1638, 0.0
      %v1703 = vmax.f32 %v1639, 0.0
      %v1704 = vmax.f32 %v1640, 0.0
      %v1705 = vmax.f32 %v1641, 0.0
      %v1706 = vmax.f32 %v1642, 0.0
      %v1707 = vmax.f32 %v1643, 0.0
      %v1708 = vmax.f32 %v1644, 0.0
      %v1709 = vmax.f32 %v1645, 0.0
      %v1710 = vmax.f32 %v1646, 0.0
      %v1711 = vmax.f32 %v1647, 0.0
      %v1712 = vmax.f32 %v1648, 0.0
      %v1713 = vmax.f32 %v1649, 0.0
      %v1714 = vmax.f32 %v1650, 0.0
      %v1715 = vmax.f32 %v1651, 0.0
      %v1716 = vmax.f32 %v1652, 0.0
      %v1717 = vmax.f32 %v1653, 0.0
      %v1718 = vmax.f32 %v1654, 0.0
      %v1719 = vmax.f32 %v1655, 0.0
      %v1720 = vmax.f32 %v1656, 0.0
      %v1721 = vmax.f32 %v1657, 0.0
      %v1722 = vmax.f32 %v1658, 0.0
      %v1723 = vmax.f32 %v1659, 0.0
      %v1724 = vmax.f32 %v1660, 0.0
      %v1725 = vmax.f32 %v1661, 0.0
      %v1726 = vmax.f32 %v1662, 0.0
      %v1727 = vmax.f32 %v1663, 0.0
      %v1728 = vmax.f32 %v1664, 0.0
      %v1729 = vld [vmem:[%s7] sm:$0xff]
      %v1730 = vld [vmem:[%s7 + $0x8] sm:$0xff]
      %v1731 = vld [vmem:[%s7 + $0x10] sm:$0xff]
      %v1732 = vld [vmem:[%s7 + $0x18] sm:$0xff]
      %v1733 = vld [vmem:[%s7 + $0x20] sm:$0xff]
      %v1734 = vld [vmem:[%s7 + $0x28] sm:$0xff]
      %v1735 = vld [vmem:[%s7 + $0x30] sm:$0xff]
      %v1736 = vld [vmem:[%s7 + $0x38] sm:$0xff]
      %v1737 = vld [vmem:[%s7 + $0x40] sm:$0xff]
      %v1738 = vld [vmem:[%s7 + $0x48] sm:$0xff]
      %v1739 = vld [vmem:[%s7 + $0x50] sm:$0xff]
      %v1740 = vld [vmem:[%s7 + $0x58] sm:$0xff]
      %v1741 = vld [vmem:[%s7 + $0x60] sm:$0xff]
      %v1742 = vld [vmem:[%s7 + $0x68] sm:$0xff]
      %v1743 = vld [vmem:[%s7 + $0x70] sm:$0xff]
      %v1744 = vld [vmem:[%s7 + $0x78] sm:$0xff]
      %v1745 = vld [vmem:[%s7 + $0x80] sm:$0xff]
      %v1746 = vld [vmem:[%s7 + $0x88] sm:$0xff]
      %v1747 = vld [vmem:[%s7 + $0x90] sm:$0xff]
      %v1748 = vld [vmem:[%s7 + $0x98] sm:$0xff]
      %v1749 = vld [vmem:[%s7 + $0xa0] sm:$0xff]
      %v1750 = vld [vmem:[%s7 + $0xa8] sm:$0xff]
      %v1751 = vld [vmem:[%s7 + $0xb0] sm:$0xff]
      %v1752 = vld [vmem:[%s7 + $0xb8] sm:$0xff]
      %v1753 = vld [vmem:[%s7 + $0xc0] sm:$0xff]
      %v1754 = vld [vmem:[%s7 + $0xc8] sm:$0xff]
      %v1755 = vld [vmem:[%s7 + $0xd0] sm:$0xff]
      %v1756 = vld [vmem:[%s7 + $0xd8] sm:$0xff]
      %v1757 = vld [vmem:[%s7 + $0xe0] sm:$0xff]
      %v1758 = vld [vmem:[%s7 + $0xe8] sm:$0xff]
      %v1759 = vld [vmem:[%s7 + $0xf0] sm:$0xff]
      %v1760 = vld [vmem:[%s7 + $0xf8] sm:$0xff]
      %v1761 = vld [vmem:[%s7 + $0x100] sm:$0xff]
      %v1762 = vld [vmem:[%s7 + $0x108] sm:$0xff]
      %v1763 = vld [vmem:[%s7 + $0x110] sm:$0xff]
      %v1764 = vld [vmem:[%s7 + $0x118] sm:$0xff]
      %v1765 = vld [vmem:[%s7 + $0x120] sm:$0xff]
      %v1766 = vld [vmem:[%s7 + $0x128] sm:$0xff]
      %v1767 = vld [vmem:[%s7 + $0x130] sm:$0xff]
      %v1768 = vld [vmem:[%s7 + $0x138] sm:$0xff]
      %v1769 = vld [vmem:[%s7 + $0x140] sm:$0xff]
      %v1770 = vld [vmem:[%s7 + $0x148] sm:$0xff]
      %v1771 = vld [vmem:[%s7 + $0x150] sm:$0xff]
      %v1772 = vld [vmem:[%s7 + $0x158] sm:$0xff]
      %v1773 = vld [vmem:[%s7 + $0x160] sm:$0xff]
      %v1774 = vld [vmem:[%s7 + $0x168] sm:$0xff]
      %v1775 = vld [vmem:[%s7 + $0x170] sm:$0xff]
      %v1776 = vld [vmem:[%s7 + $0x178] sm:$0xff]
      %v1777 = vld [vmem:[%s7 + $0x180] sm:$0xff]
      %v1778 = vld [vmem:[%s7 + $0x188] sm:$0xff]
      %v1779 = vld [vmem:[%s7 + $0x190] sm:$0xff]
      %v1780 = vld [vmem:[%s7 + $0x198] sm:$0xff]
      %v1781 = vld [vmem:[%s7 + $0x1a0] sm:$0xff]
      %v1782 = vld [vmem:[%s7 + $0x1a8] sm:$0xff]
      %v1783 = vld [vmem:[%s7 + $0x1b0] sm:$0xff]
      %v1784 = vld [vmem:[%s7 + $0x1b8] sm:$0xff]
      %v1785 = vld [vmem:[%s7 + $0x1c0] sm:$0xff]
      %v1786 = vld [vmem:[%s7 + $0x1c8] sm:$0xff]
      %v1787 = vld [vmem:[%s7 + $0x1d0] sm:$0xff]
      %v1788 = vld [vmem:[%s7 + $0x1d8] sm:$0xff]
      %v1789 = vld [vmem:[%s7 + $0x1e0] sm:$0xff]
      %v1790 = vld [vmem:[%s7 + $0x1e8] sm:$0xff]
      %v1791 = vld [vmem:[%s7 + $0x1f0] sm:$0xff]
      %v1792 = vld [vmem:[%s7 + $0x1f8] sm:$0xff]
      %v1793 = vld [vmem:[%s7 + $0x200] sm:$0xff]
      %v1794 = vld [vmem:[%s7 + $0x208] sm:$0xff]
      %v1795 = vld [vmem:[%s7 + $0x210] sm:$0xff]
      %v1796 = vld [vmem:[%s7 + $0x218] sm:$0xff]
      %v1797 = vld [vmem:[%s7 + $0x220] sm:$0xff]
      %v1798 = vld [vmem:[%s7 + $0x228] sm:$0xff]
      %v1799 = vld [vmem:[%s7 + $0x230] sm:$0xff]
      %v1800 = vld [vmem:[%s7 + $0x238] sm:$0xff]
      %v1801 = vld [vmem:[%s7 + $0x240] sm:$0xff]
      %v1802 = vld [vmem:[%s7 + $0x248] sm:$0xff]
      %v1803 = vld [vmem:[%s7 + $0x250] sm:$0xff]
      %v1804 = vld [vmem:[%s7 + $0x258] sm:$0xff]
      %v1805 = vld [vmem:[%s7 + $0x260] sm:$0xff]
      %v1806 = vld [vmem:[%s7 + $0x268] sm:$0xff]
      %v1807 = vld [vmem:[%s7 + $0x270] sm:$0xff]
      %v1808 = vld [vmem:[%s7 + $0x278] sm:$0xff]
      %v1809 = vld [vmem:[%s7 + $0x280] sm:$0xff]
      %v1810 = vld [vmem:[%s7 + $0x288] sm:$0xff]
      %v1811 = vld [vmem:[%s7 + $0x290] sm:$0xff]
      %v1812 = vld [vmem:[%s7 + $0x298] sm:$0xff]
      %v1813 = vld [vmem:[%s7 + $0x2a0] sm:$0xff]
      %v1814 = vld [vmem:[%s7 + $0x2a8] sm:$0xff]
      %v1815 = vld [vmem:[%s7 + $0x2b0] sm:$0xff]
      %v1816 = vld [vmem:[%s7 + $0x2b8] sm:$0xff]
      %v1817 = vld [vmem:[%s7 + $0x2c0] sm:$0xff]
      %v1818 = vld [vmem:[%s7 + $0x2c8] sm:$0xff]
      %v1819 = vld [vmem:[%s7 + $0x2d0] sm:$0xff]
      %v1820 = vld [vmem:[%s7 + $0x2d8] sm:$0xff]
      %v1821 = vld [vmem:[%s7 + $0x2e0] sm:$0xff]
      %v1822 = vld [vmem:[%s7 + $0x2e8] sm:$0xff]
      %v1823 = vld [vmem:[%s7 + $0x2f0] sm:$0xff]
      %v1824 = vld [vmem:[%s7 + $0x2f8] sm:$0xff]
      %v1825 = vld [vmem:[%s7 + $0x300] sm:$0xff]
      %v1826 = vld [vmem:[%s7 + $0x308] sm:$0xff]
      %v1827 = vld [vmem:[%s7 + $0x310] sm:$0xff]
      %v1828 = vld [vmem:[%s7 + $0x318] sm:$0xff]
      %v1829 = vld [vmem:[%s7 + $0x320] sm:$0xff]
      %v1830 = vld [vmem:[%s7 + $0x328] sm:$0xff]
      %v1831 = vld [vmem:[%s7 + $0x330] sm:$0xff]
      %v1832 = vld [vmem:[%s7 + $0x338] sm:$0xff]
      %v1833 = vld [vmem:[%s7 + $0x340] sm:$0xff]
      %v1834 = vld [vmem:[%s7 + $0x348] sm:$0xff]
      %v1835 = vld [vmem:[%s7 + $0x350] sm:$0xff]
      %v1836 = vld [vmem:[%s7 + $0x358] sm:$0xff]
      %v1837 = vld [vmem:[%s7 + $0x360] sm:$0xff]
      %v1838 = vld [vmem:[%s7 + $0x368] sm:$0xff]
      %v1839 = vld [vmem:[%s7 + $0x370] sm:$0xff]
      %v1840 = vld [vmem:[%s7 + $0x378] sm:$0xff]
      %v1841 = vld [vmem:[%s7 + $0x380] sm:$0xff]
      %v1842 = vld [vmem:[%s7 + $0x388] sm:$0xff]
      %v1843 = vld [vmem:[%s7 + $0x390] sm:$0xff]
      %v1844 = vld [vmem:[%s7 + $0x398] sm:$0xff]
      %v1845 = vld [vmem:[%s7 + $0x3a0] sm:$0xff]
      %v1846 = vld [vmem:[%s7 + $0x3a8] sm:$0xff]
      %v1847 = vld [vmem:[%s7 + $0x3b0] sm:$0xff]
      %v1848 = vld [vmem:[%s7 + $0x3b8] sm:$0xff]
      %v1849 = vld [vmem:[%s7 + $0x3c0] sm:$0xff]
      %v1850 = vld [vmem:[%s7 + $0x3c8] sm:$0xff]
      %v1851 = vld [vmem:[%s7 + $0x3d0] sm:$0xff]
      %v1852 = vld [vmem:[%s7 + $0x3d8] sm:$0xff]
      %v1853 = vld [vmem:[%s7 + $0x3e0] sm:$0xff]
      %v1854 = vld [vmem:[%s7 + $0x3e8] sm:$0xff]
      %v1855 = vld [vmem:[%s7 + $0x3f0] sm:$0xff]
      %v1856 = vld [vmem:[%s7 + $0x3f8] sm:$0xff]
      %1857 = vmatpush.msra.mxu0 %v1849
      %1858 = vmatpush.msra.mxu0 %v1841
      %1859 = vmatpush.msra.mxu0 %v1833
      %1860 = vmatpush.msra.mxu0 %v1825
      %1861 = vmatpush.msra.mxu0 %v1817
      %1862 = vmatpush.msra.mxu0 %v1809
      %1863 = vmatpush.msra.mxu0 %v1801
      %1864 = vmatpush.msra.mxu0 %v1793
      %1865 = vmatpush.msra.mxu0 %v1785
      %1866 = vmatpush.msra.mxu0 %v1777
      %1867 = vmatpush.msra.mxu0 %v1769
      %1868 = vmatpush.msra.mxu0 %v1761
      %1869 = vmatpush.msra.mxu0 %v1753
      %1870 = vmatpush.msra.mxu0 %v1745
      %1871 = vmatpush.msra.mxu0 %v1737
      %1872 = vmatpush.msra.mxu0 %v1729
      %1873 = vmatmul.f32.gmra.mxu0 %v1665
      %v1874 = vpop.f32.mrf.mxu0
      %v1875 = vadd.f32 0.0, %v1874
      %1876 = vmatmul.f32.gmra.mxu0 %v1666
      %v1877 = vpop.f32.mrf.mxu0
      %v1878 = vadd.f32 0.0, %v1877
      %1879 = vmatmul.f32.gmra.mxu0 %v1667
      %v1880 = vpop.f32.mrf.mxu0
      %v1881 = vadd.f32 0.0, %v1880
      %1882 = vmatmul.f32.gmra.mxu0 %v1668
      %v1883 = vpop.f32.mrf.mxu0
      %v1884 = vadd.f32 0.0, %v1883
      %1885 = vmatmul.f32.gmra.mxu0 %v1669
      %v1886 = vpop.f32.mrf.mxu0
      %v1887 = vadd.f32 0.0, %v1886
      %1888 = vmatmul.f32.gmra.mxu0 %v1670
      %v1889 = vpop.f32.mrf.mxu0
      %v1890 = vadd.f32 0.0, %v1889
      %1891 = vmatmul.f32.gmra.mxu0 %v1671
      %v1892 = vpop.f32.mrf.mxu0
      %v1893 = vadd.f32 0.0, %v1892
      %1894 = vmatmul.f32.gmra.mxu0 %v1672
      %v1895 = vpop.f32.mrf.mxu0
      %v1896 = vadd.f32 0.0, %v1895
      %1897 = vmatmul.f32.gmra.mxu0 %v1673
      %v1898 = vpop.f32.mrf.mxu0
      %v1899 = vadd.f32 0.0, %v1898
      %1900 = vmatmul.f32.gmra.mxu0 %v1674
      %v1901 = vpop.f32.mrf.mxu0
      %v1902 = vadd.f32 0.0, %v1901
      %1903 = vmatmul.f32.gmra.mxu0 %v1675
      %v1904 = vpop.f32.mrf.mxu0
      %v1905 = vadd.f32 0.0, %v1904
      %1906 = vmatmul.f32.gmra.mxu0 %v1676
      %v1907 = vpop.f32.mrf.mxu0
      %v1908 = vadd.f32 0.0, %v1907
      %1909 = vmatmul.f32.gmra.mxu0 %v1677
      %v1910 = vpop.f32.mrf.mxu0
      %v1911 = vadd.f32 0.0, %v1910
      %1912 = vmatmul.f32.gmra.mxu0 %v1678
      %v1913 = vpop.f32.mrf.mxu0
      %v1914 = vadd.f32 0.0, %v1913
      %1915 = vmatmul.f32.gmra.mxu0 %v1679
      %v1916 = vpop.f32.mrf.mxu0
      %v1917 = vadd.f32 0.0, %v1916
      %1918 = vmatmul.f32.gmra.mxu0 %v1680
      %v1919 = vpop.f32.mrf.mxu0
      %v1920 = vadd.f32 0.0, %v1919
      %1921 = vmatmul.f32.gmra.mxu0 %v1681
      %v1922 = vpop.f32.mrf.mxu0
      %v1923 = vadd.f32 0.0, %v1922
      %1924 = vmatmul.f32.gmra.mxu0 %v1682
      %v1925 = vpop.f32.mrf.mxu0
      %v1926 = vadd.f32 0.0, %v1925
      %1927 = vmatmul.f32.gmra.mxu0 %v1683
      %v1928 = vpop.f32.mrf.mxu0
      %v1929 = vadd.f32 0.0, %v1928
      %1930 = vmatmul.f32.gmra.mxu0 %v1684
      %v1931 = vpop.f32.mrf.mxu0
      %v1932 = vadd.f32 0.0, %v1931
      %1933 = vmatmul.f32.gmra.mxu0 %v1685
      %v1934 = vpop.f32.mrf.mxu0
      %v1935 = vadd.f32 0.0, %v1934
      %1936 = vmatmul.f32.gmra.mxu0 %v1686
      %v1937 = vpop.f32.mrf.mxu0
      %v1938 = vadd.f32 0.0, %v1937
      %1939 = vmatmul.f32.gmra.mxu0 %v1687
      %v1940 = vpop.f32.mrf.mxu0
      %v1941 = vadd.f32 0.0, %v1940
      %1942 = vmatmul.f32.gmra.mxu0 %v1688
      %v1943 = vpop.f32.mrf.mxu0
      %v1944 = vadd.f32 0.0, %v1943
      %1945 = vmatmul.f32.gmra.mxu0 %v1689
      %v1946 = vpop.f32.mrf.mxu0
      %v1947 = vadd.f32 0.0, %v1946
      %1948 = vmatmul.f32.gmra.mxu0 %v1690
      %v1949 = vpop.f32.mrf.mxu0
      %v1950 = vadd.f32 0.0, %v1949
      %1951 = vmatmul.f32.gmra.mxu0 %v1691
      %v1952 = vpop.f32.mrf.mxu0
      %v1953 = vadd.f32 0.0, %v1952
      %1954 = vmatmul.f32.gmra.mxu0 %v1692
      %v1955 = vpop.f32.mrf.mxu0
      %v1956 = vadd.f32 0.0, %v1955
      %1957 = vmatmul.f32.gmra.mxu0 %v1693
      %v1958 = vpop.f32.mrf.mxu0
      %v1959 = vadd.f32 0.0, %v1958
      %1960 = vmatmul.f32.gmra.mxu0 %v1694
      %v1961 = vpop.f32.mrf.mxu0
      %v1962 = vadd.f32 0.0, %v1961
      %1963 = vmatmul.f32.gmra.mxu0 %v1695
      %v1964 = vpop.f32.mrf.mxu0
      %v1965 = vadd.f32 0.0, %v1964
      %1966 = vmatmul.f32.gmra.mxu0 %v1696
      %v1967 = vpop.f32.mrf.mxu0
      %v1968 = vadd.f32 0.0, %v1967
      %1969 = vmatmul.f32.gmra.mxu0 %v1697
      %v1970 = vpop.f32.mrf.mxu0
      %v1971 = vadd.f32 0.0, %v1970
      %1972 = vmatmul.f32.gmra.mxu0 %v1698
      %v1973 = vpop.f32.mrf.mxu0
      %v1974 = vadd.f32 0.0, %v1973
      %1975 = vmatmul.f32.gmra.mxu0 %v1699
      %v1976 = vpop.f32.mrf.mxu0
      %v1977 = vadd.f32 0.0, %v1976
      %1978 = vmatmul.f32.gmra.mxu0 %v1700
      %v1979 = vpop.f32.mrf.mxu0
      %v1980 = vadd.f32 0.0, %v1979
      %1981 = vmatmul.f32.gmra.mxu0 %v1701
      %v1982 = vpop.f32.mrf.mxu0
      %v1983 = vadd.f32 0.0, %v1982
      %1984 = vmatmul.f32.gmra.mxu0 %v1702
      %v1985 = vpop.f32.mrf.mxu0
      %v1986 = vadd.f32 0.0, %v1985
      %1987 = vmatmul.f32.gmra.mxu0 %v1703
      %v1988 = vpop.f32.mrf.mxu0
      %v1989 = vadd.f32 0.0, %v1988
      %1990 = vmatmul.f32.gmra.mxu0 %v1704
      %v1991 = vpop.f32.mrf.mxu0
      %v1992 = vadd.f32 0.0, %v1991
      %1993 = vmatmul.f32.gmra.mxu0 %v1705
      %v1994 = vpop.f32.mrf.mxu0
      %v1995 = vadd.f32 0.0, %v1994
      %1996 = vmatmul.f32.gmra.mxu0 %v1706
      %v1997 = vpop.f32.mrf.mxu0
      %v1998 = vadd.f32 0.0, %v1997
      %1999 = vmatmul.f32.gmra.mxu0 %v1707
      %v2000 = vpop.f32.mrf.mxu0
      %v2001 = vadd.f32 0.0, %v2000
      %2002 = vmatmul.f32.gmra.mxu0 %v1708
      %v2003 = vpop.f32.mrf.mxu0
      %v2004 = vadd.f32 0.0, %v2003
      %2005 = vmatmul.f32.gmra.mxu0 %v1709
      %v2006 = vpop.f32.mrf.mxu0
      %v2007 = vadd.f32 0.0, %v2006
      %2008 = vmatmul.f32.gmra.mxu0 %v1710
      %v2009 = vpop.f32.mrf.mxu0
      %v2010 = vadd.f32 0.0, %v2009
      %2011 = vmatmul.f32.gmra.mxu0 %v1711
      %v2012 = vpop.f32.mrf.mxu0
      %v2013 = vadd.f32 0.0, %v2012
      %2014 = vmatmul.f32.gmra.mxu0 %v1712
      %v2015 = vpop.f32.mrf.mxu0
      %v2016 = vadd.f32 0.0, %v2015
      %2017 = vmatmul.f32.gmra.mxu0 %v1713
      %v2018 = vpop.f32.mrf.mxu0
      %v2019 = vadd.f32 0.0, %v2018
      %2020 = vmatmul.f32.gmra.mxu0 %v1714
      %v2021 = vpop.f32.mrf.mxu0
      %v2022 = vadd.f32 0.0, %v2021
      %2023 = vmatmul.f32.gmra.mxu0 %v1715
      %v2024 = vpop.f32.mrf.mxu0
      %v2025 = vadd.f32 0.0, %v2024
      %2026 = vmatmul.f32.gmra.mxu0 %v1716
      %v2027 = vpop.f32.mrf.mxu0
      %v2028 = vadd.f32 0.0, %v2027
      %2029 = vmatmul.f32.gmra.mxu0 %v1717
      %v2030 = vpop.f32.mrf.mxu0
      %v2031 = vadd.f32 0.0, %v2030
      %2032 = vmatmul.f32.gmra.mxu0 %v1718
      %v2033 = vpop.f32.mrf.mxu0
      %v2034 = vadd.f32 0.0, %v2033
      %2035 = vmatmul.f32.gmra.mxu0 %v1719
      %v2036 = vpop.f32.mrf.mxu0
      %v2037 = vadd.f32 0.0, %v2036
      %2038 = vmatmul.f32.gmra.mxu0 %v1720
      %v2039 = vpop.f32.mrf.mxu0
      %v2040 = vadd.f32 0.0, %v2039
      %2041 = vmatmul.f32.gmra.mxu0 %v1721
      %v2042 = vpop.f32.mrf.mxu0
      %v2043 = vadd.f32 0.0, %v2042
      %2044 = vmatmul.f32.gmra.mxu0 %v1722
      %v2045 = vpop.f32.mrf.mxu0
      %v2046 = vadd.f32 0.0, %v2045
      %2047 = vmatmul.f32.gmra.mxu0 %v1723
      %v2048 = vpop.f32.mrf.mxu0
      %v2049 = vadd.f32 0.0, %v2048
      %2050 = vmatmul.f32.gmra.mxu0 %v1724
      %v2051 = vpop.f32.mrf.mxu0
      %v2052 = vadd.f32 0.0, %v2051
      %2053 = vmatmul.f32.gmra.mxu0 %v1725
      %v2054 = vpop.f32.mrf.mxu0
      %v2055 = vadd.f32 0.0, %v2054
      %2056 = vmatmul.f32.gmra.mxu0 %v1726
      %v2057 = vpop.f32.mrf.mxu0
      %v2058 = vadd.f32 0.0, %v2057
      %2059 = vmatmul.f32.gmra.mxu0 %v1727
      %v2060 = vpop.f32.mrf.mxu0
      %v2061 = vadd.f32 0.0, %v2060
      %2062 = vmatmul.f32.gmra.mxu0 %v1728
      %v2063 = vpop.f32.mrf.mxu0
      %v2064 = vadd.f32 0.0, %v2063
      %2065 = vdwg.mxu0
      %2066 = vmatpush.msra.mxu0 %v1850
      %2067 = vmatpush.msra.mxu0 %v1842
      %2068 = vmatpush.msra.mxu0 %v1834
      %2069 = vmatpush.msra.mxu0 %v1826
      %2070 = vmatpush.msra.mxu0 %v1818
      %2071 = vmatpush.msra.mxu0 %v1810
      %2072 = vmatpush.msra.mxu0 %v1802
      %2073 = vmatpush.msra.mxu0 %v1794
      %2074 = vmatpush.msra.mxu0 %v1786
      %2075 = vmatpush.msra.mxu0 %v1778
      %2076 = vmatpush.msra.mxu0 %v1770
      %2077 = vmatpush.msra.mxu0 %v1762
      %2078 = vmatpush.msra.mxu0 %v1754
      %2079 = vmatpush.msra.mxu0 %v1746
      %2080 = vmatpush.msra.mxu0 %v1738
      %2081 = vmatpush.msra.mxu0 %v1730
      %2082 = vmatmul.f32.gmra.mxu0 %v1665
      %v2083 = vpop.f32.mrf.mxu0
      %v2084 = vadd.f32 0.0, %v2083
      %2085 = vmatmul.f32.gmra.mxu0 %v1666
      %v2086 = vpop.f32.mrf.mxu0
      %v2087 = vadd.f32 0.0, %v2086
      %2088 = vmatmul.f32.gmra.mxu0 %v1667
      %v2089 = vpop.f32.mrf.mxu0
      %v2090 = vadd.f32 0.0, %v2089
      %2091 = vmatmul.f32.gmra.mxu0 %v1668
      %v2092 = vpop.f32.mrf.mxu0
      %v2093 = vadd.f32 0.0, %v2092
      %2094 = vmatmul.f32.gmra.mxu0 %v1669
      %v2095 = vpop.f32.mrf.mxu0
      %v2096 = vadd.f32 0.0, %v2095
      %2097 = vmatmul.f32.gmra.mxu0 %v1670
      %v2098 = vpop.f32.mrf.mxu0
      %v2099 = vadd.f32 0.0, %v2098
      %2100 = vmatmul.f32.gmra.mxu0 %v1671
      %v2101 = vpop.f32.mrf.mxu0
      %v2102 = vadd.f32 0.0, %v2101
      %2103 = vmatmul.f32.gmra.mxu0 %v1672
      %v2104 = vpop.f32.mrf.mxu0
      %v2105 = vadd.f32 0.0, %v2104
      %2106 = vmatmul.f32.gmra.mxu0 %v1673
      %v2107 = vpop.f32.mrf.mxu0
      %v2108 = vadd.f32 0.0, %v2107
      %2109 = vmatmul.f32.gmra.mxu0 %v1674
      %v2110 = vpop.f32.mrf.mxu0
      %v2111 = vadd.f32 0.0, %v2110
      %2112 = vmatmul.f32.gmra.mxu0 %v1675
      %v2113 = vpop.f32.mrf.mxu0
      %v2114 = vadd.f32 0.0, %v2113
      %2115 = vmatmul.f32.gmra.mxu0 %v1676
      %v2116 = vpop.f32.mrf.mxu0
      %v2117 = vadd.f32 0.0, %v2116
      %2118 = vmatmul.f32.gmra.mxu0 %v1677
      %v2119 = vpop.f32.mrf.mxu0
      %v2120 = vadd.f32 0.0, %v2119
      %2121 = vmatmul.f32.gmra.mxu0 %v1678
      %v2122 = vpop.f32.mrf.mxu0
      %v2123 = vadd.f32 0.0, %v2122
      %2124 = vmatmul.f32.gmra.mxu0 %v1679
      %v2125 = vpop.f32.mrf.mxu0
      %v2126 = vadd.f32 0.0, %v2125
      %2127 = vmatmul.f32.gmra.mxu0 %v1680
      %v2128 = vpop.f32.mrf.mxu0
      %v2129 = vadd.f32 0.0, %v2128
      %2130 = vmatmul.f32.gmra.mxu0 %v1681
      %v2131 = vpop.f32.mrf.mxu0
      %v2132 = vadd.f32 0.0, %v2131
      %2133 = vmatmul.f32.gmra.mxu0 %v1682
      %v2134 = vpop.f32.mrf.mxu0
      %v2135 = vadd.f32 0.0, %v2134
      %2136 = vmatmul.f32.gmra.mxu0 %v1683
      %v2137 = vpop.f32.mrf.mxu0
      %v2138 = vadd.f32 0.0, %v2137
      %2139 = vmatmul.f32.gmra.mxu0 %v1684
      %v2140 = vpop.f32.mrf.mxu0
      %v2141 = vadd.f32 0.0, %v2140
      %2142 = vmatmul.f32.gmra.mxu0 %v1685
      %v2143 = vpop.f32.mrf.mxu0
      %v2144 = vadd.f32 0.0, %v2143
      %2145 = vmatmul.f32.gmra.mxu0 %v1686
      %v2146 = vpop.f32.mrf.mxu0
      %v2147 = vadd.f32 0.0, %v2146
      %2148 = vmatmul.f32.gmra.mxu0 %v1687
      %v2149 = vpop.f32.mrf.mxu0
      %v2150 = vadd.f32 0.0, %v2149
      %2151 = vmatmul.f32.gmra.mxu0 %v1688
      %v2152 = vpop.f32.mrf.mxu0
      %v2153 = vadd.f32 0.0, %v2152
      %2154 = vmatmul.f32.gmra.mxu0 %v1689
      %v2155 = vpop.f32.mrf.mxu0
      %v2156 = vadd.f32 0.0, %v2155
      %2157 = vmatmul.f32.gmra.mxu0 %v1690
      %v2158 = vpop.f32.mrf.mxu0
      %v2159 = vadd.f32 0.0, %v2158
      %2160 = vmatmul.f32.gmra.mxu0 %v1691
      %v2161 = vpop.f32.mrf.mxu0
      %v2162 = vadd.f32 0.0, %v2161
      %2163 = vmatmul.f32.gmra.mxu0 %v1692
      %v2164 = vpop.f32.mrf.mxu0
      %v2165 = vadd.f32 0.0, %v2164
      %2166 = vmatmul.f32.gmra.mxu0 %v1693
      %v2167 = vpop.f32.mrf.mxu0
      %v2168 = vadd.f32 0.0, %v2167
      %2169 = vmatmul.f32.gmra.mxu0 %v1694
      %v2170 = vpop.f32.mrf.mxu0
      %v2171 = vadd.f32 0.0, %v2170
      %2172 = vmatmul.f32.gmra.mxu0 %v1695
      %v2173 = vpop.f32.mrf.mxu0
      %v2174 = vadd.f32 0.0, %v2173
      %2175 = vmatmul.f32.gmra.mxu0 %v1696
      %v2176 = vpop.f32.mrf.mxu0
      %v2177 = vadd.f32 0.0, %v2176
      %2178 = vmatmul.f32.gmra.mxu0 %v1697
      %v2179 = vpop.f32.mrf.mxu0
      %v2180 = vadd.f32 0.0, %v2179
      %2181 = vmatmul.f32.gmra.mxu0 %v1698
      %v2182 = vpop.f32.mrf.mxu0
      %v2183 = vadd.f32 0.0, %v2182
      %2184 = vmatmul.f32.gmra.mxu0 %v1699
      %v2185 = vpop.f32.mrf.mxu0
      %v2186 = vadd.f32 0.0, %v2185
      %2187 = vmatmul.f32.gmra.mxu0 %v1700
      %v2188 = vpop.f32.mrf.mxu0
      %v2189 = vadd.f32 0.0, %v2188
      %2190 = vmatmul.f32.gmra.mxu0 %v1701
      %v2191 = vpop.f32.mrf.mxu0
      %v2192 = vadd.f32 0.0, %v2191
      %2193 = vmatmul.f32.gmra.mxu0 %v1702
      %v2194 = vpop.f32.mrf.mxu0
      %v2195 = vadd.f32 0.0, %v2194
      %2196 = vmatmul.f32.gmra.mxu0 %v1703
      %v2197 = vpop.f32.mrf.mxu0
      %v2198 = vadd.f32 0.0, %v2197
      %2199 = vmatmul.f32.gmra.mxu0 %v1704
      %v2200 = vpop.f32.mrf.mxu0
      %v2201 = vadd.f32 0.0, %v2200
      %2202 = vmatmul.f32.gmra.mxu0 %v1705
      %v2203 = vpop.f32.mrf.mxu0
      %v2204 = vadd.f32 0.0, %v2203
      %2205 = vmatmul.f32.gmra.mxu0 %v1706
      %v2206 = vpop.f32.mrf.mxu0
      %v2207 = vadd.f32 0.0, %v2206
      %2208 = vmatmul.f32.gmra.mxu0 %v1707
      %v2209 = vpop.f32.mrf.mxu0
      %v2210 = vadd.f32 0.0, %v2209
      %2211 = vmatmul.f32.gmra.mxu0 %v1708
      %v2212 = vpop.f32.mrf.mxu0
      %v2213 = vadd.f32 0.0, %v2212
      %2214 = vmatmul.f32.gmra.mxu0 %v1709
      %v2215 = vpop.f32.mrf.mxu0
      %v2216 = vadd.f32 0.0, %v2215
      %2217 = vmatmul.f32.gmra.mxu0 %v1710
      %v2218 = vpop.f32.mrf.mxu0
      %v2219 = vadd.f32 0.0, %v2218
      %2220 = vmatmul.f32.gmra.mxu0 %v1711
      %v2221 = vpop.f32.mrf.mxu0
      %v2222 = vadd.f32 0.0, %v2221
      %2223 = vmatmul.f32.gmra.mxu0 %v1712
      %v2224 = vpop.f32.mrf.mxu0
      %v2225 = vadd.f32 0.0, %v2224
      %2226 = vmatmul.f32.gmra.mxu0 %v1713
      %v2227 = vpop.f32.mrf.mxu0
      %v2228 = vadd.f32 0.0, %v2227
      %2229 = vmatmul.f32.gmra.mxu0 %v1714
      %v2230 = vpop.f32.mrf.mxu0
      %v2231 = vadd.f32 0.0, %v2230
      %2232 = vmatmul.f32.gmra.mxu0 %v1715
      %v2233 = vpop.f32.mrf.mxu0
      %v2234 = vadd.f32 0.0, %v2233
      %2235 = vmatmul.f32.gmra.mxu0 %v1716
      %v2236 = vpop.f32.mrf.mxu0
      %v2237 = vadd.f32 0.0, %v2236
      %2238 = vmatmul.f32.gmra.mxu0 %v1717
      %v2239 = vpop.f32.mrf.mxu0
      %v2240 = vadd.f32 0.0, %v2239
      %2241 = vmatmul.f32.gmra.mxu0 %v1718
      %v2242 = vpop.f32.mrf.mxu0
      %v2243 = vadd.f32 0.0, %v2242
      %2244 = vmatmul.f32.gmra.mxu0 %v1719
      %v2245 = vpop.f32.mrf.mxu0
      %v2246 = vadd.f32 0.0, %v2245
      %2247 = vmatmul.f32.gmra.mxu0 %v1720
      %v2248 = vpop.f32.mrf.mxu0
      %v2249 = vadd.f32 0.0, %v2248
      %2250 = vmatmul.f32.gmra.mxu0 %v1721
      %v2251 = vpop.f32.mrf.mxu0
      %v2252 = vadd.f32 0.0, %v2251
      %2253 = vmatmul.f32.gmra.mxu0 %v1722
      %v2254 = vpop.f32.mrf.mxu0
      %v2255 = vadd.f32 0.0, %v2254
      %2256 = vmatmul.f32.gmra.mxu0 %v1723
      %v2257 = vpop.f32.mrf.mxu0
      %v2258 = vadd.f32 0.0, %v2257
      %2259 = vmatmul.f32.gmra.mxu0 %v1724
      %v2260 = vpop.f32.mrf.mxu0
      %v2261 = vadd.f32 0.0, %v2260
      %2262 = vmatmul.f32.gmra.mxu0 %v1725
      %v2263 = vpop.f32.mrf.mxu0
      %v2264 = vadd.f32 0.0, %v2263
      %2265 = vmatmul.f32.gmra.mxu0 %v1726
      %v2266 = vpop.f32.mrf.mxu0
      %v2267 = vadd.f32 0.0, %v2266
      %2268 = vmatmul.f32.gmra.mxu0 %v1727
      %v2269 = vpop.f32.mrf.mxu0
      %v2270 = vadd.f32 0.0, %v2269
      %2271 = vmatmul.f32.gmra.mxu0 %v1728
      %v2272 = vpop.f32.mrf.mxu0
      %v2273 = vadd.f32 0.0, %v2272
      %2274 = vdwg.mxu0
      %2275 = vmatpush.msra.mxu0 %v1851
      %2276 = vmatpush.msra.mxu0 %v1843
      %2277 = vmatpush.msra.mxu0 %v1835
      %2278 = vmatpush.msra.mxu0 %v1827
      %2279 = vmatpush.msra.mxu0 %v1819
      %2280 = vmatpush.msra.mxu0 %v1811
      %2281 = vmatpush.msra.mxu0 %v1803
      %2282 = vmatpush.msra.mxu0 %v1795
      %2283 = vmatpush.msra.mxu0 %v1787
      %2284 = vmatpush.msra.mxu0 %v1779
      %2285 = vmatpush.msra.mxu0 %v1771
      %2286 = vmatpush.msra.mxu0 %v1763
      %2287 = vmatpush.msra.mxu0 %v1755
      %2288 = vmatpush.msra.mxu0 %v1747
      %2289 = vmatpush.msra.mxu0 %v1739
      %2290 = vmatpush.msra.mxu0 %v1731
      %2291 = vmatmul.f32.gmra.mxu0 %v1665
      %v2292 = vpop.f32.mrf.mxu0
      %v2293 = vadd.f32 0.0, %v2292
      %2294 = vmatmul.f32.gmra.mxu0 %v1666
      %v2295 = vpop.f32.mrf.mxu0
      %v2296 = vadd.f32 0.0, %v2295
      %2297 = vmatmul.f32.gmra.mxu0 %v1667
      %v2298 = vpop.f32.mrf.mxu0
      %v2299 = vadd.f32 0.0, %v2298
      %2300 = vmatmul.f32.gmra.mxu0 %v1668
      %v2301 = vpop.f32.mrf.mxu0
      %v2302 = vadd.f32 0.0, %v2301
      %2303 = vmatmul.f32.gmra.mxu0 %v1669
      %v2304 = vpop.f32.mrf.mxu0
      %v2305 = vadd.f32 0.0, %v2304
      %2306 = vmatmul.f32.gmra.mxu0 %v1670
      %v2307 = vpop.f32.mrf.mxu0
      %v2308 = vadd.f32 0.0, %v2307
      %2309 = vmatmul.f32.gmra.mxu0 %v1671
      %v2310 = vpop.f32.mrf.mxu0
      %v2311 = vadd.f32 0.0, %v2310
      %2312 = vmatmul.f32.gmra.mxu0 %v1672
      %v2313 = vpop.f32.mrf.mxu0
      %v2314 = vadd.f32 0.0, %v2313
      %2315 = vmatmul.f32.gmra.mxu0 %v1673
      %v2316 = vpop.f32.mrf.mxu0
      %v2317 = vadd.f32 0.0, %v2316
      %2318 = vmatmul.f32.gmra.mxu0 %v1674
      %v2319 = vpop.f32.mrf.mxu0
      %v2320 = vadd.f32 0.0, %v2319
      %2321 = vmatmul.f32.gmra.mxu0 %v1675
      %v2322 = vpop.f32.mrf.mxu0
      %v2323 = vadd.f32 0.0, %v2322
      %2324 = vmatmul.f32.gmra.mxu0 %v1676
      %v2325 = vpop.f32.mrf.mxu0
      %v2326 = vadd.f32 0.0, %v2325
      %2327 = vmatmul.f32.gmra.mxu0 %v1677
      %v2328 = vpop.f32.mrf.mxu0
      %v2329 = vadd.f32 0.0, %v2328
      %2330 = vmatmul.f32.gmra.mxu0 %v1678
      %v2331 = vpop.f32.mrf.mxu0
      %v2332 = vadd.f32 0.0, %v2331
      %2333 = vmatmul.f32.gmra.mxu0 %v1679
      %v2334 = vpop.f32.mrf.mxu0
      %v2335 = vadd.f32 0.0, %v2334
      %2336 = vmatmul.f32.gmra.mxu0 %v1680
      %v2337 = vpop.f32.mrf.mxu0
      %v2338 = vadd.f32 0.0, %v2337
      %2339 = vmatmul.f32.gmra.mxu0 %v1681
      %v2340 = vpop.f32.mrf.mxu0
      %v2341 = vadd.f32 0.0, %v2340
      %2342 = vmatmul.f32.gmra.mxu0 %v1682
      %v2343 = vpop.f32.mrf.mxu0
      %v2344 = vadd.f32 0.0, %v2343
      %2345 = vmatmul.f32.gmra.mxu0 %v1683
      %v2346 = vpop.f32.mrf.mxu0
      %v2347 = vadd.f32 0.0, %v2346
      %2348 = vmatmul.f32.gmra.mxu0 %v1684
      %v2349 = vpop.f32.mrf.mxu0
      %v2350 = vadd.f32 0.0, %v2349
      %2351 = vmatmul.f32.gmra.mxu0 %v1685
      %v2352 = vpop.f32.mrf.mxu0
      %v2353 = vadd.f32 0.0, %v2352
      %2354 = vmatmul.f32.gmra.mxu0 %v1686
      %v2355 = vpop.f32.mrf.mxu0
      %v2356 = vadd.f32 0.0, %v2355
      %2357 = vmatmul.f32.gmra.mxu0 %v1687
      %v2358 = vpop.f32.mrf.mxu0
      %v2359 = vadd.f32 0.0, %v2358
      %2360 = vmatmul.f32.gmra.mxu0 %v1688
      %v2361 = vpop.f32.mrf.mxu0
      %v2362 = vadd.f32 0.0, %v2361
      %2363 = vmatmul.f32.gmra.mxu0 %v1689
      %v2364 = vpop.f32.mrf.mxu0
      %v2365 = vadd.f32 0.0, %v2364
      %2366 = vmatmul.f32.gmra.mxu0 %v1690
      %v2367 = vpop.f32.mrf.mxu0
      %v2368 = vadd.f32 0.0, %v2367
      %2369 = vmatmul.f32.gmra.mxu0 %v1691
      %v2370 = vpop.f32.mrf.mxu0
      %v2371 = vadd.f32 0.0, %v2370
      %2372 = vmatmul.f32.gmra.mxu0 %v1692
      %v2373 = vpop.f32.mrf.mxu0
      %v2374 = vadd.f32 0.0, %v2373
      %2375 = vmatmul.f32.gmra.mxu0 %v1693
      %v2376 = vpop.f32.mrf.mxu0
      %v2377 = vadd.f32 0.0, %v2376
      %2378 = vmatmul.f32.gmra.mxu0 %v1694
      %v2379 = vpop.f32.mrf.mxu0
      %v2380 = vadd.f32 0.0, %v2379
      %2381 = vmatmul.f32.gmra.mxu0 %v1695
      %v2382 = vpop.f32.mrf.mxu0
      %v2383 = vadd.f32 0.0, %v2382
      %2384 = vmatmul.f32.gmra.mxu0 %v1696
      %v2385 = vpop.f32.mrf.mxu0
      %v2386 = vadd.f32 0.0, %v2385
      %2387 = vmatmul.f32.gmra.mxu0 %v1697
      %v2388 = vpop.f32.mrf.mxu0
      %v2389 = vadd.f32 0.0, %v2388
      %2390 = vmatmul.f32.gmra.mxu0 %v1698
      %v2391 = vpop.f32.mrf.mxu0
      %v2392 = vadd.f32 0.0, %v2391
      %2393 = vmatmul.f32.gmra.mxu0 %v1699
      %v2394 = vpop.f32.mrf.mxu0
      %v2395 = vadd.f32 0.0, %v2394
      %2396 = vmatmul.f32.gmra.mxu0 %v1700
      %v2397 = vpop.f32.mrf.mxu0
      %v2398 = vadd.f32 0.0, %v2397
      %2399 = vmatmul.f32.gmra.mxu0 %v1701
      %v2400 = vpop.f32.mrf.mxu0
      %v2401 = vadd.f32 0.0, %v2400
      %2402 = vmatmul.f32.gmra.mxu0 %v1702
      %v2403 = vpop.f32.mrf.mxu0
      %v2404 = vadd.f32 0.0, %v2403
      %2405 = vmatmul.f32.gmra.mxu0 %v1703
      %v2406 = vpop.f32.mrf.mxu0
      %v2407 = vadd.f32 0.0, %v2406
      %2408 = vmatmul.f32.gmra.mxu0 %v1704
      %v2409 = vpop.f32.mrf.mxu0
      %v2410 = vadd.f32 0.0, %v2409
      %2411 = vmatmul.f32.gmra.mxu0 %v1705
      %v2412 = vpop.f32.mrf.mxu0
      %v2413 = vadd.f32 0.0, %v2412
      %2414 = vmatmul.f32.gmra.mxu0 %v1706
      %v2415 = vpop.f32.mrf.mxu0
      %v2416 = vadd.f32 0.0, %v2415
      %2417 = vmatmul.f32.gmra.mxu0 %v1707
      %v2418 = vpop.f32.mrf.mxu0
      %v2419 = vadd.f32 0.0, %v2418
      %2420 = vmatmul.f32.gmra.mxu0 %v1708
      %v2421 = vpop.f32.mrf.mxu0
      %v2422 = vadd.f32 0.0, %v2421
      %2423 = vmatmul.f32.gmra.mxu0 %v1709
      %v2424 = vpop.f32.mrf.mxu0
      %v2425 = vadd.f32 0.0, %v2424
      %2426 = vmatmul.f32.gmra.mxu0 %v1710
      %v2427 = vpop.f32.mrf.mxu0
      %v2428 = vadd.f32 0.0, %v2427
      %2429 = vmatmul.f32.gmra.mxu0 %v1711
      %v2430 = vpop.f32.mrf.mxu0
      %v2431 = vadd.f32 0.0, %v2430
      %2432 = vmatmul.f32.gmra.mxu0 %v1712
      %v2433 = vpop.f32.mrf.mxu0
      %v2434 = vadd.f32 0.0, %v2433
      %2435 = vmatmul.f32.gmra.mxu0 %v1713
      %v2436 = vpop.f32.mrf.mxu0
      %v2437 = vadd.f32 0.0, %v2436
      %2438 = vmatmul.f32.gmra.mxu0 %v1714
      %v2439 = vpop.f32.mrf.mxu0
      %v2440 = vadd.f32 0.0, %v2439
      %2441 = vmatmul.f32.gmra.mxu0 %v1715
      %v2442 = vpop.f32.mrf.mxu0
      %v2443 = vadd.f32 0.0, %v2442
      %2444 = vmatmul.f32.gmra.mxu0 %v1716
      %v2445 = vpop.f32.mrf.mxu0
      %v2446 = vadd.f32 0.0, %v2445
      %2447 = vmatmul.f32.gmra.mxu0 %v1717
      %v2448 = vpop.f32.mrf.mxu0
      %v2449 = vadd.f32 0.0, %v2448
      %2450 = vmatmul.f32.gmra.mxu0 %v1718
      %v2451 = vpop.f32.mrf.mxu0
      %v2452 = vadd.f32 0.0, %v2451
      %2453 = vmatmul.f32.gmra.mxu0 %v1719
      %v2454 = vpop.f32.mrf.mxu0
      %v2455 = vadd.f32 0.0, %v2454
      %2456 = vmatmul.f32.gmra.mxu0 %v1720
      %v2457 = vpop.f32.mrf.mxu0
      %v2458 = vadd.f32 0.0, %v2457
      %2459 = vmatmul.f32.gmra.mxu0 %v1721
      %v2460 = vpop.f32.mrf.mxu0
      %v2461 = vadd.f32 0.0, %v2460
      %2462 = vmatmul.f32.gmra.mxu0 %v1722
      %v2463 = vpop.f32.mrf.mxu0
      %v2464 = vadd.f32 0.0, %v2463
      %2465 = vmatmul.f32.gmra.mxu0 %v1723
      %v2466 = vpop.f32.mrf.mxu0
      %v2467 = vadd.f32 0.0, %v2466
      %2468 = vmatmul.f32.gmra.mxu0 %v1724
      %v2469 = vpop.f32.mrf.mxu0
      %v2470 = vadd.f32 0.0, %v2469
      %2471 = vmatmul.f32.gmra.mxu0 %v1725
      %v2472 = vpop.f32.mrf.mxu0
      %v2473 = vadd.f32 0.0, %v2472
      %2474 = vmatmul.f32.gmra.mxu0 %v1726
      %v2475 = vpop.f32.mrf.mxu0
      %v2476 = vadd.f32 0.0, %v2475
      %2477 = vmatmul.f32.gmra.mxu0 %v1727
      %v2478 = vpop.f32.mrf.mxu0
      %v2479 = vadd.f32 0.0, %v2478
      %2480 = vmatmul.f32.gmra.mxu0 %v1728
      %v2481 = vpop.f32.mrf.mxu0
      %v2482 = vadd.f32 0.0, %v2481
      %2483 = vdwg.mxu0
      %2484 = vmatpush.msra.mxu0 %v1852
      %2485 = vmatpush.msra.mxu0 %v1844
      %2486 = vmatpush.msra.mxu0 %v1836
      %2487 = vmatpush.msra.mxu0 %v1828
      %2488 = vmatpush.msra.mxu0 %v1820
      %2489 = vmatpush.msra.mxu0 %v1812
      %2490 = vmatpush.msra.mxu0 %v1804
      %2491 = vmatpush.msra.mxu0 %v1796
      %2492 = vmatpush.msra.mxu0 %v1788
      %2493 = vmatpush.msra.mxu0 %v1780
      %2494 = vmatpush.msra.mxu0 %v1772
      %2495 = vmatpush.msra.mxu0 %v1764
      %2496 = vmatpush.msra.mxu0 %v1756
      %2497 = vmatpush.msra.mxu0 %v1748
      %2498 = vmatpush.msra.mxu0 %v1740
      %2499 = vmatpush.msra.mxu0 %v1732
      %2500 = vmatmul.f32.gmra.mxu0 %v1665
      %v2501 = vpop.f32.mrf.mxu0
      %v2502 = vadd.f32 0.0, %v2501
      %2503 = vmatmul.f32.gmra.mxu0 %v1666
      %v2504 = vpop.f32.mrf.mxu0
      %v2505 = vadd.f32 0.0, %v2504
      %2506 = vmatmul.f32.gmra.mxu0 %v1667
      %v2507 = vpop.f32.mrf.mxu0
      %v2508 = vadd.f32 0.0, %v2507
      %2509 = vmatmul.f32.gmra.mxu0 %v1668
      %v2510 = vpop.f32.mrf.mxu0
      %v2511 = vadd.f32 0.0, %v2510
      %2512 = vmatmul.f32.gmra.mxu0 %v1669
      %v2513 = vpop.f32.mrf.mxu0
      %v2514 = vadd.f32 0.0, %v2513
      %2515 = vmatmul.f32.gmra.mxu0 %v1670
      %v2516 = vpop.f32.mrf.mxu0
      %v2517 = vadd.f32 0.0, %v2516
      %2518 = vmatmul.f32.gmra.mxu0 %v1671
      %v2519 = vpop.f32.mrf.mxu0
      %v2520 = vadd.f32 0.0, %v2519
      %2521 = vmatmul.f32.gmra.mxu0 %v1672
      %v2522 = vpop.f32.mrf.mxu0
      %v2523 = vadd.f32 0.0, %v2522
      %2524 = vmatmul.f32.gmra.mxu0 %v1673
      %v2525 = vpop.f32.mrf.mxu0
      %v2526 = vadd.f32 0.0, %v2525
      %2527 = vmatmul.f32.gmra.mxu0 %v1674
      %v2528 = vpop.f32.mrf.mxu0
      %v2529 = vadd.f32 0.0, %v2528
      %2530 = vmatmul.f32.gmra.mxu0 %v1675
      %v2531 = vpop.f32.mrf.mxu0
      %v2532 = vadd.f32 0.0, %v2531
      %2533 = vmatmul.f32.gmra.mxu0 %v1676
      %v2534 = vpop.f32.mrf.mxu0
      %v2535 = vadd.f32 0.0, %v2534
      %2536 = vmatmul.f32.gmra.mxu0 %v1677
      %v2537 = vpop.f32.mrf.mxu0
      %v2538 = vadd.f32 0.0, %v2537
      %2539 = vmatmul.f32.gmra.mxu0 %v1678
      %v2540 = vpop.f32.mrf.mxu0
      %v2541 = vadd.f32 0.0, %v2540
      %2542 = vmatmul.f32.gmra.mxu0 %v1679
      %v2543 = vpop.f32.mrf.mxu0
      %v2544 = vadd.f32 0.0, %v2543
      %2545 = vmatmul.f32.gmra.mxu0 %v1680
      %v2546 = vpop.f32.mrf.mxu0
      %v2547 = vadd.f32 0.0, %v2546
      %2548 = vmatmul.f32.gmra.mxu0 %v1681
      %v2549 = vpop.f32.mrf.mxu0
      %v2550 = vadd.f32 0.0, %v2549
      %2551 = vmatmul.f32.gmra.mxu0 %v1682
      %v2552 = vpop.f32.mrf.mxu0
      %v2553 = vadd.f32 0.0, %v2552
      %2554 = vmatmul.f32.gmra.mxu0 %v1683
      %v2555 = vpop.f32.mrf.mxu0
      %v2556 = vadd.f32 0.0, %v2555
      %2557 = vmatmul.f32.gmra.mxu0 %v1684
      %v2558 = vpop.f32.mrf.mxu0
      %v2559 = vadd.f32 0.0, %v2558
      %2560 = vmatmul.f32.gmra.mxu0 %v1685
      %v2561 = vpop.f32.mrf.mxu0
      %v2562 = vadd.f32 0.0, %v2561
      %2563 = vmatmul.f32.gmra.mxu0 %v1686
      %v2564 = vpop.f32.mrf.mxu0
      %v2565 = vadd.f32 0.0, %v2564
      %2566 = vmatmul.f32.gmra.mxu0 %v1687
      %v2567 = vpop.f32.mrf.mxu0
      %v2568 = vadd.f32 0.0, %v2567
      %2569 = vmatmul.f32.gmra.mxu0 %v1688
      %v2570 = vpop.f32.mrf.mxu0
      %v2571 = vadd.f32 0.0, %v2570
      %2572 = vmatmul.f32.gmra.mxu0 %v1689
      %v2573 = vpop.f32.mrf.mxu0
      %v2574 = vadd.f32 0.0, %v2573
      %2575 = vmatmul.f32.gmra.mxu0 %v1690
      %v2576 = vpop.f32.mrf.mxu0
      %v2577 = vadd.f32 0.0, %v2576
      %2578 = vmatmul.f32.gmra.mxu0 %v1691
      %v2579 = vpop.f32.mrf.mxu0
      %v2580 = vadd.f32 0.0, %v2579
      %2581 = vmatmul.f32.gmra.mxu0 %v1692
      %v2582 = vpop.f32.mrf.mxu0
      %v2583 = vadd.f32 0.0, %v2582
      %2584 = vmatmul.f32.gmra.mxu0 %v1693
      %v2585 = vpop.f32.mrf.mxu0
      %v2586 = vadd.f32 0.0, %v2585
      %2587 = vmatmul.f32.gmra.mxu0 %v1694
      %v2588 = vpop.f32.mrf.mxu0
      %v2589 = vadd.f32 0.0, %v2588
      %2590 = vmatmul.f32.gmra.mxu0 %v1695
      %v2591 = vpop.f32.mrf.mxu0
      %v2592 = vadd.f32 0.0, %v2591
      %2593 = vmatmul.f32.gmra.mxu0 %v1696
      %v2594 = vpop.f32.mrf.mxu0
      %v2595 = vadd.f32 0.0, %v2594
      %2596 = vmatmul.f32.gmra.mxu0 %v1697
      %v2597 = vpop.f32.mrf.mxu0
      %v2598 = vadd.f32 0.0, %v2597
      %2599 = vmatmul.f32.gmra.mxu0 %v1698
      %v2600 = vpop.f32.mrf.mxu0
      %v2601 = vadd.f32 0.0, %v2600
      %2602 = vmatmul.f32.gmra.mxu0 %v1699
      %v2603 = vpop.f32.mrf.mxu0
      %v2604 = vadd.f32 0.0, %v2603
      %2605 = vmatmul.f32.gmra.mxu0 %v1700
      %v2606 = vpop.f32.mrf.mxu0
      %v2607 = vadd.f32 0.0, %v2606
      %2608 = vmatmul.f32.gmra.mxu0 %v1701
      %v2609 = vpop.f32.mrf.mxu0
      %v2610 = vadd.f32 0.0, %v2609
      %2611 = vmatmul.f32.gmra.mxu0 %v1702
      %v2612 = vpop.f32.mrf.mxu0
      %v2613 = vadd.f32 0.0, %v2612
      %2614 = vmatmul.f32.gmra.mxu0 %v1703
      %v2615 = vpop.f32.mrf.mxu0
      %v2616 = vadd.f32 0.0, %v2615
      %2617 = vmatmul.f32.gmra.mxu0 %v1704
      %v2618 = vpop.f32.mrf.mxu0
      %v2619 = vadd.f32 0.0, %v2618
      %2620 = vmatmul.f32.gmra.mxu0 %v1705
      %v2621 = vpop.f32.mrf.mxu0
      %v2622 = vadd.f32 0.0, %v2621
      %2623 = vmatmul.f32.gmra.mxu0 %v1706
      %v2624 = vpop.f32.mrf.mxu0
      %v2625 = vadd.f32 0.0, %v2624
      %2626 = vmatmul.f32.gmra.mxu0 %v1707
      %v2627 = vpop.f32.mrf.mxu0
      %v2628 = vadd.f32 0.0, %v2627
      %2629 = vmatmul.f32.gmra.mxu0 %v1708
      %v2630 = vpop.f32.mrf.mxu0
      %v2631 = vadd.f32 0.0, %v2630
      %2632 = vmatmul.f32.gmra.mxu0 %v1709
      %v2633 = vpop.f32.mrf.mxu0
      %v2634 = vadd.f32 0.0, %v2633
      %2635 = vmatmul.f32.gmra.mxu0 %v1710
      %v2636 = vpop.f32.mrf.mxu0
      %v2637 = vadd.f32 0.0, %v2636
      %2638 = vmatmul.f32.gmra.mxu0 %v1711
      %v2639 = vpop.f32.mrf.mxu0
      %v2640 = vadd.f32 0.0, %v2639
      %2641 = vmatmul.f32.gmra.mxu0 %v1712
      %v2642 = vpop.f32.mrf.mxu0
      %v2643 = vadd.f32 0.0, %v2642
      %2644 = vmatmul.f32.gmra.mxu0 %v1713
      %v2645 = vpop.f32.mrf.mxu0
      %v2646 = vadd.f32 0.0, %v2645
      %2647 = vmatmul.f32.gmra.mxu0 %v1714
      %v2648 = vpop.f32.mrf.mxu0
      %v2649 = vadd.f32 0.0, %v2648
      %2650 = vmatmul.f32.gmra.mxu0 %v1715
      %v2651 = vpop.f32.mrf.mxu0
      %v2652 = vadd.f32 0.0, %v2651
      %2653 = vmatmul.f32.gmra.mxu0 %v1716
      %v2654 = vpop.f32.mrf.mxu0
      %v2655 = vadd.f32 0.0, %v2654
      %2656 = vmatmul.f32.gmra.mxu0 %v1717
      %v2657 = vpop.f32.mrf.mxu0
      %v2658 = vadd.f32 0.0, %v2657
      %2659 = vmatmul.f32.gmra.mxu0 %v1718
      %v2660 = vpop.f32.mrf.mxu0
      %v2661 = vadd.f32 0.0, %v2660
      %2662 = vmatmul.f32.gmra.mxu0 %v1719
      %v2663 = vpop.f32.mrf.mxu0
      %v2664 = vadd.f32 0.0, %v2663
      %2665 = vmatmul.f32.gmra.mxu0 %v1720
      %v2666 = vpop.f32.mrf.mxu0
      %v2667 = vadd.f32 0.0, %v2666
      %2668 = vmatmul.f32.gmra.mxu0 %v1721
      %v2669 = vpop.f32.mrf.mxu0
      %v2670 = vadd.f32 0.0, %v2669
      %2671 = vmatmul.f32.gmra.mxu0 %v1722
      %v2672 = vpop.f32.mrf.mxu0
      %v2673 = vadd.f32 0.0, %v2672
      %2674 = vmatmul.f32.gmra.mxu0 %v1723
      %v2675 = vpop.f32.mrf.mxu0
      %v2676 = vadd.f32 0.0, %v2675
      %2677 = vmatmul.f32.gmra.mxu0 %v1724
      %v2678 = vpop.f32.mrf.mxu0
      %v2679 = vadd.f32 0.0, %v2678
      %2680 = vmatmul.f32.gmra.mxu0 %v1725
      %v2681 = vpop.f32.mrf.mxu0
      %v2682 = vadd.f32 0.0, %v2681
      %2683 = vmatmul.f32.gmra.mxu0 %v1726
      %v2684 = vpop.f32.mrf.mxu0
      %v2685 = vadd.f32 0.0, %v2684
      %2686 = vmatmul.f32.gmra.mxu0 %v1727
      %v2687 = vpop.f32.mrf.mxu0
      %v2688 = vadd.f32 0.0, %v2687
      %2689 = vmatmul.f32.gmra.mxu0 %v1728
      %v2690 = vpop.f32.mrf.mxu0
      %v2691 = vadd.f32 0.0, %v2690
      %2692 = vdwg.mxu0
      %2693 = vmatpush.msra.mxu0 %v1853
      %2694 = vmatpush.msra.mxu0 %v1845
      %2695 = vmatpush.msra.mxu0 %v1837
      %2696 = vmatpush.msra.mxu0 %v1829
      %2697 = vmatpush.msra.mxu0 %v1821
      %2698 = vmatpush.msra.mxu0 %v1813
      %2699 = vmatpush.msra.mxu0 %v1805
      %2700 = vmatpush.msra.mxu0 %v1797
      %2701 = vmatpush.msra.mxu0 %v1789
      %2702 = vmatpush.msra.mxu0 %v1781
      %2703 = vmatpush.msra.mxu0 %v1773
      %2704 = vmatpush.msra.mxu0 %v1765
      %2705 = vmatpush.msra.mxu0 %v1757
      %2706 = vmatpush.msra.mxu0 %v1749
      %2707 = vmatpush.msra.mxu0 %v1741
      %2708 = vmatpush.msra.mxu0 %v1733
      %2709 = vmatmul.f32.gmra.mxu0 %v1665
      %v2710 = vpop.f32.mrf.mxu0
      %v2711 = vadd.f32 0.0, %v2710
      %2712 = vmatmul.f32.gmra.mxu0 %v1666
      %v2713 = vpop.f32.mrf.mxu0
      %v2714 = vadd.f32 0.0, %v2713
      %2715 = vmatmul.f32.gmra.mxu0 %v1667
      %v2716 = vpop.f32.mrf.mxu0
      %v2717 = vadd.f32 0.0, %v2716
      %2718 = vmatmul.f32.gmra.mxu0 %v1668
      %v2719 = vpop.f32.mrf.mxu0
      %v2720 = vadd.f32 0.0, %v2719
      %2721 = vmatmul.f32.gmra.mxu0 %v1669
      %v2722 = vpop.f32.mrf.mxu0
      %v2723 = vadd.f32 0.0, %v2722
      %2724 = vmatmul.f32.gmra.mxu0 %v1670
      %v2725 = vpop.f32.mrf.mxu0
      %v2726 = vadd.f32 0.0, %v2725
      %2727 = vmatmul.f32.gmra.mxu0 %v1671
      %v2728 = vpop.f32.mrf.mxu0
      %v2729 = vadd.f32 0.0, %v2728
      %2730 = vmatmul.f32.gmra.mxu0 %v1672
      %v2731 = vpop.f32.mrf.mxu0
      %v2732 = vadd.f32 0.0, %v2731
      %2733 = vmatmul.f32.gmra.mxu0 %v1673
      %v2734 = vpop.f32.mrf.mxu0
      %v2735 = vadd.f32 0.0, %v2734
      %2736 = vmatmul.f32.gmra.mxu0 %v1674
      %v2737 = vpop.f32.mrf.mxu0
      %v2738 = vadd.f32 0.0, %v2737
      %2739 = vmatmul.f32.gmra.mxu0 %v1675
      %v2740 = vpop.f32.mrf.mxu0
      %v2741 = vadd.f32 0.0, %v2740
      %2742 = vmatmul.f32.gmra.mxu0 %v1676
      %v2743 = vpop.f32.mrf.mxu0
      %v2744 = vadd.f32 0.0, %v2743
      %2745 = vmatmul.f32.gmra.mxu0 %v1677
      %v2746 = vpop.f32.mrf.mxu0
      %v2747 = vadd.f32 0.0, %v2746
      %2748 = vmatmul.f32.gmra.mxu0 %v1678
      %v2749 = vpop.f32.mrf.mxu0
      %v2750 = vadd.f32 0.0, %v2749
      %2751 = vmatmul.f32.gmra.mxu0 %v1679
      %v2752 = vpop.f32.mrf.mxu0
      %v2753 = vadd.f32 0.0, %v2752
      %2754 = vmatmul.f32.gmra.mxu0 %v1680
      %v2755 = vpop.f32.mrf.mxu0
      %v2756 = vadd.f32 0.0, %v2755
      %2757 = vmatmul.f32.gmra.mxu0 %v1681
      %v2758 = vpop.f32.mrf.mxu0
      %v2759 = vadd.f32 0.0, %v2758
      %2760 = vmatmul.f32.gmra.mxu0 %v1682
      %v2761 = vpop.f32.mrf.mxu0
      %v2762 = vadd.f32 0.0, %v2761
      %2763 = vmatmul.f32.gmra.mxu0 %v1683
      %v2764 = vpop.f32.mrf.mxu0
      %v2765 = vadd.f32 0.0, %v2764
      %2766 = vmatmul.f32.gmra.mxu0 %v1684
      %v2767 = vpop.f32.mrf.mxu0
      %v2768 = vadd.f32 0.0, %v2767
      %2769 = vmatmul.f32.gmra.mxu0 %v1685
      %v2770 = vpop.f32.mrf.mxu0
      %v2771 = vadd.f32 0.0, %v2770
      %2772 = vmatmul.f32.gmra.mxu0 %v1686
      %v2773 = vpop.f32.mrf.mxu0
      %v2774 = vadd.f32 0.0, %v2773
      %2775 = vmatmul.f32.gmra.mxu0 %v1687
      %v2776 = vpop.f32.mrf.mxu0
      %v2777 = vadd.f32 0.0, %v2776
      %2778 = vmatmul.f32.gmra.mxu0 %v1688
      %v2779 = vpop.f32.mrf.mxu0
      %v2780 = vadd.f32 0.0, %v2779
      %2781 = vmatmul.f32.gmra.mxu0 %v1689
      %v2782 = vpop.f32.mrf.mxu0
      %v2783 = vadd.f32 0.0, %v2782
      %2784 = vmatmul.f32.gmra.mxu0 %v1690
      %v2785 = vpop.f32.mrf.mxu0
      %v2786 = vadd.f32 0.0, %v2785
      %2787 = vmatmul.f32.gmra.mxu0 %v1691
      %v2788 = vpop.f32.mrf.mxu0
      %v2789 = vadd.f32 0.0, %v2788
      %2790 = vmatmul.f32.gmra.mxu0 %v1692
      %v2791 = vpop.f32.mrf.mxu0
      %v2792 = vadd.f32 0.0, %v2791
      %2793 = vmatmul.f32.gmra.mxu0 %v1693
      %v2794 = vpop.f32.mrf.mxu0
      %v2795 = vadd.f32 0.0, %v2794
      %2796 = vmatmul.f32.gmra.mxu0 %v1694
      %v2797 = vpop.f32.mrf.mxu0
      %v2798 = vadd.f32 0.0, %v2797
      %2799 = vmatmul.f32.gmra.mxu0 %v1695
      %v2800 = vpop.f32.mrf.mxu0
      %v2801 = vadd.f32 0.0, %v2800
      %2802 = vmatmul.f32.gmra.mxu0 %v1696
      %v2803 = vpop.f32.mrf.mxu0
      %v2804 = vadd.f32 0.0, %v2803
      %2805 = vmatmul.f32.gmra.mxu0 %v1697
      %v2806 = vpop.f32.mrf.mxu0
      %v2807 = vadd.f32 0.0, %v2806
      %2808 = vmatmul.f32.gmra.mxu0 %v1698
      %v2809 = vpop.f32.mrf.mxu0
      %v2810 = vadd.f32 0.0, %v2809
      %2811 = vmatmul.f32.gmra.mxu0 %v1699
      %v2812 = vpop.f32.mrf.mxu0
      %v2813 = vadd.f32 0.0, %v2812
      %2814 = vmatmul.f32.gmra.mxu0 %v1700
      %v2815 = vpop.f32.mrf.mxu0
      %v2816 = vadd.f32 0.0, %v2815
      %2817 = vmatmul.f32.gmra.mxu0 %v1701
      %v2818 = vpop.f32.mrf.mxu0
      %v2819 = vadd.f32 0.0, %v2818
      %2820 = vmatmul.f32.gmra.mxu0 %v1702
      %v2821 = vpop.f32.mrf.mxu0
      %v2822 = vadd.f32 0.0, %v2821
      %2823 = vmatmul.f32.gmra.mxu0 %v1703
      %v2824 = vpop.f32.mrf.mxu0
      %v2825 = vadd.f32 0.0, %v2824
      %2826 = vmatmul.f32.gmra.mxu0 %v1704
      %v2827 = vpop.f32.mrf.mxu0
      %v2828 = vadd.f32 0.0, %v2827
      %2829 = vmatmul.f32.gmra.mxu0 %v1705
      %v2830 = vpop.f32.mrf.mxu0
      %v2831 = vadd.f32 0.0, %v2830
      %2832 = vmatmul.f32.gmra.mxu0 %v1706
      %v2833 = vpop.f32.mrf.mxu0
      %v2834 = vadd.f32 0.0, %v2833
      %2835 = vmatmul.f32.gmra.mxu0 %v1707
      %v2836 = vpop.f32.mrf.mxu0
      %v2837 = vadd.f32 0.0, %v2836
      %2838 = vmatmul.f32.gmra.mxu0 %v1708
      %v2839 = vpop.f32.mrf.mxu0
      %v2840 = vadd.f32 0.0, %v2839
      %2841 = vmatmul.f32.gmra.mxu0 %v1709
      %v2842 = vpop.f32.mrf.mxu0
      %v2843 = vadd.f32 0.0, %v2842
      %2844 = vmatmul.f32.gmra.mxu0 %v1710
      %v2845 = vpop.f32.mrf.mxu0
      %v2846 = vadd.f32 0.0, %v2845
      %2847 = vmatmul.f32.gmra.mxu0 %v1711
      %v2848 = vpop.f32.mrf.mxu0
      %v2849 = vadd.f32 0.0, %v2848
      %2850 = vmatmul.f32.gmra.mxu0 %v1712
      %v2851 = vpop.f32.mrf.mxu0
      %v2852 = vadd.f32 0.0, %v2851
      %2853 = vmatmul.f32.gmra.mxu0 %v1713
      %v2854 = vpop.f32.mrf.mxu0
      %v2855 = vadd.f32 0.0, %v2854
      %2856 = vmatmul.f32.gmra.mxu0 %v1714
      %v2857 = vpop.f32.mrf.mxu0
      %v2858 = vadd.f32 0.0, %v2857
      %2859 = vmatmul.f32.gmra.mxu0 %v1715
      %v2860 = vpop.f32.mrf.mxu0
      %v2861 = vadd.f32 0.0, %v2860
      %2862 = vmatmul.f32.gmra.mxu0 %v1716
      %v2863 = vpop.f32.mrf.mxu0
      %v2864 = vadd.f32 0.0, %v2863
      %2865 = vmatmul.f32.gmra.mxu0 %v1717
      %v2866 = vpop.f32.mrf.mxu0
      %v2867 = vadd.f32 0.0, %v2866
      %2868 = vmatmul.f32.gmra.mxu0 %v1718
      %v2869 = vpop.f32.mrf.mxu0
      %v2870 = vadd.f32 0.0, %v2869
      %2871 = vmatmul.f32.gmra.mxu0 %v1719
      %v2872 = vpop.f32.mrf.mxu0
      %v2873 = vadd.f32 0.0, %v2872
      %2874 = vmatmul.f32.gmra.mxu0 %v1720
      %v2875 = vpop.f32.mrf.mxu0
      %v2876 = vadd.f32 0.0, %v2875
      %2877 = vmatmul.f32.gmra.mxu0 %v1721
      %v2878 = vpop.f32.mrf.mxu0
      %v2879 = vadd.f32 0.0, %v2878
      %2880 = vmatmul.f32.gmra.mxu0 %v1722
      %v2881 = vpop.f32.mrf.mxu0
      %v2882 = vadd.f32 0.0, %v2881
      %2883 = vmatmul.f32.gmra.mxu0 %v1723
      %v2884 = vpop.f32.mrf.mxu0
      %v2885 = vadd.f32 0.0, %v2884
      %2886 = vmatmul.f32.gmra.mxu0 %v1724
      %v2887 = vpop.f32.mrf.mxu0
      %v2888 = vadd.f32 0.0, %v2887
      %2889 = vmatmul.f32.gmra.mxu0 %v1725
      %v2890 = vpop.f32.mrf.mxu0
      %v2891 = vadd.f32 0.0, %v2890
      %2892 = vmatmul.f32.gmra.mxu0 %v1726
      %v2893 = vpop.f32.mrf.mxu0
      %v2894 = vadd.f32 0.0, %v2893
      %2895 = vmatmul.f32.gmra.mxu0 %v1727
      %v2896 = vpop.f32.mrf.mxu0
      %v2897 = vadd.f32 0.0, %v2896
      %2898 = vmatmul.f32.gmra.mxu0 %v1728
      %v2899 = vpop.f32.mrf.mxu0
      %v2900 = vadd.f32 0.0, %v2899
      %2901 = vdwg.mxu0
      %2902 = vmatpush.msra.mxu0 %v1854
      %2903 = vmatpush.msra.mxu0 %v1846
      %2904 = vmatpush.msra.mxu0 %v1838
      %2905 = vmatpush.msra.mxu0 %v1830
      %2906 = vmatpush.msra.mxu0 %v1822
      %2907 = vmatpush.msra.mxu0 %v1814
      %2908 = vmatpush.msra.mxu0 %v1806
      %2909 = vmatpush.msra.mxu0 %v1798
      %2910 = vmatpush.msra.mxu0 %v1790
      %2911 = vmatpush.msra.mxu0 %v1782
      %2912 = vmatpush.msra.mxu0 %v1774
      %2913 = vmatpush.msra.mxu0 %v1766
      %2914 = vmatpush.msra.mxu0 %v1758
      %2915 = vmatpush.msra.mxu0 %v1750
      %2916 = vmatpush.msra.mxu0 %v1742
      %2917 = vmatpush.msra.mxu0 %v1734
      %2918 = vmatmul.f32.gmra.mxu0 %v1665
      %v2919 = vpop.f32.mrf.mxu0
      %v2920 = vadd.f32 0.0, %v2919
      %2921 = vmatmul.f32.gmra.mxu0 %v1666
      %v2922 = vpop.f32.mrf.mxu0
      %v2923 = vadd.f32 0.0, %v2922
      %2924 = vmatmul.f32.gmra.mxu0 %v1667
      %v2925 = vpop.f32.mrf.mxu0
      %v2926 = vadd.f32 0.0, %v2925
      %2927 = vmatmul.f32.gmra.mxu0 %v1668
      %v2928 = vpop.f32.mrf.mxu0
      %v2929 = vadd.f32 0.0, %v2928
      %2930 = vmatmul.f32.gmra.mxu0 %v1669
      %v2931 = vpop.f32.mrf.mxu0
      %v2932 = vadd.f32 0.0, %v2931
      %2933 = vmatmul.f32.gmra.mxu0 %v1670
      %v2934 = vpop.f32.mrf.mxu0
      %v2935 = vadd.f32 0.0, %v2934
      %2936 = vmatmul.f32.gmra.mxu0 %v1671
      %v2937 = vpop.f32.mrf.mxu0
      %v2938 = vadd.f32 0.0, %v2937
      %2939 = vmatmul.f32.gmra.mxu0 %v1672
      %v2940 = vpop.f32.mrf.mxu0
      %v2941 = vadd.f32 0.0, %v2940
      %2942 = vmatmul.f32.gmra.mxu0 %v1673
      %v2943 = vpop.f32.mrf.mxu0
      %v2944 = vadd.f32 0.0, %v2943
      %2945 = vmatmul.f32.gmra.mxu0 %v1674
      %v2946 = vpop.f32.mrf.mxu0
      %v2947 = vadd.f32 0.0, %v2946
      %2948 = vmatmul.f32.gmra.mxu0 %v1675
      %v2949 = vpop.f32.mrf.mxu0
      %v2950 = vadd.f32 0.0, %v2949
      %2951 = vmatmul.f32.gmra.mxu0 %v1676
      %v2952 = vpop.f32.mrf.mxu0
      %v2953 = vadd.f32 0.0, %v2952
      %2954 = vmatmul.f32.gmra.mxu0 %v1677
      %v2955 = vpop.f32.mrf.mxu0
      %v2956 = vadd.f32 0.0, %v2955
      %2957 = vmatmul.f32.gmra.mxu0 %v1678
      %v2958 = vpop.f32.mrf.mxu0
      %v2959 = vadd.f32 0.0, %v2958
      %2960 = vmatmul.f32.gmra.mxu0 %v1679
      %v2961 = vpop.f32.mrf.mxu0
      %v2962 = vadd.f32 0.0, %v2961
      %2963 = vmatmul.f32.gmra.mxu0 %v1680
      %v2964 = vpop.f32.mrf.mxu0
      %v2965 = vadd.f32 0.0, %v2964
      %2966 = vmatmul.f32.gmra.mxu0 %v1681
      %v2967 = vpop.f32.mrf.mxu0
      %v2968 = vadd.f32 0.0, %v2967
      %2969 = vmatmul.f32.gmra.mxu0 %v1682
      %v2970 = vpop.f32.mrf.mxu0
      %v2971 = vadd.f32 0.0, %v2970
      %2972 = vmatmul.f32.gmra.mxu0 %v1683
      %v2973 = vpop.f32.mrf.mxu0
      %v2974 = vadd.f32 0.0, %v2973
      %2975 = vmatmul.f32.gmra.mxu0 %v1684
      %v2976 = vpop.f32.mrf.mxu0
      %v2977 = vadd.f32 0.0, %v2976
      %2978 = vmatmul.f32.gmra.mxu0 %v1685
      %v2979 = vpop.f32.mrf.mxu0
      %v2980 = vadd.f32 0.0, %v2979
      %2981 = vmatmul.f32.gmra.mxu0 %v1686
      %v2982 = vpop.f32.mrf.mxu0
      %v2983 = vadd.f32 0.0, %v2982
      %2984 = vmatmul.f32.gmra.mxu0 %v1687
      %v2985 = vpop.f32.mrf.mxu0
      %v2986 = vadd.f32 0.0, %v2985
      %2987 = vmatmul.f32.gmra.mxu0 %v1688
      %v2988 = vpop.f32.mrf.mxu0
      %v2989 = vadd.f32 0.0, %v2988
      %2990 = vmatmul.f32.gmra.mxu0 %v1689
      %v2991 = vpop.f32.mrf.mxu0
      %v2992 = vadd.f32 0.0, %v2991
      %2993 = vmatmul.f32.gmra.mxu0 %v1690
      %v2994 = vpop.f32.mrf.mxu0
      %v2995 = vadd.f32 0.0, %v2994
      %2996 = vmatmul.f32.gmra.mxu0 %v1691
      %v2997 = vpop.f32.mrf.mxu0
      %v2998 = vadd.f32 0.0, %v2997
      %2999 = vmatmul.f32.gmra.mxu0 %v1692
      %v3000 = vpop.f32.mrf.mxu0
      %v3001 = vadd.f32 0.0, %v3000
      %3002 = vmatmul.f32.gmra.mxu0 %v1693
      %v3003 = vpop.f32.mrf.mxu0
      %v3004 = vadd.f32 0.0, %v3003
      %3005 = vmatmul.f32.gmra.mxu0 %v1694
      %v3006 = vpop.f32.mrf.mxu0
      %v3007 = vadd.f32 0.0, %v3006
      %3008 = vmatmul.f32.gmra.mxu0 %v1695
      %v3009 = vpop.f32.mrf.mxu0
      %v3010 = vadd.f32 0.0, %v3009
      %3011 = vmatmul.f32.gmra.mxu0 %v1696
      %v3012 = vpop.f32.mrf.mxu0
      %v3013 = vadd.f32 0.0, %v3012
      %3014 = vmatmul.f32.gmra.mxu0 %v1697
      %v3015 = vpop.f32.mrf.mxu0
      %v3016 = vadd.f32 0.0, %v3015
      %3017 = vmatmul.f32.gmra.mxu0 %v1698
      %v3018 = vpop.f32.mrf.mxu0
      %v3019 = vadd.f32 0.0, %v3018
      %3020 = vmatmul.f32.gmra.mxu0 %v1699
      %v3021 = vpop.f32.mrf.mxu0
      %v3022 = vadd.f32 0.0, %v3021
      %3023 = vmatmul.f32.gmra.mxu0 %v1700
      %v3024 = vpop.f32.mrf.mxu0
      %v3025 = vadd.f32 0.0, %v3024
      %3026 = vmatmul.f32.gmra.mxu0 %v1701
      %v3027 = vpop.f32.mrf.mxu0
      %v3028 = vadd.f32 0.0, %v3027
      %3029 = vmatmul.f32.gmra.mxu0 %v1702
      %v3030 = vpop.f32.mrf.mxu0
      %v3031 = vadd.f32 0.0, %v3030
      %3032 = vmatmul.f32.gmra.mxu0 %v1703
      %v3033 = vpop.f32.mrf.mxu0
      %v3034 = vadd.f32 0.0, %v3033
      %3035 = vmatmul.f32.gmra.mxu0 %v1704
      %v3036 = vpop.f32.mrf.mxu0
      %v3037 = vadd.f32 0.0, %v3036
      %3038 = vmatmul.f32.gmra.mxu0 %v1705
      %v3039 = vpop.f32.mrf.mxu0
      %v3040 = vadd.f32 0.0, %v3039
      %3041 = vmatmul.f32.gmra.mxu0 %v1706
      %v3042 = vpop.f32.mrf.mxu0
      %v3043 = vadd.f32 0.0, %v3042
      %3044 = vmatmul.f32.gmra.mxu0 %v1707
      %v3045 = vpop.f32.mrf.mxu0
      %v3046 = vadd.f32 0.0, %v3045
      %3047 = vmatmul.f32.gmra.mxu0 %v1708
      %v3048 = vpop.f32.mrf.mxu0
      %v3049 = vadd.f32 0.0, %v3048
      %3050 = vmatmul.f32.gmra.mxu0 %v1709
      %v3051 = vpop.f32.mrf.mxu0
      %v3052 = vadd.f32 0.0, %v3051
      %3053 = vmatmul.f32.gmra.mxu0 %v1710
      %v3054 = vpop.f32.mrf.mxu0
      %v3055 = vadd.f32 0.0, %v3054
      %3056 = vmatmul.f32.gmra.mxu0 %v1711
      %v3057 = vpop.f32.mrf.mxu0
      %v3058 = vadd.f32 0.0, %v3057
      %3059 = vmatmul.f32.gmra.mxu0 %v1712
      %v3060 = vpop.f32.mrf.mxu0
      %v3061 = vadd.f32 0.0, %v3060
      %3062 = vmatmul.f32.gmra.mxu0 %v1713
      %v3063 = vpop.f32.mrf.mxu0
      %v3064 = vadd.f32 0.0, %v3063
      %3065 = vmatmul.f32.gmra.mxu0 %v1714
      %v3066 = vpop.f32.mrf.mxu0
      %v3067 = vadd.f32 0.0, %v3066
      %3068 = vmatmul.f32.gmra.mxu0 %v1715
      %v3069 = vpop.f32.mrf.mxu0
      %v3070 = vadd.f32 0.0, %v3069
      %3071 = vmatmul.f32.gmra.mxu0 %v1716
      %v3072 = vpop.f32.mrf.mxu0
      %v3073 = vadd.f32 0.0, %v3072
      %3074 = vmatmul.f32.gmra.mxu0 %v1717
      %v3075 = vpop.f32.mrf.mxu0
      %v3076 = vadd.f32 0.0, %v3075
      %3077 = vmatmul.f32.gmra.mxu0 %v1718
      %v3078 = vpop.f32.mrf.mxu0
      %v3079 = vadd.f32 0.0, %v3078
      %3080 = vmatmul.f32.gmra.mxu0 %v1719
      %v3081 = vpop.f32.mrf.mxu0
      %v3082 = vadd.f32 0.0, %v3081
      %3083 = vmatmul.f32.gmra.mxu0 %v1720
      %v3084 = vpop.f32.mrf.mxu0
      %v3085 = vadd.f32 0.0, %v3084
      %3086 = vmatmul.f32.gmra.mxu0 %v1721
      %v3087 = vpop.f32.mrf.mxu0
      %v3088 = vadd.f32 0.0, %v3087
      %3089 = vmatmul.f32.gmra.mxu0 %v1722
      %v3090 = vpop.f32.mrf.mxu0
      %v3091 = vadd.f32 0.0, %v3090
      %3092 = vmatmul.f32.gmra.mxu0 %v1723
      %v3093 = vpop.f32.mrf.mxu0
      %v3094 = vadd.f32 0.0, %v3093
      %3095 = vmatmul.f32.gmra.mxu0 %v1724
      %v3096 = vpop.f32.mrf.mxu0
      %v3097 = vadd.f32 0.0, %v3096
      %3098 = vmatmul.f32.gmra.mxu0 %v1725
      %v3099 = vpop.f32.mrf.mxu0
      %v3100 = vadd.f32 0.0, %v3099
      %3101 = vmatmul.f32.gmra.mxu0 %v1726
      %v3102 = vpop.f32.mrf.mxu0
      %v3103 = vadd.f32 0.0, %v3102
      %3104 = vmatmul.f32.gmra.mxu0 %v1727
      %v3105 = vpop.f32.mrf.mxu0
      %v3106 = vadd.f32 0.0, %v3105
      %3107 = vmatmul.f32.gmra.mxu0 %v1728
      %v3108 = vpop.f32.mrf.mxu0
      %v3109 = vadd.f32 0.0, %v3108
      %3110 = vdwg.mxu0
      %3111 = vmatpush.msra.mxu0 %v1855
      %3112 = vmatpush.msra.mxu0 %v1847
      %3113 = vmatpush.msra.mxu0 %v1839
      %3114 = vmatpush.msra.mxu0 %v1831
      %3115 = vmatpush.msra.mxu0 %v1823
      %3116 = vmatpush.msra.mxu0 %v1815
      %3117 = vmatpush.msra.mxu0 %v1807
      %3118 = vmatpush.msra.mxu0 %v1799
      %3119 = vmatpush.msra.mxu0 %v1791
      %3120 = vmatpush.msra.mxu0 %v1783
      %3121 = vmatpush.msra.mxu0 %v1775
      %3122 = vmatpush.msra.mxu0 %v1767
      %3123 = vmatpush.msra.mxu0 %v1759
      %3124 = vmatpush.msra.mxu0 %v1751
      %3125 = vmatpush.msra.mxu0 %v1743
      %3126 = vmatpush.msra.mxu0 %v1735
      %3127 = vmatmul.f32.gmra.mxu0 %v1665
      %v3128 = vpop.f32.mrf.mxu0
      %v3129 = vadd.f32 0.0, %v3128
      %3130 = vmatmul.f32.gmra.mxu0 %v1666
      %v3131 = vpop.f32.mrf.mxu0
      %v3132 = vadd.f32 0.0, %v3131
      %3133 = vmatmul.f32.gmra.mxu0 %v1667
      %v3134 = vpop.f32.mrf.mxu0
      %v3135 = vadd.f32 0.0, %v3134
      %3136 = vmatmul.f32.gmra.mxu0 %v1668
      %v3137 = vpop.f32.mrf.mxu0
      %v3138 = vadd.f32 0.0, %v3137
      %3139 = vmatmul.f32.gmra.mxu0 %v1669
      %v3140 = vpop.f32.mrf.mxu0
      %v3141 = vadd.f32 0.0, %v3140
      %3142 = vmatmul.f32.gmra.mxu0 %v1670
      %v3143 = vpop.f32.mrf.mxu0
      %v3144 = vadd.f32 0.0, %v3143
      %3145 = vmatmul.f32.gmra.mxu0 %v1671
      %v3146 = vpop.f32.mrf.mxu0
      %v3147 = vadd.f32 0.0, %v3146
      %3148 = vmatmul.f32.gmra.mxu0 %v1672
      %v3149 = vpop.f32.mrf.mxu0
      %v3150 = vadd.f32 0.0, %v3149
      %3151 = vmatmul.f32.gmra.mxu0 %v1673
      %v3152 = vpop.f32.mrf.mxu0
      %v3153 = vadd.f32 0.0, %v3152
      %3154 = vmatmul.f32.gmra.mxu0 %v1674
      %v3155 = vpop.f32.mrf.mxu0
      %v3156 = vadd.f32 0.0, %v3155
      %3157 = vmatmul.f32.gmra.mxu0 %v1675
      %v3158 = vpop.f32.mrf.mxu0
      %v3159 = vadd.f32 0.0, %v3158
      %3160 = vmatmul.f32.gmra.mxu0 %v1676
      %v3161 = vpop.f32.mrf.mxu0
      %v3162 = vadd.f32 0.0, %v3161
      %3163 = vmatmul.f32.gmra.mxu0 %v1677
      %v3164 = vpop.f32.mrf.mxu0
      %v3165 = vadd.f32 0.0, %v3164
      %3166 = vmatmul.f32.gmra.mxu0 %v1678
      %v3167 = vpop.f32.mrf.mxu0
      %v3168 = vadd.f32 0.0, %v3167
      %3169 = vmatmul.f32.gmra.mxu0 %v1679
      %v3170 = vpop.f32.mrf.mxu0
      %v3171 = vadd.f32 0.0, %v3170
      %3172 = vmatmul.f32.gmra.mxu0 %v1680
      %v3173 = vpop.f32.mrf.mxu0
      %v3174 = vadd.f32 0.0, %v3173
      %3175 = vmatmul.f32.gmra.mxu0 %v1681
      %v3176 = vpop.f32.mrf.mxu0
      %v3177 = vadd.f32 0.0, %v3176
      %3178 = vmatmul.f32.gmra.mxu0 %v1682
      %v3179 = vpop.f32.mrf.mxu0
      %v3180 = vadd.f32 0.0, %v3179
      %3181 = vmatmul.f32.gmra.mxu0 %v1683
      %v3182 = vpop.f32.mrf.mxu0
      %v3183 = vadd.f32 0.0, %v3182
      %3184 = vmatmul.f32.gmra.mxu0 %v1684
      %v3185 = vpop.f32.mrf.mxu0
      %v3186 = vadd.f32 0.0, %v3185
      %3187 = vmatmul.f32.gmra.mxu0 %v1685
      %v3188 = vpop.f32.mrf.mxu0
      %v3189 = vadd.f32 0.0, %v3188
      %3190 = vmatmul.f32.gmra.mxu0 %v1686
      %v3191 = vpop.f32.mrf.mxu0
      %v3192 = vadd.f32 0.0, %v3191
      %3193 = vmatmul.f32.gmra.mxu0 %v1687
      %v3194 = vpop.f32.mrf.mxu0
      %v3195 = vadd.f32 0.0, %v3194
      %3196 = vmatmul.f32.gmra.mxu0 %v1688
      %v3197 = vpop.f32.mrf.mxu0
      %v3198 = vadd.f32 0.0, %v3197
      %3199 = vmatmul.f32.gmra.mxu0 %v1689
      %v3200 = vpop.f32.mrf.mxu0
      %v3201 = vadd.f32 0.0, %v3200
      %3202 = vmatmul.f32.gmra.mxu0 %v1690
      %v3203 = vpop.f32.mrf.mxu0
      %v3204 = vadd.f32 0.0, %v3203
      %3205 = vmatmul.f32.gmra.mxu0 %v1691
      %v3206 = vpop.f32.mrf.mxu0
      %v3207 = vadd.f32 0.0, %v3206
      %3208 = vmatmul.f32.gmra.mxu0 %v1692
      %v3209 = vpop.f32.mrf.mxu0
      %v3210 = vadd.f32 0.0, %v3209
      %3211 = vmatmul.f32.gmra.mxu0 %v1693
      %v3212 = vpop.f32.mrf.mxu0
      %v3213 = vadd.f32 0.0, %v3212
      %3214 = vmatmul.f32.gmra.mxu0 %v1694
      %v3215 = vpop.f32.mrf.mxu0
      %v3216 = vadd.f32 0.0, %v3215
      %3217 = vmatmul.f32.gmra.mxu0 %v1695
      %v3218 = vpop.f32.mrf.mxu0
      %v3219 = vadd.f32 0.0, %v3218
      %3220 = vmatmul.f32.gmra.mxu0 %v1696
      %v3221 = vpop.f32.mrf.mxu0
      %v3222 = vadd.f32 0.0, %v3221
      %3223 = vmatmul.f32.gmra.mxu0 %v1697
      %v3224 = vpop.f32.mrf.mxu0
      %v3225 = vadd.f32 0.0, %v3224
      %3226 = vmatmul.f32.gmra.mxu0 %v1698
      %v3227 = vpop.f32.mrf.mxu0
      %v3228 = vadd.f32 0.0, %v3227
      %3229 = vmatmul.f32.gmra.mxu0 %v1699
      %v3230 = vpop.f32.mrf.mxu0
      %v3231 = vadd.f32 0.0, %v3230
      %3232 = vmatmul.f32.gmra.mxu0 %v1700
      %v3233 = vpop.f32.mrf.mxu0
      %v3234 = vadd.f32 0.0, %v3233
      %3235 = vmatmul.f32.gmra.mxu0 %v1701
      %v3236 = vpop.f32.mrf.mxu0
      %v3237 = vadd.f32 0.0, %v3236
      %3238 = vmatmul.f32.gmra.mxu0 %v1702
      %v3239 = vpop.f32.mrf.mxu0
      %v3240 = vadd.f32 0.0, %v3239
      %3241 = vmatmul.f32.gmra.mxu0 %v1703
      %v3242 = vpop.f32.mrf.mxu0
      %v3243 = vadd.f32 0.0, %v3242
      %3244 = vmatmul.f32.gmra.mxu0 %v1704
      %v3245 = vpop.f32.mrf.mxu0
      %v3246 = vadd.f32 0.0, %v3245
      %3247 = vmatmul.f32.gmra.mxu0 %v1705
      %v3248 = vpop.f32.mrf.mxu0
      %v3249 = vadd.f32 0.0, %v3248
      %3250 = vmatmul.f32.gmra.mxu0 %v1706
      %v3251 = vpop.f32.mrf.mxu0
      %v3252 = vadd.f32 0.0, %v3251
      %3253 = vmatmul.f32.gmra.mxu0 %v1707
      %v3254 = vpop.f32.mrf.mxu0
      %v3255 = vadd.f32 0.0, %v3254
      %3256 = vmatmul.f32.gmra.mxu0 %v1708
      %v3257 = vpop.f32.mrf.mxu0
      %v3258 = vadd.f32 0.0, %v3257
      %3259 = vmatmul.f32.gmra.mxu0 %v1709
      %v3260 = vpop.f32.mrf.mxu0
      %v3261 = vadd.f32 0.0, %v3260
      %3262 = vmatmul.f32.gmra.mxu0 %v1710
      %v3263 = vpop.f32.mrf.mxu0
      %v3264 = vadd.f32 0.0, %v3263
      %3265 = vmatmul.f32.gmra.mxu0 %v1711
      %v3266 = vpop.f32.mrf.mxu0
      %v3267 = vadd.f32 0.0, %v3266
      %3268 = vmatmul.f32.gmra.mxu0 %v1712
      %v3269 = vpop.f32.mrf.mxu0
      %v3270 = vadd.f32 0.0, %v3269
      %3271 = vmatmul.f32.gmra.mxu0 %v1713
      %v3272 = vpop.f32.mrf.mxu0
      %v3273 = vadd.f32 0.0, %v3272
      %3274 = vmatmul.f32.gmra.mxu0 %v1714
      %v3275 = vpop.f32.mrf.mxu0
      %v3276 = vadd.f32 0.0, %v3275
      %3277 = vmatmul.f32.gmra.mxu0 %v1715
      %v3278 = vpop.f32.mrf.mxu0
      %v3279 = vadd.f32 0.0, %v3278
      %3280 = vmatmul.f32.gmra.mxu0 %v1716
      %v3281 = vpop.f32.mrf.mxu0
      %v3282 = vadd.f32 0.0, %v3281
      %3283 = vmatmul.f32.gmra.mxu0 %v1717
      %v3284 = vpop.f32.mrf.mxu0
      %v3285 = vadd.f32 0.0, %v3284
      %3286 = vmatmul.f32.gmra.mxu0 %v1718
      %v3287 = vpop.f32.mrf.mxu0
      %v3288 = vadd.f32 0.0, %v3287
      %3289 = vmatmul.f32.gmra.mxu0 %v1719
      %v3290 = vpop.f32.mrf.mxu0
      %v3291 = vadd.f32 0.0, %v3290
      %3292 = vmatmul.f32.gmra.mxu0 %v1720
      %v3293 = vpop.f32.mrf.mxu0
      %v3294 = vadd.f32 0.0, %v3293
      %3295 = vmatmul.f32.gmra.mxu0 %v1721
      %v3296 = vpop.f32.mrf.mxu0
      %v3297 = vadd.f32 0.0, %v3296
      %3298 = vmatmul.f32.gmra.mxu0 %v1722
      %v3299 = vpop.f32.mrf.mxu0
      %v3300 = vadd.f32 0.0, %v3299
      %3301 = vmatmul.f32.gmra.mxu0 %v1723
      %v3302 = vpop.f32.mrf.mxu0
      %v3303 = vadd.f32 0.0, %v3302
      %3304 = vmatmul.f32.gmra.mxu0 %v1724
      %v3305 = vpop.f32.mrf.mxu0
      %v3306 = vadd.f32 0.0, %v3305
      %3307 = vmatmul.f32.gmra.mxu0 %v1725
      %v3308 = vpop.f32.mrf.mxu0
      %v3309 = vadd.f32 0.0, %v3308
      %3310 = vmatmul.f32.gmra.mxu0 %v1726
      %v3311 = vpop.f32.mrf.mxu0
      %v3312 = vadd.f32 0.0, %v3311
      %3313 = vmatmul.f32.gmra.mxu0 %v1727
      %v3314 = vpop.f32.mrf.mxu0
      %v3315 = vadd.f32 0.0, %v3314
      %3316 = vmatmul.f32.gmra.mxu0 %v1728
      %v3317 = vpop.f32.mrf.mxu0
      %v3318 = vadd.f32 0.0, %v3317
      %3319 = vdwg.mxu0
      %3320 = vmatpush.msra.mxu0 %v1856
      %3321 = vmatpush.msra.mxu0 %v1848
      %3322 = vmatpush.msra.mxu0 %v1840
      %3323 = vmatpush.msra.mxu0 %v1832
      %3324 = vmatpush.msra.mxu0 %v1824
      %3325 = vmatpush.msra.mxu0 %v1816
      %3326 = vmatpush.msra.mxu0 %v1808
      %3327 = vmatpush.msra.mxu0 %v1800
      %3328 = vmatpush.msra.mxu0 %v1792
      %3329 = vmatpush.msra.mxu0 %v1784
      %3330 = vmatpush.msra.mxu0 %v1776
      %3331 = vmatpush.msra.mxu0 %v1768
      %3332 = vmatpush.msra.mxu0 %v1760
      %3333 = vmatpush.msra.mxu0 %v1752
      %3334 = vmatpush.msra.mxu0 %v1744
      %3335 = vmatpush.msra.mxu0 %v1736
      %3336 = vmatmul.f32.gmra.mxu0 %v1665
      %v3337 = vpop.f32.mrf.mxu0
      %v3338 = vadd.f32 0.0, %v3337
      %3339 = vmatmul.f32.gmra.mxu0 %v1666
      %v3340 = vpop.f32.mrf.mxu0
      %v3341 = vadd.f32 0.0, %v3340
      %3342 = vmatmul.f32.gmra.mxu0 %v1667
      %v3343 = vpop.f32.mrf.mxu0
      %v3344 = vadd.f32 0.0, %v3343
      %3345 = vmatmul.f32.gmra.mxu0 %v1668
      %v3346 = vpop.f32.mrf.mxu0
      %v3347 = vadd.f32 0.0, %v3346
      %3348 = vmatmul.f32.gmra.mxu0 %v1669
      %v3349 = vpop.f32.mrf.mxu0
      %v3350 = vadd.f32 0.0, %v3349
      %3351 = vmatmul.f32.gmra.mxu0 %v1670
      %v3352 = vpop.f32.mrf.mxu0
      %v3353 = vadd.f32 0.0, %v3352
      %3354 = vmatmul.f32.gmra.mxu0 %v1671
      %v3355 = vpop.f32.mrf.mxu0
      %v3356 = vadd.f32 0.0, %v3355
      %3357 = vmatmul.f32.gmra.mxu0 %v1672
      %v3358 = vpop.f32.mrf.mxu0
      %v3359 = vadd.f32 0.0, %v3358
      %3360 = vmatmul.f32.gmra.mxu0 %v1673
      %v3361 = vpop.f32.mrf.mxu0
      %v3362 = vadd.f32 0.0, %v3361
      %3363 = vmatmul.f32.gmra.mxu0 %v1674
      %v3364 = vpop.f32.mrf.mxu0
      %v3365 = vadd.f32 0.0, %v3364
      %3366 = vmatmul.f32.gmra.mxu0 %v1675
      %v3367 = vpop.f32.mrf.mxu0
      %v3368 = vadd.f32 0.0, %v3367
      %3369 = vmatmul.f32.gmra.mxu0 %v1676
      %v3370 = vpop.f32.mrf.mxu0
      %v3371 = vadd.f32 0.0, %v3370
      %3372 = vmatmul.f32.gmra.mxu0 %v1677
      %v3373 = vpop.f32.mrf.mxu0
      %v3374 = vadd.f32 0.0, %v3373
      %3375 = vmatmul.f32.gmra.mxu0 %v1678
      %v3376 = vpop.f32.mrf.mxu0
      %v3377 = vadd.f32 0.0, %v3376
      %3378 = vmatmul.f32.gmra.mxu0 %v1679
      %v3379 = vpop.f32.mrf.mxu0
      %v3380 = vadd.f32 0.0, %v3379
      %3381 = vmatmul.f32.gmra.mxu0 %v1680
      %v3382 = vpop.f32.mrf.mxu0
      %v3383 = vadd.f32 0.0, %v3382
      %3384 = vmatmul.f32.gmra.mxu0 %v1681
      %v3385 = vpop.f32.mrf.mxu0
      %v3386 = vadd.f32 0.0, %v3385
      %3387 = vmatmul.f32.gmra.mxu0 %v1682
      %v3388 = vpop.f32.mrf.mxu0
      %v3389 = vadd.f32 0.0, %v3388
      %3390 = vmatmul.f32.gmra.mxu0 %v1683
      %v3391 = vpop.f32.mrf.mxu0
      %v3392 = vadd.f32 0.0, %v3391
      %3393 = vmatmul.f32.gmra.mxu0 %v1684
      %v3394 = vpop.f32.mrf.mxu0
      %v3395 = vadd.f32 0.0, %v3394
      %3396 = vmatmul.f32.gmra.mxu0 %v1685
      %v3397 = vpop.f32.mrf.mxu0
      %v3398 = vadd.f32 0.0, %v3397
      %3399 = vmatmul.f32.gmra.mxu0 %v1686
      %v3400 = vpop.f32.mrf.mxu0
      %v3401 = vadd.f32 0.0, %v3400
      %3402 = vmatmul.f32.gmra.mxu0 %v1687
      %v3403 = vpop.f32.mrf.mxu0
      %v3404 = vadd.f32 0.0, %v3403
      %3405 = vmatmul.f32.gmra.mxu0 %v1688
      %v3406 = vpop.f32.mrf.mxu0
      %v3407 = vadd.f32 0.0, %v3406
      %3408 = vmatmul.f32.gmra.mxu0 %v1689
      %v3409 = vpop.f32.mrf.mxu0
      %v3410 = vadd.f32 0.0, %v3409
      %3411 = vmatmul.f32.gmra.mxu0 %v1690
      %v3412 = vpop.f32.mrf.mxu0
      %v3413 = vadd.f32 0.0, %v3412
      %3414 = vmatmul.f32.gmra.mxu0 %v1691
      %v3415 = vpop.f32.mrf.mxu0
      %v3416 = vadd.f32 0.0, %v3415
      %3417 = vmatmul.f32.gmra.mxu0 %v1692
      %v3418 = vpop.f32.mrf.mxu0
      %v3419 = vadd.f32 0.0, %v3418
      %3420 = vmatmul.f32.gmra.mxu0 %v1693
      %v3421 = vpop.f32.mrf.mxu0
      %v3422 = vadd.f32 0.0, %v3421
      %3423 = vmatmul.f32.gmra.mxu0 %v1694
      %v3424 = vpop.f32.mrf.mxu0
      %v3425 = vadd.f32 0.0, %v3424
      %3426 = vmatmul.f32.gmra.mxu0 %v1695
      %v3427 = vpop.f32.mrf.mxu0
      %v3428 = vadd.f32 0.0, %v3427
      %3429 = vmatmul.f32.gmra.mxu0 %v1696
      %v3430 = vpop.f32.mrf.mxu0
      %v3431 = vadd.f32 0.0, %v3430
      %3432 = vmatmul.f32.gmra.mxu0 %v1697
      %v3433 = vpop.f32.mrf.mxu0
      %v3434 = vadd.f32 0.0, %v3433
      %3435 = vmatmul.f32.gmra.mxu0 %v1698
      %v3436 = vpop.f32.mrf.mxu0
      %v3437 = vadd.f32 0.0, %v3436
      %3438 = vmatmul.f32.gmra.mxu0 %v1699
      %v3439 = vpop.f32.mrf.mxu0
      %v3440 = vadd.f32 0.0, %v3439
      %3441 = vmatmul.f32.gmra.mxu0 %v1700
      %v3442 = vpop.f32.mrf.mxu0
      %v3443 = vadd.f32 0.0, %v3442
      %3444 = vmatmul.f32.gmra.mxu0 %v1701
      %v3445 = vpop.f32.mrf.mxu0
      %v3446 = vadd.f32 0.0, %v3445
      %3447 = vmatmul.f32.gmra.mxu0 %v1702
      %v3448 = vpop.f32.mrf.mxu0
      %v3449 = vadd.f32 0.0, %v3448
      %3450 = vmatmul.f32.gmra.mxu0 %v1703
      %v3451 = vpop.f32.mrf.mxu0
      %v3452 = vadd.f32 0.0, %v3451
      %3453 = vmatmul.f32.gmra.mxu0 %v1704
      %v3454 = vpop.f32.mrf.mxu0
      %v3455 = vadd.f32 0.0, %v3454
      %3456 = vmatmul.f32.gmra.mxu0 %v1705
      %v3457 = vpop.f32.mrf.mxu0
      %v3458 = vadd.f32 0.0, %v3457
      %3459 = vmatmul.f32.gmra.mxu0 %v1706
      %v3460 = vpop.f32.mrf.mxu0
      %v3461 = vadd.f32 0.0, %v3460
      %3462 = vmatmul.f32.gmra.mxu0 %v1707
      %v3463 = vpop.f32.mrf.mxu0
      %v3464 = vadd.f32 0.0, %v3463
      %3465 = vmatmul.f32.gmra.mxu0 %v1708
      %v3466 = vpop.f32.mrf.mxu0
      %v3467 = vadd.f32 0.0, %v3466
      %3468 = vmatmul.f32.gmra.mxu0 %v1709
      %v3469 = vpop.f32.mrf.mxu0
      %v3470 = vadd.f32 0.0, %v3469
      %3471 = vmatmul.f32.gmra.mxu0 %v1710
      %v3472 = vpop.f32.mrf.mxu0
      %v3473 = vadd.f32 0.0, %v3472
      %3474 = vmatmul.f32.gmra.mxu0 %v1711
      %v3475 = vpop.f32.mrf.mxu0
      %v3476 = vadd.f32 0.0, %v3475
      %3477 = vmatmul.f32.gmra.mxu0 %v1712
      %v3478 = vpop.f32.mrf.mxu0
      %v3479 = vadd.f32 0.0, %v3478
      %3480 = vmatmul.f32.gmra.mxu0 %v1713
      %v3481 = vpop.f32.mrf.mxu0
      %v3482 = vadd.f32 0.0, %v3481
      %3483 = vmatmul.f32.gmra.mxu0 %v1714
      %v3484 = vpop.f32.mrf.mxu0
      %v3485 = vadd.f32 0.0, %v3484
      %3486 = vmatmul.f32.gmra.mxu0 %v1715
      %v3487 = vpop.f32.mrf.mxu0
      %v3488 = vadd.f32 0.0, %v3487
      %3489 = vmatmul.f32.gmra.mxu0 %v1716
      %v3490 = vpop.f32.mrf.mxu0
      %v3491 = vadd.f32 0.0, %v3490
      %3492 = vmatmul.f32.gmra.mxu0 %v1717
      %v3493 = vpop.f32.mrf.mxu0
      %v3494 = vadd.f32 0.0, %v3493
      %3495 = vmatmul.f32.gmra.mxu0 %v1718
      %v3496 = vpop.f32.mrf.mxu0
      %v3497 = vadd.f32 0.0, %v3496
      %3498 = vmatmul.f32.gmra.mxu0 %v1719
      %v3499 = vpop.f32.mrf.mxu0
      %v3500 = vadd.f32 0.0, %v3499
      %3501 = vmatmul.f32.gmra.mxu0 %v1720
      %v3502 = vpop.f32.mrf.mxu0
      %v3503 = vadd.f32 0.0, %v3502
      %3504 = vmatmul.f32.gmra.mxu0 %v1721
      %v3505 = vpop.f32.mrf.mxu0
      %v3506 = vadd.f32 0.0, %v3505
      %3507 = vmatmul.f32.gmra.mxu0 %v1722
      %v3508 = vpop.f32.mrf.mxu0
      %v3509 = vadd.f32 0.0, %v3508
      %3510 = vmatmul.f32.gmra.mxu0 %v1723
      %v3511 = vpop.f32.mrf.mxu0
      %v3512 = vadd.f32 0.0, %v3511
      %3513 = vmatmul.f32.gmra.mxu0 %v1724
      %v3514 = vpop.f32.mrf.mxu0
      %v3515 = vadd.f32 0.0, %v3514
      %3516 = vmatmul.f32.gmra.mxu0 %v1725
      %v3517 = vpop.f32.mrf.mxu0
      %v3518 = vadd.f32 0.0, %v3517
      %3519 = vmatmul.f32.gmra.mxu0 %v1726
      %v3520 = vpop.f32.mrf.mxu0
      %v3521 = vadd.f32 0.0, %v3520
      %3522 = vmatmul.f32.gmra.mxu0 %v1727
      %v3523 = vpop.f32.mrf.mxu0
      %v3524 = vadd.f32 0.0, %v3523
      %3525 = vmatmul.f32.gmra.mxu0 %v1728
      %v3526 = vpop.f32.mrf.mxu0
      %v3527 = vadd.f32 0.0, %v3526
      %3528 = vdwg.mxu0
      %v3529 = vadd.f32 %v1665, %v1666
      %v3530 = vadd.f32 %v3529, %v1667
      %v3531 = vadd.f32 %v3530, %v1668
      %v3532 = vadd.f32 %v3531, %v1669
      %v3533 = vadd.f32 %v3532, %v1670
      %v3534 = vadd.f32 %v3533, %v1671
      %v3535 = vadd.f32 %v3534, %v1672
      %v3536 = vadd.f32 %v3535, %v1673
      %v3537 = vadd.f32 %v3536, %v1674
      %v3538 = vadd.f32 %v3537, %v1675
      %v3539 = vadd.f32 %v3538, %v1676
      %v3540 = vadd.f32 %v3539, %v1677
      %v3541 = vadd.f32 %v3540, %v1678
      %v3542 = vadd.f32 %v3541, %v1679
      %v3543 = vadd.f32 %v3542, %v1680
      %v3544 = vadd.f32 %v3543, %v1681
      %v3545 = vadd.f32 %v3544, %v1682
      %v3546 = vadd.f32 %v3545, %v1683
      %v3547 = vadd.f32 %v3546, %v1684
      %v3548 = vadd.f32 %v3547, %v1685
      %v3549 = vadd.f32 %v3548, %v1686
      %v3550 = vadd.f32 %v3549, %v1687
      %v3551 = vadd.f32 %v3550, %v1688
      %v3552 = vadd.f32 %v3551, %v1689
      %v3553 = vadd.f32 %v3552, %v1690
      %v3554 = vadd.f32 %v3553, %v1691
      %v3555 = vadd.f32 %v3554, %v1692
      %v3556 = vadd.f32 %v3555, %v1693
      %v3557 = vadd.f32 %v3556, %v1694
      %v3558 = vadd.f32 %v3557, %v1695
      %v3559 = vadd.f32 %v3558, %v1696
      %v3560 = vadd.f32 %v3559, %v1697
      %v3561 = vadd.f32 %v3560, %v1698
      %v3562 = vadd.f32 %v3561, %v1699
      %v3563 = vadd.f32 %v3562, %v1700
      %v3564 = vadd.f32 %v3563, %v1701
      %v3565 = vadd.f32 %v3564, %v1702
      %v3566 = vadd.f32 %v3565, %v1703
      %v3567 = vadd.f32 %v3566, %v1704
      %v3568 = vadd.f32 %v3567, %v1705
      %v3569 = vadd.f32 %v3568, %v1706
      %v3570 = vadd.f32 %v3569, %v1707
      %v3571 = vadd.f32 %v3570, %v1708
      %v3572 = vadd.f32 %v3571, %v1709
      %v3573 = vadd.f32 %v3572, %v1710
      %v3574 = vadd.f32 %v3573, %v1711
      %v3575 = vadd.f32 %v3574, %v1712
      %v3576 = vadd.f32 %v3575, %v1713
      %v3577 = vadd.f32 %v3576, %v1714
      %v3578 = vadd.f32 %v3577, %v1715
      %v3579 = vadd.f32 %v3578, %v1716
      %v3580 = vadd.f32 %v3579, %v1717
      %v3581 = vadd.f32 %v3580, %v1718
      %v3582 = vadd.f32 %v3581, %v1719
      %v3583 = vadd.f32 %v3582, %v1720
      %v3584 = vadd.f32 %v3583, %v1721
      %v3585 = vadd.f32 %v3584, %v1722
      %v3586 = vadd.f32 %v3585, %v1723
      %v3587 = vadd.f32 %v3586, %v1724
      %v3588 = vadd.f32 %v3587, %v1725
      %v3589 = vadd.f32 %v3588, %v1726
      %v3590 = vadd.f32 %v3589, %v1727
      %v3591 = vadd.f32 %v3590, %v1728
      %v3592 = vrot.slane %v3591, 4
      %v3593 = vadd.f32 %v3591, %v3592
      %v3594 = vrot.slane %v3593, 2
      %v3595 = vadd.f32 %v3593, %v3594
      %v3596 = vrot.slane %v3595, 1
      %v3597 = vadd.f32 %v3595, %v3596
      %v3598 = vld [vmem:[%s439] sm:$0xff]
      %3599 = vmatpush.msra.mxu0 %v1849
      %3600 = vmatpush.msra.mxu0 %v1841
      %3601 = vmatpush.msra.mxu0 %v1833
      %3602 = vmatpush.msra.mxu0 %v1825
      %3603 = vmatpush.msra.mxu0 %v1817
      %3604 = vmatpush.msra.mxu0 %v1809
      %3605 = vmatpush.msra.mxu0 %v1801
      %3606 = vmatpush.msra.mxu0 %v1793
      %3607 = vmatpush.msra.mxu0 %v1785
      %3608 = vmatpush.msra.mxu0 %v1777
      %3609 = vmatpush.msra.mxu0 %v1769
      %3610 = vmatpush.msra.mxu0 %v1761
      %3611 = vmatpush.msra.mxu0 %v1753
      %3612 = vmatpush.msra.mxu0 %v1745
      %3613 = vmatpush.msra.mxu0 %v1737
      %3614 = vmatpush.msra.mxu0 %v1729
      %3615 = vmatmul.f32.gmra.mxu0 %v3597
      %v3616 = vpop.f32.mrf.mxu0
      %v3617 = vadd.f32 0.0, %v3616
      %3618 = vdwg.mxu0
      %3619 = vmatpush.msra.mxu0 %v1850
      %3620 = vmatpush.msra.mxu0 %v1842
      %3621 = vmatpush.msra.mxu0 %v1834
      %3622 = vmatpush.msra.mxu0 %v1826
      %3623 = vmatpush.msra.mxu0 %v1818
      %3624 = vmatpush.msra.mxu0 %v1810
      %3625 = vmatpush.msra.mxu0 %v1802
      %3626 = vmatpush.msra.mxu0 %v1794
      %3627 = vmatpush.msra.mxu0 %v1786
      %3628 = vmatpush.msra.mxu0 %v1778
      %3629 = vmatpush.msra.mxu0 %v1770
      %3630 = vmatpush.msra.mxu0 %v1762
      %3631 = vmatpush.msra.mxu0 %v1754
      %3632 = vmatpush.msra.mxu0 %v1746
      %3633 = vmatpush.msra.mxu0 %v1738
      %3634 = vmatpush.msra.mxu0 %v1730
      %3635 = vmatmul.f32.gmra.mxu0 %v3597
      %v3636 = vpop.f32.mrf.mxu0
      %v3637 = vadd.f32 0.0, %v3636
      %3638 = vdwg.mxu0
      %3639 = vmatpush.msra.mxu0 %v1851
      %3640 = vmatpush.msra.mxu0 %v1843
      %3641 = vmatpush.msra.mxu0 %v1835
      %3642 = vmatpush.msra.mxu0 %v1827
      %3643 = vmatpush.msra.mxu0 %v1819
      %3644 = vmatpush.msra.mxu0 %v1811
      %3645 = vmatpush.msra.mxu0 %v1803
      %3646 = vmatpush.msra.mxu0 %v1795
      %3647 = vmatpush.msra.mxu0 %v1787
      %3648 = vmatpush.msra.mxu0 %v1779
      %3649 = vmatpush.msra.mxu0 %v1771
      %3650 = vmatpush.msra.mxu0 %v1763
      %3651 = vmatpush.msra.mxu0 %v1755
      %3652 = vmatpush.msra.mxu0 %v1747
      %3653 = vmatpush.msra.mxu0 %v1739
      %3654 = vmatpush.msra.mxu0 %v1731
      %3655 = vmatmul.f32.gmra.mxu0 %v3597
      %v3656 = vpop.f32.mrf.mxu0
      %v3657 = vadd.f32 0.0, %v3656
      %3658 = vdwg.mxu0
      %3659 = vmatpush.msra.mxu0 %v1852
      %3660 = vmatpush.msra.mxu0 %v1844
      %3661 = vmatpush.msra.mxu0 %v1836
      %3662 = vmatpush.msra.mxu0 %v1828
      %3663 = vmatpush.msra.mxu0 %v1820
      %3664 = vmatpush.msra.mxu0 %v1812
      %3665 = vmatpush.msra.mxu0 %v1804
      %3666 = vmatpush.msra.mxu0 %v1796
      %3667 = vmatpush.msra.mxu0 %v1788
      %3668 = vmatpush.msra.mxu0 %v1780
      %3669 = vmatpush.msra.mxu0 %v1772
      %3670 = vmatpush.msra.mxu0 %v1764
      %3671 = vmatpush.msra.mxu0 %v1756
      %3672 = vmatpush.msra.mxu0 %v1748
      %3673 = vmatpush.msra.mxu0 %v1740
      %3674 = vmatpush.msra.mxu0 %v1732
      %3675 = vmatmul.f32.gmra.mxu0 %v3597
      %v3676 = vpop.f32.mrf.mxu0
      %v3677 = vadd.f32 0.0, %v3676
      %3678 = vdwg.mxu0
      %3679 = vmatpush.msra.mxu0 %v1853
      %3680 = vmatpush.msra.mxu0 %v1845
      %3681 = vmatpush.msra.mxu0 %v1837
      %3682 = vmatpush.msra.mxu0 %v1829
      %3683 = vmatpush.msra.mxu0 %v1821
      %3684 = vmatpush.msra.mxu0 %v1813
      %3685 = vmatpush.msra.mxu0 %v1805
      %3686 = vmatpush.msra.mxu0 %v1797
      %3687 = vmatpush.msra.mxu0 %v1789
      %3688 = vmatpush.msra.mxu0 %v1781
      %3689 = vmatpush.msra.mxu0 %v1773
      %3690 = vmatpush.msra.mxu0 %v1765
      %3691 = vmatpush.msra.mxu0 %v1757
      %3692 = vmatpush.msra.mxu0 %v1749
      %3693 = vmatpush.msra.mxu0 %v1741
      %3694 = vmatpush.msra.mxu0 %v1733
      %3695 = vmatmul.f32.gmra.mxu0 %v3597
      %v3696 = vpop.f32.mrf.mxu0
      %v3697 = vadd.f32 0.0, %v3696
      %3698 = vdwg.mxu0
      %3699 = vmatpush.msra.mxu0 %v1854
      %3700 = vmatpush.msra.mxu0 %v1846
      %3701 = vmatpush.msra.mxu0 %v1838
      %3702 = vmatpush.msra.mxu0 %v1830
      %3703 = vmatpush.msra.mxu0 %v1822
      %3704 = vmatpush.msra.mxu0 %v1814
      %3705 = vmatpush.msra.mxu0 %v1806
      %3706 = vmatpush.msra.mxu0 %v1798
      %3707 = vmatpush.msra.mxu0 %v1790
      %3708 = vmatpush.msra.mxu0 %v1782
      %3709 = vmatpush.msra.mxu0 %v1774
      %3710 = vmatpush.msra.mxu0 %v1766
      %3711 = vmatpush.msra.mxu0 %v1758
      %3712 = vmatpush.msra.mxu0 %v1750
      %3713 = vmatpush.msra.mxu0 %v1742
      %3714 = vmatpush.msra.mxu0 %v1734
      %3715 = vmatmul.f32.gmra.mxu0 %v3597
      %v3716 = vpop.f32.mrf.mxu0
      %v3717 = vadd.f32 0.0, %v3716
      %3718 = vdwg.mxu0
      %3719 = vmatpush.msra.mxu0 %v1855
      %3720 = vmatpush.msra.mxu0 %v1847
      %3721 = vmatpush.msra.mxu0 %v1839
      %3722 = vmatpush.msra.mxu0 %v1831
      %3723 = vmatpush.msra.mxu0 %v1823
      %3724 = vmatpush.msra.mxu0 %v1815
      %3725 = vmatpush.msra.mxu0 %v1807
      %3726 = vmatpush.msra.mxu0 %v1799
      %3727 = vmatpush.msra.mxu0 %v1791
      %3728 = vmatpush.msra.mxu0 %v1783
      %3729 = vmatpush.msra.mxu0 %v1775
      %3730 = vmatpush.msra.mxu0 %v1767
      %3731 = vmatpush.msra.mxu0 %v1759
      %3732 = vmatpush.msra.mxu0 %v1751
      %3733 = vmatpush.msra.mxu0 %v1743
      %3734 = vmatpush.msra.mxu0 %v1735
      %3735 = vmatmul.f32.gmra.mxu0 %v3597
      %v3736 = vpop.f32.mrf.mxu0
      %v3737 = vadd.f32 0.0, %v3736
      %3738 = vdwg.mxu0
      %3739 = vmatpush.msra.mxu0 %v1856
      %3740 = vmatpush.msra.mxu0 %v1848
      %3741 = vmatpush.msra.mxu0 %v1840
      %3742 = vmatpush.msra.mxu0 %v1832
      %3743 = vmatpush.msra.mxu0 %v1824
      %3744 = vmatpush.msra.mxu0 %v1816
      %3745 = vmatpush.msra.mxu0 %v1808
      %3746 = vmatpush.msra.mxu0 %v1800
      %3747 = vmatpush.msra.mxu0 %v1792
      %3748 = vmatpush.msra.mxu0 %v1784
      %3749 = vmatpush.msra.mxu0 %v1776
      %3750 = vmatpush.msra.mxu0 %v1768
      %3751 = vmatpush.msra.mxu0 %v1760
      %3752 = vmatpush.msra.mxu0 %v1752
      %3753 = vmatpush.msra.mxu0 %v1744
      %3754 = vmatpush.msra.mxu0 %v1736
      %3755 = vmatmul.f32.gmra.mxu0 %v3597
      %v3756 = vpop.f32.mrf.mxu0
      %v3757 = vadd.f32 0.0, %v3756
      %3758 = vdwg.mxu0
      %v3767 = vrot.slane %v3637, 7
      %v3768 = vrot.slane %v3657, 6
      %v3769 = vrot.slane %v3677, 5
      %v3770 = vrot.slane %v3697, 4
      %v3771 = vrot.slane %v3717, 3
      %v3772 = vrot.slane %v3737, 2
      %v3773 = vrot.slane %v3757, 1
      %vm3774 = vcmask 1040384
      %v3775 = vsel %vm3774, %v3617, %v3767
      %vm3776 = vcmask 1042434
      %v3777 = vsel %vm3776, %v3768, %v3769
      %vm3778 = vcmask 1041408
      %v3779 = vsel %vm3778, %v3775, %v3777
      %vm3780 = vcmask 1044484
      %v3781 = vsel %vm3780, %v3770, %v3771
      %vm3782 = vcmask 1046534
      %v3783 = vsel %vm3782, %v3772, %v3773
      %vm3784 = vcmask 1045508
      %v3785 = vsel %vm3784, %v3781, %v3783
      %vm3786 = vcmask 1043456
      %v3787 = vsel %vm3786, %v3779, %v3785
      %v3789 = vadd.f32 %v3598, %v3787
      %3790 = vst [vmem:[%s439] sm:$0xff] %v3789
      %v3791 = vld [vmem:[%s443] sm:$0x3]
      %v3792 = vmul.f32 %v1875, %v1875
      %v3793 = vmul.f32 %v2084, %v2084
      %v3794 = vmul.f32 %v1878, %v1878
      %v3795 = vmul.f32 %v2087, %v2087
      %v3796 = vmul.f32 %v1881, %v1881
      %v3797 = vmul.f32 %v2090, %v2090
      %v3798 = vmul.f32 %v1884, %v1884
      %v3799 = vmul.f32 %v2093, %v2093
      %v3800 = vmul.f32 %v1887, %v1887
      %v3801 = vmul.f32 %v2096, %v2096
      %v3802 = vmul.f32 %v1890, %v1890
      %v3803 = vmul.f32 %v2099, %v2099
      %v3804 = vmul.f32 %v1893, %v1893
      %v3805 = vmul.f32 %v2102, %v2102
      %v3806 = vmul.f32 %v1896, %v1896
      %v3807 = vmul.f32 %v2105, %v2105
      %v3808 = vmul.f32 %v1899, %v1899
      %v3809 = vmul.f32 %v2108, %v2108
      %v3810 = vmul.f32 %v1902, %v1902
      %v3811 = vmul.f32 %v2111, %v2111
      %v3812 = vmul.f32 %v1905, %v1905
      %v3813 = vmul.f32 %v2114, %v2114
      %v3814 = vmul.f32 %v1908, %v1908
      %v3815 = vmul.f32 %v2117, %v2117
      %v3816 = vmul.f32 %v1911, %v1911
      %v3817 = vmul.f32 %v2120, %v2120
      %v3818 = vmul.f32 %v1914, %v1914
      %v3819 = vmul.f32 %v2123, %v2123
      %v3820 = vmul.f32 %v1917, %v1917
      %v3821 = vmul.f32 %v2126, %v2126
      %v3822 = vmul.f32 %v1920, %v1920
      %v3823 = vmul.f32 %v2129, %v2129
      %v3824 = vmul.f32 %v1923, %v1923
      %v3825 = vmul.f32 %v2132, %v2132
      %v3826 = vmul.f32 %v1926, %v1926
      %v3827 = vmul.f32 %v2135, %v2135
      %v3828 = vmul.f32 %v1929, %v1929
      %v3829 = vmul.f32 %v2138, %v2138
      %v3830 = vmul.f32 %v1932, %v1932
      %v3831 = vmul.f32 %v2141, %v2141
      %v3832 = vmul.f32 %v1935, %v1935
      %v3833 = vmul.f32 %v2144, %v2144
      %v3834 = vmul.f32 %v1938, %v1938
      %v3835 = vmul.f32 %v2147, %v2147
      %v3836 = vmul.f32 %v1941, %v1941
      %v3837 = vmul.f32 %v2150, %v2150
      %v3838 = vmul.f32 %v1944, %v1944
      %v3839 = vmul.f32 %v2153, %v2153
      %v3840 = vmul.f32 %v1947, %v1947
      %v3841 = vmul.f32 %v2156, %v2156
      %v3842 = vmul.f32 %v1950, %v1950
      %v3843 = vmul.f32 %v2159, %v2159
      %v3844 = vmul.f32 %v1953, %v1953
      %v3845 = vmul.f32 %v2162, %v2162
      %v3846 = vmul.f32 %v1956, %v1956
      %v3847 = vmul.f32 %v2165, %v2165
      %v3848 = vmul.f32 %v1959, %v1959
      %v3849 = vmul.f32 %v2168, %v2168
      %v3850 = vmul.f32 %v1962, %v1962
      %v3851 = vmul.f32 %v2171, %v2171
      %v3852 = vmul.f32 %v1965, %v1965
      %v3853 = vmul.f32 %v2174, %v2174
      %v3854 = vmul.f32 %v1968, %v1968
      %v3855 = vmul.f32 %v2177, %v2177
      %v3856 = vmul.f32 %v1971, %v1971
      %v3857 = vmul.f32 %v2180, %v2180
      %v3858 = vmul.f32 %v1974, %v1974
      %v3859 = vmul.f32 %v2183, %v2183
      %v3860 = vmul.f32 %v1977, %v1977
      %v3861 = vmul.f32 %v2186, %v2186
      %v3862 = vmul.f32 %v1980, %v1980
      %v3863 = vmul.f32 %v2189, %v2189
      %v3864 = vmul.f32 %v1983, %v1983
      %v3865 = vmul.f32 %v2192, %v2192
      %v3866 = vmul.f32 %v1986, %v1986
      %v3867 = vmul.f32 %v2195, %v2195
      %v3868 = vmul.f32 %v1989, %v1989
      %v3869 = vmul.f32 %v2198, %v2198
      %v3870 = vmul.f32 %v1992, %v1992
      %v3871 = vmul.f32 %v2201, %v2201
      %v3872 = vmul.f32 %v1995, %v1995
      %v3873 = vmul.f32 %v2204, %v2204
      %v3874 = vmul.f32 %v1998, %v1998
      %v3875 = vmul.f32 %v2207, %v2207
      %v3876 = vmul.f32 %v2001, %v2001
      %v3877 = vmul.f32 %v2210, %v2210
      %v3878 = vmul.f32 %v2004, %v2004
      %v3879 = vmul.f32 %v2213, %v2213
      %v3880 = vmul.f32 %v2007, %v2007
      %v3881 = vmul.f32 %v2216, %v2216
      %v3882 = vmul.f32 %v2010, %v2010
      %v3883 = vmul.f32 %v2219, %v2219
      %v3884 = vmul.f32 %v2013, %v2013
      %v3885 = vmul.f32 %v2222, %v2222
      %v3886 = vmul.f32 %v2016, %v2016
      %v3887 = vmul.f32 %v2225, %v2225
      %v3888 = vmul.f32 %v2019, %v2019
      %v3889 = vmul.f32 %v2228, %v2228
      %v3890 = vmul.f32 %v2022, %v2022
      %v3891 = vmul.f32 %v2231, %v2231
      %v3892 = vmul.f32 %v2025, %v2025
      %v3893 = vmul.f32 %v2234, %v2234
      %v3894 = vmul.f32 %v2028, %v2028
      %v3895 = vmul.f32 %v2237, %v2237
      %v3896 = vmul.f32 %v2031, %v2031
      %v3897 = vmul.f32 %v2240, %v2240
      %v3898 = vmul.f32 %v2034, %v2034
      %v3899 = vmul.f32 %v2243, %v2243
      %v3900 = vmul.f32 %v2037, %v2037
      %v3901 = vmul.f32 %v2246, %v2246
      %v3902 = vmul.f32 %v2040, %v2040
      %v3903 = vmul.f32 %v2249, %v2249
      %v3904 = vmul.f32 %v2043, %v2043
      %v3905 = vmul.f32 %v2252, %v2252
      %v3906 = vmul.f32 %v2046, %v2046
      %v3907 = vmul.f32 %v2255, %v2255
      %v3908 = vmul.f32 %v2049, %v2049
      %v3909 = vmul.f32 %v2258, %v2258
      %v3910 = vmul.f32 %v2052, %v2052
      %v3911 = vmul.f32 %v2261, %v2261
      %v3912 = vmul.f32 %v2055, %v2055
      %v3913 = vmul.f32 %v2264, %v2264
      %v3914 = vmul.f32 %v2058, %v2058
      %v3915 = vmul.f32 %v2267, %v2267
      %v3916 = vmul.f32 %v2061, %v2061
      %v3917 = vmul.f32 %v2270, %v2270
      %v3918 = vmul.f32 %v2064, %v2064
      %v3919 = vmul.f32 %v2273, %v2273
      %v3920 = vadd.f32 %v3792, %v3794
      %v3921 = vadd.f32 %v3920, %v3796
      %v3922 = vadd.f32 %v3921, %v3798
      %v3923 = vadd.f32 %v3922, %v3800
      %v3924 = vadd.f32 %v3923, %v3802
      %v3925 = vadd.f32 %v3924, %v3804
      %v3926 = vadd.f32 %v3925, %v3806
      %v3927 = vadd.f32 %v3926, %v3808
      %v3928 = vadd.f32 %v3927, %v3810
      %v3929 = vadd.f32 %v3928, %v3812
      %v3930 = vadd.f32 %v3929, %v3814
      %v3931 = vadd.f32 %v3930, %v3816
      %v3932 = vadd.f32 %v3931, %v3818
      %v3933 = vadd.f32 %v3932, %v3820
      %v3934 = vadd.f32 %v3933, %v3822
      %v3935 = vadd.f32 %v3934, %v3824
      %v3936 = vadd.f32 %v3935, %v3826
      %v3937 = vadd.f32 %v3936, %v3828
      %v3938 = vadd.f32 %v3937, %v3830
      %v3939 = vadd.f32 %v3938, %v3832
      %v3940 = vadd.f32 %v3939, %v3834
      %v3941 = vadd.f32 %v3940, %v3836
      %v3942 = vadd.f32 %v3941, %v3838
      %v3943 = vadd.f32 %v3942, %v3840
      %v3944 = vadd.f32 %v3943, %v3842
      %v3945 = vadd.f32 %v3944, %v3844
      %v3946 = vadd.f32 %v3945, %v3846
      %v3947 = vadd.f32 %v3946, %v3848
      %v3948 = vadd.f32 %v3947, %v3850
      %v3949 = vadd.f32 %v3948, %v3852
      %v3950 = vadd.f32 %v3949, %v3854
      %v3951 = vadd.f32 %v3950, %v3856
      %v3952 = vadd.f32 %v3951, %v3858
      %v3953 = vadd.f32 %v3952, %v3860
      %v3954 = vadd.f32 %v3953, %v3862
      %v3955 = vadd.f32 %v3954, %v3864
      %v3956 = vadd.f32 %v3955, %v3866
      %v3957 = vadd.f32 %v3956, %v3868
      %v3958 = vadd.f32 %v3957, %v3870
      %v3959 = vadd.f32 %v3958, %v3872
      %v3960 = vadd.f32 %v3959, %v3874
      %v3961 = vadd.f32 %v3960, %v3876
      %v3962 = vadd.f32 %v3961, %v3878
      %v3963 = vadd.f32 %v3962, %v3880
      %v3964 = vadd.f32 %v3963, %v3882
      %v3965 = vadd.f32 %v3964, %v3884
      %v3966 = vadd.f32 %v3965, %v3886
      %v3967 = vadd.f32 %v3966, %v3888
      %v3968 = vadd.f32 %v3967, %v3890
      %v3969 = vadd.f32 %v3968, %v3892
      %v3970 = vadd.f32 %v3969, %v3894
      %v3971 = vadd.f32 %v3970, %v3896
      %v3972 = vadd.f32 %v3971, %v3898
      %v3973 = vadd.f32 %v3972, %v3900
      %v3974 = vadd.f32 %v3973, %v3902
      %v3975 = vadd.f32 %v3974, %v3904
      %v3976 = vadd.f32 %v3975, %v3906
      %v3977 = vadd.f32 %v3976, %v3908
      %v3978 = vadd.f32 %v3977, %v3910
      %v3979 = vadd.f32 %v3978, %v3912
      %v3980 = vadd.f32 %v3979, %v3914
      %v3981 = vadd.f32 %v3980, %v3916
      %v3982 = vadd.f32 %v3981, %v3918
      %v3983 = vrot.slane %v3982, 4
      %v3984 = vadd.f32 %v3982, %v3983
      %v3985 = vrot.slane %v3984, 2
      %v3986 = vadd.f32 %v3984, %v3985
      %v3987 = vrot.slane %v3986, 1
      %v3988 = vadd.f32 %v3986, %v3987
      %v3989 = vadd.f32 %v3793, %v3795
      %v3990 = vadd.f32 %v3989, %v3797
      %v3991 = vadd.f32 %v3990, %v3799
      %v3992 = vadd.f32 %v3991, %v3801
      %v3993 = vadd.f32 %v3992, %v3803
      %v3994 = vadd.f32 %v3993, %v3805
      %v3995 = vadd.f32 %v3994, %v3807
      %v3996 = vadd.f32 %v3995, %v3809
      %v3997 = vadd.f32 %v3996, %v3811
      %v3998 = vadd.f32 %v3997, %v3813
      %v3999 = vadd.f32 %v3998, %v3815
      %v4000 = vadd.f32 %v3999, %v3817
      %v4001 = vadd.f32 %v4000, %v3819
      %v4002 = vadd.f32 %v4001, %v3821
      %v4003 = vadd.f32 %v4002, %v3823
      %v4004 = vadd.f32 %v4003, %v3825
      %v4005 = vadd.f32 %v4004, %v3827
      %v4006 = vadd.f32 %v4005, %v3829
      %v4007 = vadd.f32 %v4006, %v3831
      %v4008 = vadd.f32 %v4007, %v3833
      %v4009 = vadd.f32 %v4008, %v3835
      %v4010 = vadd.f32 %v4009, %v3837
      %v4011 = vadd.f32 %v4010, %v3839
      %v4012 = vadd.f32 %v4011, %v3841
      %v4013 = vadd.f32 %v4012, %v3843
      %v4014 = vadd.f32 %v4013, %v3845
      %v4015 = vadd.f32 %v4014, %v3847
      %v4016 = vadd.f32 %v4015, %v3849
      %v4017 = vadd.f32 %v4016, %v3851
      %v4018 = vadd.f32 %v4017, %v3853
      %v4019 = vadd.f32 %v4018, %v3855
      %v4020 = vadd.f32 %v4019, %v3857
      %v4021 = vadd.f32 %v4020, %v3859
      %v4022 = vadd.f32 %v4021, %v3861
      %v4023 = vadd.f32 %v4022, %v3863
      %v4024 = vadd.f32 %v4023, %v3865
      %v4025 = vadd.f32 %v4024, %v3867
      %v4026 = vadd.f32 %v4025, %v3869
      %v4027 = vadd.f32 %v4026, %v3871
      %v4028 = vadd.f32 %v4027, %v3873
      %v4029 = vadd.f32 %v4028, %v3875
      %v4030 = vadd.f32 %v4029, %v3877
      %v4031 = vadd.f32 %v4030, %v3879
      %v4032 = vadd.f32 %v4031, %v3881
      %v4033 = vadd.f32 %v4032, %v3883
      %v4034 = vadd.f32 %v4033, %v3885
      %v4035 = vadd.f32 %v4034, %v3887
      %v4036 = vadd.f32 %v4035, %v3889
      %v4037 = vadd.f32 %v4036, %v3891
      %v4038 = vadd.f32 %v4037, %v3893
      %v4039 = vadd.f32 %v4038, %v3895
      %v4040 = vadd.f32 %v4039, %v3897
      %v4041 = vadd.f32 %v4040, %v3899
      %v4042 = vadd.f32 %v4041, %v3901
      %v4043 = vadd.f32 %v4042, %v3903
      %v4044 = vadd.f32 %v4043, %v3905
      %v4045 = vadd.f32 %v4044, %v3907
      %v4046 = vadd.f32 %v4045, %v3909
      %v4047 = vadd.f32 %v4046, %v3911
      %v4048 = vadd.f32 %v4047, %v3913
      %v4049 = vadd.f32 %v4048, %v3915
      %v4050 = vadd.f32 %v4049, %v3917
      %v4051 = vadd.f32 %v4050, %v3919
      %v4052 = vrot.slane %v4051, 4
      %v4053 = vadd.f32 %v4051, %v4052
      %v4054 = vrot.slane %v4053, 2
      %v4055 = vadd.f32 %v4053, %v4054
      %v4056 = vrot.slane %v4055, 1
      %v4057 = vadd.f32 %v4055, %v4056
      %v4060 = vrot.slane %v4057, 7
      %v4061 = vsel %vm3774, %v3988, %v4060
      %v4063 = vadd.f32 %v3791, %v4061
      %v4064 = vlaneseq
      %vm4065 = vcmp.ge.s32.totalorder %v4064, 0
      %vm4066 = vcmp.lt.s32.totalorder %v4064, 256
      %vm4067 = vmand %vm4065, %vm4066
      %4068 = vst.msk [vmem:[%s443] sm:$0x3] %vm4067, %v4063
      %v4069 = vld [vmem:[%s431] sm:$0x3]
      %v4070 = vmax.f32 %v1875, %v1881
      %v4071 = vmax.f32 %v1878, %v1884
      %v4072 = vmax.f32 %v4070, %v1887
      %v4073 = vmax.f32 %v4071, %v1890
      %v4074 = vmax.f32 %v4072, %v1893
      %v4075 = vmax.f32 %v4073, %v1896
      %v4076 = vmax.f32 %v4074, %v1899
      %v4077 = vmax.f32 %v4075, %v1902
      %v4078 = vmax.f32 %v4076, %v1905
      %v4079 = vmax.f32 %v4077, %v1908
      %v4080 = vmax.f32 %v4078, %v1911
      %v4081 = vmax.f32 %v4079, %v1914
      %v4082 = vmax.f32 %v4080, %v1917
      %v4083 = vmax.f32 %v4081, %v1920
      %v4084 = vmax.f32 %v4082, %v1923
      %v4085 = vmax.f32 %v4083, %v1926
      %v4086 = vmax.f32 %v4084, %v1929
      %v4087 = vmax.f32 %v4085, %v1932
      %v4088 = vmax.f32 %v4086, %v1935
      %v4089 = vmax.f32 %v4087, %v1938
      %v4090 = vmax.f32 %v4088, %v1941
      %v4091 = vmax.f32 %v4089, %v1944
      %v4092 = vmax.f32 %v4090, %v1947
      %v4093 = vmax.f32 %v4091, %v1950
      %v4094 = vmax.f32 %v4092, %v1953
      %v4095 = vmax.f32 %v4093, %v1956
      %v4096 = vmax.f32 %v4094, %v1959
      %v4097 = vmax.f32 %v4095, %v1962
      %v4098 = vmax.f32 %v4096, %v1965
      %v4099 = vmax.f32 %v4097, %v1968
      %v4100 = vmax.f32 %v4098, %v1971
      %v4101 = vmax.f32 %v4099, %v1974
      %v4102 = vmax.f32 %v4100, %v1977
      %v4103 = vmax.f32 %v4101, %v1980
      %v4104 = vmax.f32 %v4102, %v1983
      %v4105 = vmax.f32 %v4103, %v1986
      %v4106 = vmax.f32 %v4104, %v1989
      %v4107 = vmax.f32 %v4105, %v1992
      %v4108 = vmax.f32 %v4106, %v1995
      %v4109 = vmax.f32 %v4107, %v1998
      %v4110 = vmax.f32 %v4108, %v2001
      %v4111 = vmax.f32 %v4109, %v2004
      %v4112 = vmax.f32 %v4110, %v2007
      %v4113 = vmax.f32 %v4111, %v2010
      %v4114 = vmax.f32 %v4112, %v2013
      %v4115 = vmax.f32 %v4113, %v2016
      %v4116 = vmax.f32 %v4114, %v2019
      %v4117 = vmax.f32 %v4115, %v2022
      %v4118 = vmax.f32 %v4116, %v2025
      %v4119 = vmax.f32 %v4117, %v2028
      %v4120 = vmax.f32 %v4118, %v2031
      %v4121 = vmax.f32 %v4119, %v2034
      %v4122 = vmax.f32 %v4120, %v2037
      %v4123 = vmax.f32 %v4121, %v2040
      %v4124 = vmax.f32 %v4122, %v2043
      %v4125 = vmax.f32 %v4123, %v2046
      %v4126 = vmax.f32 %v4124, %v2049
      %v4127 = vmax.f32 %v4125, %v2052
      %v4128 = vmax.f32 %v4126, %v2055
      %v4129 = vmax.f32 %v4127, %v2058
      %v4130 = vmax.f32 %v4128, %v2061
      %v4131 = vmax.f32 %v4129, %v2064
      %v4132 = vmax.f32 %v4130, %v4131
      %v4133 = vrot.slane %v4132, 4
      %v4134 = vmax.f32 %v4132, %v4133
      %v4135 = vrot.slane %v4134, 2
      %v4136 = vmax.f32 %v4134, %v4135
      %v4137 = vrot.slane %v4136, 1
      %v4138 = vmax.f32 %v4136, %v4137
      %v4139 = vmax.f32 %v2084, %v2090
      %v4140 = vmax.f32 %v2087, %v2093
      %v4141 = vmax.f32 %v4139, %v2096
      %v4142 = vmax.f32 %v4140, %v2099
      %v4143 = vmax.f32 %v4141, %v2102
      %v4144 = vmax.f32 %v4142, %v2105
      %v4145 = vmax.f32 %v4143, %v2108
      %v4146 = vmax.f32 %v4144, %v2111
      %v4147 = vmax.f32 %v4145, %v2114
      %v4148 = vmax.f32 %v4146, %v2117
      %v4149 = vmax.f32 %v4147, %v2120
      %v4150 = vmax.f32 %v4148, %v2123
      %v4151 = vmax.f32 %v4149, %v2126
      %v4152 = vmax.f32 %v4150, %v2129
      %v4153 = vmax.f32 %v4151, %v2132
      %v4154 = vmax.f32 %v4152, %v2135
      %v4155 = vmax.f32 %v4153, %v2138
      %v4156 = vmax.f32 %v4154, %v2141
      %v4157 = vmax.f32 %v4155, %v2144
      %v4158 = vmax.f32 %v4156, %v2147
      %v4159 = vmax.f32 %v4157, %v2150
      %v4160 = vmax.f32 %v4158, %v2153
      %v4161 = vmax.f32 %v4159, %v2156
      %v4162 = vmax.f32 %v4160, %v2159
      %v4163 = vmax.f32 %v4161, %v2162
      %v4164 = vmax.f32 %v4162, %v2165
      %v4165 = vmax.f32 %v4163, %v2168
      %v4166 = vmax.f32 %v4164, %v2171
      %v4167 = vmax.f32 %v4165, %v2174
      %v4168 = vmax.f32 %v4166, %v2177
      %v4169 = vmax.f32 %v4167, %v2180
      %v4170 = vmax.f32 %v4168, %v2183
      %v4171 = vmax.f32 %v4169, %v2186
      %v4172 = vmax.f32 %v4170, %v2189
      %v4173 = vmax.f32 %v4171, %v2192
      %v4174 = vmax.f32 %v4172, %v2195
      %v4175 = vmax.f32 %v4173, %v2198
      %v4176 = vmax.f32 %v4174, %v2201
      %v4177 = vmax.f32 %v4175, %v2204
      %v4178 = vmax.f32 %v4176, %v2207
      %v4179 = vmax.f32 %v4177, %v2210
      %v4180 = vmax.f32 %v4178, %v2213
      %v4181 = vmax.f32 %v4179, %v2216
      %v4182 = vmax.f32 %v4180, %v2219
      %v4183 = vmax.f32 %v4181, %v2222
      %v4184 = vmax.f32 %v4182, %v2225
      %v4185 = vmax.f32 %v4183, %v2228
      %v4186 = vmax.f32 %v4184, %v2231
      %v4187 = vmax.f32 %v4185, %v2234
      %v4188 = vmax.f32 %v4186, %v2237
      %v4189 = vmax.f32 %v4187, %v2240
      %v4190 = vmax.f32 %v4188, %v2243
      %v4191 = vmax.f32 %v4189, %v2246
      %v4192 = vmax.f32 %v4190, %v2249
      %v4193 = vmax.f32 %v4191, %v2252
      %v4194 = vmax.f32 %v4192, %v2255
      %v4195 = vmax.f32 %v4193, %v2258
      %v4196 = vmax.f32 %v4194, %v2261
      %v4197 = vmax.f32 %v4195, %v2264
      %v4198 = vmax.f32 %v4196, %v2267
      %v4199 = vmax.f32 %v4197, %v2270
      %v4200 = vmax.f32 %v4198, %v2273
      %v4201 = vmax.f32 %v4199, %v4200
      %v4202 = vrot.slane %v4201, 4
      %v4203 = vmax.f32 %v4201, %v4202
      %v4204 = vrot.slane %v4203, 2
      %v4205 = vmax.f32 %v4203, %v4204
      %v4206 = vrot.slane %v4205, 1
      %v4207 = vmax.f32 %v4205, %v4206
      %v4210 = vrot.slane %v4207, 7
      %v4211 = vsel %vm3774, %v4138, %v4210
      %v4213 = vmax.f32 %v4069, %v4211
      %4214 = vst.msk [vmem:[%s431] sm:$0x3] %vm4067, %v4213
      %v4215 = vld [vmem:[%s435] sm:$0x3]
      %v4216 = vmin.f32 %v1875, %v1881
      %v4217 = vmin.f32 %v1878, %v1884
      %v4218 = vmin.f32 %v4216, %v1887
      %v4219 = vmin.f32 %v4217, %v1890
      %v4220 = vmin.f32 %v4218, %v1893
      %v4221 = vmin.f32 %v4219, %v1896
      %v4222 = vmin.f32 %v4220, %v1899
      %v4223 = vmin.f32 %v4221, %v1902
      %v4224 = vmin.f32 %v4222, %v1905
      %v4225 = vmin.f32 %v4223, %v1908
      %v4226 = vmin.f32 %v4224, %v1911
      %v4227 = vmin.f32 %v4225, %v1914
      %v4228 = vmin.f32 %v4226, %v1917
      %v4229 = vmin.f32 %v4227, %v1920
      %v4230 = vmin.f32 %v4228, %v1923
      %v4231 = vmin.f32 %v4229, %v1926
      %v4232 = vmin.f32 %v4230, %v1929
      %v4233 = vmin.f32 %v4231, %v1932
      %v4234 = vmin.f32 %v4232, %v1935
      %v4235 = vmin.f32 %v4233, %v1938
      %v4236 = vmin.f32 %v4234, %v1941
      %v4237 = vmin.f32 %v4235, %v1944
      %v4238 = vmin.f32 %v4236, %v1947
      %v4239 = vmin.f32 %v4237, %v1950
      %v4240 = vmin.f32 %v4238, %v1953
      %v4241 = vmin.f32 %v4239, %v1956
      %v4242 = vmin.f32 %v4240, %v1959
      %v4243 = vmin.f32 %v4241, %v1962
      %v4244 = vmin.f32 %v4242, %v1965
      %v4245 = vmin.f32 %v4243, %v1968
      %v4246 = vmin.f32 %v4244, %v1971
      %v4247 = vmin.f32 %v4245, %v1974
      %v4248 = vmin.f32 %v4246, %v1977
      %v4249 = vmin.f32 %v4247, %v1980
      %v4250 = vmin.f32 %v4248, %v1983
      %v4251 = vmin.f32 %v4249, %v1986
      %v4252 = vmin.f32 %v4250, %v1989
      %v4253 = vmin.f32 %v4251, %v1992
      %v4254 = vmin.f32 %v4252, %v1995
      %v4255 = vmin.f32 %v4253, %v1998
      %v4256 = vmin.f32 %v4254, %v2001
      %v4257 = vmin.f32 %v4255, %v2004
      %v4258 = vmin.f32 %v4256, %v2007
      %v4259 = vmin.f32 %v4257, %v2010
      %v4260 = vmin.f32 %v4258, %v2013
      %v4261 = vmin.f32 %v4259, %v2016
      %v4262 = vmin.f32 %v4260, %v2019
      %v4263 = vmin.f32 %v4261, %v2022
      %v4264 = vmin.f32 %v4262, %v2025
      %v4265 = vmin.f32 %v4263, %v2028
      %v4266 = vmin.f32 %v4264, %v2031
      %v4267 = vmin.f32 %v4265, %v2034
      %v4268 = vmin.f32 %v4266, %v2037
      %v4269 = vmin.f32 %v4267, %v2040
      %v4270 = vmin.f32 %v4268, %v2043
      %v4271 = vmin.f32 %v4269, %v2046
      %v4272 = vmin.f32 %v4270, %v2049
      %v4273 = vmin.f32 %v4271, %v2052
      %v4274 = vmin.f32 %v4272, %v2055
      %v4275 = vmin.f32 %v4273, %v2058
      %v4276 = vmin.f32 %v4274, %v2061
      %v4277 = vmin.f32 %v4275, %v2064
      %v4278 = vmin.f32 %v4276, %v4277
      %v4279 = vrot.slane %v4278, 4
      %v4280 = vmin.f32 %v4278, %v4279
      %v4281 = vrot.slane %v4280, 2
      %v4282 = vmin.f32 %v4280, %v4281
      %v4283 = vrot.slane %v4282, 1
      %v4284 = vmin.f32 %v4282, %v4283
      %v4285 = vmin.f32 %v2084, %v2090
      %v4286 = vmin.f32 %v2087, %v2093
      %v4287 = vmin.f32 %v4285, %v2096
      %v4288 = vmin.f32 %v4286, %v2099
      %v4289 = vmin.f32 %v4287, %v2102
      %v4290 = vmin.f32 %v4288, %v2105
      %v4291 = vmin.f32 %v4289, %v2108
      %v4292 = vmin.f32 %v4290, %v2111
      %v4293 = vmin.f32 %v4291, %v2114
      %v4294 = vmin.f32 %v4292, %v2117
      %v4295 = vmin.f32 %v4293, %v2120
      %v4296 = vmin.f32 %v4294, %v2123
      %v4297 = vmin.f32 %v4295, %v2126
      %v4298 = vmin.f32 %v4296, %v2129
      %v4299 = vmin.f32 %v4297, %v2132
      %v4300 = vmin.f32 %v4298, %v2135
      %v4301 = vmin.f32 %v4299, %v2138
      %v4302 = vmin.f32 %v4300, %v2141
      %v4303 = vmin.f32 %v4301, %v2144
      %v4304 = vmin.f32 %v4302, %v2147
      %v4305 = vmin.f32 %v4303, %v2150
      %v4306 = vmin.f32 %v4304, %v2153
      %v4307 = vmin.f32 %v4305, %v2156
      %v4308 = vmin.f32 %v4306, %v2159
      %v4309 = vmin.f32 %v4307, %v2162
      %v4310 = vmin.f32 %v4308, %v2165
      %v4311 = vmin.f32 %v4309, %v2168
      %v4312 = vmin.f32 %v4310, %v2171
      %v4313 = vmin.f32 %v4311, %v2174
      %v4314 = vmin.f32 %v4312, %v2177
      %v4315 = vmin.f32 %v4313, %v2180
      %v4316 = vmin.f32 %v4314, %v2183
      %v4317 = vmin.f32 %v4315, %v2186
      %v4318 = vmin.f32 %v4316, %v2189
      %v4319 = vmin.f32 %v4317, %v2192
      %v4320 = vmin.f32 %v4318, %v2195
      %v4321 = vmin.f32 %v4319, %v2198
      %v4322 = vmin.f32 %v4320, %v2201
      %v4323 = vmin.f32 %v4321, %v2204
      %v4324 = vmin.f32 %v4322, %v2207
      %v4325 = vmin.f32 %v4323, %v2210
      %v4326 = vmin.f32 %v4324, %v2213
      %v4327 = vmin.f32 %v4325, %v2216
      %v4328 = vmin.f32 %v4326, %v2219
      %v4329 = vmin.f32 %v4327, %v2222
      %v4330 = vmin.f32 %v4328, %v2225
      %v4331 = vmin.f32 %v4329, %v2228
      %v4332 = vmin.f32 %v4330, %v2231
      %v4333 = vmin.f32 %v4331, %v2234
      %v4334 = vmin.f32 %v4332, %v2237
      %v4335 = vmin.f32 %v4333, %v2240
      %v4336 = vmin.f32 %v4334, %v2243
      %v4337 = vmin.f32 %v4335, %v2246
      %v4338 = vmin.f32 %v4336, %v2249
      %v4339 = vmin.f32 %v4337, %v2252
      %v4340 = vmin.f32 %v4338, %v2255
      %v4341 = vmin.f32 %v4339, %v2258
      %v4342 = vmin.f32 %v4340, %v2261
      %v4343 = vmin.f32 %v4341, %v2264
      %v4344 = vmin.f32 %v4342, %v2267
      %v4345 = vmin.f32 %v4343, %v2270
      %v4346 = vmin.f32 %v4344, %v2273
      %v4347 = vmin.f32 %v4345, %v4346
      %v4348 = vrot.slane %v4347, 4
      %v4349 = vmin.f32 %v4347, %v4348
      %v4350 = vrot.slane %v4349, 2
      %v4351 = vmin.f32 %v4349, %v4350
      %v4352 = vrot.slane %v4351, 1
      %v4353 = vmin.f32 %v4351, %v4352
      %v4356 = vrot.slane %v4353, 7
      %v4357 = vsel %vm3774, %v4284, %v4356
      %v4359 = vmin.f32 %v4215, %v4357
      %4360 = vst.msk [vmem:[%s435] sm:$0x3] %vm4067, %v4359
      %v4361 = vld [vmem:[%s443 + $0x2] sm:$0x3]
      %v4362 = vmul.f32 %v2293, %v2293
      %v4363 = vmul.f32 %v2502, %v2502
      %v4364 = vmul.f32 %v2296, %v2296
      %v4365 = vmul.f32 %v2505, %v2505
      %v4366 = vmul.f32 %v2299, %v2299
      %v4367 = vmul.f32 %v2508, %v2508
      %v4368 = vmul.f32 %v2302, %v2302
      %v4369 = vmul.f32 %v2511, %v2511
      %v4370 = vmul.f32 %v2305, %v2305
      %v4371 = vmul.f32 %v2514, %v2514
      %v4372 = vmul.f32 %v2308, %v2308
      %v4373 = vmul.f32 %v2517, %v2517
      %v4374 = vmul.f32 %v2311, %v2311
      %v4375 = vmul.f32 %v2520, %v2520
      %v4376 = vmul.f32 %v2314, %v2314
      %v4377 = vmul.f32 %v2523, %v2523
      %v4378 = vmul.f32 %v2317, %v2317
      %v4379 = vmul.f32 %v2526, %v2526
      %v4380 = vmul.f32 %v2320, %v2320
      %v4381 = vmul.f32 %v2529, %v2529
      %v4382 = vmul.f32 %v2323, %v2323
      %v4383 = vmul.f32 %v2532, %v2532
      %v4384 = vmul.f32 %v2326, %v2326
      %v4385 = vmul.f32 %v2535, %v2535
      %v4386 = vmul.f32 %v2329, %v2329
      %v4387 = vmul.f32 %v2538, %v2538
      %v4388 = vmul.f32 %v2332, %v2332
      %v4389 = vmul.f32 %v2541, %v2541
      %v4390 = vmul.f32 %v2335, %v2335
      %v4391 = vmul.f32 %v2544, %v2544
      %v4392 = vmul.f32 %v2338, %v2338
      %v4393 = vmul.f32 %v2547, %v2547
      %v4394 = vmul.f32 %v2341, %v2341
      %v4395 = vmul.f32 %v2550, %v2550
      %v4396 = vmul.f32 %v2344, %v2344
      %v4397 = vmul.f32 %v2553, %v2553
      %v4398 = vmul.f32 %v2347, %v2347
      %v4399 = vmul.f32 %v2556, %v2556
      %v4400 = vmul.f32 %v2350, %v2350
      %v4401 = vmul.f32 %v2559, %v2559
      %v4402 = vmul.f32 %v2353, %v2353
      %v4403 = vmul.f32 %v2562, %v2562
      %v4404 = vmul.f32 %v2356, %v2356
      %v4405 = vmul.f32 %v2565, %v2565
      %v4406 = vmul.f32 %v2359, %v2359
      %v4407 = vmul.f32 %v2568, %v2568
      %v4408 = vmul.f32 %v2362, %v2362
      %v4409 = vmul.f32 %v2571, %v2571
      %v4410 = vmul.f32 %v2365, %v2365
      %v4411 = vmul.f32 %v2574, %v2574
      %v4412 = vmul.f32 %v2368, %v2368
      %v4413 = vmul.f32 %v2577, %v2577
      %v4414 = vmul.f32 %v2371, %v2371
      %v4415 = vmul.f32 %v2580, %v2580
      %v4416 = vmul.f32 %v2374, %v2374
      %v4417 = vmul.f32 %v2583, %v2583
      %v4418 = vmul.f32 %v2377, %v2377
      %v4419 = vmul.f32 %v2586, %v2586
      %v4420 = vmul.f32 %v2380, %v2380
      %v4421 = vmul.f32 %v2589, %v2589
      %v4422 = vmul.f32 %v2383, %v2383
      %v4423 = vmul.f32 %v2592, %v2592
      %v4424 = vmul.f32 %v2386, %v2386
      %v4425 = vmul.f32 %v2595, %v2595
      %v4426 = vmul.f32 %v2389, %v2389
      %v4427 = vmul.f32 %v2598, %v2598
      %v4428 = vmul.f32 %v2392, %v2392
      %v4429 = vmul.f32 %v2601, %v2601
      %v4430 = vmul.f32 %v2395, %v2395
      %v4431 = vmul.f32 %v2604, %v2604
      %v4432 = vmul.f32 %v2398, %v2398
      %v4433 = vmul.f32 %v2607, %v2607
      %v4434 = vmul.f32 %v2401, %v2401
      %v4435 = vmul.f32 %v2610, %v2610
      %v4436 = vmul.f32 %v2404, %v2404
      %v4437 = vmul.f32 %v2613, %v2613
      %v4438 = vmul.f32 %v2407, %v2407
      %v4439 = vmul.f32 %v2616, %v2616
      %v4440 = vmul.f32 %v2410, %v2410
      %v4441 = vmul.f32 %v2619, %v2619
      %v4442 = vmul.f32 %v2413, %v2413
      %v4443 = vmul.f32 %v2622, %v2622
      %v4444 = vmul.f32 %v2416, %v2416
      %v4445 = vmul.f32 %v2625, %v2625
      %v4446 = vmul.f32 %v2419, %v2419
      %v4447 = vmul.f32 %v2628, %v2628
      %v4448 = vmul.f32 %v2422, %v2422
      %v4449 = vmul.f32 %v2631, %v2631
      %v4450 = vmul.f32 %v2425, %v2425
      %v4451 = vmul.f32 %v2634, %v2634
      %v4452 = vmul.f32 %v2428, %v2428
      %v4453 = vmul.f32 %v2637, %v2637
      %v4454 = vmul.f32 %v2431, %v2431
      %v4455 = vmul.f32 %v2640, %v2640
      %v4456 = vmul.f32 %v2434, %v2434
      %v4457 = vmul.f32 %v2643, %v2643
      %v4458 = vmul.f32 %v2437, %v2437
      %v4459 = vmul.f32 %v2646, %v2646
      %v4460 = vmul.f32 %v2440, %v2440
      %v4461 = vmul.f32 %v2649, %v2649
      %v4462 = vmul.f32 %v2443, %v2443
      %v4463 = vmul.f32 %v2652, %v2652
      %v4464 = vmul.f32 %v2446, %v2446
      %v4465 = vmul.f32 %v2655, %v2655
      %v4466 = vmul.f32 %v2449, %v2449
      %v4467 = vmul.f32 %v2658, %v2658
      %v4468 = vmul.f32 %v2452, %v2452
      %v4469 = vmul.f32 %v2661, %v2661
      %v4470 = vmul.f32 %v2455, %v2455
      %v4471 = vmul.f32 %v2664, %v2664
      %v4472 = vmul.f32 %v2458, %v2458
      %v4473 = vmul.f32 %v2667, %v2667
      %v4474 = vmul.f32 %v2461, %v2461
      %v4475 = vmul.f32 %v2670, %v2670
      %v4476 = vmul.f32 %v2464, %v2464
      %v4477 = vmul.f32 %v2673, %v2673
      %v4478 = vmul.f32 %v2467, %v2467
      %v4479 = vmul.f32 %v2676, %v2676
      %v4480 = vmul.f32 %v2470, %v2470
      %v4481 = vmul.f32 %v2679, %v2679
      %v4482 = vmul.f32 %v2473, %v2473
      %v4483 = vmul.f32 %v2682, %v2682
      %v4484 = vmul.f32 %v2476, %v2476
      %v4485 = vmul.f32 %v2685, %v2685
      %v4486 = vmul.f32 %v2479, %v2479
      %v4487 = vmul.f32 %v2688, %v2688
      %v4488 = vmul.f32 %v2482, %v2482
      %v4489 = vmul.f32 %v2691, %v2691
      %v4490 = vadd.f32 %v4362, %v4364
      %v4491 = vadd.f32 %v4490, %v4366
      %v4492 = vadd.f32 %v4491, %v4368
      %v4493 = vadd.f32 %v4492, %v4370
      %v4494 = vadd.f32 %v4493, %v4372
      %v4495 = vadd.f32 %v4494, %v4374
      %v4496 = vadd.f32 %v4495, %v4376
      %v4497 = vadd.f32 %v4496, %v4378
      %v4498 = vadd.f32 %v4497, %v4380
      %v4499 = vadd.f32 %v4498, %v4382
      %v4500 = vadd.f32 %v4499, %v4384
      %v4501 = vadd.f32 %v4500, %v4386
      %v4502 = vadd.f32 %v4501, %v4388
      %v4503 = vadd.f32 %v4502, %v4390
      %v4504 = vadd.f32 %v4503, %v4392
      %v4505 = vadd.f32 %v4504, %v4394
      %v4506 = vadd.f32 %v4505, %v4396
      %v4507 = vadd.f32 %v4506, %v4398
      %v4508 = vadd.f32 %v4507, %v4400
      %v4509 = vadd.f32 %v4508, %v4402
      %v4510 = vadd.f32 %v4509, %v4404
      %v4511 = vadd.f32 %v4510, %v4406
      %v4512 = vadd.f32 %v4511, %v4408
      %v4513 = vadd.f32 %v4512, %v4410
      %v4514 = vadd.f32 %v4513, %v4412
      %v4515 = vadd.f32 %v4514, %v4414
      %v4516 = vadd.f32 %v4515, %v4416
      %v4517 = vadd.f32 %v4516, %v4418
      %v4518 = vadd.f32 %v4517, %v4420
      %v4519 = vadd.f32 %v4518, %v4422
      %v4520 = vadd.f32 %v4519, %v4424
      %v4521 = vadd.f32 %v4520, %v4426
      %v4522 = vadd.f32 %v4521, %v4428
      %v4523 = vadd.f32 %v4522, %v4430
      %v4524 = vadd.f32 %v4523, %v4432
      %v4525 = vadd.f32 %v4524, %v4434
      %v4526 = vadd.f32 %v4525, %v4436
      %v4527 = vadd.f32 %v4526, %v4438
      %v4528 = vadd.f32 %v4527, %v4440
      %v4529 = vadd.f32 %v4528, %v4442
      %v4530 = vadd.f32 %v4529, %v4444
      %v4531 = vadd.f32 %v4530, %v4446
      %v4532 = vadd.f32 %v4531, %v4448
      %v4533 = vadd.f32 %v4532, %v4450
      %v4534 = vadd.f32 %v4533, %v4452
      %v4535 = vadd.f32 %v4534, %v4454
      %v4536 = vadd.f32 %v4535, %v4456
      %v4537 = vadd.f32 %v4536, %v4458
      %v4538 = vadd.f32 %v4537, %v4460
      %v4539 = vadd.f32 %v4538, %v4462
      %v4540 = vadd.f32 %v4539, %v4464
      %v4541 = vadd.f32 %v4540, %v4466
      %v4542 = vadd.f32 %v4541, %v4468
      %v4543 = vadd.f32 %v4542, %v4470
      %v4544 = vadd.f32 %v4543, %v4472
      %v4545 = vadd.f32 %v4544, %v4474
      %v4546 = vadd.f32 %v4545, %v4476
      %v4547 = vadd.f32 %v4546, %v4478
      %v4548 = vadd.f32 %v4547, %v4480
      %v4549 = vadd.f32 %v4548, %v4482
      %v4550 = vadd.f32 %v4549, %v4484
      %v4551 = vadd.f32 %v4550, %v4486
      %v4552 = vadd.f32 %v4551, %v4488
      %v4553 = vrot.slane %v4552, 4
      %v4554 = vadd.f32 %v4552, %v4553
      %v4555 = vrot.slane %v4554, 2
      %v4556 = vadd.f32 %v4554, %v4555
      %v4557 = vrot.slane %v4556, 1
      %v4558 = vadd.f32 %v4556, %v4557
      %v4559 = vadd.f32 %v4363, %v4365
      %v4560 = vadd.f32 %v4559, %v4367
      %v4561 = vadd.f32 %v4560, %v4369
      %v4562 = vadd.f32 %v4561, %v4371
      %v4563 = vadd.f32 %v4562, %v4373
      %v4564 = vadd.f32 %v4563, %v4375
      %v4565 = vadd.f32 %v4564, %v4377
      %v4566 = vadd.f32 %v4565, %v4379
      %v4567 = vadd.f32 %v4566, %v4381
      %v4568 = vadd.f32 %v4567, %v4383
      %v4569 = vadd.f32 %v4568, %v4385
      %v4570 = vadd.f32 %v4569, %v4387
      %v4571 = vadd.f32 %v4570, %v4389
      %v4572 = vadd.f32 %v4571, %v4391
      %v4573 = vadd.f32 %v4572, %v4393
      %v4574 = vadd.f32 %v4573, %v4395
      %v4575 = vadd.f32 %v4574, %v4397
      %v4576 = vadd.f32 %v4575, %v4399
      %v4577 = vadd.f32 %v4576, %v4401
      %v4578 = vadd.f32 %v4577, %v4403
      %v4579 = vadd.f32 %v4578, %v4405
      %v4580 = vadd.f32 %v4579, %v4407
      %v4581 = vadd.f32 %v4580, %v4409
      %v4582 = vadd.f32 %v4581, %v4411
      %v4583 = vadd.f32 %v4582, %v4413
      %v4584 = vadd.f32 %v4583, %v4415
      %v4585 = vadd.f32 %v4584, %v4417
      %v4586 = vadd.f32 %v4585, %v4419
      %v4587 = vadd.f32 %v4586, %v4421
      %v4588 = vadd.f32 %v4587, %v4423
      %v4589 = vadd.f32 %v4588, %v4425
      %v4590 = vadd.f32 %v4589, %v4427
      %v4591 = vadd.f32 %v4590, %v4429
      %v4592 = vadd.f32 %v4591, %v4431
      %v4593 = vadd.f32 %v4592, %v4433
      %v4594 = vadd.f32 %v4593, %v4435
      %v4595 = vadd.f32 %v4594, %v4437
      %v4596 = vadd.f32 %v4595, %v4439
      %v4597 = vadd.f32 %v4596, %v4441
      %v4598 = vadd.f32 %v4597, %v4443
      %v4599 = vadd.f32 %v4598, %v4445
      %v4600 = vadd.f32 %v4599, %v4447
      %v4601 = vadd.f32 %v4600, %v4449
      %v4602 = vadd.f32 %v4601, %v4451
      %v4603 = vadd.f32 %v4602, %v4453
      %v4604 = vadd.f32 %v4603, %v4455
      %v4605 = vadd.f32 %v4604, %v4457
      %v4606 = vadd.f32 %v4605, %v4459
      %v4607 = vadd.f32 %v4606, %v4461
      %v4608 = vadd.f32 %v4607, %v4463
      %v4609 = vadd.f32 %v4608, %v4465
      %v4610 = vadd.f32 %v4609, %v4467
      %v4611 = vadd.f32 %v4610, %v4469
      %v4612 = vadd.f32 %v4611, %v4471
      %v4613 = vadd.f32 %v4612, %v4473
      %v4614 = vadd.f32 %v4613, %v4475
      %v4615 = vadd.f32 %v4614, %v4477
      %v4616 = vadd.f32 %v4615, %v4479
      %v4617 = vadd.f32 %v4616, %v4481
      %v4618 = vadd.f32 %v4617, %v4483
      %v4619 = vadd.f32 %v4618, %v4485
      %v4620 = vadd.f32 %v4619, %v4487
      %v4621 = vadd.f32 %v4620, %v4489
      %v4622 = vrot.slane %v4621, 4
      %v4623 = vadd.f32 %v4621, %v4622
      %v4624 = vrot.slane %v4623, 2
      %v4625 = vadd.f32 %v4623, %v4624
      %v4626 = vrot.slane %v4625, 1
      %v4627 = vadd.f32 %v4625, %v4626
      %v4630 = vrot.slane %v4627, 7
      %v4631 = vsel %vm3774, %v4558, %v4630
      %v4633 = vadd.f32 %v4361, %v4631
      %4634 = vst.msk [vmem:[%s443 + $0x2] sm:$0x3] %vm4067, %v4633
      %v4635 = vld [vmem:[%s431 + $0x2] sm:$0x3]
      %v4636 = vmax.f32 %v2293, %v2299
      %v4637 = vmax.f32 %v2296, %v2302
      %v4638 = vmax.f32 %v4636, %v2305
      %v4639 = vmax.f32 %v4637, %v2308
      %v4640 = vmax.f32 %v4638, %v2311
      %v4641 = vmax.f32 %v4639, %v2314
      %v4642 = vmax.f32 %v4640, %v2317
      %v4643 = vmax.f32 %v4641, %v2320
      %v4644 = vmax.f32 %v4642, %v2323
      %v4645 = vmax.f32 %v4643, %v2326
      %v4646 = vmax.f32 %v4644, %v2329
      %v4647 = vmax.f32 %v4645, %v2332
      %v4648 = vmax.f32 %v4646, %v2335
      %v4649 = vmax.f32 %v4647, %v2338
      %v4650 = vmax.f32 %v4648, %v2341
      %v4651 = vmax.f32 %v4649, %v2344
      %v4652 = vmax.f32 %v4650, %v2347
      %v4653 = vmax.f32 %v4651, %v2350
      %v4654 = vmax.f32 %v4652, %v2353
      %v4655 = vmax.f32 %v4653, %v2356
      %v4656 = vmax.f32 %v4654, %v2359
      %v4657 = vmax.f32 %v4655, %v2362
      %v4658 = vmax.f32 %v4656, %v2365
      %v4659 = vmax.f32 %v4657, %v2368
      %v4660 = vmax.f32 %v4658, %v2371
      %v4661 = vmax.f32 %v4659, %v2374
      %v4662 = vmax.f32 %v4660, %v2377
      %v4663 = vmax.f32 %v4661, %v2380
      %v4664 = vmax.f32 %v4662, %v2383
      %v4665 = vmax.f32 %v4663, %v2386
      %v4666 = vmax.f32 %v4664, %v2389
      %v4667 = vmax.f32 %v4665, %v2392
      %v4668 = vmax.f32 %v4666, %v2395
      %v4669 = vmax.f32 %v4667, %v2398
      %v4670 = vmax.f32 %v4668, %v2401
      %v4671 = vmax.f32 %v4669, %v2404
      %v4672 = vmax.f32 %v4670, %v2407
      %v4673 = vmax.f32 %v4671, %v2410
      %v4674 = vmax.f32 %v4672, %v2413
      %v4675 = vmax.f32 %v4673, %v2416
      %v4676 = vmax.f32 %v4674, %v2419
      %v4677 = vmax.f32 %v4675, %v2422
      %v4678 = vmax.f32 %v4676, %v2425
      %v4679 = vmax.f32 %v4677, %v2428
      %v4680 = vmax.f32 %v4678, %v2431
      %v4681 = vmax.f32 %v4679, %v2434
      %v4682 = vmax.f32 %v4680, %v2437
      %v4683 = vmax.f32 %v4681, %v2440
      %v4684 = vmax.f32 %v4682, %v2443
      %v4685 = vmax.f32 %v4683, %v2446
      %v4686 = vmax.f32 %v4684, %v2449
      %v4687 = vmax.f32 %v4685, %v2452
      %v4688 = vmax.f32 %v4686, %v2455
      %v4689 = vmax.f32 %v4687, %v2458
      %v4690 = vmax.f32 %v4688, %v2461
      %v4691 = vmax.f32 %v4689, %v2464
      %v4692 = vmax.f32 %v4690, %v2467
      %v4693 = vmax.f32 %v4691, %v2470
      %v4694 = vmax.f32 %v4692, %v2473
      %v4695 = vmax.f32 %v4693, %v2476
      %v4696 = vmax.f32 %v4694, %v2479
      %v4697 = vmax.f32 %v4695, %v2482
      %v4698 = vmax.f32 %v4696, %v4697
      %v4699 = vrot.slane %v4698, 4
      %v4700 = vmax.f32 %v4698, %v4699
      %v4701 = vrot.slane %v4700, 2
      %v4702 = vmax.f32 %v4700, %v4701
      %v4703 = vrot.slane %v4702, 1
      %v4704 = vmax.f32 %v4702, %v4703
      %v4705 = vmax.f32 %v2502, %v2508
      %v4706 = vmax.f32 %v2505, %v2511
      %v4707 = vmax.f32 %v4705, %v2514
      %v4708 = vmax.f32 %v4706, %v2517
      %v4709 = vmax.f32 %v4707, %v2520
      %v4710 = vmax.f32 %v4708, %v2523
      %v4711 = vmax.f32 %v4709, %v2526
      %v4712 = vmax.f32 %v4710, %v2529
      %v4713 = vmax.f32 %v4711, %v2532
      %v4714 = vmax.f32 %v4712, %v2535
      %v4715 = vmax.f32 %v4713, %v2538
      %v4716 = vmax.f32 %v4714, %v2541
      %v4717 = vmax.f32 %v4715, %v2544
      %v4718 = vmax.f32 %v4716, %v2547
      %v4719 = vmax.f32 %v4717, %v2550
      %v4720 = vmax.f32 %v4718, %v2553
      %v4721 = vmax.f32 %v4719, %v2556
      %v4722 = vmax.f32 %v4720, %v2559
      %v4723 = vmax.f32 %v4721, %v2562
      %v4724 = vmax.f32 %v4722, %v2565
      %v4725 = vmax.f32 %v4723, %v2568
      %v4726 = vmax.f32 %v4724, %v2571
      %v4727 = vmax.f32 %v4725, %v2574
      %v4728 = vmax.f32 %v4726, %v2577
      %v4729 = vmax.f32 %v4727, %v2580
      %v4730 = vmax.f32 %v4728, %v2583
      %v4731 = vmax.f32 %v4729, %v2586
      %v4732 = vmax.f32 %v4730, %v2589
      %v4733 = vmax.f32 %v4731, %v2592
      %v4734 = vmax.f32 %v4732, %v2595
      %v4735 = vmax.f32 %v4733, %v2598
      %v4736 = vmax.f32 %v4734, %v2601
      %v4737 = vmax.f32 %v4735, %v2604
      %v4738 = vmax.f32 %v4736, %v2607
      %v4739 = vmax.f32 %v4737, %v2610
      %v4740 = vmax.f32 %v4738, %v2613
      %v4741 = vmax.f32 %v4739, %v2616
      %v4742 = vmax.f32 %v4740, %v2619
      %v4743 = vmax.f32 %v4741, %v2622
      %v4744 = vmax.f32 %v4742, %v2625
      %v4745 = vmax.f32 %v4743, %v2628
      %v4746 = vmax.f32 %v4744, %v2631
      %v4747 = vmax.f32 %v4745, %v2634
      %v4748 = vmax.f32 %v4746, %v2637
      %v4749 = vmax.f32 %v4747, %v2640
      %v4750 = vmax.f32 %v4748, %v2643
      %v4751 = vmax.f32 %v4749, %v2646
      %v4752 = vmax.f32 %v4750, %v2649
      %v4753 = vmax.f32 %v4751, %v2652
      %v4754 = vmax.f32 %v4752, %v2655
      %v4755 = vmax.f32 %v4753, %v2658
      %v4756 = vmax.f32 %v4754, %v2661
      %v4757 = vmax.f32 %v4755, %v2664
      %v4758 = vmax.f32 %v4756, %v2667
      %v4759 = vmax.f32 %v4757, %v2670
      %v4760 = vmax.f32 %v4758, %v2673
      %v4761 = vmax.f32 %v4759, %v2676
      %v4762 = vmax.f32 %v4760, %v2679
      %v4763 = vmax.f32 %v4761, %v2682
      %v4764 = vmax.f32 %v4762, %v2685
      %v4765 = vmax.f32 %v4763, %v2688
      %v4766 = vmax.f32 %v4764, %v2691
      %v4767 = vmax.f32 %v4765, %v4766
      %v4768 = vrot.slane %v4767, 4
      %v4769 = vmax.f32 %v4767, %v4768
      %v4770 = vrot.slane %v4769, 2
      %v4771 = vmax.f32 %v4769, %v4770
      %v4772 = vrot.slane %v4771, 1
      %v4773 = vmax.f32 %v4771, %v4772
      %v4776 = vrot.slane %v4773, 7
      %v4777 = vsel %vm3774, %v4704, %v4776
      %v4779 = vmax.f32 %v4635, %v4777
      %4780 = vst.msk [vmem:[%s431 + $0x2] sm:$0x3] %vm4067, %v4779
      %v4781 = vld [vmem:[%s435 + $0x2] sm:$0x3]
      %v4782 = vmin.f32 %v2293, %v2299
      %v4783 = vmin.f32 %v2296, %v2302
      %v4784 = vmin.f32 %v4782, %v2305
      %v4785 = vmin.f32 %v4783, %v2308
      %v4786 = vmin.f32 %v4784, %v2311
      %v4787 = vmin.f32 %v4785, %v2314
      %v4788 = vmin.f32 %v4786, %v2317
      %v4789 = vmin.f32 %v4787, %v2320
      %v4790 = vmin.f32 %v4788, %v2323
      %v4791 = vmin.f32 %v4789, %v2326
      %v4792 = vmin.f32 %v4790, %v2329
      %v4793 = vmin.f32 %v4791, %v2332
      %v4794 = vmin.f32 %v4792, %v2335
      %v4795 = vmin.f32 %v4793, %v2338
      %v4796 = vmin.f32 %v4794, %v2341
      %v4797 = vmin.f32 %v4795, %v2344
      %v4798 = vmin.f32 %v4796, %v2347
      %v4799 = vmin.f32 %v4797, %v2350
      %v4800 = vmin.f32 %v4798, %v2353
      %v4801 = vmin.f32 %v4799, %v2356
      %v4802 = vmin.f32 %v4800, %v2359
      %v4803 = vmin.f32 %v4801, %v2362
      %v4804 = vmin.f32 %v4802, %v2365
      %v4805 = vmin.f32 %v4803, %v2368
      %v4806 = vmin.f32 %v4804, %v2371
      %v4807 = vmin.f32 %v4805, %v2374
      %v4808 = vmin.f32 %v4806, %v2377
      %v4809 = vmin.f32 %v4807, %v2380
      %v4810 = vmin.f32 %v4808, %v2383
      %v4811 = vmin.f32 %v4809, %v2386
      %v4812 = vmin.f32 %v4810, %v2389
      %v4813 = vmin.f32 %v4811, %v2392
      %v4814 = vmin.f32 %v4812, %v2395
      %v4815 = vmin.f32 %v4813, %v2398
      %v4816 = vmin.f32 %v4814, %v2401
      %v4817 = vmin.f32 %v4815, %v2404
      %v4818 = vmin.f32 %v4816, %v2407
      %v4819 = vmin.f32 %v4817, %v2410
      %v4820 = vmin.f32 %v4818, %v2413
      %v4821 = vmin.f32 %v4819, %v2416
      %v4822 = vmin.f32 %v4820, %v2419
      %v4823 = vmin.f32 %v4821, %v2422
      %v4824 = vmin.f32 %v4822, %v2425
      %v4825 = vmin.f32 %v4823, %v2428
      %v4826 = vmin.f32 %v4824, %v2431
      %v4827 = vmin.f32 %v4825, %v2434
      %v4828 = vmin.f32 %v4826, %v2437
      %v4829 = vmin.f32 %v4827, %v2440
      %v4830 = vmin.f32 %v4828, %v2443
      %v4831 = vmin.f32 %v4829, %v2446
      %v4832 = vmin.f32 %v4830, %v2449
      %v4833 = vmin.f32 %v4831, %v2452
      %v4834 = vmin.f32 %v4832, %v2455
      %v4835 = vmin.f32 %v4833, %v2458
      %v4836 = vmin.f32 %v4834, %v2461
      %v4837 = vmin.f32 %v4835, %v2464
      %v4838 = vmin.f32 %v4836, %v2467
      %v4839 = vmin.f32 %v4837, %v2470
      %v4840 = vmin.f32 %v4838, %v2473
      %v4841 = vmin.f32 %v4839, %v2476
      %v4842 = vmin.f32 %v4840, %v2479
      %v4843 = vmin.f32 %v4841, %v2482
      %v4844 = vmin.f32 %v4842, %v4843
      %v4845 = vrot.slane %v4844, 4
      %v4846 = vmin.f32 %v4844, %v4845
      %v4847 = vrot.slane %v4846, 2
      %v4848 = vmin.f32 %v4846, %v4847
      %v4849 = vrot.slane %v4848, 1
      %v4850 = vmin.f32 %v4848, %v4849
      %v4851 = vmin.f32 %v2502, %v2508
      %v4852 = vmin.f32 %v2505, %v2511
      %v4853 = vmin.f32 %v4851, %v2514
      %v4854 = vmin.f32 %v4852, %v2517
      %v4855 = vmin.f32 %v4853, %v2520
      %v4856 = vmin.f32 %v4854, %v2523
      %v4857 = vmin.f32 %v4855, %v2526
      %v4858 = vmin.f32 %v4856, %v2529
      %v4859 = vmin.f32 %v4857, %v2532
      %v4860 = vmin.f32 %v4858, %v2535
      %v4861 = vmin.f32 %v4859, %v2538
      %v4862 = vmin.f32 %v4860, %v2541
      %v4863 = vmin.f32 %v4861, %v2544
      %v4864 = vmin.f32 %v4862, %v2547
      %v4865 = vmin.f32 %v4863, %v2550
      %v4866 = vmin.f32 %v4864, %v2553
      %v4867 = vmin.f32 %v4865, %v2556
      %v4868 = vmin.f32 %v4866, %v2559
      %v4869 = vmin.f32 %v4867, %v2562
      %v4870 = vmin.f32 %v4868, %v2565
      %v4871 = vmin.f32 %v4869, %v2568
      %v4872 = vmin.f32 %v4870, %v2571
      %v4873 = vmin.f32 %v4871, %v2574
      %v4874 = vmin.f32 %v4872, %v2577
      %v4875 = vmin.f32 %v4873, %v2580
      %v4876 = vmin.f32 %v4874, %v2583
      %v4877 = vmin.f32 %v4875, %v2586
      %v4878 = vmin.f32 %v4876, %v2589
      %v4879 = vmin.f32 %v4877, %v2592
      %v4880 = vmin.f32 %v4878, %v2595
      %v4881 = vmin.f32 %v4879, %v2598
      %v4882 = vmin.f32 %v4880, %v2601
      %v4883 = vmin.f32 %v4881, %v2604
      %v4884 = vmin.f32 %v4882, %v2607
      %v4885 = vmin.f32 %v4883, %v2610
      %v4886 = vmin.f32 %v4884, %v2613
      %v4887 = vmin.f32 %v4885, %v2616
      %v4888 = vmin.f32 %v4886, %v2619
      %v4889 = vmin.f32 %v4887, %v2622
      %v4890 = vmin.f32 %v4888, %v2625
      %v4891 = vmin.f32 %v4889, %v2628
      %v4892 = vmin.f32 %v4890, %v2631
      %v4893 = vmin.f32 %v4891, %v2634
      %v4894 = vmin.f32 %v4892, %v2637
      %v4895 = vmin.f32 %v4893, %v2640
      %v4896 = vmin.f32 %v4894, %v2643
      %v4897 = vmin.f32 %v4895, %v2646
      %v4898 = vmin.f32 %v4896, %v2649
      %v4899 = vmin.f32 %v4897, %v2652
      %v4900 = vmin.f32 %v4898, %v2655
      %v4901 = vmin.f32 %v4899, %v2658
      %v4902 = vmin.f32 %v4900, %v2661
      %v4903 = vmin.f32 %v4901, %v2664
      %v4904 = vmin.f32 %v4902, %v2667
      %v4905 = vmin.f32 %v4903, %v2670
      %v4906 = vmin.f32 %v4904, %v2673
      %v4907 = vmin.f32 %v4905, %v2676
      %v4908 = vmin.f32 %v4906, %v2679
      %v4909 = vmin.f32 %v4907, %v2682
      %v4910 = vmin.f32 %v4908, %v2685
      %v4911 = vmin.f32 %v4909, %v2688
      %v4912 = vmin.f32 %v4910, %v2691
      %v4913 = vmin.f32 %v4911, %v4912
      %v4914 = vrot.slane %v4913, 4
      %v4915 = vmin.f32 %v4913, %v4914
      %v4916 = vrot.slane %v4915, 2
      %v4917 = vmin.f32 %v4915, %v4916
      %v4918 = vrot.slane %v4917, 1
      %v4919 = vmin.f32 %v4917, %v4918
      %v4922 = vrot.slane %v4919, 7
      %v4923 = vsel %vm3774, %v4850, %v4922
      %v4925 = vmin.f32 %v4781, %v4923
      %4926 = vst.msk [vmem:[%s435 + $0x2] sm:$0x3] %vm4067, %v4925
      %v4927 = vld [vmem:[%s443 + $0x4] sm:$0x3]
      %v4928 = vmul.f32 %v2711, %v2711
      %v4929 = vmul.f32 %v2920, %v2920
      %v4930 = vmul.f32 %v2714, %v2714
      %v4931 = vmul.f32 %v2923, %v2923
      %v4932 = vmul.f32 %v2717, %v2717
      %v4933 = vmul.f32 %v2926, %v2926
      %v4934 = vmul.f32 %v2720, %v2720
      %v4935 = vmul.f32 %v2929, %v2929
      %v4936 = vmul.f32 %v2723, %v2723
      %v4937 = vmul.f32 %v2932, %v2932
      %v4938 = vmul.f32 %v2726, %v2726
      %v4939 = vmul.f32 %v2935, %v2935
      %v4940 = vmul.f32 %v2729, %v2729
      %v4941 = vmul.f32 %v2938, %v2938
      %v4942 = vmul.f32 %v2732, %v2732
      %v4943 = vmul.f32 %v2941, %v2941
      %v4944 = vmul.f32 %v2735, %v2735
      %v4945 = vmul.f32 %v2944, %v2944
      %v4946 = vmul.f32 %v2738, %v2738
      %v4947 = vmul.f32 %v2947, %v2947
      %v4948 = vmul.f32 %v2741, %v2741
      %v4949 = vmul.f32 %v2950, %v2950
      %v4950 = vmul.f32 %v2744, %v2744
      %v4951 = vmul.f32 %v2953, %v2953
      %v4952 = vmul.f32 %v2747, %v2747
      %v4953 = vmul.f32 %v2956, %v2956
      %v4954 = vmul.f32 %v2750, %v2750
      %v4955 = vmul.f32 %v2959, %v2959
      %v4956 = vmul.f32 %v2753, %v2753
      %v4957 = vmul.f32 %v2962, %v2962
      %v4958 = vmul.f32 %v2756, %v2756
      %v4959 = vmul.f32 %v2965, %v2965
      %v4960 = vmul.f32 %v2759, %v2759
      %v4961 = vmul.f32 %v2968, %v2968
      %v4962 = vmul.f32 %v2762, %v2762
      %v4963 = vmul.f32 %v2971, %v2971
      %v4964 = vmul.f32 %v2765, %v2765
      %v4965 = vmul.f32 %v2974, %v2974
      %v4966 = vmul.f32 %v2768, %v2768
      %v4967 = vmul.f32 %v2977, %v2977
      %v4968 = vmul.f32 %v2771, %v2771
      %v4969 = vmul.f32 %v2980, %v2980
      %v4970 = vmul.f32 %v2774, %v2774
      %v4971 = vmul.f32 %v2983, %v2983
      %v4972 = vmul.f32 %v2777, %v2777
      %v4973 = vmul.f32 %v2986, %v2986
      %v4974 = vmul.f32 %v2780, %v2780
      %v4975 = vmul.f32 %v2989, %v2989
      %v4976 = vmul.f32 %v2783, %v2783
      %v4977 = vmul.f32 %v2992, %v2992
      %v4978 = vmul.f32 %v2786, %v2786
      %v4979 = vmul.f32 %v2995, %v2995
      %v4980 = vmul.f32 %v2789, %v2789
      %v4981 = vmul.f32 %v2998, %v2998
      %v4982 = vmul.f32 %v2792, %v2792
      %v4983 = vmul.f32 %v3001, %v3001
      %v4984 = vmul.f32 %v2795, %v2795
      %v4985 = vmul.f32 %v3004, %v3004
      %v4986 = vmul.f32 %v2798, %v2798
      %v4987 = vmul.f32 %v3007, %v3007
      %v4988 = vmul.f32 %v2801, %v2801
      %v4989 = vmul.f32 %v3010, %v3010
      %v4990 = vmul.f32 %v2804, %v2804
      %v4991 = vmul.f32 %v3013, %v3013
      %v4992 = vmul.f32 %v2807, %v2807
      %v4993 = vmul.f32 %v3016, %v3016
      %v4994 = vmul.f32 %v2810, %v2810
      %v4995 = vmul.f32 %v3019, %v3019
      %v4996 = vmul.f32 %v2813, %v2813
      %v4997 = vmul.f32 %v3022, %v3022
      %v4998 = vmul.f32 %v2816, %v2816
      %v4999 = vmul.f32 %v3025, %v3025
      %v5000 = vmul.f32 %v2819, %v2819
      %v5001 = vmul.f32 %v3028, %v3028
      %v5002 = vmul.f32 %v2822, %v2822
      %v5003 = vmul.f32 %v3031, %v3031
      %v5004 = vmul.f32 %v2825, %v2825
      %v5005 = vmul.f32 %v3034, %v3034
      %v5006 = vmul.f32 %v2828, %v2828
      %v5007 = vmul.f32 %v3037, %v3037
      %v5008 = vmul.f32 %v2831, %v2831
      %v5009 = vmul.f32 %v3040, %v3040
      %v5010 = vmul.f32 %v2834, %v2834
      %v5011 = vmul.f32 %v3043, %v3043
      %v5012 = vmul.f32 %v2837, %v2837
      %v5013 = vmul.f32 %v3046, %v3046
      %v5014 = vmul.f32 %v2840, %v2840
      %v5015 = vmul.f32 %v3049, %v3049
      %v5016 = vmul.f32 %v2843, %v2843
      %v5017 = vmul.f32 %v3052, %v3052
      %v5018 = vmul.f32 %v2846, %v2846
      %v5019 = vmul.f32 %v3055, %v3055
      %v5020 = vmul.f32 %v2849, %v2849
      %v5021 = vmul.f32 %v3058, %v3058
      %v5022 = vmul.f32 %v2852, %v2852
      %v5023 = vmul.f32 %v3061, %v3061
      %v5024 = vmul.f32 %v2855, %v2855
      %v5025 = vmul.f32 %v3064, %v3064
      %v5026 = vmul.f32 %v2858, %v2858
      %v5027 = vmul.f32 %v3067, %v3067
      %v5028 = vmul.f32 %v2861, %v2861
      %v5029 = vmul.f32 %v3070, %v3070
      %v5030 = vmul.f32 %v2864, %v2864
      %v5031 = vmul.f32 %v3073, %v3073
      %v5032 = vmul.f32 %v2867, %v2867
      %v5033 = vmul.f32 %v3076, %v3076
      %v5034 = vmul.f32 %v2870, %v2870
      %v5035 = vmul.f32 %v3079, %v3079
      %v5036 = vmul.f32 %v2873, %v2873
      %v5037 = vmul.f32 %v3082, %v3082
      %v5038 = vmul.f32 %v2876, %v2876
      %v5039 = vmul.f32 %v3085, %v3085
      %v5040 = vmul.f32 %v2879, %v2879
      %v5041 = vmul.f32 %v3088, %v3088
      %v5042 = vmul.f32 %v2882, %v2882
      %v5043 = vmul.f32 %v3091, %v3091
      %v5044 = vmul.f32 %v2885, %v2885
      %v5045 = vmul.f32 %v3094, %v3094
      %v5046 = vmul.f32 %v2888, %v2888
      %v5047 = vmul.f32 %v3097, %v3097
      %v5048 = vmul.f32 %v2891, %v2891
      %v5049 = vmul.f32 %v3100, %v3100
      %v5050 = vmul.f32 %v2894, %v2894
      %v5051 = vmul.f32 %v3103, %v3103
      %v5052 = vmul.f32 %v2897, %v2897
      %v5053 = vmul.f32 %v3106, %v3106
      %v5054 = vmul.f32 %v2900, %v2900
      %v5055 = vmul.f32 %v3109, %v3109
      %v5056 = vadd.f32 %v4928, %v4930
      %v5057 = vadd.f32 %v5056, %v4932
      %v5058 = vadd.f32 %v5057, %v4934
      %v5059 = vadd.f32 %v5058, %v4936
      %v5060 = vadd.f32 %v5059, %v4938
      %v5061 = vadd.f32 %v5060, %v4940
      %v5062 = vadd.f32 %v5061, %v4942
      %v5063 = vadd.f32 %v5062, %v4944
      %v5064 = vadd.f32 %v5063, %v4946
      %v5065 = vadd.f32 %v5064, %v4948
      %v5066 = vadd.f32 %v5065, %v4950
      %v5067 = vadd.f32 %v5066, %v4952
      %v5068 = vadd.f32 %v5067, %v4954
      %v5069 = vadd.f32 %v5068, %v4956
      %v5070 = vadd.f32 %v5069, %v4958
      %v5071 = vadd.f32 %v5070, %v4960
      %v5072 = vadd.f32 %v5071, %v4962
      %v5073 = vadd.f32 %v5072, %v4964
      %v5074 = vadd.f32 %v5073, %v4966
      %v5075 = vadd.f32 %v5074, %v4968
      %v5076 = vadd.f32 %v5075, %v4970
      %v5077 = vadd.f32 %v5076, %v4972
      %v5078 = vadd.f32 %v5077, %v4974
      %v5079 = vadd.f32 %v5078, %v4976
      %v5080 = vadd.f32 %v5079, %v4978
      %v5081 = vadd.f32 %v5080, %v4980
      %v5082 = vadd.f32 %v5081, %v4982
      %v5083 = vadd.f32 %v5082, %v4984
      %v5084 = vadd.f32 %v5083, %v4986
      %v5085 = vadd.f32 %v5084, %v4988
      %v5086 = vadd.f32 %v5085, %v4990
      %v5087 = vadd.f32 %v5086, %v4992
      %v5088 = vadd.f32 %v5087, %v4994
      %v5089 = vadd.f32 %v5088, %v4996
      %v5090 = vadd.f32 %v5089, %v4998
      %v5091 = vadd.f32 %v5090, %v5000
      %v5092 = vadd.f32 %v5091, %v5002
      %v5093 = vadd.f32 %v5092, %v5004
      %v5094 = vadd.f32 %v5093, %v5006
      %v5095 = vadd.f32 %v5094, %v5008
      %v5096 = vadd.f32 %v5095, %v5010
      %v5097 = vadd.f32 %v5096, %v5012
      %v5098 = vadd.f32 %v5097, %v5014
      %v5099 = vadd.f32 %v5098, %v5016
      %v5100 = vadd.f32 %v5099, %v5018
      %v5101 = vadd.f32 %v5100, %v5020
      %v5102 = vadd.f32 %v5101, %v5022
      %v5103 = vadd.f32 %v5102, %v5024
      %v5104 = vadd.f32 %v5103, %v5026
      %v5105 = vadd.f32 %v5104, %v5028
      %v5106 = vadd.f32 %v5105, %v5030
      %v5107 = vadd.f32 %v5106, %v5032
      %v5108 = vadd.f32 %v5107, %v5034
      %v5109 = vadd.f32 %v5108, %v5036
      %v5110 = vadd.f32 %v5109, %v5038
      %v5111 = vadd.f32 %v5110, %v5040
      %v5112 = vadd.f32 %v5111, %v5042
      %v5113 = vadd.f32 %v5112, %v5044
      %v5114 = vadd.f32 %v5113, %v5046
      %v5115 = vadd.f32 %v5114, %v5048
      %v5116 = vadd.f32 %v5115, %v5050
      %v5117 = vadd.f32 %v5116, %v5052
      %v5118 = vadd.f32 %v5117, %v5054
      %v5119 = vrot.slane %v5118, 4
      %v5120 = vadd.f32 %v5118, %v5119
      %v5121 = vrot.slane %v5120, 2
      %v5122 = vadd.f32 %v5120, %v5121
      %v5123 = vrot.slane %v5122, 1
      %v5124 = vadd.f32 %v5122, %v5123
      %v5125 = vadd.f32 %v4929, %v4931
      %v5126 = vadd.f32 %v5125, %v4933
      %v5127 = vadd.f32 %v5126, %v4935
      %v5128 = vadd.f32 %v5127, %v4937
      %v5129 = vadd.f32 %v5128, %v4939
      %v5130 = vadd.f32 %v5129, %v4941
      %v5131 = vadd.f32 %v5130, %v4943
      %v5132 = vadd.f32 %v5131, %v4945
      %v5133 = vadd.f32 %v5132, %v4947
      %v5134 = vadd.f32 %v5133, %v4949
      %v5135 = vadd.f32 %v5134, %v4951
      %v5136 = vadd.f32 %v5135, %v4953
      %v5137 = vadd.f32 %v5136, %v4955
      %v5138 = vadd.f32 %v5137, %v4957
      %v5139 = vadd.f32 %v5138, %v4959
      %v5140 = vadd.f32 %v5139, %v4961
      %v5141 = vadd.f32 %v5140, %v4963
      %v5142 = vadd.f32 %v5141, %v4965
      %v5143 = vadd.f32 %v5142, %v4967
      %v5144 = vadd.f32 %v5143, %v4969
      %v5145 = vadd.f32 %v5144, %v4971
      %v5146 = vadd.f32 %v5145, %v4973
      %v5147 = vadd.f32 %v5146, %v4975
      %v5148 = vadd.f32 %v5147, %v4977
      %v5149 = vadd.f32 %v5148, %v4979
      %v5150 = vadd.f32 %v5149, %v4981
      %v5151 = vadd.f32 %v5150, %v4983
      %v5152 = vadd.f32 %v5151, %v4985
      %v5153 = vadd.f32 %v5152, %v4987
      %v5154 = vadd.f32 %v5153, %v4989
      %v5155 = vadd.f32 %v5154, %v4991
      %v5156 = vadd.f32 %v5155, %v4993
      %v5157 = vadd.f32 %v5156, %v4995
      %v5158 = vadd.f32 %v5157, %v4997
      %v5159 = vadd.f32 %v5158, %v4999
      %v5160 = vadd.f32 %v5159, %v5001
      %v5161 = vadd.f32 %v5160, %v5003
      %v5162 = vadd.f32 %v5161, %v5005
      %v5163 = vadd.f32 %v5162, %v5007
      %v5164 = vadd.f32 %v5163, %v5009
      %v5165 = vadd.f32 %v5164, %v5011
      %v5166 = vadd.f32 %v5165, %v5013
      %v5167 = vadd.f32 %v5166, %v5015
      %v5168 = vadd.f32 %v5167, %v5017
      %v5169 = vadd.f32 %v5168, %v5019
      %v5170 = vadd.f32 %v5169, %v5021
      %v5171 = vadd.f32 %v5170, %v5023
      %v5172 = vadd.f32 %v5171, %v5025
      %v5173 = vadd.f32 %v5172, %v5027
      %v5174 = vadd.f32 %v5173, %v5029
      %v5175 = vadd.f32 %v5174, %v5031
      %v5176 = vadd.f32 %v5175, %v5033
      %v5177 = vadd.f32 %v5176, %v5035
      %v5178 = vadd.f32 %v5177, %v5037
      %v5179 = vadd.f32 %v5178, %v5039
      %v5180 = vadd.f32 %v5179, %v5041
      %v5181 = vadd.f32 %v5180, %v5043
      %v5182 = vadd.f32 %v5181, %v5045
      %v5183 = vadd.f32 %v5182, %v5047
      %v5184 = vadd.f32 %v5183, %v5049
      %v5185 = vadd.f32 %v5184, %v5051
      %v5186 = vadd.f32 %v5185, %v5053
      %v5187 = vadd.f32 %v5186, %v5055
      %v5188 = vrot.slane %v5187, 4
      %v5189 = vadd.f32 %v5187, %v5188
      %v5190 = vrot.slane %v5189, 2
      %v5191 = vadd.f32 %v5189, %v5190
      %v5192 = vrot.slane %v5191, 1
      %v5193 = vadd.f32 %v5191, %v5192
      %v5196 = vrot.slane %v5193, 7
      %v5197 = vsel %vm3774, %v5124, %v5196
      %v5199 = vadd.f32 %v4927, %v5197
      %5200 = vst.msk [vmem:[%s443 + $0x4] sm:$0x3] %vm4067, %v5199
      %v5201 = vld [vmem:[%s431 + $0x4] sm:$0x3]
      %v5202 = vmax.f32 %v2711, %v2717
      %v5203 = vmax.f32 %v2714, %v2720
      %v5204 = vmax.f32 %v5202, %v2723
      %v5205 = vmax.f32 %v5203, %v2726
      %v5206 = vmax.f32 %v5204, %v2729
      %v5207 = vmax.f32 %v5205, %v2732
      %v5208 = vmax.f32 %v5206, %v2735
      %v5209 = vmax.f32 %v5207, %v2738
      %v5210 = vmax.f32 %v5208, %v2741
      %v5211 = vmax.f32 %v5209, %v2744
      %v5212 = vmax.f32 %v5210, %v2747
      %v5213 = vmax.f32 %v5211, %v2750
      %v5214 = vmax.f32 %v5212, %v2753
      %v5215 = vmax.f32 %v5213, %v2756
      %v5216 = vmax.f32 %v5214, %v2759
      %v5217 = vmax.f32 %v5215, %v2762
      %v5218 = vmax.f32 %v5216, %v2765
      %v5219 = vmax.f32 %v5217, %v2768
      %v5220 = vmax.f32 %v5218, %v2771
      %v5221 = vmax.f32 %v5219, %v2774
      %v5222 = vmax.f32 %v5220, %v2777
      %v5223 = vmax.f32 %v5221, %v2780
      %v5224 = vmax.f32 %v5222, %v2783
      %v5225 = vmax.f32 %v5223, %v2786
      %v5226 = vmax.f32 %v5224, %v2789
      %v5227 = vmax.f32 %v5225, %v2792
      %v5228 = vmax.f32 %v5226, %v2795
      %v5229 = vmax.f32 %v5227, %v2798
      %v5230 = vmax.f32 %v5228, %v2801
      %v5231 = vmax.f32 %v5229, %v2804
      %v5232 = vmax.f32 %v5230, %v2807
      %v5233 = vmax.f32 %v5231, %v2810
      %v5234 = vmax.f32 %v5232, %v2813
      %v5235 = vmax.f32 %v5233, %v2816
      %v5236 = vmax.f32 %v5234, %v2819
      %v5237 = vmax.f32 %v5235, %v2822
      %v5238 = vmax.f32 %v5236, %v2825
      %v5239 = vmax.f32 %v5237, %v2828
      %v5240 = vmax.f32 %v5238, %v2831
      %v5241 = vmax.f32 %v5239, %v2834
      %v5242 = vmax.f32 %v5240, %v2837
      %v5243 = vmax.f32 %v5241, %v2840
      %v5244 = vmax.f32 %v5242, %v2843
      %v5245 = vmax.f32 %v5243, %v2846
      %v5246 = vmax.f32 %v5244, %v2849
      %v5247 = vmax.f32 %v5245, %v2852
      %v5248 = vmax.f32 %v5246, %v2855
      %v5249 = vmax.f32 %v5247, %v2858
      %v5250 = vmax.f32 %v5248, %v2861
      %v5251 = vmax.f32 %v5249, %v2864
      %v5252 = vmax.f32 %v5250, %v2867
      %v5253 = vmax.f32 %v5251, %v2870
      %v5254 = vmax.f32 %v5252, %v2873
      %v5255 = vmax.f32 %v5253, %v2876
      %v5256 = vmax.f32 %v5254, %v2879
      %v5257 = vmax.f32 %v5255, %v2882
      %v5258 = vmax.f32 %v5256, %v2885
      %v5259 = vmax.f32 %v5257, %v2888
      %v5260 = vmax.f32 %v5258, %v2891
      %v5261 = vmax.f32 %v5259, %v2894
      %v5262 = vmax.f32 %v5260, %v2897
      %v5263 = vmax.f32 %v5261, %v2900
      %v5264 = vmax.f32 %v5262, %v5263
      %v5265 = vrot.slane %v5264, 4
      %v5266 = vmax.f32 %v5264, %v5265
      %v5267 = vrot.slane %v5266, 2
      %v5268 = vmax.f32 %v5266, %v5267
      %v5269 = vrot.slane %v5268, 1
      %v5270 = vmax.f32 %v5268, %v5269
      %v5271 = vmax.f32 %v2920, %v2926
      %v5272 = vmax.f32 %v2923, %v2929
      %v5273 = vmax.f32 %v5271, %v2932
      %v5274 = vmax.f32 %v5272, %v2935
      %v5275 = vmax.f32 %v5273, %v2938
      %v5276 = vmax.f32 %v5274, %v2941
      %v5277 = vmax.f32 %v5275, %v2944
      %v5278 = vmax.f32 %v5276, %v2947
      %v5279 = vmax.f32 %v5277, %v2950
      %v5280 = vmax.f32 %v5278, %v2953
      %v5281 = vmax.f32 %v5279, %v2956
      %v5282 = vmax.f32 %v5280, %v2959
      %v5283 = vmax.f32 %v5281, %v2962
      %v5284 = vmax.f32 %v5282, %v2965
      %v5285 = vmax.f32 %v5283, %v2968
      %v5286 = vmax.f32 %v5284, %v2971
      %v5287 = vmax.f32 %v5285, %v2974
      %v5288 = vmax.f32 %v5286, %v2977
      %v5289 = vmax.f32 %v5287, %v2980
      %v5290 = vmax.f32 %v5288, %v2983
      %v5291 = vmax.f32 %v5289, %v2986
      %v5292 = vmax.f32 %v5290, %v2989
      %v5293 = vmax.f32 %v5291, %v2992
      %v5294 = vmax.f32 %v5292, %v2995
      %v5295 = vmax.f32 %v5293, %v2998
      %v5296 = vmax.f32 %v5294, %v3001
      %v5297 = vmax.f32 %v5295, %v3004
      %v5298 = vmax.f32 %v5296, %v3007
      %v5299 = vmax.f32 %v5297, %v3010
      %v5300 = vmax.f32 %v5298, %v3013
      %v5301 = vmax.f32 %v5299, %v3016
      %v5302 = vmax.f32 %v5300, %v3019
      %v5303 = vmax.f32 %v5301, %v3022
      %v5304 = vmax.f32 %v5302, %v3025
      %v5305 = vmax.f32 %v5303, %v3028
      %v5306 = vmax.f32 %v5304, %v3031
      %v5307 = vmax.f32 %v5305, %v3034
      %v5308 = vmax.f32 %v5306, %v3037
      %v5309 = vmax.f32 %v5307, %v3040
      %v5310 = vmax.f32 %v5308, %v3043
      %v5311 = vmax.f32 %v5309, %v3046
      %v5312 = vmax.f32 %v5310, %v3049
      %v5313 = vmax.f32 %v5311, %v3052
      %v5314 = vmax.f32 %v5312, %v3055
      %v5315 = vmax.f32 %v5313, %v3058
      %v5316 = vmax.f32 %v5314, %v3061
      %v5317 = vmax.f32 %v5315, %v3064
      %v5318 = vmax.f32 %v5316, %v3067
      %v5319 = vmax.f32 %v5317, %v3070
      %v5320 = vmax.f32 %v5318, %v3073
      %v5321 = vmax.f32 %v5319, %v3076
      %v5322 = vmax.f32 %v5320, %v3079
      %v5323 = vmax.f32 %v5321, %v3082
      %v5324 = vmax.f32 %v5322, %v3085
      %v5325 = vmax.f32 %v5323, %v3088
      %v5326 = vmax.f32 %v5324, %v3091
      %v5327 = vmax.f32 %v5325, %v3094
      %v5328 = vmax.f32 %v5326, %v3097
      %v5329 = vmax.f32 %v5327, %v3100
      %v5330 = vmax.f32 %v5328, %v3103
      %v5331 = vmax.f32 %v5329, %v3106
      %v5332 = vmax.f32 %v5330, %v3109
      %v5333 = vmax.f32 %v5331, %v5332
      %v5334 = vrot.slane %v5333, 4
      %v5335 = vmax.f32 %v5333, %v5334
      %v5336 = vrot.slane %v5335, 2
      %v5337 = vmax.f32 %v5335, %v5336
      %v5338 = vrot.slane %v5337, 1
      %v5339 = vmax.f32 %v5337, %v5338
      %v5342 = vrot.slane %v5339, 7
      %v5343 = vsel %vm3774, %v5270, %v5342
      %v5345 = vmax.f32 %v5201, %v5343
      %5346 = vst.msk [vmem:[%s431 + $0x4] sm:$0x3] %vm4067, %v5345
      %v5347 = vld [vmem:[%s435 + $0x4] sm:$0x3]
      %v5348 = vmin.f32 %v2711, %v2717
      %v5349 = vmin.f32 %v2714, %v2720
      %v5350 = vmin.f32 %v5348, %v2723
      %v5351 = vmin.f32 %v5349, %v2726
      %v5352 = vmin.f32 %v5350, %v2729
      %v5353 = vmin.f32 %v5351, %v2732
      %v5354 = vmin.f32 %v5352, %v2735
      %v5355 = vmin.f32 %v5353, %v2738
      %v5356 = vmin.f32 %v5354, %v2741
      %v5357 = vmin.f32 %v5355, %v2744
      %v5358 = vmin.f32 %v5356, %v2747
      %v5359 = vmin.f32 %v5357, %v2750
      %v5360 = vmin.f32 %v5358, %v2753
      %v5361 = vmin.f32 %v5359, %v2756
      %v5362 = vmin.f32 %v5360, %v2759
      %v5363 = vmin.f32 %v5361, %v2762
      %v5364 = vmin.f32 %v5362, %v2765
      %v5365 = vmin.f32 %v5363, %v2768
      %v5366 = vmin.f32 %v5364, %v2771
      %v5367 = vmin.f32 %v5365, %v2774
      %v5368 = vmin.f32 %v5366, %v2777
      %v5369 = vmin.f32 %v5367, %v2780
      %v5370 = vmin.f32 %v5368, %v2783
      %v5371 = vmin.f32 %v5369, %v2786
      %v5372 = vmin.f32 %v5370, %v2789
      %v5373 = vmin.f32 %v5371, %v2792
      %v5374 = vmin.f32 %v5372, %v2795
      %v5375 = vmin.f32 %v5373, %v2798
      %v5376 = vmin.f32 %v5374, %v2801
      %v5377 = vmin.f32 %v5375, %v2804
      %v5378 = vmin.f32 %v5376, %v2807
      %v5379 = vmin.f32 %v5377, %v2810
      %v5380 = vmin.f32 %v5378, %v2813
      %v5381 = vmin.f32 %v5379, %v2816
      %v5382 = vmin.f32 %v5380, %v2819
      %v5383 = vmin.f32 %v5381, %v2822
      %v5384 = vmin.f32 %v5382, %v2825
      %v5385 = vmin.f32 %v5383, %v2828
      %v5386 = vmin.f32 %v5384, %v2831
      %v5387 = vmin.f32 %v5385, %v2834
      %v5388 = vmin.f32 %v5386, %v2837
      %v5389 = vmin.f32 %v5387, %v2840
      %v5390 = vmin.f32 %v5388, %v2843
      %v5391 = vmin.f32 %v5389, %v2846
      %v5392 = vmin.f32 %v5390, %v2849
      %v5393 = vmin.f32 %v5391, %v2852
      %v5394 = vmin.f32 %v5392, %v2855
      %v5395 = vmin.f32 %v5393, %v2858
      %v5396 = vmin.f32 %v5394, %v2861
      %v5397 = vmin.f32 %v5395, %v2864
      %v5398 = vmin.f32 %v5396, %v2867
      %v5399 = vmin.f32 %v5397, %v2870
      %v5400 = vmin.f32 %v5398, %v2873
      %v5401 = vmin.f32 %v5399, %v2876
      %v5402 = vmin.f32 %v5400, %v2879
      %v5403 = vmin.f32 %v5401, %v2882
      %v5404 = vmin.f32 %v5402, %v2885
      %v5405 = vmin.f32 %v5403, %v2888
      %v5406 = vmin.f32 %v5404, %v2891
      %v5407 = vmin.f32 %v5405, %v2894
      %v5408 = vmin.f32 %v5406, %v2897
      %v5409 = vmin.f32 %v5407, %v2900
      %v5410 = vmin.f32 %v5408, %v5409
      %v5411 = vrot.slane %v5410, 4
      %v5412 = vmin.f32 %v5410, %v5411
      %v5413 = vrot.slane %v5412, 2
      %v5414 = vmin.f32 %v5412, %v5413
      %v5415 = vrot.slane %v5414, 1
      %v5416 = vmin.f32 %v5414, %v5415
      %v5417 = vmin.f32 %v2920, %v2926
      %v5418 = vmin.f32 %v2923, %v2929
      %v5419 = vmin.f32 %v5417, %v2932
      %v5420 = vmin.f32 %v5418, %v2935
      %v5421 = vmin.f32 %v5419, %v2938
      %v5422 = vmin.f32 %v5420, %v2941
      %v5423 = vmin.f32 %v5421, %v2944
      %v5424 = vmin.f32 %v5422, %v2947
      %v5425 = vmin.f32 %v5423, %v2950
      %v5426 = vmin.f32 %v5424, %v2953
      %v5427 = vmin.f32 %v5425, %v2956
      %v5428 = vmin.f32 %v5426, %v2959
      %v5429 = vmin.f32 %v5427, %v2962
      %v5430 = vmin.f32 %v5428, %v2965
      %v5431 = vmin.f32 %v5429, %v2968
      %v5432 = vmin.f32 %v5430, %v2971
      %v5433 = vmin.f32 %v5431, %v2974
      %v5434 = vmin.f32 %v5432, %v2977
      %v5435 = vmin.f32 %v5433, %v2980
      %v5436 = vmin.f32 %v5434, %v2983
      %v5437 = vmin.f32 %v5435, %v2986
      %v5438 = vmin.f32 %v5436, %v2989
      %v5439 = vmin.f32 %v5437, %v2992
      %v5440 = vmin.f32 %v5438, %v2995
      %v5441 = vmin.f32 %v5439, %v2998
      %v5442 = vmin.f32 %v5440, %v3001
      %v5443 = vmin.f32 %v5441, %v3004
      %v5444 = vmin.f32 %v5442, %v3007
      %v5445 = vmin.f32 %v5443, %v3010
      %v5446 = vmin.f32 %v5444, %v3013
      %v5447 = vmin.f32 %v5445, %v3016
      %v5448 = vmin.f32 %v5446, %v3019
      %v5449 = vmin.f32 %v5447, %v3022
      %v5450 = vmin.f32 %v5448, %v3025
      %v5451 = vmin.f32 %v5449, %v3028
      %v5452 = vmin.f32 %v5450, %v3031
      %v5453 = vmin.f32 %v5451, %v3034
      %v5454 = vmin.f32 %v5452, %v3037
      %v5455 = vmin.f32 %v5453, %v3040
      %v5456 = vmin.f32 %v5454, %v3043
      %v5457 = vmin.f32 %v5455, %v3046
      %v5458 = vmin.f32 %v5456, %v3049
      %v5459 = vmin.f32 %v5457, %v3052
      %v5460 = vmin.f32 %v5458, %v3055
      %v5461 = vmin.f32 %v5459, %v3058
      %v5462 = vmin.f32 %v5460, %v3061
      %v5463 = vmin.f32 %v5461, %v3064
      %v5464 = vmin.f32 %v5462, %v3067
      %v5465 = vmin.f32 %v5463, %v3070
      %v5466 = vmin.f32 %v5464, %v3073
      %v5467 = vmin.f32 %v5465, %v3076
      %v5468 = vmin.f32 %v5466, %v3079
      %v5469 = vmin.f32 %v5467, %v3082
      %v5470 = vmin.f32 %v5468, %v3085
      %v5471 = vmin.f32 %v5469, %v3088
      %v5472 = vmin.f32 %v5470, %v3091
      %v5473 = vmin.f32 %v5471, %v3094
      %v5474 = vmin.f32 %v5472, %v3097
      %v5475 = vmin.f32 %v5473, %v3100
      %v5476 = vmin.f32 %v5474, %v3103
      %v5477 = vmin.f32 %v5475, %v3106
      %v5478 = vmin.f32 %v5476, %v3109
      %v5479 = vmin.f32 %v5477, %v5478
      %v5480 = vrot.slane %v5479, 4
      %v5481 = vmin.f32 %v5479, %v5480
      %v5482 = vrot.slane %v5481, 2
      %v5483 = vmin.f32 %v5481, %v5482
      %v5484 = vrot.slane %v5483, 1
      %v5485 = vmin.f32 %v5483, %v5484
      %v5488 = vrot.slane %v5485, 7
      %v5489 = vsel %vm3774, %v5416, %v5488
      %v5491 = vmin.f32 %v5347, %v5489
      %5492 = vst.msk [vmem:[%s435 + $0x4] sm:$0x3] %vm4067, %v5491
      %v5493 = vld [vmem:[%s443 + $0x6] sm:$0x3]
      %v5494 = vmul.f32 %v3129, %v3129
      %v5495 = vmul.f32 %v3338, %v3338
      %v5496 = vmul.f32 %v3132, %v3132
      %v5497 = vmul.f32 %v3341, %v3341
      %v5498 = vmul.f32 %v3135, %v3135
      %v5499 = vmul.f32 %v3344, %v3344
      %v5500 = vmul.f32 %v3138, %v3138
      %v5501 = vmul.f32 %v3347, %v3347
      %v5502 = vmul.f32 %v3141, %v3141
      %v5503 = vmul.f32 %v3350, %v3350
      %v5504 = vmul.f32 %v3144, %v3144
      %v5505 = vmul.f32 %v3353, %v3353
      %v5506 = vmul.f32 %v3147, %v3147
      %v5507 = vmul.f32 %v3356, %v3356
      %v5508 = vmul.f32 %v3150, %v3150
      %v5509 = vmul.f32 %v3359, %v3359
      %v5510 = vmul.f32 %v3153, %v3153
      %v5511 = vmul.f32 %v3362, %v3362
      %v5512 = vmul.f32 %v3156, %v3156
      %v5513 = vmul.f32 %v3365, %v3365
      %v5514 = vmul.f32 %v3159, %v3159
      %v5515 = vmul.f32 %v3368, %v3368
      %v5516 = vmul.f32 %v3162, %v3162
      %v5517 = vmul.f32 %v3371, %v3371
      %v5518 = vmul.f32 %v3165, %v3165
      %v5519 = vmul.f32 %v3374, %v3374
      %v5520 = vmul.f32 %v3168, %v3168
      %v5521 = vmul.f32 %v3377, %v3377
      %v5522 = vmul.f32 %v3171, %v3171
      %v5523 = vmul.f32 %v3380, %v3380
      %v5524 = vmul.f32 %v3174, %v3174
      %v5525 = vmul.f32 %v3383, %v3383
      %v5526 = vmul.f32 %v3177, %v3177
      %v5527 = vmul.f32 %v3386, %v3386
      %v5528 = vmul.f32 %v3180, %v3180
      %v5529 = vmul.f32 %v3389, %v3389
      %v5530 = vmul.f32 %v3183, %v3183
      %v5531 = vmul.f32 %v3392, %v3392
      %v5532 = vmul.f32 %v3186, %v3186
      %v5533 = vmul.f32 %v3395, %v3395
      %v5534 = vmul.f32 %v3189, %v3189
      %v5535 = vmul.f32 %v3398, %v3398
      %v5536 = vmul.f32 %v3192, %v3192
      %v5537 = vmul.f32 %v3401, %v3401
      %v5538 = vmul.f32 %v3195, %v3195
      %v5539 = vmul.f32 %v3404, %v3404
      %v5540 = vmul.f32 %v3198, %v3198
      %v5541 = vmul.f32 %v3407, %v3407
      %v5542 = vmul.f32 %v3201, %v3201
      %v5543 = vmul.f32 %v3410, %v3410
      %v5544 = vmul.f32 %v3204, %v3204
      %v5545 = vmul.f32 %v3413, %v3413
      %v5546 = vmul.f32 %v3207, %v3207
      %v5547 = vmul.f32 %v3416, %v3416
      %v5548 = vmul.f32 %v3210, %v3210
      %v5549 = vmul.f32 %v3419, %v3419
      %v5550 = vmul.f32 %v3213, %v3213
      %v5551 = vmul.f32 %v3422, %v3422
      %v5552 = vmul.f32 %v3216, %v3216
      %v5553 = vmul.f32 %v3425, %v3425
      %v5554 = vmul.f32 %v3219, %v3219
      %v5555 = vmul.f32 %v3428, %v3428
      %v5556 = vmul.f32 %v3222, %v3222
      %v5557 = vmul.f32 %v3431, %v3431
      %v5558 = vmul.f32 %v3225, %v3225
      %v5559 = vmul.f32 %v3434, %v3434
      %v5560 = vmul.f32 %v3228, %v3228
      %v5561 = vmul.f32 %v3437, %v3437
      %v5562 = vmul.f32 %v3231, %v3231
      %v5563 = vmul.f32 %v3440, %v3440
      %v5564 = vmul.f32 %v3234, %v3234
      %v5565 = vmul.f32 %v3443, %v3443
      %v5566 = vmul.f32 %v3237, %v3237
      %v5567 = vmul.f32 %v3446, %v3446
      %v5568 = vmul.f32 %v3240, %v3240
      %v5569 = vmul.f32 %v3449, %v3449
      %v5570 = vmul.f32 %v3243, %v3243
      %v5571 = vmul.f32 %v3452, %v3452
      %v5572 = vmul.f32 %v3246, %v3246
      %v5573 = vmul.f32 %v3455, %v3455
      %v5574 = vmul.f32 %v3249, %v3249
      %v5575 = vmul.f32 %v3458, %v3458
      %v5576 = vmul.f32 %v3252, %v3252
      %v5577 = vmul.f32 %v3461, %v3461
      %v5578 = vmul.f32 %v3255, %v3255
      %v5579 = vmul.f32 %v3464, %v3464
      %v5580 = vmul.f32 %v3258, %v3258
      %v5581 = vmul.f32 %v3467, %v3467
      %v5582 = vmul.f32 %v3261, %v3261
      %v5583 = vmul.f32 %v3470, %v3470
      %v5584 = vmul.f32 %v3264, %v3264
      %v5585 = vmul.f32 %v3473, %v3473
      %v5586 = vmul.f32 %v3267, %v3267
      %v5587 = vmul.f32 %v3476, %v3476
      %v5588 = vmul.f32 %v3270, %v3270
      %v5589 = vmul.f32 %v3479, %v3479
      %v5590 = vmul.f32 %v3273, %v3273
      %v5591 = vmul.f32 %v3482, %v3482
      %v5592 = vmul.f32 %v3276, %v3276
      %v5593 = vmul.f32 %v3485, %v3485
      %v5594 = vmul.f32 %v3279, %v3279
      %v5595 = vmul.f32 %v3488, %v3488
      %v5596 = vmul.f32 %v3282, %v3282
      %v5597 = vmul.f32 %v3491, %v3491
      %v5598 = vmul.f32 %v3285, %v3285
      %v5599 = vmul.f32 %v3494, %v3494
      %v5600 = vmul.f32 %v3288, %v3288
      %v5601 = vmul.f32 %v3497, %v3497
      %v5602 = vmul.f32 %v3291, %v3291
      %v5603 = vmul.f32 %v3500, %v3500
      %v5604 = vmul.f32 %v3294, %v3294
      %v5605 = vmul.f32 %v3503, %v3503
      %v5606 = vmul.f32 %v3297, %v3297
      %v5607 = vmul.f32 %v3506, %v3506
      %v5608 = vmul.f32 %v3300, %v3300
      %v5609 = vmul.f32 %v3509, %v3509
      %v5610 = vmul.f32 %v3303, %v3303
      %v5611 = vmul.f32 %v3512, %v3512
      %v5612 = vmul.f32 %v3306, %v3306
      %v5613 = vmul.f32 %v3515, %v3515
      %v5614 = vmul.f32 %v3309, %v3309
      %v5615 = vmul.f32 %v3518, %v3518
      %v5616 = vmul.f32 %v3312, %v3312
      %v5617 = vmul.f32 %v3521, %v3521
      %v5618 = vmul.f32 %v3315, %v3315
      %v5619 = vmul.f32 %v3524, %v3524
      %v5620 = vmul.f32 %v3318, %v3318
      %v5621 = vmul.f32 %v3527, %v3527
      %v5622 = vadd.f32 %v5494, %v5496
      %v5623 = vadd.f32 %v5622, %v5498
      %v5624 = vadd.f32 %v5623, %v5500
      %v5625 = vadd.f32 %v5624, %v5502
      %v5626 = vadd.f32 %v5625, %v5504
      %v5627 = vadd.f32 %v5626, %v5506
      %v5628 = vadd.f32 %v5627, %v5508
      %v5629 = vadd.f32 %v5628, %v5510
      %v5630 = vadd.f32 %v5629, %v5512
      %v5631 = vadd.f32 %v5630, %v5514
      %v5632 = vadd.f32 %v5631, %v5516
      %v5633 = vadd.f32 %v5632, %v5518
      %v5634 = vadd.f32 %v5633, %v5520
      %v5635 = vadd.f32 %v5634, %v5522
      %v5636 = vadd.f32 %v5635, %v5524
      %v5637 = vadd.f32 %v5636, %v5526
      %v5638 = vadd.f32 %v5637, %v5528
      %v5639 = vadd.f32 %v5638, %v5530
      %v5640 = vadd.f32 %v5639, %v5532
      %v5641 = vadd.f32 %v5640, %v5534
      %v5642 = vadd.f32 %v5641, %v5536
      %v5643 = vadd.f32 %v5642, %v5538
      %v5644 = vadd.f32 %v5643, %v5540
      %v5645 = vadd.f32 %v5644, %v5542
      %v5646 = vadd.f32 %v5645, %v5544
      %v5647 = vadd.f32 %v5646, %v5546
      %v5648 = vadd.f32 %v5647, %v5548
      %v5649 = vadd.f32 %v5648, %v5550
      %v5650 = vadd.f32 %v5649, %v5552
      %v5651 = vadd.f32 %v5650, %v5554
      %v5652 = vadd.f32 %v5651, %v5556
      %v5653 = vadd.f32 %v5652, %v5558
      %v5654 = vadd.f32 %v5653, %v5560
      %v5655 = vadd.f32 %v5654, %v5562
      %v5656 = vadd.f32 %v5655, %v5564
      %v5657 = vadd.f32 %v5656, %v5566
      %v5658 = vadd.f32 %v5657, %v5568
      %v5659 = vadd.f32 %v5658, %v5570
      %v5660 = vadd.f32 %v5659, %v5572
      %v5661 = vadd.f32 %v5660, %v5574
      %v5662 = vadd.f32 %v5661, %v5576
      %v5663 = vadd.f32 %v5662, %v5578
      %v5664 = vadd.f32 %v5663, %v5580
      %v5665 = vadd.f32 %v5664, %v5582
      %v5666 = vadd.f32 %v5665, %v5584
      %v5667 = vadd.f32 %v5666, %v5586
      %v5668 = vadd.f32 %v5667, %v5588
      %v5669 = vadd.f32 %v5668, %v5590
      %v5670 = vadd.f32 %v5669, %v5592
      %v5671 = vadd.f32 %v5670, %v5594
      %v5672 = vadd.f32 %v5671, %v5596
      %v5673 = vadd.f32 %v5672, %v5598
      %v5674 = vadd.f32 %v5673, %v5600
      %v5675 = vadd.f32 %v5674, %v5602
      %v5676 = vadd.f32 %v5675, %v5604
      %v5677 = vadd.f32 %v5676, %v5606
      %v5678 = vadd.f32 %v5677, %v5608
      %v5679 = vadd.f32 %v5678, %v5610
      %v5680 = vadd.f32 %v5679, %v5612
      %v5681 = vadd.f32 %v5680, %v5614
      %v5682 = vadd.f32 %v5681, %v5616
      %v5683 = vadd.f32 %v5682, %v5618
      %v5684 = vadd.f32 %v5683, %v5620
      %v5685 = vrot.slane %v5684, 4
      %v5686 = vadd.f32 %v5684, %v5685
      %v5687 = vrot.slane %v5686, 2
      %v5688 = vadd.f32 %v5686, %v5687
      %v5689 = vrot.slane %v5688, 1
      %v5690 = vadd.f32 %v5688, %v5689
      %v5691 = vadd.f32 %v5495, %v5497
      %v5692 = vadd.f32 %v5691, %v5499
      %v5693 = vadd.f32 %v5692, %v5501
      %v5694 = vadd.f32 %v5693, %v5503
      %v5695 = vadd.f32 %v5694, %v5505
      %v5696 = vadd.f32 %v5695, %v5507
      %v5697 = vadd.f32 %v5696, %v5509
      %v5698 = vadd.f32 %v5697, %v5511
      %v5699 = vadd.f32 %v5698, %v5513
      %v5700 = vadd.f32 %v5699, %v5515
      %v5701 = vadd.f32 %v5700, %v5517
      %v5702 = vadd.f32 %v5701, %v5519
      %v5703 = vadd.f32 %v5702, %v5521
      %v5704 = vadd.f32 %v5703, %v5523
      %v5705 = vadd.f32 %v5704, %v5525
      %v5706 = vadd.f32 %v5705, %v5527
      %v5707 = vadd.f32 %v5706, %v5529
      %v5708 = vadd.f32 %v5707, %v5531
      %v5709 = vadd.f32 %v5708, %v5533
      %v5710 = vadd.f32 %v5709, %v5535
      %v5711 = vadd.f32 %v5710, %v5537
      %v5712 = vadd.f32 %v5711, %v5539
      %v5713 = vadd.f32 %v5712, %v5541
      %v5714 = vadd.f32 %v5713, %v5543
      %v5715 = vadd.f32 %v5714, %v5545
      %v5716 = vadd.f32 %v5715, %v5547
      %v5717 = vadd.f32 %v5716, %v5549
      %v5718 = vadd.f32 %v5717, %v5551
      %v5719 = vadd.f32 %v5718, %v5553
      %v5720 = vadd.f32 %v5719, %v5555
      %v5721 = vadd.f32 %v5720, %v5557
      %v5722 = vadd.f32 %v5721, %v5559
      %v5723 = vadd.f32 %v5722, %v5561
      %v5724 = vadd.f32 %v5723, %v5563
      %v5725 = vadd.f32 %v5724, %v5565
      %v5726 = vadd.f32 %v5725, %v5567
      %v5727 = vadd.f32 %v5726, %v5569
      %v5728 = vadd.f32 %v5727, %v5571
      %v5729 = vadd.f32 %v5728, %v5573
      %v5730 = vadd.f32 %v5729, %v5575
      %v5731 = vadd.f32 %v5730, %v5577
      %v5732 = vadd.f32 %v5731, %v5579
      %v5733 = vadd.f32 %v5732, %v5581
      %v5734 = vadd.f32 %v5733, %v5583
      %v5735 = vadd.f32 %v5734, %v5585
      %v5736 = vadd.f32 %v5735, %v5587
      %v5737 = vadd.f32 %v5736, %v5589
      %v5738 = vadd.f32 %v5737, %v5591
      %v5739 = vadd.f32 %v5738, %v5593
      %v5740 = vadd.f32 %v5739, %v5595
      %v5741 = vadd.f32 %v5740, %v5597
      %v5742 = vadd.f32 %v5741, %v5599
      %v5743 = vadd.f32 %v5742, %v5601
      %v5744 = vadd.f32 %v5743, %v5603
      %v5745 = vadd.f32 %v5744, %v5605
      %v5746 = vadd.f32 %v5745, %v5607
      %v5747 = vadd.f32 %v5746, %v5609
      %v5748 = vadd.f32 %v5747, %v5611
      %v5749 = vadd.f32 %v5748, %v5613
      %v5750 = vadd.f32 %v5749, %v5615
      %v5751 = vadd.f32 %v5750, %v5617
      %v5752 = vadd.f32 %v5751, %v5619
      %v5753 = vadd.f32 %v5752, %v5621
      %v5754 = vrot.slane %v5753, 4
      %v5755 = vadd.f32 %v5753, %v5754
      %v5756 = vrot.slane %v5755, 2
      %v5757 = vadd.f32 %v5755, %v5756
      %v5758 = vrot.slane %v5757, 1
      %v5759 = vadd.f32 %v5757, %v5758
      %v5762 = vrot.slane %v5759, 7
      %v5763 = vsel %vm3774, %v5690, %v5762
      %v5765 = vadd.f32 %v5493, %v5763
      %5766 = vst.msk [vmem:[%s443 + $0x6] sm:$0x3] %vm4067, %v5765
      %v5767 = vld [vmem:[%s431 + $0x6] sm:$0x3]
      %v5768 = vmax.f32 %v3129, %v3135
      %v5769 = vmax.f32 %v3132, %v3138
      %v5770 = vmax.f32 %v5768, %v3141
      %v5771 = vmax.f32 %v5769, %v3144
      %v5772 = vmax.f32 %v5770, %v3147
      %v5773 = vmax.f32 %v5771, %v3150
      %v5774 = vmax.f32 %v5772, %v3153
      %v5775 = vmax.f32 %v5773, %v3156
      %v5776 = vmax.f32 %v5774, %v3159
      %v5777 = vmax.f32 %v5775, %v3162
      %v5778 = vmax.f32 %v5776, %v3165
      %v5779 = vmax.f32 %v5777, %v3168
      %v5780 = vmax.f32 %v5778, %v3171
      %v5781 = vmax.f32 %v5779, %v3174
      %v5782 = vmax.f32 %v5780, %v3177
      %v5783 = vmax.f32 %v5781, %v3180
      %v5784 = vmax.f32 %v5782, %v3183
      %v5785 = vmax.f32 %v5783, %v3186
      %v5786 = vmax.f32 %v5784, %v3189
      %v5787 = vmax.f32 %v5785, %v3192
      %v5788 = vmax.f32 %v5786, %v3195
      %v5789 = vmax.f32 %v5787, %v3198
      %v5790 = vmax.f32 %v5788, %v3201
      %v5791 = vmax.f32 %v5789, %v3204
      %v5792 = vmax.f32 %v5790, %v3207
      %v5793 = vmax.f32 %v5791, %v3210
      %v5794 = vmax.f32 %v5792, %v3213
      %v5795 = vmax.f32 %v5793, %v3216
      %v5796 = vmax.f32 %v5794, %v3219
      %v5797 = vmax.f32 %v5795, %v3222
      %v5798 = vmax.f32 %v5796, %v3225
      %v5799 = vmax.f32 %v5797, %v3228
      %v5800 = vmax.f32 %v5798, %v3231
      %v5801 = vmax.f32 %v5799, %v3234
      %v5802 = vmax.f32 %v5800, %v3237
      %v5803 = vmax.f32 %v5801, %v3240
      %v5804 = vmax.f32 %v5802, %v3243
      %v5805 = vmax.f32 %v5803, %v3246
      %v5806 = vmax.f32 %v5804, %v3249
      %v5807 = vmax.f32 %v5805, %v3252
      %v5808 = vmax.f32 %v5806, %v3255
      %v5809 = vmax.f32 %v5807, %v3258
      %v5810 = vmax.f32 %v5808, %v3261
      %v5811 = vmax.f32 %v5809, %v3264
      %v5812 = vmax.f32 %v5810, %v3267
      %v5813 = vmax.f32 %v5811, %v3270
      %v5814 = vmax.f32 %v5812, %v3273
      %v5815 = vmax.f32 %v5813, %v3276
      %v5816 = vmax.f32 %v5814, %v3279
      %v5817 = vmax.f32 %v5815, %v3282
      %v5818 = vmax.f32 %v5816, %v3285
      %v5819 = vmax.f32 %v5817, %v3288
      %v5820 = vmax.f32 %v5818, %v3291
      %v5821 = vmax.f32 %v5819, %v3294
      %v5822 = vmax.f32 %v5820, %v3297
      %v5823 = vmax.f32 %v5821, %v3300
      %v5824 = vmax.f32 %v5822, %v3303
      %v5825 = vmax.f32 %v5823, %v3306
      %v5826 = vmax.f32 %v5824, %v3309
      %v5827 = vmax.f32 %v5825, %v3312
      %v5828 = vmax.f32 %v5826, %v3315
      %v5829 = vmax.f32 %v5827, %v3318
      %v5830 = vmax.f32 %v5828, %v5829
      %v5831 = vrot.slane %v5830, 4
      %v5832 = vmax.f32 %v5830, %v5831
      %v5833 = vrot.slane %v5832, 2
      %v5834 = vmax.f32 %v5832, %v5833
      %v5835 = vrot.slane %v5834, 1
      %v5836 = vmax.f32 %v5834, %v5835
      %v5837 = vmax.f32 %v3338, %v3344
      %v5838 = vmax.f32 %v3341, %v3347
      %v5839 = vmax.f32 %v5837, %v3350
      %v5840 = vmax.f32 %v5838, %v3353
      %v5841 = vmax.f32 %v5839, %v3356
      %v5842 = vmax.f32 %v5840, %v3359
      %v5843 = vmax.f32 %v5841, %v3362
      %v5844 = vmax.f32 %v5842, %v3365
      %v5845 = vmax.f32 %v5843, %v3368
      %v5846 = vmax.f32 %v5844, %v3371
      %v5847 = vmax.f32 %v5845, %v3374
      %v5848 = vmax.f32 %v5846, %v3377
      %v5849 = vmax.f32 %v5847, %v3380
      %v5850 = vmax.f32 %v5848, %v3383
      %v5851 = vmax.f32 %v5849, %v3386
      %v5852 = vmax.f32 %v5850, %v3389
      %v5853 = vmax.f32 %v5851, %v3392
      %v5854 = vmax.f32 %v5852, %v3395
      %v5855 = vmax.f32 %v5853, %v3398
      %v5856 = vmax.f32 %v5854, %v3401
      %v5857 = vmax.f32 %v5855, %v3404
      %v5858 = vmax.f32 %v5856, %v3407
      %v5859 = vmax.f32 %v5857, %v3410
      %v5860 = vmax.f32 %v5858, %v3413
      %v5861 = vmax.f32 %v5859, %v3416
      %v5862 = vmax.f32 %v5860, %v3419
      %v5863 = vmax.f32 %v5861, %v3422
      %v5864 = vmax.f32 %v5862, %v3425
      %v5865 = vmax.f32 %v5863, %v3428
      %v5866 = vmax.f32 %v5864, %v3431
      %v5867 = vmax.f32 %v5865, %v3434
      %v5868 = vmax.f32 %v5866, %v3437
      %v5869 = vmax.f32 %v5867, %v3440
      %v5870 = vmax.f32 %v5868, %v3443
      %v5871 = vmax.f32 %v5869, %v3446
      %v5872 = vmax.f32 %v5870, %v3449
      %v5873 = vmax.f32 %v5871, %v3452
      %v5874 = vmax.f32 %v5872, %v3455
      %v5875 = vmax.f32 %v5873, %v3458
      %v5876 = vmax.f32 %v5874, %v3461
      %v5877 = vmax.f32 %v5875, %v3464
      %v5878 = vmax.f32 %v5876, %v3467
      %v5879 = vmax.f32 %v5877, %v3470
      %v5880 = vmax.f32 %v5878, %v3473
      %v5881 = vmax.f32 %v5879, %v3476
      %v5882 = vmax.f32 %v5880, %v3479
      %v5883 = vmax.f32 %v5881, %v3482
      %v5884 = vmax.f32 %v5882, %v3485
      %v5885 = vmax.f32 %v5883, %v3488
      %v5886 = vmax.f32 %v5884, %v3491
      %v5887 = vmax.f32 %v5885, %v3494
      %v5888 = vmax.f32 %v5886, %v3497
      %v5889 = vmax.f32 %v5887, %v3500
      %v5890 = vmax.f32 %v5888, %v3503
      %v5891 = vmax.f32 %v5889, %v3506
      %v5892 = vmax.f32 %v5890, %v3509
      %v5893 = vmax.f32 %v5891, %v3512
      %v5894 = vmax.f32 %v5892, %v3515
      %v5895 = vmax.f32 %v5893, %v3518
      %v5896 = vmax.f32 %v5894, %v3521
      %v5897 = vmax.f32 %v5895, %v3524
      %v5898 = vmax.f32 %v5896, %v3527
      %v5899 = vmax.f32 %v5897, %v5898
      %v5900 = vrot.slane %v5899, 4
      %v5901 = vmax.f32 %v5899, %v5900
      %v5902 = vrot.slane %v5901, 2
      %v5903 = vmax.f32 %v5901, %v5902
      %v5904 = vrot.slane %v5903, 1
      %v5905 = vmax.f32 %v5903, %v5904
      %v5908 = vrot.slane %v5905, 7
      %v5909 = vsel %vm3774, %v5836, %v5908
      %v5911 = vmax.f32 %v5767, %v5909
      %5912 = vst.msk [vmem:[%s431 + $0x6] sm:$0x3] %vm4067, %v5911
      %v5913 = vld [vmem:[%s435 + $0x6] sm:$0x3]
      %v5914 = vmin.f32 %v3129, %v3135
      %v5915 = vmin.f32 %v3132, %v3138
      %v5916 = vmin.f32 %v5914, %v3141
      %v5917 = vmin.f32 %v5915, %v3144
      %v5918 = vmin.f32 %v5916, %v3147
      %v5919 = vmin.f32 %v5917, %v3150
      %v5920 = vmin.f32 %v5918, %v3153
      %v5921 = vmin.f32 %v5919, %v3156
      %v5922 = vmin.f32 %v5920, %v3159
      %v5923 = vmin.f32 %v5921, %v3162
      %v5924 = vmin.f32 %v5922, %v3165
      %v5925 = vmin.f32 %v5923, %v3168
      %v5926 = vmin.f32 %v5924, %v3171
      %v5927 = vmin.f32 %v5925, %v3174
      %v5928 = vmin.f32 %v5926, %v3177
      %v5929 = vmin.f32 %v5927, %v3180
      %v5930 = vmin.f32 %v5928, %v3183
      %v5931 = vmin.f32 %v5929, %v3186
      %v5932 = vmin.f32 %v5930, %v3189
      %v5933 = vmin.f32 %v5931, %v3192
      %v5934 = vmin.f32 %v5932, %v3195
      %v5935 = vmin.f32 %v5933, %v3198
      %v5936 = vmin.f32 %v5934, %v3201
      %v5937 = vmin.f32 %v5935, %v3204
      %v5938 = vmin.f32 %v5936, %v3207
      %v5939 = vmin.f32 %v5937, %v3210
      %v5940 = vmin.f32 %v5938, %v3213
      %v5941 = vmin.f32 %v5939, %v3216
      %v5942 = vmin.f32 %v5940, %v3219
      %v5943 = vmin.f32 %v5941, %v3222
      %v5944 = vmin.f32 %v5942, %v3225
      %v5945 = vmin.f32 %v5943, %v3228
      %v5946 = vmin.f32 %v5944, %v3231
      %v5947 = vmin.f32 %v5945, %v3234
      %v5948 = vmin.f32 %v5946, %v3237
      %v5949 = vmin.f32 %v5947, %v3240
      %v5950 = vmin.f32 %v5948, %v3243
      %v5951 = vmin.f32 %v5949, %v3246
      %v5952 = vmin.f32 %v5950, %v3249
      %v5953 = vmin.f32 %v5951, %v3252
      %v5954 = vmin.f32 %v5952, %v3255
      %v5955 = vmin.f32 %v5953, %v3258
      %v5956 = vmin.f32 %v5954, %v3261
      %v5957 = vmin.f32 %v5955, %v3264
      %v5958 = vmin.f32 %v5956, %v3267
      %v5959 = vmin.f32 %v5957, %v3270
      %v5960 = vmin.f32 %v5958, %v3273
      %v5961 = vmin.f32 %v5959, %v3276
      %v5962 = vmin.f32 %v5960, %v3279
      %v5963 = vmin.f32 %v5961, %v3282
      %v5964 = vmin.f32 %v5962, %v3285
      %v5965 = vmin.f32 %v5963, %v3288
      %v5966 = vmin.f32 %v5964, %v3291
      %v5967 = vmin.f32 %v5965, %v3294
      %v5968 = vmin.f32 %v5966, %v3297
      %v5969 = vmin.f32 %v5967, %v3300
      %v5970 = vmin.f32 %v5968, %v3303
      %v5971 = vmin.f32 %v5969, %v3306
      %v5972 = vmin.f32 %v5970, %v3309
      %v5973 = vmin.f32 %v5971, %v3312
      %v5974 = vmin.f32 %v5972, %v3315
      %v5975 = vmin.f32 %v5973, %v3318
      %v5976 = vmin.f32 %v5974, %v5975
      %v5977 = vrot.slane %v5976, 4
      %v5978 = vmin.f32 %v5976, %v5977
      %v5979 = vrot.slane %v5978, 2
      %v5980 = vmin.f32 %v5978, %v5979
      %v5981 = vrot.slane %v5980, 1
      %v5982 = vmin.f32 %v5980, %v5981
      %v5983 = vmin.f32 %v3338, %v3344
      %v5984 = vmin.f32 %v3341, %v3347
      %v5985 = vmin.f32 %v5983, %v3350
      %v5986 = vmin.f32 %v5984, %v3353
      %v5987 = vmin.f32 %v5985, %v3356
      %v5988 = vmin.f32 %v5986, %v3359
      %v5989 = vmin.f32 %v5987, %v3362
      %v5990 = vmin.f32 %v5988, %v3365
      %v5991 = vmin.f32 %v5989, %v3368
      %v5992 = vmin.f32 %v5990, %v3371
      %v5993 = vmin.f32 %v5991, %v3374
      %v5994 = vmin.f32 %v5992, %v3377
      %v5995 = vmin.f32 %v5993, %v3380
      %v5996 = vmin.f32 %v5994, %v3383
      %v5997 = vmin.f32 %v5995, %v3386
      %v5998 = vmin.f32 %v5996, %v3389
      %v5999 = vmin.f32 %v5997, %v3392
      %v6000 = vmin.f32 %v5998, %v3395
      %v6001 = vmin.f32 %v5999, %v3398
      %v6002 = vmin.f32 %v6000, %v3401
      %v6003 = vmin.f32 %v6001, %v3404
      %v6004 = vmin.f32 %v6002, %v3407
      %v6005 = vmin.f32 %v6003, %v3410
      %v6006 = vmin.f32 %v6004, %v3413
      %v6007 = vmin.f32 %v6005, %v3416
      %v6008 = vmin.f32 %v6006, %v3419
      %v6009 = vmin.f32 %v6007, %v3422
      %v6010 = vmin.f32 %v6008, %v3425
      %v6011 = vmin.f32 %v6009, %v3428
      %v6012 = vmin.f32 %v6010, %v3431
      %v6013 = vmin.f32 %v6011, %v3434
      %v6014 = vmin.f32 %v6012, %v3437
      %v6015 = vmin.f32 %v6013, %v3440
      %v6016 = vmin.f32 %v6014, %v3443
      %v6017 = vmin.f32 %v6015, %v3446
      %v6018 = vmin.f32 %v6016, %v3449
      %v6019 = vmin.f32 %v6017, %v3452
      %v6020 = vmin.f32 %v6018, %v3455
      %v6021 = vmin.f32 %v6019, %v3458
      %v6022 = vmin.f32 %v6020, %v3461
      %v6023 = vmin.f32 %v6021, %v3464
      %v6024 = vmin.f32 %v6022, %v3467
      %v6025 = vmin.f32 %v6023, %v3470
      %v6026 = vmin.f32 %v6024, %v3473
      %v6027 = vmin.f32 %v6025, %v3476
      %v6028 = vmin.f32 %v6026, %v3479
      %v6029 = vmin.f32 %v6027, %v3482
      %v6030 = vmin.f32 %v6028, %v3485
      %v6031 = vmin.f32 %v6029, %v3488
      %v6032 = vmin.f32 %v6030, %v3491
      %v6033 = vmin.f32 %v6031, %v3494
      %v6034 = vmin.f32 %v6032, %v3497
      %v6035 = vmin.f32 %v6033, %v3500
      %v6036 = vmin.f32 %v6034, %v3503
      %v6037 = vmin.f32 %v6035, %v3506
      %v6038 = vmin.f32 %v6036, %v3509
      %v6039 = vmin.f32 %v6037, %v3512
      %v6040 = vmin.f32 %v6038, %v3515
      %v6041 = vmin.f32 %v6039, %v3518
      %v6042 = vmin.f32 %v6040, %v3521
      %v6043 = vmin.f32 %v6041, %v3524
      %v6044 = vmin.f32 %v6042, %v3527
      %v6045 = vmin.f32 %v6043, %v6044
      %v6046 = vrot.slane %v6045, 4
      %v6047 = vmin.f32 %v6045, %v6046
      %v6048 = vrot.slane %v6047, 2
      %v6049 = vmin.f32 %v6047, %v6048
      %v6050 = vrot.slane %v6049, 1
      %v6051 = vmin.f32 %v6049, %v6050
      %v6054 = vrot.slane %v6051, 7
      %v6055 = vsel %vm3774, %v5982, %v6054
      %v6057 = vmin.f32 %v5913, %v6055
      %6058 = vst.msk [vmem:[%s435 + $0x6] sm:$0x3] %vm4067, %v6057
      %p6059 = scmp.lt.s32.totalorder %s27, 1
      %s6060 = scalar_select %p6059, %s27, 1
      %s6061 = smul.addr %s6060, 8
      %s6062 = scalar_lea.vmem %s8, %s6061
      %p6063 = scmp.lt.s32.totalorder %s27, 1
      %s6064 = scalar_select %p6063, %s27, 1
      %s6065 = smul.addr %s6064, 8
      %s6066 = scalar_lea.vmem %s9, %s6065
      %p6067 = scmp.lt.s32.totalorder %s27, 1
      %s6068 = scalar_select %p6067, %s27, 1
      %s6069 = smul.addr %s6068, 8
      %s6070 = scalar_lea.vmem %s10, %s6069
      %p6071 = scmp.lt.s32.totalorder %s27, 1
      %s6072 = scalar_select %p6071, %s27, 1
      %s6073 = smul.addr %s6072, 8
      %s6074 = scalar_lea.vmem %s11, %s6073
      // Predicated region
      $region57: #{stn3d_forward.4} parent=51 // pred_check
        %p6075 = pneg %p228
      $region58: #{stn3d_forward.4} parent=51 // pred_check_branch
        %6077 = sbr.rel (%p6075) target = $region60
      $region59: #{stn3d_forward.4} parent=51 // pred_region
        _
      $region60: #{stn3d_forward.4} parent=51 // pred_fallthru
        _
      // Predicated region
      $region61: #{stn3d_forward.4} parent=51 // pred_check
        %p6078 = pneg %p254
      $region62: #{stn3d_forward.4} parent=51 // pred_check_branch
        %6080 = sbr.rel (%p6078) target = $region64
      $region63: #{stn3d_forward.4} parent=51 // pred_region
        _
      $region64: #{stn3d_forward.4} parent=51 // pred_fallthru
        _
      // Predicated region
      $region65: #{stn3d_forward.4} parent=51 // pred_check
        %p6081 = pneg %p280
      $region66: #{stn3d_forward.4} parent=51 // pred_check_branch
        %6083 = sbr.rel (%p6081) target = $region68
      $region67: #{stn3d_forward.4} parent=51 // pred_region
        _
      $region68: #{stn3d_forward.4} parent=51 // pred_fallthru
        _
      // Predicated region
      $region69: #{stn3d_forward.4} parent=51 // pred_check
        %p6084 = pneg %p306
      $region70: #{stn3d_forward.4} parent=51 // pred_check_branch
        %6086 = sbr.rel (%p6084) target = $region72
      $region71: #{stn3d_forward.4} parent=51 // pred_region
        _
      $region72: #{stn3d_forward.4} parent=51 // pred_fallthru
        _
    $region52: #{stn3d_forward.4} parent=5 // pred_fallthru
      _
    %p6087 = scmp.le.s32.totalorder 2, %s18
    // Predicated region
    $region73: #{stn3d_forward.4} parent=5 // pred_check
      %p6088 = pneg %p6087
    $region74: #{stn3d_forward.4} parent=5 // pred_check_branch
      %6090 = sbr.rel (%p6088) target = $region76
    $region75: #{stn3d_forward.4} parent=5 // pred_region
      %s6091 = ssub.s32 %s18, 2
      // Predicated region
      $region77: #{stn3d_forward.4} parent=75 // pred_check
        %p6092 = pneg %p234
      $region78: #{stn3d_forward.4} parent=75 // pred_check_branch
        %6094 = sbr.rel (%p6092) target = $region80
      $region79: #{stn3d_forward.4} parent=75 // pred_region
        %p6095 = scmp.lt.s32.totalorder %s29, 1
        %s6096 = scalar_select %p6095, %s29, 1
        %s6097 = smul.addr %s6096, 8
        %s6098 = scalar_lea.vmem %s8, %s6097
      $region80: #{stn3d_forward.4} parent=75 // pred_fallthru
        _
      // Predicated region
      $region81: #{stn3d_forward.4} parent=75 // pred_check
        %p6099 = pneg %p260
      $region82: #{stn3d_forward.4} parent=75 // pred_check_branch
        %6101 = sbr.rel (%p6099) target = $region84
      $region83: #{stn3d_forward.4} parent=75 // pred_region
        %p6102 = scmp.lt.s32.totalorder %s29, 1
        %s6103 = scalar_select %p6102, %s29, 1
        %s6104 = smul.addr %s6103, 8
        %s6105 = scalar_lea.vmem %s9, %s6104
      $region84: #{stn3d_forward.4} parent=75 // pred_fallthru
        _
      // Predicated region
      $region85: #{stn3d_forward.4} parent=75 // pred_check
        %p6106 = pneg %p286
      $region86: #{stn3d_forward.4} parent=75 // pred_check_branch
        %6108 = sbr.rel (%p6106) target = $region88
      $region87: #{stn3d_forward.4} parent=75 // pred_region
        %p6109 = scmp.lt.s32.totalorder %s29, 1
        %s6110 = scalar_select %p6109, %s29, 1
        %s6111 = smul.addr %s6110, 8
        %s6112 = scalar_lea.vmem %s10, %s6111
      $region88: #{stn3d_forward.4} parent=75 // pred_fallthru
        _
      // Predicated region
      $region89: #{stn3d_forward.4} parent=75 // pred_check
        %p6113 = pneg %p312
      $region90: #{stn3d_forward.4} parent=75 // pred_check_branch
        %6115 = sbr.rel (%p6113) target = $region92
      $region91: #{stn3d_forward.4} parent=75 // pred_region
        %p6116 = scmp.lt.s32.totalorder %s29, 1
        %s6117 = scalar_select %p6116, %s29, 1
        %s6118 = smul.addr %s6117, 8
        %s6119 = scalar_lea.vmem %s11, %s6118
      $region92: #{stn3d_forward.4} parent=75 // pred_fallthru
        _
    $region76: #{stn3d_forward.4} parent=5 // pred_fallthru
      _
  $region6: #{stn3d_forward.4} parent=0 // loop_footer
    %s22 = sadd.s32 1, %s18
  $region7: #{stn3d_forward.4} parent=0 // loop_footer_branch
    %17 = sbr.rel target = $region3
  $region8: #{stn3d_forward.4} parent=0 // loop_exit
    _

</llo_original>
